<compile_context>
chip_gen: v6e
topology: v6e:2x2x1
jax: 0.10.0
libtpu: 0.0.40
codegen_flags: <defaults>
</compile_context>

<pallas_src>
import functools

import jax
import jax.numpy as jnp
from jax.experimental import pallas as pl
from jax.experimental.pallas import tpu as pltpu


def _vmem_limit_bytes():
    """Generation-aware scoped-VMEM budget (96 MiB on 128-MiB parts, 48 MiB on v7x)."""
    cap = None
    try:
        info = pltpu.get_tpu_info()
        for name in ("vmem_capacity_bytes", "vmem_bytes", "vmem_size_bytes"):
            cap = getattr(info, name, None)
            if cap:
                break
    except Exception:
        cap = None
    if not cap:
        cap = 64 * 1024 * 1024  # safe fallback (v7x-sized)
    return min(int(cap * 0.75), 100 * 1024 * 1024)


VMEM_LIMIT = _vmem_limit_bytes()


# ------------------------------ small helpers ------------------------------

def _round_up(x, m):
    return (x + m - 1) // m * m


def _pad_dim(a, axis, target):
    pad = target - a.shape[axis]
    if pad == 0:
        return a
    cfg = [(0, 0)] * a.ndim
    cfg[axis] = (0, pad)
    return jnp.pad(a, cfg)


def _largest_divisor_leq(n, cap):
    for d in range(min(cap, n), 0, -1):
        if n % d == 0:
            return d
    return 1


def _gelu_tanh(x):
    # TODO(synk): nn.GELU default is the exact erf GELU; the tanh approximation
    # is used here so the activation stays a cheap fused epilogue.
    c = 0.7978845608028654  # sqrt(2/pi)
    return 0.5 * x * (1.0 + jnp.tanh(c * (x + 0.044715 * x * x * x)))


# ----------------------------- Pallas kernels ------------------------------

def _matmul_kernel(*refs, activation, has_residual, has_ln, ln_eps):
    it = iter(refs)
    x_ref = next(it)
    if has_ln:
        g_ref = next(it)
        be_ref = next(it)
    w_ref = next(it)
    b_ref = next(it)
    r_ref = next(it) if has_residual else None
    o_ref = next(it)

    x = x_ref[...]
    if has_ln:
        xf = x.astype(jnp.float32)
        mu = jnp.mean(xf, axis=-1, keepdims=True)
        var = jnp.mean(jnp.square(xf - mu), axis=-1, keepdims=True)
        xf = (xf - mu) * jax.lax.rsqrt(var + ln_eps)
        x = (xf * g_ref[...] + be_ref[...]).astype(jnp.bfloat16)
    acc = jnp.dot(x, w_ref[...], preferred_element_type=jnp.float32)
    acc = acc + b_ref[...]
    if activation == "gelu":
        acc = _gelu_tanh(acc)
    if r_ref is not None:
        acc = acc + r_ref[...].astype(jnp.float32)
    o_ref[...] = acc.astype(o_ref.dtype)


def matmul_bias(x, w, b, *, activation=None, residual=None, ln=None,
                out_dtype=jnp.bfloat16, bm_max=512, bn_max=2048):
    """x:(M,K) @ w:(K,N) + b with optional fused LayerNorm prologue (over K),
    GELU, and residual add.

    bf16 MXU inputs, f32 accumulation.  Grid is (N-tiles, M-tiles) with the M
    axis innermost so the weight block is re-used across all M tiles (DMA'd
    once per N tile).  M padded to a multiple of the row tile, N to a
    multiple of 128 (lane-dense stores); result sliced back to (M, N).
    """
    M, K = x.shape
    N = w.shape[1]
    out_bytes = jnp.dtype(out_dtype).itemsize
    bn = min(bn_max, _round_up(N, 128))
    bm = min(bm_max, _round_up(M, 8))

    budget = VMEM_LIMIT // 2

    def footprint(bm_, bn_):
        fp = 2 * (bm_ * K * 2) + 2 * (K * bn_ * 2) + 2 * (bn_ * 4)
        fp += 2 * (bm_ * bn_ * out_bytes)
        if residual is not None:
            fp += 2 * (bm_ * bn_ * 2)
        fp += bm_ * max(bn_, K) * 4  # rough accumulator / LN temporaries
        return fp

    while footprint(bm, bn) > budget and bm > 64:
        bm = max(64, bm // 2)
    while footprint(bm, bn) > budget and bn > 256:
        bn = max(256, _round_up(bn // 2, 128))

    Mp = _round_up(M, bm)
    Np = _round_up(N, bn)

    xp = _pad_dim(x.astype(jnp.bfloat16), 0, Mp)
    wp = _pad_dim(w.astype(jnp.bfloat16), 1, Np)
    bp = _pad_dim(b.astype(jnp.float32).reshape(1, N), 1, Np)

    operands = [xp]
    in_specs = [pl.BlockSpec((bm, K), lambda j, i: (i, 0))]
    has_ln = ln is not None
    if has_ln:
        gamma, beta, eps = ln
        operands += [gamma.astype(jnp.float32).reshape(1, K),
                     beta.astype(jnp.float32).reshape(1, K)]
        in_specs += [pl.BlockSpec((1, K), lambda j, i: (0, 0)),
                     pl.BlockSpec((1, K), lambda j, i: (0, 0))]
    else:
        eps = 1e-5
    operands += [wp, bp]
    in_specs += [pl.BlockSpec((K, bn), lambda j, i: (0, j)),
                 pl.BlockSpec((1, bn), lambda j, i: (0, j))]
    has_residual = residual is not None
    if has_residual:
        rp = _pad_dim(_pad_dim(residual.astype(jnp.bfloat16), 0, Mp), 1, Np)
        operands.append(rp)
        in_specs.append(pl.BlockSpec((bm, bn), lambda j, i: (i, j)))

    out = pl.pallas_call(
        functools.partial(_matmul_kernel, activation=activation,
                          has_residual=has_residual, has_ln=has_ln,
                          ln_eps=float(eps)),
        out_shape=jax.ShapeDtypeStruct((Mp, Np), out_dtype),
        grid=(Np // bn, Mp // bm),
        in_specs=in_specs,
        out_specs=pl.BlockSpec((bm, bn), lambda j, i: (i, j)),
        compiler_params=pltpu.CompilerParams(
            dimension_semantics=("parallel", "parallel"),
            vmem_limit_bytes=VMEM_LIMIT),
    )(*operands)
    if Mp != M or Np != N:
        out = out[:M, :N]
    return out


def _layernorm_kernel(x_ref, g_ref, b_ref, o_ref, *, eps):
    x = x_ref[...].astype(jnp.float32)
    mu = jnp.mean(x, axis=-1, keepdims=True)
    var = jnp.mean(jnp.square(x - mu), axis=-1, keepdims=True)
    y = (x - mu) * jax.lax.rsqrt(var + eps)
    o_ref[...] = (y * g_ref[...] + b_ref[...]).astype(o_ref.dtype)


def layernorm(x2d, gamma, beta, eps, *, out_dtype=jnp.bfloat16, bm_max=1024):
    """Row-wise LayerNorm over the last dim of a (M, D) array (neck / fallback)."""
    M, D = x2d.shape
    bm = min(bm_max, _round_up(M, 8))
    Mp = _round_up(M, bm)
    xp = _pad_dim(x2d, 0, Mp)
    out = pl.pallas_call(
        functools.partial(_layernorm_kernel, eps=eps),
        out_shape=jax.ShapeDtypeStruct((Mp, D), out_dtype),
        grid=(Mp // bm,),
        in_specs=[
            pl.BlockSpec((bm, D), lambda i: (i, 0)),
            pl.BlockSpec((1, D), lambda i: (0, 0)),
            pl.BlockSpec((1, D), lambda i: (0, 0)),
        ],
        out_specs=pl.BlockSpec((bm, D), lambda i: (i, 0)),
        compiler_params=pltpu.CompilerParams(
            dimension_semantics=("parallel",),
            vmem_limit_bytes=VMEM_LIMIT),
    )(xp, gamma.reshape(1, D).astype(jnp.float32),
      beta.reshape(1, D).astype(jnp.float32))
    return out[:M] if Mp != M else out


def _flash_attn_kernel(q_ref, k_ref, v_ref, o_ref, m_ref, l_ref, acc_ref,
                       *, scale, n_kv, bkv, mask_kv):
    t = pl.program_id(2)

    @pl.when(t == 0)
    def _():
        m_ref[...] = jnp.full(m_ref.shape, -jnp.inf, jnp.float32)
        l_ref[...] = jnp.zeros(l_ref.shape, jnp.float32)
        acc_ref[...] = jnp.zeros(acc_ref.shape, jnp.float32)

    q = q_ref[...]                              # (bb, bq, Dh) bf16
    k = k_ref[...]                              # (bb, bkv, Dh) bf16
    s = jnp.einsum('bqd,bkd->bqk', q, k,
                   preferred_element_type=jnp.float32) * scale
    if mask_kv:                                 # only emitted when padding exists
        col = t * bkv + jax.lax.broadcasted_iota(jnp.int32, s.shape, 2)
        s = jnp.where(col < n_kv, s, -1e30)

    m_prev = m_ref[...]
    m_new = jnp.maximum(m_prev, jnp.max(s, axis=-1, keepdims=True))
    alpha = jnp.exp(m_prev - m_new)
    p = jnp.exp(s - m_new)
    l_ref[...] = alpha * l_ref[...] + jnp.sum(p, axis=-1, keepdims=True)
    acc_ref[...] = alpha * acc_ref[...] + jnp.einsum(
        'bqk,bkd->bqd', p.astype(v_ref.dtype), v_ref[...],
        preferred_element_type=jnp.float32)
    m_ref[...] = m_new

    @pl.when(t == pl.num_programs(2) - 1)
    def _():
        o_ref[...] = (acc_ref[...] *
                      pl.reciprocal(l_ref[...], approx=True)).astype(o_ref.dtype)


def flash_attention(q, k, v, scale, *, bq_max=256, bkv_max=512):
    """q,k,v: (BH, N, Dh).  Online-softmax flash attention.

    Batched over the leading (batch*window*head) axis (bb slices per grid
    step), Q tiled along a 'parallel' axis, KV tiled along the innermost
    'arbitrary' axis with m/l/acc scratch in VMEM.  The padded-KV mask is
    only emitted when KV padding actually exists.
    """
    BH, N, Dh = q.shape
    bq = min(bq_max, _round_up(N, 8))
    bkv = min(bkv_max, _round_up(N, 128))
    Nqp = _round_up(N, bq)
    Nkp = _round_up(N, bkv)
    bb_cap = 8 if N <= 1024 else 4              # bound S/P temporaries on v7x
    bb = _largest_divisor_leq(BH, bb_cap)

    qp = _pad_dim(q.astype(jnp.bfloat16), 1, Nqp)
    kp = _pad_dim(k.astype(jnp.bfloat16), 1, Nkp)
    vp = _pad_dim(v.astype(jnp.bfloat16), 1, Nkp)
    mask_kv = Nkp != N

    out = pl.pallas_call(
        functools.partial(_flash_attn_kernel, scale=scale, n_kv=N, bkv=bkv,
                          mask_kv=mask_kv),
        out_shape=jax.ShapeDtypeStruct((BH, Nqp, Dh), jnp.bfloat16),
        grid=(BH // bb, Nqp // bq, Nkp // bkv),
        in_specs=[
            pl.BlockSpec((bb, bq, Dh), lambda b, i, t: (b, i, 0)),
            pl.BlockSpec((bb, bkv, Dh), lambda b, i, t: (b, t, 0)),
            pl.BlockSpec((bb, bkv, Dh), lambda b, i, t: (b, t, 0)),
        ],
        out_specs=pl.BlockSpec((bb, bq, Dh), lambda b, i, t: (b, i, 0)),
        scratch_shapes=[
            pltpu.VMEM((bb, bq, 1), jnp.float32),
            pltpu.VMEM((bb, bq, 1), jnp.float32),
            pltpu.VMEM((bb, bq, Dh), jnp.float32),
        ],
        compiler_params=pltpu.CompilerParams(
            dimension_semantics=("parallel", "parallel", "arbitrary"),
            vmem_limit_bytes=VMEM_LIMIT),
    )(qp, kp, vp)
    return out[:, :N, :] if Nqp != N else out


def _conv3x3_kernel(x0_ref, x1_ref, x2_ref, w_ref, o_ref, *, W):
    # x*_ref: (th, W+2, Cin) row-shifted slabs; w_ref: (9, Cin, Cout) resident.
    xs = (x0_ref, x1_ref, x2_ref)
    cin = w_ref.shape[1]
    cout = w_ref.shape[2]
    th = o_ref.shape[0]
    acc = jnp.zeros((th * W, cout), jnp.float32)
    for kh in range(3):
        x = xs[kh][...]
        for kw in range(3):
            xt = x[:, kw:kw + W, :].reshape(th * W, cin)
            acc = acc + jnp.dot(xt, w_ref[kh * 3 + kw],
                                preferred_element_type=jnp.float32)
    o_ref[...] = acc.reshape(o_ref.shape).astype(o_ref.dtype)


def conv3x3(y, w):
    """3x3 conv, padding=1, no bias: all 9 tap weights resident in VMEM and
    th output rows per grid step (9 accumulating in-kernel matmuls).
    y: (B, H, W, Cin) channels-last; w: (Cout, Cin, 3, 3) (PyTorch layout)."""
    B, H, W, Cin = y.shape
    Cout = w.shape[0]
    th = _largest_divisor_leq(H, 8)
    yp = jnp.pad(y, ((0, 0), (1, 1), (1, 1), (0, 0))).astype(jnp.bfloat16)
    shifts = [yp[:, s:s + H, :, :] for s in range(3)]       # 3 row-shifted slabs
    wt = jnp.transpose(w, (2, 3, 1, 0)).reshape(9, Cin, Cout).astype(jnp.bfloat16)
    return pl.pallas_call(
        functools.partial(_conv3x3_kernel, W=W),
        out_shape=jax.ShapeDtypeStruct((B, H, W, Cout), jnp.bfloat16),
        grid=(B, H // th),
        in_specs=[
            pl.BlockSpec((None, th, W + 2, Cin), lambda b, h: (b, h, 0, 0)),
            pl.BlockSpec((None, th, W + 2, Cin), lambda b, h: (b, h, 0, 0)),
            pl.BlockSpec((None, th, W + 2, Cin), lambda b, h: (b, h, 0, 0)),
            pl.BlockSpec((9, Cin, Cout), lambda b, h: (0, 0, 0)),
        ],
        out_specs=pl.BlockSpec((None, th, W, Cout), lambda b, h: (b, h, 0, 0)),
        compiler_params=pltpu.CompilerParams(
            dimension_semantics=("parallel", "parallel"),
            vmem_limit_bytes=VMEM_LIMIT),
    )(*shifts, wt)


# ------------------------------- model glue --------------------------------

def window_partition(x, ws):
    B, H, W, C = x.shape
    pad_h = (ws - H % ws) % ws
    pad_w = (ws - W % ws) % ws
    if pad_h or pad_w:
        x = jnp.pad(x, ((0, 0), (0, pad_h), (0, pad_w), (0, 0)))
    Hp, Wp = H + pad_h, W + pad_w
    x = x.reshape(B, Hp // ws, ws, Wp // ws, ws, C)
    windows = jnp.transpose(x, (0, 1, 3, 2, 4, 5)).reshape(-1, ws, ws, C)
    return windows, (Hp, Wp)


def window_unpartition(windows, ws, pad_hw, hw):
    Hp, Wp = pad_hw
    H, W = hw
    B = windows.shape[0] // (Hp * Wp // ws // ws)
    x = windows.reshape(B, Hp // ws, Wp // ws, ws, ws, -1)
    x = jnp.transpose(x, (0, 1, 3, 2, 4, 5)).reshape(B, Hp, Wp, -1)
    if Hp > H or Wp > W:
        x = x[:, :H, :W, :]
    return x


def patch_embed(x_nchw, w, b, patch, pos_embed=None):
    """Conv2d(kernel=stride=patch) as patch-extract + matmul; pos_embed add is
    fused into the matmul epilogue.  NCHW -> NHWC bf16."""
    B, C, H, W = x_nchw.shape
    Hp, Wp = H // patch, W // patch
    xp = x_nchw.reshape(B, C, Hp, patch, Wp, patch)
    xp = jnp.transpose(xp, (0, 2, 4, 1, 3, 5)).reshape(B * Hp * Wp, C * patch * patch)
    wf = w.reshape(w.shape[0], -1).T       # (C*p*p, E), flatten order (c, ph, pw)
    residual = None
    if pos_embed is not None:
        E = pos_embed.shape[-1]
        residual = jnp.broadcast_to(
            pos_embed.reshape(1, Hp * Wp, E), (B, Hp * Wp, E)
        ).reshape(B * Hp * Wp, E).astype(jnp.bfloat16)
    out = matmul_bias(xp, wf, b, residual=residual)
    return out.reshape(B, Hp, Wp, -1)


def attention(xw, p, num_heads, ln=None, residual=None):
    """xw: (Bw, T, D) -> (Bw, T, D).  If `ln` is given, LayerNorm is fused into
    the qkv matmul prologue; if `residual` ((Bw*T, D)) is given, it is fused
    into the output-projection epilogue."""
    Bw, T, D = xw.shape
    head_dim = D // num_heads
    scale = head_dim ** (-0.5)
    qkv = matmul_bias(xw.reshape(Bw * T, D), p["qkv_w"], p["qkv_b"], ln=ln)
    qkv = qkv.reshape(Bw, T, 3, num_heads, head_dim)
    qkv = jnp.transpose(qkv, (2, 0, 3, 1, 4)).reshape(3, Bw * num_heads, T, head_dim)
    q, k, v = qkv[0], qkv[1], qkv[2]
    o = flash_attention(q, k, v, scale)                         # (Bw*nh, T, hd)
    o = o.reshape(Bw, num_heads, T, head_dim)
    o = jnp.transpose(o, (0, 2, 1, 3)).reshape(Bw * T, D)
    o = matmul_bias(o, p["proj_w"], p["proj_b"], residual=residual)
    return o.reshape(Bw, T, D)


def transformer_block(x, p, num_heads, window_size, eps=1e-5):
    B, H, W, D = x.shape
    ln1 = (p["norm1_g"], p["norm1_b"], eps)
    if window_size > 0:
        ws = window_size
        needs_pad = (H % ws != 0) or (W % ws != 0)
        if needs_pad:
            # padding tokens must be zero *after* norm1, so LN cannot be fused
            # into the qkv matmul in this case.
            xn = layernorm(x.reshape(-1, D), p["norm1_g"], p["norm1_b"],
                           eps).reshape(B, H, W, D)
            xw, pad_hw = window_partition(xn, ws)
            ln_qkv = None
        else:
            xw, pad_hw = window_partition(x, ws)     # LN fused into qkv matmul
            ln_qkv = ln1
        nw = xw.shape[0]
        xa = attention(xw.reshape(nw, ws * ws, D), p, num_heads, ln=ln_qkv)
        xa = window_unpartition(xa.reshape(nw, ws, ws, D), ws, pad_hw, (H, W))
        x = x + xa
    else:
        N = H * W
        xa = attention(x.reshape(B, N, D), p, num_heads, ln=ln1,
                       residual=x.reshape(-1, D))    # residual fused in proj
        x = xa.reshape(B, H, W, D)

    xf = x.reshape(-1, D)
    ln2 = (p["norm2_g"], p["norm2_b"], eps)
    h = matmul_bias(xf, p["mlp_w1"], p["mlp_b1"], activation="gelu", ln=ln2)
    out = matmul_bias(h, p["mlp_w2"], p["mlp_b2"], residual=xf)
    # TODO(synk): AdapterLayer branch not implemented (adapter_train=False path).
    return out.reshape(B, H, W, D)


def neck(x, p):
    """x: (B, H, W, E) -> (B, out_chans, H, W) NCHW like the PyTorch module."""
    B, H, W, E = x.shape
    C = p["conv1_w"].shape[0]
    w1 = p["conv1_w"].reshape(C, E).T                                    # 1x1 conv
    y = matmul_bias(x.reshape(-1, E), w1, jnp.zeros((C,), jnp.float32))
    y = layernorm(y, p["ln1_g"], p["ln1_b"], 1e-6).reshape(B, H, W, C)   # LayerNorm2d
    z = conv3x3(y, p["conv2_w"])                                         # 3x3 conv
    z = layernorm(z.reshape(-1, C), p["ln2_g"], p["ln2_b"], 1e-6,
                  out_dtype=jnp.float32).reshape(B, H, W, C)
    return jnp.transpose(z, (0, 3, 1, 2))


def image_encoder_vit(x, params, cfg):
    x = patch_embed(x, params["patch_w"], params["patch_b"], cfg["patch_size"],
                    pos_embed=params["pos_embed"])
    for i, bp in enumerate(params["blocks"]):
        ws = 0 if i in cfg["global_attn_indexes"] else cfg["window_size"]
        # TODO(synk): use_rel_pos (decomposed relative position bias) not
        # implemented — default config has use_rel_pos=False.
        x = transformer_block(x, bp, cfg["num_heads"], ws)
    return neck(x, params["neck"])


# ------------------------------ parameter init ------------------------------

def init_params(key, cfg):
    E = cfg["embed_dim"]
    C = cfg["in_chans"]
    p = cfg["patch_size"]
    mlp = int(E * cfg["mlp_ratio"])
    O = cfg["out_chans"]
    Hp = cfg["img_size"] // p
    keys = iter(jax.random.split(key, 64))

    def w(shape, scale=0.02):
        return (scale * jax.random.normal(next(keys), shape)).astype(jnp.float32)

    params = {
        "patch_w": w((E, C, p, p)),
        "patch_b": jnp.zeros((E,), jnp.float32),
        "pos_embed": w((1, Hp, Hp, E)),
        "blocks": [],
        "neck": {
            "conv1_w": w((O, E, 1, 1)),
            "ln1_g": jnp.ones((O,), jnp.float32),
            "ln1_b": jnp.zeros((O,), jnp.float32),
            "conv2_w": w((O, O, 3, 3)),
            "ln2_g": jnp.ones((O,), jnp.float32),
            "ln2_b": jnp.zeros((O,), jnp.float32),
        },
    }
    for _ in range(cfg["depth"]):
        params["blocks"].append({
            "norm1_g": jnp.ones((E,), jnp.float32),
            "norm1_b": jnp.zeros((E,), jnp.float32),
            "qkv_w": w((E, 3 * E)),
            "qkv_b": jnp.zeros((3 * E,), jnp.float32),
            "proj_w": w((E, E)),
            "proj_b": jnp.zeros((E,), jnp.float32),
            "norm2_g": jnp.ones((E,), jnp.float32),
            "norm2_b": jnp.zeros((E,), jnp.float32),
            "mlp_w1": w((E, mlp)),
            "mlp_b1": jnp.zeros((mlp,), jnp.float32),
            "mlp_w2": w((mlp, E)),
            "mlp_b2": jnp.zeros((E,), jnp.float32),
        })
    return params


# ----------------------------------- main -----------------------------------

if __name__ == "__main__":
    cfg = dict(
        img_size=32,
        patch_size=8,
        in_chans=3,
        embed_dim=32,
        depth=2,
        num_heads=4,
        mlp_ratio=4.0,
        out_chans=16,
        window_size=2,
        global_attn_indexes=(1,),
    )
    params = init_params(jax.random.PRNGKey(1), cfg)
    x = jax.random.normal(
        jax.random.PRNGKey(0),
        (2, cfg["in_chans"], cfg["img_size"], cfg["img_size"]),
        jnp.float32,
    )

    fwd = jax.jit(lambda xx, pp: image_encoder_vit(xx, pp, cfg))
    out = fwd(x, params)
    jax.block_until_ready(out)

    Hp = cfg["img_size"] // cfg["patch_size"]
    assert out.shape == (2, cfg["out_chans"], Hp, Hp), out.shape
    assert out.dtype == jnp.float32
    assert bool(jnp.all(jnp.isfinite(out)))
    print("KERNEL_OK")
</pallas_src>

<mosaic_0001>
module attributes {stable_mosaic.version = 11 : i64} {
  func.func @_matmul_kernel(%arg0: i32, %arg1: i32, %arg2: memref<32x192xbf16, #tpu.memory_space<vmem>>, %arg3: memref<192x128xbf16, #tpu.memory_space<vmem>>, %arg4: memref<1x128xf32, #tpu.memory_space<vmem>>, %arg5: memref<32x128xbf16, #tpu.memory_space<vmem>>, %arg6: memref<32x128xbf16, #tpu.memory_space<vmem>>) attributes {dimension_semantics = [#tpu.dimension_semantics<parallel>, #tpu.dimension_semantics<parallel>], iteration_bounds = array<i64: 1, 1>, scalar_prefetch = 0 : i64, scratch_operands = 0 : i64, tpu.core_type = #tpu.core_type<tc>, window_params = [{transform_indices = @transform_0, window_bounds = array<i64: 32, 192>}, {transform_indices = @transform_1, window_bounds = array<i64: 192, 128>}, {transform_indices = @transform_2, window_bounds = array<i64: 1, 128>}, {transform_indices = @transform_3, window_bounds = array<i64: 32, 128>}, {transform_indices = @transform_4, window_bounds = array<i64: 32, 128>}]} {
    %c0 = arith.constant 0 : index
    %c0_0 = arith.constant 0 : index
    %0 = vector.load %arg2[%c0, %c0_0] : memref<32x192xbf16, #tpu.memory_space<vmem>>, vector<32x192xbf16>
    %c0_1 = arith.constant 0 : index
    %c0_2 = arith.constant 0 : index
    %1 = vector.load %arg3[%c0_1, %c0_2] : memref<192x128xbf16, #tpu.memory_space<vmem>>, vector<192x128xbf16>
    %cst = arith.constant dense<0.000000e+00> : vector<32x128xf32>
    %2 = tpu.matmul %0, %1, %cst {dimension_numbers = #tpu.dot_dimension_numbers<[1], [0], [0], [1], [0, 0, 1, 1], [], []>} : vector<32x192xbf16>, vector<192x128xbf16>, vector<32x128xf32> -> vector<32x128xf32>
    %c0_3 = arith.constant 0 : index
    %c0_4 = arith.constant 0 : index
    %3 = vector.load %arg4[%c0_3, %c0_4] : memref<1x128xf32, #tpu.memory_space<vmem>>, vector<1x128xf32>
    %4 = vector.broadcast %3 : vector<1x128xf32> to vector<32x128xf32>
    %5 = arith.addf %2, %4 : vector<32x128xf32>
    %c0_5 = arith.constant 0 : index
    %c0_6 = arith.constant 0 : index
    %6 = vector.load %arg5[%c0_5, %c0_6] : memref<32x128xbf16, #tpu.memory_space<vmem>>, vector<32x128xbf16>
    %7 = arith.extf %6 : vector<32x128xbf16> to vector<32x128xf32>
    %8 = arith.addf %5, %7 : vector<32x128xf32>
    %9 = arith.truncf %8 : vector<32x128xf32> to vector<32x128xbf16>
    %c0_7 = arith.constant 0 : index
    %c0_8 = arith.constant 0 : index
    %10 = vector.load %arg6[%c0_7, %c0_8] : memref<32x128xbf16, #tpu.memory_space<vmem>>, vector<32x128xbf16>
    tpu.vector_store %arg6[%c0_7, %c0_8], %9 {strides = array<i32>} : memref<32x128xbf16, #tpu.memory_space<vmem>>, vector<32x128xbf16>,
    return
  }
  func.func @transform_0(%arg0: i32, %arg1: i32) -> (i32, i32) {
    %c0_i32 = arith.constant 0 : i32
    %c0_i32_0 = arith.constant 0 : i32
    return %arg1, %c0_i32 : i32, i32
  }
  func.func @transform_1(%arg0: i32, %arg1: i32) -> (i32, i32) {
    %c0_i32 = arith.constant 0 : i32
    %c0_i32_0 = arith.constant 0 : i32
    return %c0_i32, %arg0 : i32, i32
  }
  func.func @transform_2(%arg0: i32, %arg1: i32) -> (i32, i32) {
    %c0_i32 = arith.constant 0 : i32
    %c0_i32_0 = arith.constant 0 : i32
    return %c0_i32, %arg0 : i32, i32
  }
  func.func @transform_3(%arg0: i32, %arg1: i32) -> (i32, i32) {
    %c0_i32 = arith.constant 0 : i32
    return %arg1, %arg0 : i32, i32
  }
  func.func @transform_4(%arg0: i32, %arg1: i32) -> (i32, i32) {
    %c0_i32 = arith.constant 0 : i32
    return %arg1, %arg0 : i32, i32
  }
}

module attributes {stable_mosaic.version = 11 : i64} {
  func.func @_matmul_kernel(%arg0: i32, %arg1: i32, %arg2: memref<32x32xbf16, #tpu.memory_space<vmem>>, %arg3: memref<1x32xf32, #tpu.memory_space<vmem>>, %arg4: memref<1x32xf32, #tpu.memory_space<vmem>>, %arg5: memref<32x128xbf16, #tpu.memory_space<vmem>>, %arg6: memref<1x128xf32, #tpu.memory_space<vmem>>, %arg7: memref<32x128xbf16, #tpu.memory_space<vmem>>) attributes {dimension_semantics = [#tpu.dimension_semantics<parallel>, #tpu.dimension_semantics<parallel>], iteration_bounds = array<i64: 1, 1>, scalar_prefetch = 0 : i64, scratch_operands = 0 : i64, tpu.core_type = #tpu.core_type<tc>, window_params = [{transform_indices = @transform_0, window_bounds = array<i64: 32, 32>}, {pipeline_mode = #tpu.pipeline_mode<synchronous>, transform_indices = @transform_1, window_bounds = array<i64: 1, 32>}, {pipeline_mode = #tpu.pipeline_mode<synchronous>, transform_indices = @transform_2, window_bounds = array<i64: 1, 32>}, {transform_indices = @transform_3, window_bounds = array<i64: 32, 128>}, {transform_indices = @transform_4, window_bounds = array<i64: 1, 128>}, {transform_indices = @transform_5, window_bounds = array<i64: 32, 128>}]} {
    %c0 = arith.constant 0 : index
    %c0_0 = arith.constant 0 : index
    %0 = vector.load %arg2[%c0, %c0_0] : memref<32x32xbf16, #tpu.memory_space<vmem>>, vector<32x32xbf16>
    %1 = arith.extf %0 : vector<32x32xbf16> to vector<32x32xf32>
    %cst = arith.constant dense<0.000000e+00> : vector<32xf32>
    %2 = vector.multi_reduction <add>, %1, %cst [1] : vector<32x32xf32> to vector<32xf32>
    %3 = vector.shape_cast %2 : vector<32xf32> to vector<32x1xf32>
    %cst_1 = arith.constant 3.200000e+01 : f32
    %4 = vector.broadcast %cst_1 : f32 to vector<32x1xf32>
    %5 = arith.divf %3, %4 : vector<32x1xf32>
    %6 = vector.broadcast %5 : vector<32x1xf32> to vector<32x32xf32>
    %7 = arith.subf %1, %6 : vector<32x32xf32>
    %8 = arith.mulf %7, %7 : vector<32x32xf32>
    %cst_2 = arith.constant dense<0.000000e+00> : vector<32xf32>
    %9 = vector.multi_reduction <add>, %8, %cst_2 [1] : vector<32x32xf32> to vector<32xf32>
    %10 = vector.shape_cast %9 : vector<32xf32> to vector<32x1xf32>
    %cst_3 = arith.constant 3.200000e+01 : f32
    %11 = vector.broadcast %cst_3 : f32 to vector<32x1xf32>
    %12 = arith.divf %10, %11 : vector<32x1xf32>
    %13 = vector.broadcast %5 : vector<32x1xf32> to vector<32x32xf32>
    %14 = arith.subf %1, %13 : vector<32x32xf32>
    %cst_4 = arith.constant 9.99999974E-6 : f32
    %15 = vector.broadcast %cst_4 : f32 to vector<32x1xf32>
    %16 = arith.addf %12, %15 : vector<32x1xf32>
    %17 = math.rsqrt %16 : vector<32x1xf32>
    %18 = vector.broadcast %17 : vector<32x1xf32> to vector<32x32xf32>
    %19 = arith.mulf %14, %18 : vector<32x32xf32>
    %c0_5 = arith.constant 0 : index
    %c0_6 = arith.constant 0 : index
    %20 = vector.load %arg3[%c0_5, %c0_6] : memref<1x32xf32, #tpu.memory_space<vmem>>, vector<1x32xf32>
    %21 = vector.broadcast %20 : vector<1x32xf32> to vector<32x32xf32>
    %22 = arith.mulf %19, %21 : vector<32x32xf32>
    %c0_7 = arith.constant 0 : index
    %c0_8 = arith.constant 0 : index
    %23 = vector.load %arg4[%c0_7, %c0_8] : memref<1x32xf32, #tpu.memory_space<vmem>>, vector<1x32xf32>
    %24 = vector.broadcast %23 : vector<1x32xf32> to vector<32x32xf32>
    %25 = arith.addf %22, %24 : vector<32x32xf32>
    %26 = arith.truncf %25 : vector<32x32xf32> to vector<32x32xbf16>
    %c0_9 = arith.constant 0 : index
    %c0_10 = arith.constant 0 : index
    %27 = vector.load %arg5[%c0_9, %c0_10] : memref<32x128xbf16, #tpu.memory_space<vmem>>, vector<32x128xbf16>
    %cst_11 = arith.constant dense<0.000000e+00> : vector<32x128xf32>
    %28 = tpu.matmul %26, %27, %cst_11 {dimension_numbers = #tpu.dot_dimension_numbers<[1], [0], [0], [1], [0, 0, 1, 1], [], []>} : vector<32x32xbf16>, vector<32x128xbf16>, vector<32x128xf32> -> vector<32x128xf32>
    %c0_12 = arith.constant 0 : index
    %c0_13 = arith.constant 0 : index
    %29 = vector.load %arg6[%c0_12, %c0_13] : memref<1x128xf32, #tpu.memory_space<vmem>>, vector<1x128xf32>
    %30 = vector.broadcast %29 : vector<1x128xf32> to vector<32x128xf32>
    %31 = arith.addf %28, %30 : vector<32x128xf32>
    %32 = arith.truncf %31 : vector<32x128xf32> to vector<32x128xbf16>
    %c0_14 = arith.constant 0 : index
    %c0_15 = arith.constant 0 : index
    %33 = vector.load %arg7[%c0_14, %c0_15] : memref<32x128xbf16, #tpu.memory_space<vmem>>, vector<32x128xbf16>
    tpu.vector_store %arg7[%c0_14, %c0_15], %32 {strides = array<i32>} : memref<32x128xbf16, #tpu.memory_space<vmem>>, vector<32x128xbf16>,
    return
  }
  func.func @transform_0(%arg0: i32, %arg1: i32) -> (i32, i32) {
    %c0_i32 = arith.constant 0 : i32
    %c0_i32_0 = arith.constant 0 : i32
    return %arg1, %c0_i32 : i32, i32
  }
  func.func @transform_1(%arg0: i32, %arg1: i32) -> (i32, i32) {
    %c0_i32 = arith.constant 0 : i32
    %c0_i32_0 = arith.constant 0 : i32
    %c0_i32_1 = arith.constant 0 : i32
    return %c0_i32, %c0_i32_0 : i32, i32
  }
  func.func @transform_2(%arg0: i32, %arg1: i32) -> (i32, i32) {
    %c0_i32 = arith.constant 0 : i32
    %c0_i32_0 = arith.constant 0 : i32
    %c0_i32_1 = arith.constant 0 : i32
    return %c0_i32, %c0_i32_0 : i32, i32
  }
  func.func @transform_3(%arg0: i32, %arg1: i32) -> (i32, i32) {
    %c0_i32 = arith.constant 0 : i32
    %c0_i32_0 = arith.constant 0 : i32
    return %c0_i32, %arg0 : i32, i32
  }
  func.func @transform_4(%arg0: i32, %arg1: i32) -> (i32, i32) {
    %c0_i32 = arith.constant 0 : i32
    %c0_i32_0 = arith.constant 0 : i32
    return %c0_i32, %arg0 : i32, i32
  }
  func.func @transform_5(%arg0: i32, %arg1: i32) -> (i32, i32) {
    %c0_i32 = arith.constant 0 : i32
    return %arg1, %arg0 : i32, i32
  }
}

module attributes {stable_mosaic.version = 11 : i64} {
  func.func @_flash_attn_kernel(%arg0: i32, %arg1: i32, %arg2: i32, %arg3: memref<8x8x8xbf16, #tpu.memory_space<vmem>>, %arg4: memref<8x128x8xbf16, #tpu.memory_space<vmem>>, %arg5: memref<8x128x8xbf16, #tpu.memory_space<vmem>>, %arg6: memref<8x8x8xbf16, #tpu.memory_space<vmem>>, %arg7: memref<8x8x1xf32, #tpu.memory_space<vmem>>, %arg8: memref<8x8x1xf32, #tpu.memory_space<vmem>>, %arg9: memref<8x8x8xf32, #tpu.memory_space<vmem>>) attributes {dimension_semantics = [#tpu.dimension_semantics<parallel>, #tpu.dimension_semantics<parallel>, #tpu.dimension_semantics<arbitrary>], iteration_bounds = array<i64: 4, 1, 1>, scalar_prefetch = 0 : i64, scratch_operands = 3 : i64, tpu.core_type = #tpu.core_type<tc>, window_params = [{transform_indices = @transform_0, window_bounds = array<i64: 8, 8, 8>}, {transform_indices = @transform_1, window_bounds = array<i64: 8, 128, 8>}, {transform_indices = @transform_2, window_bounds = array<i64: 8, 128, 8>}, {transform_indices = @transform_3, window_bounds = array<i64: 8, 8, 8>}]} {
    %c0_i32 = arith.constant 0 : i32
    %0 = arith.cmpi eq, %arg2, %c0_i32 : i32
    %1 = arith.extui %0 : i1 to i32
    %c0_i32_0 = arith.constant 0 : i32
    %2 = arith.cmpi ne, %1, %c0_i32_0 : i32
    scf.if %2 {
      %cst_34 = arith.constant 0xFF800000 : f32
      %43 = vector.broadcast %cst_34 : f32 to vector<8x8x1xf32>
      %c0_35 = arith.constant 0 : index
      %c0_36 = arith.constant 0 : index
      %c0_37 = arith.constant 0 : index
      %44 = vector.load %arg7[%c0_35, %c0_36, %c0_37] : memref<8x8x1xf32, #tpu.memory_space<vmem>>, vector<8x8x1xf32>
      tpu.vector_store %arg7[%c0_35, %c0_36, %c0_37], %43 {strides = array<i32>} : memref<8x8x1xf32, #tpu.memory_space<vmem>>, vector<8x8x1xf32>,
      %cst_38 = arith.constant 0.000000e+00 : f32
      %45 = vector.broadcast %cst_38 : f32 to vector<8x8x1xf32>
      %c0_39 = arith.constant 0 : index
      %c0_40 = arith.constant 0 : index
      %c0_41 = arith.constant 0 : index
      %46 = vector.load %arg8[%c0_39, %c0_40, %c0_41] : memref<8x8x1xf32, #tpu.memory_space<vmem>>, vector<8x8x1xf32>
      tpu.vector_store %arg8[%c0_39, %c0_40, %c0_41], %45 {strides = array<i32>} : memref<8x8x1xf32, #tpu.memory_space<vmem>>, vector<8x8x1xf32>,
      %cst_42 = arith.constant 0.000000e+00 : f32
      %47 = vector.broadcast %cst_42 : f32 to vector<8x8x8xf32>
      %c0_43 = arith.constant 0 : index
      %c0_44 = arith.constant 0 : index
      %c0_45 = arith.constant 0 : index
      %48 = vector.load %arg9[%c0_43, %c0_44, %c0_45] : memref<8x8x8xf32, #tpu.memory_space<vmem>>, vector<8x8x8xf32>
      tpu.vector_store %arg9[%c0_43, %c0_44, %c0_45], %47 {strides = array<i32>} : memref<8x8x8xf32, #tpu.memory_space<vmem>>, vector<8x8x8xf32>,
    } else {
    }
    %c0 = arith.constant 0 : index
    %c0_1 = arith.constant 0 : index
    %c0_2 = arith.constant 0 : index
    %3 = vector.load %arg3[%c0, %c0_1, %c0_2] : memref<8x8x8xbf16, #tpu.memory_space<vmem>>, vector<8x8x8xbf16>
    %c0_3 = arith.constant 0 : index
    %c0_4 = arith.constant 0 : index
    %c0_5 = arith.constant 0 : index
    %4 = vector.load %arg4[%c0_3, %c0_4, %c0_5] : memref<8x128x8xbf16, #tpu.memory_space<vmem>>, vector<8x128x8xbf16>
    "tpu.trace_start"() <{level = 10 : i32, message = "bqd,bkd->bqk"}> : () -> ()
    %cst = arith.constant dense<0.000000e+00> : vector<8x8x128xf32>
    %5 = tpu.matmul %3, %4, %cst {dimension_numbers = #tpu.dot_dimension_numbers<[2], [2], [1], [1], [0, 0, 0, 1, 1, 1], [0], [0]>} : vector<8x8x8xbf16>, vector<8x128x8xbf16>, vector<8x8x128xf32> -> vector<8x8x128xf32>
    "tpu.trace_stop"() : () -> ()
    %cst_6 = arith.constant 0.353553385 : f32
    %6 = vector.broadcast %cst_6 : f32 to vector<8x8x128xf32>
    %7 = arith.mulf %5, %6 : vector<8x8x128xf32>
    %c128_i32 = arith.constant 128 : i32
    %8 = arith.muli %arg2, %c128_i32 : i32
    %9 = tpu.iota {dimensions = array<i32: 2>} : vector<8x8x128xi32>
    %10 = vector.broadcast %8 : i32 to vector<8x8x128xi32>
    %11 = arith.addi %10, %9 : vector<8x8x128xi32>
    %c4_i32 = arith.constant 4 : i32
    %12 = vector.broadcast %c4_i32 : i32 to vector<8x8x128xi32>
    %13 = arith.cmpi slt, %11, %12 : vector<8x8x128xi32>
    %cst_7 = arith.constant -1.000000e+30 : f32
    %14 = vector.broadcast %cst_7 : f32 to vector<8x8x128xf32>
    %15 = arith.select %13, %7, %14 : vector<8x8x128xi1>, vector<8x8x128xf32>
    %c0_8 = arith.constant 0 : index
    %c0_9 = arith.constant 0 : index
    %c0_10 = arith.constant 0 : index
    %16 = vector.load %arg7[%c0_8, %c0_9, %c0_10] : memref<8x8x1xf32, #tpu.memory_space<vmem>>, vector<8x8x1xf32>
    %cst_11 = arith.constant dense<0xFF800000> : vector<8x8xf32>
    %17 = vector.multi_reduction <maximumf>, %15, %cst_11 [2] : vector<8x8x128xf32> to vector<8x8xf32>
    %18 = vector.shape_cast %17 : vector<8x8xf32> to vector<8x8x1xf32>
    %19 = arith.maximumf %16, %18 : vector<8x8x1xf32>
    %20 = arith.subf %16, %19 : vector<8x8x1xf32>
    %21 = math.exp %20 : vector<8x8x1xf32>
    %22 = vector.broadcast %19 : vector<8x8x1xf32> to vector<8x8x128xf32>
    %23 = arith.subf %15, %22 : vector<8x8x128xf32>
    %24 = math.exp %23 : vector<8x8x128xf32>
    %c0_12 = arith.constant 0 : index
    %c0_13 = arith.constant 0 : index
    %c0_14 = arith.constant 0 : index
    %25 = vector.load %arg8[%c0_12, %c0_13, %c0_14] : memref<8x8x1xf32, #tpu.memory_space<vmem>>, vector<8x8x1xf32>
    %26 = arith.mulf %21, %25 : vector<8x8x1xf32>
    %cst_15 = arith.constant dense<0.000000e+00> : vector<8x8xf32>
    %27 = vector.multi_reduction <add>, %24, %cst_15 [2] : vector<8x8x128xf32> to vector<8x8xf32>
    %28 = vector.shape_cast %27 : vector<8x8xf32> to vector<8x8x1xf32>
    %29 = arith.addf %26, %28 : vector<8x8x1xf32>
    %c0_16 = arith.constant 0 : index
    %c0_17 = arith.constant 0 : index
    %c0_18 = arith.constant 0 : index
    %30 = vector.load %arg8[%c0_16, %c0_17, %c0_18] : memref<8x8x1xf32, #tpu.memory_space<vmem>>, vector<8x8x1xf32>
    tpu.vector_store %arg8[%c0_16, %c0_17, %c0_18], %29 {strides = array<i32>} : memref<8x8x1xf32, #tpu.memory_space<vmem>>, vector<8x8x1xf32>,
    %c0_19 = arith.constant 0 : index
    %c0_20 = arith.constant 0 : index
    %c0_21 = arith.constant 0 : index
    %31 = vector.load %arg9[%c0_19, %c0_20, %c0_21] : memref<8x8x8xf32, #tpu.memory_space<vmem>>, vector<8x8x8xf32>
    %32 = vector.broadcast %21 : vector<8x8x1xf32> to vector<8x8x8xf32>
    %33 = arith.mulf %32, %31 : vector<8x8x8xf32>
    %34 = arith.truncf %24 : vector<8x8x128xf32> to vector<8x8x128xbf16>
    %c0_22 = arith.constant 0 : index
    %c0_23 = arith.constant 0 : index
    %c0_24 = arith.constant 0 : index
    %35 = vector.load %arg5[%c0_22, %c0_23, %c0_24] : memref<8x128x8xbf16, #tpu.memory_space<vmem>>, vector<8x128x8xbf16>
    "tpu.trace_start"() <{level = 10 : i32, message = "bqk,bkd->bqd"}> : () -> ()
    %cst_25 = arith.constant dense<0.000000e+00> : vector<8x8x8xf32>
    %36 = tpu.matmul %34, %35, %cst_25 {dimension_numbers = #tpu.dot_dimension_numbers<[2], [1], [1], [2], [0, 0, 0, 1, 1, 2], [0], [0]>} : vector<8x8x128xbf16>, vector<8x128x8xbf16>, vector<8x8x8xf32> -> vector<8x8x8xf32>
    "tpu.trace_stop"() : () -> ()
    %37 = arith.addf %33, %36 : vector<8x8x8xf32>
    %c0_26 = arith.constant 0 : index
    %c0_27 = arith.constant 0 : index
    %c0_28 = arith.constant 0 : index
    %38 = vector.load %arg9[%c0_26, %c0_27, %c0_28] : memref<8x8x8xf32, #tpu.memory_space<vmem>>, vector<8x8x8xf32>
    tpu.vector_store %arg9[%c0_26, %c0_27, %c0_28], %37 {strides = array<i32>} : memref<8x8x8xf32, #tpu.memory_space<vmem>>, vector<8x8x8xf32>,
    %c0_29 = arith.constant 0 : index
    %c0_30 = arith.constant 0 : index
    %c0_31 = arith.constant 0 : index
    %39 = vector.load %arg7[%c0_29, %c0_30, %c0_31] : memref<8x8x1xf32, #tpu.memory_space<vmem>>, vector<8x8x1xf32>
    tpu.vector_store %arg7[%c0_29, %c0_30, %c0_31], %19 {strides = array<i32>} : memref<8x8x1xf32, #tpu.memory_space<vmem>>, vector<8x8x1xf32>,
    %c0_i32_32 = arith.constant 0 : i32
    %40 = arith.cmpi eq, %arg2, %c0_i32_32 : i32
    %41 = arith.extui %40 : i1 to i32
    %c0_i32_33 = arith.constant 0 : i32
    %42 = arith.cmpi ne, %41, %c0_i32_33 : i32
    scf.if %42 {
      %c0_34 = arith.constant 0 : index
      %c0_35 = arith.constant 0 : index
      %c0_36 = arith.constant 0 : index
      %43 = vector.load %arg9[%c0_34, %c0_35, %c0_36] : memref<8x8x8xf32, #tpu.memory_space<vmem>>, vector<8x8x8xf32>
      %c0_37 = arith.constant 0 : index
      %c0_38 = arith.constant 0 : index
      %c0_39 = arith.constant 0 : index
      %44 = vector.load %arg8[%c0_37, %c0_38, %c0_39] : memref<8x8x1xf32, #tpu.memory_space<vmem>>, vector<8x8x1xf32>
      %45 = tpu.reciprocal %44 {approx = true} : vector<8x8x1xf32> -> vector<8x8x1xf32>
      %46 = vector.broadcast %45 : vector<8x8x1xf32> to vector<8x8x8xf32>
      %47 = arith.mulf %43, %46 : vector<8x8x8xf32>
      %48 = arith.truncf %47 : vector<8x8x8xf32> to vector<8x8x8xbf16>
      %c0_40 = arith.constant 0 : index
      %c0_41 = arith.constant 0 : index
      %c0_42 = arith.constant 0 : index
      %49 = vector.load %arg6[%c0_40, %c0_41, %c0_42] : memref<8x8x8xbf16, #tpu.memory_space<vmem>>, vector<8x8x8xbf16>
      tpu.vector_store %arg6[%c0_40, %c0_41, %c0_42], %48 {strides = array<i32>} : memref<8x8x8xbf16, #tpu.memory_space<vmem>>, vector<8x8x8xbf16>,
    } else {
    }
    return
  }
  func.func @transform_0(%arg0: i32, %arg1: i32, %arg2: i32) -> (i32, i32, i32) {
    %c0_i32 = arith.constant 0 : i32
    %c0_i32_0 = arith.constant 0 : i32
    return %arg0, %arg1, %c0_i32 : i32, i32, i32
  }
  func.func @transform_1(%arg0: i32, %arg1: i32, %arg2: i32) -> (i32, i32, i32) {
    %c0_i32 = arith.constant 0 : i32
    %c0_i32_0 = arith.constant 0 : i32
    return %arg0, %arg2, %c0_i32 : i32, i32, i32
  }
  func.func @transform_2(%arg0: i32, %arg1: i32, %arg2: i32) -> (i32, i32, i32) {
    %c0_i32 = arith.constant 0 : i32
    %c0_i32_0 = arith.constant 0 : i32
    return %arg0, %arg2, %c0_i32 : i32, i32, i32
  }
  func.func @transform_3(%arg0: i32, %arg1: i32, %arg2: i32) -> (i32, i32, i32) {
    %c0_i32 = arith.constant 0 : i32
    %c0_i32_0 = arith.constant 0 : i32
    return %arg0, %arg1, %c0_i32 : i32, i32, i32
  }
}

module attributes {stable_mosaic.version = 11 : i64} {
  func.func @_matmul_kernel(%arg0: i32, %arg1: i32, %arg2: memref<32x32xbf16, #tpu.memory_space<vmem>>, %arg3: memref<32x128xbf16, #tpu.memory_space<vmem>>, %arg4: memref<1x128xf32, #tpu.memory_space<vmem>>, %arg5: memref<32x128xbf16, #tpu.memory_space<vmem>>) attributes {dimension_semantics = [#tpu.dimension_semantics<parallel>, #tpu.dimension_semantics<parallel>], iteration_bounds = array<i64: 1, 1>, scalar_prefetch = 0 : i64, scratch_operands = 0 : i64, tpu.core_type = #tpu.core_type<tc>, window_params = [{transform_indices = @transform_0, window_bounds = array<i64: 32, 32>}, {transform_indices = @transform_1, window_bounds = array<i64: 32, 128>}, {transform_indices = @transform_2, window_bounds = array<i64: 1, 128>}, {transform_indices = @transform_3, window_bounds = array<i64: 32, 128>}]} {
    %c0 = arith.constant 0 : index
    %c0_0 = arith.constant 0 : index
    %0 = vector.load %arg2[%c0, %c0_0] : memref<32x32xbf16, #tpu.memory_space<vmem>>, vector<32x32xbf16>
    %c0_1 = arith.constant 0 : index
    %c0_2 = arith.constant 0 : index
    %1 = vector.load %arg3[%c0_1, %c0_2] : memref<32x128xbf16, #tpu.memory_space<vmem>>, vector<32x128xbf16>
    %cst = arith.constant dense<0.000000e+00> : vector<32x128xf32>
    %2 = tpu.matmul %0, %1, %cst {dimension_numbers = #tpu.dot_dimension_numbers<[1], [0], [0], [1], [0, 0, 1, 1], [], []>} : vector<32x32xbf16>, vector<32x128xbf16>, vector<32x128xf32> -> vector<32x128xf32>
    %c0_3 = arith.constant 0 : index
    %c0_4 = arith.constant 0 : index
    %3 = vector.load %arg4[%c0_3, %c0_4] : memref<1x128xf32, #tpu.memory_space<vmem>>, vector<1x128xf32>
    %4 = vector.broadcast %3 : vector<1x128xf32> to vector<32x128xf32>
    %5 = arith.addf %2, %4 : vector<32x128xf32>
    %6 = arith.truncf %5 : vector<32x128xf32> to vector<32x128xbf16>
    %c0_5 = arith.constant 0 : index
    %c0_6 = arith.constant 0 : index
    %7 = vector.load %arg5[%c0_5, %c0_6] : memref<32x128xbf16, #tpu.memory_space<vmem>>, vector<32x128xbf16>
    tpu.vector_store %arg5[%c0_5, %c0_6], %6 {strides = array<i32>} : memref<32x128xbf16, #tpu.memory_space<vmem>>, vector<32x128xbf16>,
    return
  }
  func.func @transform_0(%arg0: i32, %arg1: i32) -> (i32, i32) {
    %c0_i32 = arith.constant 0 : i32
    %c0_i32_0 = arith.constant 0 : i32
    return %arg1, %c0_i32 : i32, i32
  }
  func.func @transform_1(%arg0: i32, %arg1: i32) -> (i32, i32) {
    %c0_i32 = arith.constant 0 : i32
    %c0_i32_0 = arith.constant 0 : i32
    return %c0_i32, %arg0 : i32, i32
  }
  func.func @transform_2(%arg0: i32, %arg1: i32) -> (i32, i32) {
    %c0_i32 = arith.constant 0 : i32
    %c0_i32_0 = arith.constant 0 : i32
    return %c0_i32, %arg0 : i32, i32
  }
  func.func @transform_3(%arg0: i32, %arg1: i32) -> (i32, i32) {
    %c0_i32 = arith.constant 0 : i32
    return %arg1, %arg0 : i32, i32
  }
}

module attributes {stable_mosaic.version = 11 : i64} {
  func.func @_matmul_kernel(%arg0: i32, %arg1: i32, %arg2: memref<32x32xbf16, #tpu.memory_space<vmem>>, %arg3: memref<1x32xf32, #tpu.memory_space<vmem>>, %arg4: memref<1x32xf32, #tpu.memory_space<vmem>>, %arg5: memref<32x128xbf16, #tpu.memory_space<vmem>>, %arg6: memref<1x128xf32, #tpu.memory_space<vmem>>, %arg7: memref<32x128xbf16, #tpu.memory_space<vmem>>) attributes {dimension_semantics = [#tpu.dimension_semantics<parallel>, #tpu.dimension_semantics<parallel>], iteration_bounds = array<i64: 1, 1>, scalar_prefetch = 0 : i64, scratch_operands = 0 : i64, tpu.core_type = #tpu.core_type<tc>, window_params = [{transform_indices = @transform_0, window_bounds = array<i64: 32, 32>}, {pipeline_mode = #tpu.pipeline_mode<synchronous>, transform_indices = @transform_1, window_bounds = array<i64: 1, 32>}, {pipeline_mode = #tpu.pipeline_mode<synchronous>, transform_indices = @transform_2, window_bounds = array<i64: 1, 32>}, {transform_indices = @transform_3, window_bounds = array<i64: 32, 128>}, {transform_indices = @transform_4, window_bounds = array<i64: 1, 128>}, {transform_indices = @transform_5, window_bounds = array<i64: 32, 128>}]} {
    %c0 = arith.constant 0 : index
    %c0_0 = arith.constant 0 : index
    %0 = vector.load %arg2[%c0, %c0_0] : memref<32x32xbf16, #tpu.memory_space<vmem>>, vector<32x32xbf16>
    %1 = arith.extf %0 : vector<32x32xbf16> to vector<32x32xf32>
    %cst = arith.constant dense<0.000000e+00> : vector<32xf32>
    %2 = vector.multi_reduction <add>, %1, %cst [1] : vector<32x32xf32> to vector<32xf32>
    %3 = vector.shape_cast %2 : vector<32xf32> to vector<32x1xf32>
    %cst_1 = arith.constant 3.200000e+01 : f32
    %4 = vector.broadcast %cst_1 : f32 to vector<32x1xf32>
    %5 = arith.divf %3, %4 : vector<32x1xf32>
    %6 = vector.broadcast %5 : vector<32x1xf32> to vector<32x32xf32>
    %7 = arith.subf %1, %6 : vector<32x32xf32>
    %8 = arith.mulf %7, %7 : vector<32x32xf32>
    %cst_2 = arith.constant dense<0.000000e+00> : vector<32xf32>
    %9 = vector.multi_reduction <add>, %8, %cst_2 [1] : vector<32x32xf32> to vector<32xf32>
    %10 = vector.shape_cast %9 : vector<32xf32> to vector<32x1xf32>
    %cst_3 = arith.constant 3.200000e+01 : f32
    %11 = vector.broadcast %cst_3 : f32 to vector<32x1xf32>
    %12 = arith.divf %10, %11 : vector<32x1xf32>
    %13 = vector.broadcast %5 : vector<32x1xf32> to vector<32x32xf32>
    %14 = arith.subf %1, %13 : vector<32x32xf32>
    %cst_4 = arith.constant 9.99999974E-6 : f32
    %15 = vector.broadcast %cst_4 : f32 to vector<32x1xf32>
    %16 = arith.addf %12, %15 : vector<32x1xf32>
    %17 = math.rsqrt %16 : vector<32x1xf32>
    %18 = vector.broadcast %17 : vector<32x1xf32> to vector<32x32xf32>
    %19 = arith.mulf %14, %18 : vector<32x32xf32>
    %c0_5 = arith.constant 0 : index
    %c0_6 = arith.constant 0 : index
    %20 = vector.load %arg3[%c0_5, %c0_6] : memref<1x32xf32, #tpu.memory_space<vmem>>, vector<1x32xf32>
    %21 = vector.broadcast %20 : vector<1x32xf32> to vector<32x32xf32>
    %22 = arith.mulf %19, %21 : vector<32x32xf32>
    %c0_7 = arith.constant 0 : index
    %c0_8 = arith.constant 0 : index
    %23 = vector.load %arg4[%c0_7, %c0_8] : memref<1x32xf32, #tpu.memory_space<vmem>>, vector<1x32xf32>
    %24 = vector.broadcast %23 : vector<1x32xf32> to vector<32x32xf32>
    %25 = arith.addf %22, %24 : vector<32x32xf32>
    %26 = arith.truncf %25 : vector<32x32xf32> to vector<32x32xbf16>
    %c0_9 = arith.constant 0 : index
    %c0_10 = arith.constant 0 : index
    %27 = vector.load %arg5[%c0_9, %c0_10] : memref<32x128xbf16, #tpu.memory_space<vmem>>, vector<32x128xbf16>
    %cst_11 = arith.constant dense<0.000000e+00> : vector<32x128xf32>
    %28 = tpu.matmul %26, %27, %cst_11 {dimension_numbers = #tpu.dot_dimension_numbers<[1], [0], [0], [1], [0, 0, 1, 1], [], []>} : vector<32x32xbf16>, vector<32x128xbf16>, vector<32x128xf32> -> vector<32x128xf32>
    %c0_12 = arith.constant 0 : index
    %c0_13 = arith.constant 0 : index
    %29 = vector.load %arg6[%c0_12, %c0_13] : memref<1x128xf32, #tpu.memory_space<vmem>>, vector<1x128xf32>
    %30 = vector.broadcast %29 : vector<1x128xf32> to vector<32x128xf32>
    %31 = arith.addf %28, %30 : vector<32x128xf32>
    %cst_14 = arith.constant 5.000000e-01 : f32
    %32 = vector.broadcast %cst_14 : f32 to vector<32x128xf32>
    %33 = arith.mulf %32, %31 : vector<32x128xf32>
    %cst_15 = arith.constant 4.471500e-02 : f32
    %34 = vector.broadcast %cst_15 : f32 to vector<32x128xf32>
    %35 = arith.mulf %34, %31 : vector<32x128xf32>
    %36 = arith.mulf %35, %31 : vector<32x128xf32>
    %37 = arith.mulf %36, %31 : vector<32x128xf32>
    %38 = arith.addf %31, %37 : vector<32x128xf32>
    %cst_16 = arith.constant 0.797884583 : f32
    %39 = vector.broadcast %cst_16 : f32 to vector<32x128xf32>
    %40 = arith.mulf %39, %38 : vector<32x128xf32>
    %41 = math.tanh %40 : vector<32x128xf32>
    %cst_17 = arith.constant 1.000000e+00 : f32
    %42 = vector.broadcast %cst_17 : f32 to vector<32x128xf32>
    %43 = arith.addf %42, %41 : vector<32x128xf32>
    %44 = arith.mulf %33, %43 : vector<32x128xf32>
    %45 = arith.truncf %44 : vector<32x128xf32> to vector<32x128xbf16>
    %c0_18 = arith.constant 0 : index
    %c0_19 = arith.constant 0 : index
    %46 = vector.load %arg7[%c0_18, %c0_19] : memref<32x128xbf16, #tpu.memory_space<vmem>>, vector<32x128xbf16>
    tpu.vector_store %arg7[%c0_18, %c0_19], %45 {strides = array<i32>} : memref<32x128xbf16, #tpu.memory_space<vmem>>, vector<32x128xbf16>,
    return
  }
  func.func @transform_0(%arg0: i32, %arg1: i32) -> (i32, i32) {
    %c0_i32 = arith.constant 0 : i32
    %c0_i32_0 = arith.constant 0 : i32
    return %arg1, %c0_i32 : i32, i32
  }
  func.func @transform_1(%arg0: i32, %arg1: i32) -> (i32, i32) {
    %c0_i32 = arith.constant 0 : i32
    %c0_i32_0 = arith.constant 0 : i32
    %c0_i32_1 = arith.constant 0 : i32
    return %c0_i32, %c0_i32_0 : i32, i32
  }
  func.func @transform_2(%arg0: i32, %arg1: i32) -> (i32, i32) {
    %c0_i32 = arith.constant 0 : i32
    %c0_i32_0 = arith.constant 0 : i32
    %c0_i32_1 = arith.constant 0 : i32
    return %c0_i32, %c0_i32_0 : i32, i32
  }
  func.func @transform_3(%arg0: i32, %arg1: i32) -> (i32, i32) {
    %c0_i32 = arith.constant 0 : i32
    %c0_i32_0 = arith.constant 0 : i32
    return %c0_i32, %arg0 : i32, i32
  }
  func.func @transform_4(%arg0: i32, %arg1: i32) -> (i32, i32) {
    %c0_i32 = arith.constant 0 : i32
    %c0_i32_0 = arith.constant 0 : i32
    return %c0_i32, %arg0 : i32, i32
  }
  func.func @transform_5(%arg0: i32, %arg1: i32) -> (i32, i32) {
    %c0_i32 = arith.constant 0 : i32
    return %arg1, %arg0 : i32, i32
  }
}

module attributes {stable_mosaic.version = 11 : i64} {
  func.func @_matmul_kernel(%arg0: i32, %arg1: i32, %arg2: memref<32x128xbf16, #tpu.memory_space<vmem>>, %arg3: memref<128x128xbf16, #tpu.memory_space<vmem>>, %arg4: memref<1x128xf32, #tpu.memory_space<vmem>>, %arg5: memref<32x128xbf16, #tpu.memory_space<vmem>>, %arg6: memref<32x128xbf16, #tpu.memory_space<vmem>>) attributes {dimension_semantics = [#tpu.dimension_semantics<parallel>, #tpu.dimension_semantics<parallel>], iteration_bounds = array<i64: 1, 1>, scalar_prefetch = 0 : i64, scratch_operands = 0 : i64, tpu.core_type = #tpu.core_type<tc>, window_params = [{transform_indices = @transform_0, window_bounds = array<i64: 32, 128>}, {transform_indices = @transform_1, window_bounds = array<i64: 128, 128>}, {transform_indices = @transform_2, window_bounds = array<i64: 1, 128>}, {transform_indices = @transform_3, window_bounds = array<i64: 32, 128>}, {transform_indices = @transform_4, window_bounds = array<i64: 32, 128>}]} {
    %c0 = arith.constant 0 : index
    %c0_0 = arith.constant 0 : index
    %0 = vector.load %arg2[%c0, %c0_0] : memref<32x128xbf16, #tpu.memory_space<vmem>>, vector<32x128xbf16>
    %c0_1 = arith.constant 0 : index
    %c0_2 = arith.constant 0 : index
    %1 = vector.load %arg3[%c0_1, %c0_2] : memref<128x128xbf16, #tpu.memory_space<vmem>>, vector<128x128xbf16>
    %cst = arith.constant dense<0.000000e+00> : vector<32x128xf32>
    %2 = tpu.matmul %0, %1, %cst {dimension_numbers = #tpu.dot_dimension_numbers<[1], [0], [0], [1], [0, 0, 1, 1], [], []>} : vector<32x128xbf16>, vector<128x128xbf16>, vector<32x128xf32> -> vector<32x128xf32>
    %c0_3 = arith.constant 0 : index
    %c0_4 = arith.constant 0 : index
    %3 = vector.load %arg4[%c0_3, %c0_4] : memref<1x128xf32, #tpu.memory_space<vmem>>, vector<1x128xf32>
    %4 = vector.broadcast %3 : vector<1x128xf32> to vector<32x128xf32>
    %5 = arith.addf %2, %4 : vector<32x128xf32>
    %c0_5 = arith.constant 0 : index
    %c0_6 = arith.constant 0 : index
    %6 = vector.load %arg5[%c0_5, %c0_6] : memref<32x128xbf16, #tpu.memory_space<vmem>>, vector<32x128xbf16>
    %7 = arith.extf %6 : vector<32x128xbf16> to vector<32x128xf32>
    %8 = arith.addf %5, %7 : vector<32x128xf32>
    %9 = arith.truncf %8 : vector<32x128xf32> to vector<32x128xbf16>
    %c0_7 = arith.constant 0 : index
    %c0_8 = arith.constant 0 : index
    %10 = vector.load %arg6[%c0_7, %c0_8] : memref<32x128xbf16, #tpu.memory_space<vmem>>, vector<32x128xbf16>
    tpu.vector_store %arg6[%c0_7, %c0_8], %9 {strides = array<i32>} : memref<32x128xbf16, #tpu.memory_space<vmem>>, vector<32x128xbf16>,
    return
  }
  func.func @transform_0(%arg0: i32, %arg1: i32) -> (i32, i32) {
    %c0_i32 = arith.constant 0 : i32
    %c0_i32_0 = arith.constant 0 : i32
    return %arg1, %c0_i32 : i32, i32
  }
  func.func @transform_1(%arg0: i32, %arg1: i32) -> (i32, i32) {
    %c0_i32 = arith.constant 0 : i32
    %c0_i32_0 = arith.constant 0 : i32
    return %c0_i32, %arg0 : i32, i32
  }
  func.func @transform_2(%arg0: i32, %arg1: i32) -> (i32, i32) {
    %c0_i32 = arith.constant 0 : i32
    %c0_i32_0 = arith.constant 0 : i32
    return %c0_i32, %arg0 : i32, i32
  }
  func.func @transform_3(%arg0: i32, %arg1: i32) -> (i32, i32) {
    %c0_i32 = arith.constant 0 : i32
    return %arg1, %arg0 : i32, i32
  }
  func.func @transform_4(%arg0: i32, %arg1: i32) -> (i32, i32) {
    %c0_i32 = arith.constant 0 : i32
    return %arg1, %arg0 : i32, i32
  }
}

module attributes {stable_mosaic.version = 11 : i64} {
  func.func @_flash_attn_kernel(%arg0: i32, %arg1: i32, %arg2: i32, %arg3: memref<8x16x8xbf16, #tpu.memory_space<vmem>>, %arg4: memref<8x128x8xbf16, #tpu.memory_space<vmem>>, %arg5: memref<8x128x8xbf16, #tpu.memory_space<vmem>>, %arg6: memref<8x16x8xbf16, #tpu.memory_space<vmem>>, %arg7: memref<8x16x1xf32, #tpu.memory_space<vmem>>, %arg8: memref<8x16x1xf32, #tpu.memory_space<vmem>>, %arg9: memref<8x16x8xf32, #tpu.memory_space<vmem>>) attributes {dimension_semantics = [#tpu.dimension_semantics<parallel>, #tpu.dimension_semantics<parallel>, #tpu.dimension_semantics<arbitrary>], iteration_bounds = array<i64: 1, 1, 1>, scalar_prefetch = 0 : i64, scratch_operands = 3 : i64, tpu.core_type = #tpu.core_type<tc>, window_params = [{transform_indices = @transform_0, window_bounds = array<i64: 8, 16, 8>}, {transform_indices = @transform_1, window_bounds = array<i64: 8, 128, 8>}, {transform_indices = @transform_2, window_bounds = array<i64: 8, 128, 8>}, {transform_indices = @transform_3, window_bounds = array<i64: 8, 16, 8>}]} {
    %c0_i32 = arith.constant 0 : i32
    %0 = arith.cmpi eq, %arg2, %c0_i32 : i32
    %1 = arith.extui %0 : i1 to i32
    %c0_i32_0 = arith.constant 0 : i32
    %2 = arith.cmpi ne, %1, %c0_i32_0 : i32
    scf.if %2 {
      %cst_34 = arith.constant 0xFF800000 : f32
      %43 = vector.broadcast %cst_34 : f32 to vector<8x16x1xf32>
      %c0_35 = arith.constant 0 : index
      %c0_36 = arith.constant 0 : index
      %c0_37 = arith.constant 0 : index
      %44 = vector.load %arg7[%c0_35, %c0_36, %c0_37] : memref<8x16x1xf32, #tpu.memory_space<vmem>>, vector<8x16x1xf32>
      tpu.vector_store %arg7[%c0_35, %c0_36, %c0_37], %43 {strides = array<i32>} : memref<8x16x1xf32, #tpu.memory_space<vmem>>, vector<8x16x1xf32>,
      %cst_38 = arith.constant 0.000000e+00 : f32
      %45 = vector.broadcast %cst_38 : f32 to vector<8x16x1xf32>
      %c0_39 = arith.constant 0 : index
      %c0_40 = arith.constant 0 : index
      %c0_41 = arith.constant 0 : index
      %46 = vector.load %arg8[%c0_39, %c0_40, %c0_41] : memref<8x16x1xf32, #tpu.memory_space<vmem>>, vector<8x16x1xf32>
      tpu.vector_store %arg8[%c0_39, %c0_40, %c0_41], %45 {strides = array<i32>} : memref<8x16x1xf32, #tpu.memory_space<vmem>>, vector<8x16x1xf32>,
      %cst_42 = arith.constant 0.000000e+00 : f32
      %47 = vector.broadcast %cst_42 : f32 to vector<8x16x8xf32>
      %c0_43 = arith.constant 0 : index
      %c0_44 = arith.constant 0 : index
      %c0_45 = arith.constant 0 : index
      %48 = vector.load %arg9[%c0_43, %c0_44, %c0_45] : memref<8x16x8xf32, #tpu.memory_space<vmem>>, vector<8x16x8xf32>
      tpu.vector_store %arg9[%c0_43, %c0_44, %c0_45], %47 {strides = array<i32>} : memref<8x16x8xf32, #tpu.memory_space<vmem>>, vector<8x16x8xf32>,
    } else {
    }
    %c0 = arith.constant 0 : index
    %c0_1 = arith.constant 0 : index
    %c0_2 = arith.constant 0 : index
    %3 = vector.load %arg3[%c0, %c0_1, %c0_2] : memref<8x16x8xbf16, #tpu.memory_space<vmem>>, vector<8x16x8xbf16>
    %c0_3 = arith.constant 0 : index
    %c0_4 = arith.constant 0 : index
    %c0_5 = arith.constant 0 : index
    %4 = vector.load %arg4[%c0_3, %c0_4, %c0_5] : memref<8x128x8xbf16, #tpu.memory_space<vmem>>, vector<8x128x8xbf16>
    "tpu.trace_start"() <{level = 10 : i32, message = "bqd,bkd->bqk"}> : () -> ()
    %cst = arith.constant dense<0.000000e+00> : vector<8x16x128xf32>
    %5 = tpu.matmul %3, %4, %cst {dimension_numbers = #tpu.dot_dimension_numbers<[2], [2], [1], [1], [0, 0, 0, 1, 1, 1], [0], [0]>} : vector<8x16x8xbf16>, vector<8x128x8xbf16>, vector<8x16x128xf32> -> vector<8x16x128xf32>
    "tpu.trace_stop"() : () -> ()
    %cst_6 = arith.constant 0.353553385 : f32
    %6 = vector.broadcast %cst_6 : f32 to vector<8x16x128xf32>
    %7 = arith.mulf %5, %6 : vector<8x16x128xf32>
    %c128_i32 = arith.constant 128 : i32
    %8 = arith.muli %arg2, %c128_i32 : i32
    %9 = tpu.iota {dimensions = array<i32: 2>} : vector<8x16x128xi32>
    %10 = vector.broadcast %8 : i32 to vector<8x16x128xi32>
    %11 = arith.addi %10, %9 : vector<8x16x128xi32>
    %c16_i32 = arith.constant 16 : i32
    %12 = vector.broadcast %c16_i32 : i32 to vector<8x16x128xi32>
    %13 = arith.cmpi slt, %11, %12 : vector<8x16x128xi32>
    %cst_7 = arith.constant -1.000000e+30 : f32
    %14 = vector.broadcast %cst_7 : f32 to vector<8x16x128xf32>
    %15 = arith.select %13, %7, %14 : vector<8x16x128xi1>, vector<8x16x128xf32>
    %c0_8 = arith.constant 0 : index
    %c0_9 = arith.constant 0 : index
    %c0_10 = arith.constant 0 : index
    %16 = vector.load %arg7[%c0_8, %c0_9, %c0_10] : memref<8x16x1xf32, #tpu.memory_space<vmem>>, vector<8x16x1xf32>
    %cst_11 = arith.constant dense<0xFF800000> : vector<8x16xf32>
    %17 = vector.multi_reduction <maximumf>, %15, %cst_11 [2] : vector<8x16x128xf32> to vector<8x16xf32>
    %18 = vector.shape_cast %17 : vector<8x16xf32> to vector<8x16x1xf32>
    %19 = arith.maximumf %16, %18 : vector<8x16x1xf32>
    %20 = arith.subf %16, %19 : vector<8x16x1xf32>
    %21 = math.exp %20 : vector<8x16x1xf32>
    %22 = vector.broadcast %19 : vector<8x16x1xf32> to vector<8x16x128xf32>
    %23 = arith.subf %15, %22 : vector<8x16x128xf32>
    %24 = math.exp %23 : vector<8x16x128xf32>
    %c0_12 = arith.constant 0 : index
    %c0_13 = arith.constant 0 : index
    %c0_14 = arith.constant 0 : index
    %25 = vector.load %arg8[%c0_12, %c0_13, %c0_14] : memref<8x16x1xf32, #tpu.memory_space<vmem>>, vector<8x16x1xf32>
    %26 = arith.mulf %21, %25 : vector<8x16x1xf32>
    %cst_15 = arith.constant dense<0.000000e+00> : vector<8x16xf32>
    %27 = vector.multi_reduction <add>, %24, %cst_15 [2] : vector<8x16x128xf32> to vector<8x16xf32>
    %28 = vector.shape_cast %27 : vector<8x16xf32> to vector<8x16x1xf32>
    %29 = arith.addf %26, %28 : vector<8x16x1xf32>
    %c0_16 = arith.constant 0 : index
    %c0_17 = arith.constant 0 : index
    %c0_18 = arith.constant 0 : index
    %30 = vector.load %arg8[%c0_16, %c0_17, %c0_18] : memref<8x16x1xf32, #tpu.memory_space<vmem>>, vector<8x16x1xf32>
    tpu.vector_store %arg8[%c0_16, %c0_17, %c0_18], %29 {strides = array<i32>} : memref<8x16x1xf32, #tpu.memory_space<vmem>>, vector<8x16x1xf32>,
    %c0_19 = arith.constant 0 : index
    %c0_20 = arith.constant 0 : index
    %c0_21 = arith.constant 0 : index
    %31 = vector.load %arg9[%c0_19, %c0_20, %c0_21] : memref<8x16x8xf32, #tpu.memory_space<vmem>>, vector<8x16x8xf32>
    %32 = vector.broadcast %21 : vector<8x16x1xf32> to vector<8x16x8xf32>
    %33 = arith.mulf %32, %31 : vector<8x16x8xf32>
    %34 = arith.truncf %24 : vector<8x16x128xf32> to vector<8x16x128xbf16>
    %c0_22 = arith.constant 0 : index
    %c0_23 = arith.constant 0 : index
    %c0_24 = arith.constant 0 : index
    %35 = vector.load %arg5[%c0_22, %c0_23, %c0_24] : memref<8x128x8xbf16, #tpu.memory_space<vmem>>, vector<8x128x8xbf16>
    "tpu.trace_start"() <{level = 10 : i32, message = "bqk,bkd->bqd"}> : () -> ()
    %cst_25 = arith.constant dense<0.000000e+00> : vector<8x16x8xf32>
    %36 = tpu.matmul %34, %35, %cst_25 {dimension_numbers = #tpu.dot_dimension_numbers<[2], [1], [1], [2], [0, 0, 0, 1, 1, 2], [0], [0]>} : vector<8x16x128xbf16>, vector<8x128x8xbf16>, vector<8x16x8xf32> -> vector<8x16x8xf32>
    "tpu.trace_stop"() : () -> ()
    %37 = arith.addf %33, %36 : vector<8x16x8xf32>
    %c0_26 = arith.constant 0 : index
    %c0_27 = arith.constant 0 : index
    %c0_28 = arith.constant 0 : index
    %38 = vector.load %arg9[%c0_26, %c0_27, %c0_28] : memref<8x16x8xf32, #tpu.memory_space<vmem>>, vector<8x16x8xf32>
    tpu.vector_store %arg9[%c0_26, %c0_27, %c0_28], %37 {strides = array<i32>} : memref<8x16x8xf32, #tpu.memory_space<vmem>>, vector<8x16x8xf32>,
    %c0_29 = arith.constant 0 : index
    %c0_30 = arith.constant 0 : index
    %c0_31 = arith.constant 0 : index
    %39 = vector.load %arg7[%c0_29, %c0_30, %c0_31] : memref<8x16x1xf32, #tpu.memory_space<vmem>>, vector<8x16x1xf32>
    tpu.vector_store %arg7[%c0_29, %c0_30, %c0_31], %19 {strides = array<i32>} : memref<8x16x1xf32, #tpu.memory_space<vmem>>, vector<8x16x1xf32>,
    %c0_i32_32 = arith.constant 0 : i32
    %40 = arith.cmpi eq, %arg2, %c0_i32_32 : i32
    %41 = arith.extui %40 : i1 to i32
    %c0_i32_33 = arith.constant 0 : i32
    %42 = arith.cmpi ne, %41, %c0_i32_33 : i32
    scf.if %42 {
      %c0_34 = arith.constant 0 : index
      %c0_35 = arith.constant 0 : index
      %c0_36 = arith.constant 0 : index
      %43 = vector.load %arg9[%c0_34, %c0_35, %c0_36] : memref<8x16x8xf32, #tpu.memory_space<vmem>>, vector<8x16x8xf32>
      %c0_37 = arith.constant 0 : index
      %c0_38 = arith.constant 0 : index
      %c0_39 = arith.constant 0 : index
      %44 = vector.load %arg8[%c0_37, %c0_38, %c0_39] : memref<8x16x1xf32, #tpu.memory_space<vmem>>, vector<8x16x1xf32>
      %45 = tpu.reciprocal %44 {approx = true} : vector<8x16x1xf32> -> vector<8x16x1xf32>
      %46 = vector.broadcast %45 : vector<8x16x1xf32> to vector<8x16x8xf32>
      %47 = arith.mulf %43, %46 : vector<8x16x8xf32>
      %48 = arith.truncf %47 : vector<8x16x8xf32> to vector<8x16x8xbf16>
      %c0_40 = arith.constant 0 : index
      %c0_41 = arith.constant 0 : index
      %c0_42 = arith.constant 0 : index
      %49 = vector.load %arg6[%c0_40, %c0_41, %c0_42] : memref<8x16x8xbf16, #tpu.memory_space<vmem>>, vector<8x16x8xbf16>
      tpu.vector_store %arg6[%c0_40, %c0_41, %c0_42], %48 {strides = array<i32>} : memref<8x16x8xbf16, #tpu.memory_space<vmem>>, vector<8x16x8xbf16>,
    } else {
    }
    return
  }
  func.func @transform_0(%arg0: i32, %arg1: i32, %arg2: i32) -> (i32, i32, i32) {
    %c0_i32 = arith.constant 0 : i32
    %c0_i32_0 = arith.constant 0 : i32
    return %arg0, %arg1, %c0_i32 : i32, i32, i32
  }
  func.func @transform_1(%arg0: i32, %arg1: i32, %arg2: i32) -> (i32, i32, i32) {
    %c0_i32 = arith.constant 0 : i32
    %c0_i32_0 = arith.constant 0 : i32
    return %arg0, %arg2, %c0_i32 : i32, i32, i32
  }
  func.func @transform_2(%arg0: i32, %arg1: i32, %arg2: i32) -> (i32, i32, i32) {
    %c0_i32 = arith.constant 0 : i32
    %c0_i32_0 = arith.constant 0 : i32
    return %arg0, %arg2, %c0_i32 : i32, i32, i32
  }
  func.func @transform_3(%arg0: i32, %arg1: i32, %arg2: i32) -> (i32, i32, i32) {
    %c0_i32 = arith.constant 0 : i32
    %c0_i32_0 = arith.constant 0 : i32
    return %arg0, %arg1, %c0_i32 : i32, i32, i32
  }
}

module attributes {stable_mosaic.version = 11 : i64} {
  func.func @_matmul_kernel(%arg0: i32, %arg1: i32, %arg2: memref<32x32xbf16, #tpu.memory_space<vmem>>, %arg3: memref<32x128xbf16, #tpu.memory_space<vmem>>, %arg4: memref<1x128xf32, #tpu.memory_space<vmem>>, %arg5: memref<32x128xbf16, #tpu.memory_space<vmem>>, %arg6: memref<32x128xbf16, #tpu.memory_space<vmem>>) attributes {dimension_semantics = [#tpu.dimension_semantics<parallel>, #tpu.dimension_semantics<parallel>], iteration_bounds = array<i64: 1, 1>, scalar_prefetch = 0 : i64, scratch_operands = 0 : i64, tpu.core_type = #tpu.core_type<tc>, window_params = [{transform_indices = @transform_0, window_bounds = array<i64: 32, 32>}, {transform_indices = @transform_1, window_bounds = array<i64: 32, 128>}, {transform_indices = @transform_2, window_bounds = array<i64: 1, 128>}, {transform_indices = @transform_3, window_bounds = array<i64: 32, 128>}, {transform_indices = @transform_4, window_bounds = array<i64: 32, 128>}]} {
    %c0 = arith.constant 0 : index
    %c0_0 = arith.constant 0 : index
    %0 = vector.load %arg2[%c0, %c0_0] : memref<32x32xbf16, #tpu.memory_space<vmem>>, vector<32x32xbf16>
    %c0_1 = arith.constant 0 : index
    %c0_2 = arith.constant 0 : index
    %1 = vector.load %arg3[%c0_1, %c0_2] : memref<32x128xbf16, #tpu.memory_space<vmem>>, vector<32x128xbf16>
    %cst = arith.constant dense<0.000000e+00> : vector<32x128xf32>
    %2 = tpu.matmul %0, %1, %cst {dimension_numbers = #tpu.dot_dimension_numbers<[1], [0], [0], [1], [0, 0, 1, 1], [], []>} : vector<32x32xbf16>, vector<32x128xbf16>, vector<32x128xf32> -> vector<32x128xf32>
    %c0_3 = arith.constant 0 : index
    %c0_4 = arith.constant 0 : index
    %3 = vector.load %arg4[%c0_3, %c0_4] : memref<1x128xf32, #tpu.memory_space<vmem>>, vector<1x128xf32>
    %4 = vector.broadcast %3 : vector<1x128xf32> to vector<32x128xf32>
    %5 = arith.addf %2, %4 : vector<32x128xf32>
    %c0_5 = arith.constant 0 : index
    %c0_6 = arith.constant 0 : index
    %6 = vector.load %arg5[%c0_5, %c0_6] : memref<32x128xbf16, #tpu.memory_space<vmem>>, vector<32x128xbf16>
    %7 = arith.extf %6 : vector<32x128xbf16> to vector<32x128xf32>
    %8 = arith.addf %5, %7 : vector<32x128xf32>
    %9 = arith.truncf %8 : vector<32x128xf32> to vector<32x128xbf16>
    %c0_7 = arith.constant 0 : index
    %c0_8 = arith.constant 0 : index
    %10 = vector.load %arg6[%c0_7, %c0_8] : memref<32x128xbf16, #tpu.memory_space<vmem>>, vector<32x128xbf16>
    tpu.vector_store %arg6[%c0_7, %c0_8], %9 {strides = array<i32>} : memref<32x128xbf16, #tpu.memory_space<vmem>>, vector<32x128xbf16>,
    return
  }
  func.func @transform_0(%arg0: i32, %arg1: i32) -> (i32, i32) {
    %c0_i32 = arith.constant 0 : i32
    %c0_i32_0 = arith.constant 0 : i32
    return %arg1, %c0_i32 : i32, i32
  }
  func.func @transform_1(%arg0: i32, %arg1: i32) -> (i32, i32) {
    %c0_i32 = arith.constant 0 : i32
    %c0_i32_0 = arith.constant 0 : i32
    return %c0_i32, %arg0 : i32, i32
  }
  func.func @transform_2(%arg0: i32, %arg1: i32) -> (i32, i32) {
    %c0_i32 = arith.constant 0 : i32
    %c0_i32_0 = arith.constant 0 : i32
    return %c0_i32, %arg0 : i32, i32
  }
  func.func @transform_3(%arg0: i32, %arg1: i32) -> (i32, i32) {
    %c0_i32 = arith.constant 0 : i32
    return %arg1, %arg0 : i32, i32
  }
  func.func @transform_4(%arg0: i32, %arg1: i32) -> (i32, i32) {
    %c0_i32 = arith.constant 0 : i32
    return %arg1, %arg0 : i32, i32
  }
}

module attributes {stable_mosaic.version = 11 : i64} {
  func.func @_layernorm_kernel(%arg0: i32, %arg1: memref<32x16xbf16, #tpu.memory_space<vmem>>, %arg2: memref<1x16xf32, #tpu.memory_space<vmem>>, %arg3: memref<1x16xf32, #tpu.memory_space<vmem>>, %arg4: memref<32x16xbf16, #tpu.memory_space<vmem>>) attributes {dimension_semantics = [#tpu.dimension_semantics<parallel>], iteration_bounds = array<i64: 1>, scalar_prefetch = 0 : i64, scratch_operands = 0 : i64, tpu.core_type = #tpu.core_type<tc>, window_params = [{transform_indices = @transform_0, window_bounds = array<i64: 32, 16>}, {pipeline_mode = #tpu.pipeline_mode<synchronous>, transform_indices = @transform_1, window_bounds = array<i64: 1, 16>}, {pipeline_mode = #tpu.pipeline_mode<synchronous>, transform_indices = @transform_2, window_bounds = array<i64: 1, 16>}, {transform_indices = @transform_3, window_bounds = array<i64: 32, 16>}]} {
    %c0 = arith.constant 0 : index
    %c0_0 = arith.constant 0 : index
    %0 = vector.load %arg1[%c0, %c0_0] : memref<32x16xbf16, #tpu.memory_space<vmem>>, vector<32x16xbf16>
    %1 = arith.extf %0 : vector<32x16xbf16> to vector<32x16xf32>
    %cst = arith.constant dense<0.000000e+00> : vector<32xf32>
    %2 = vector.multi_reduction <add>, %1, %cst [1] : vector<32x16xf32> to vector<32xf32>
    %3 = vector.shape_cast %2 : vector<32xf32> to vector<32x1xf32>
    %cst_1 = arith.constant 1.600000e+01 : f32
    %4 = vector.broadcast %cst_1 : f32 to vector<32x1xf32>
    %5 = arith.divf %3, %4 : vector<32x1xf32>
    %6 = vector.broadcast %5 : vector<32x1xf32> to vector<32x16xf32>
    %7 = arith.subf %1, %6 : vector<32x16xf32>
    %8 = arith.mulf %7, %7 : vector<32x16xf32>
    %cst_2 = arith.constant dense<0.000000e+00> : vector<32xf32>
    %9 = vector.multi_reduction <add>, %8, %cst_2 [1] : vector<32x16xf32> to vector<32xf32>
    %10 = vector.shape_cast %9 : vector<32xf32> to vector<32x1xf32>
    %cst_3 = arith.constant 1.600000e+01 : f32
    %11 = vector.broadcast %cst_3 : f32 to vector<32x1xf32>
    %12 = arith.divf %10, %11 : vector<32x1xf32>
    %13 = vector.broadcast %5 : vector<32x1xf32> to vector<32x16xf32>
    %14 = arith.subf %1, %13 : vector<32x16xf32>
    %cst_4 = arith.constant 9.99999997E-7 : f32
    %15 = vector.broadcast %cst_4 : f32 to vector<32x1xf32>
    %16 = arith.addf %12, %15 : vector<32x1xf32>
    %17 = math.rsqrt %16 : vector<32x1xf32>
    %18 = vector.broadcast %17 : vector<32x1xf32> to vector<32x16xf32>
    %19 = arith.mulf %14, %18 : vector<32x16xf32>
    %c0_5 = arith.constant 0 : index
    %c0_6 = arith.constant 0 : index
    %20 = vector.load %arg2[%c0_5, %c0_6] : memref<1x16xf32, #tpu.memory_space<vmem>>, vector<1x16xf32>
    %21 = vector.broadcast %20 : vector<1x16xf32> to vector<32x16xf32>
    %22 = arith.mulf %19, %21 : vector<32x16xf32>
    %c0_7 = arith.constant 0 : index
    %c0_8 = arith.constant 0 : index
    %23 = vector.load %arg3[%c0_7, %c0_8] : memref<1x16xf32, #tpu.memory_space<vmem>>, vector<1x16xf32>
    %24 = vector.broadcast %23 : vector<1x16xf32> to vector<32x16xf32>
    %25 = arith.addf %22, %24 : vector<32x16xf32>
    %26 = arith.truncf %25 : vector<32x16xf32> to vector<32x16xbf16>
    %c0_9 = arith.constant 0 : index
    %c0_10 = arith.constant 0 : index
    %27 = vector.load %arg4[%c0_9, %c0_10] : memref<32x16xbf16, #tpu.memory_space<vmem>>, vector<32x16xbf16>
    tpu.vector_store %arg4[%c0_9, %c0_10], %26 {strides = array<i32>} : memref<32x16xbf16, #tpu.memory_space<vmem>>, vector<32x16xbf16>,
    return
  }
  func.func @transform_0(%arg0: i32) -> (i32, i32) {
    %c0_i32 = arith.constant 0 : i32
    %c0_i32_0 = arith.constant 0 : i32
    return %arg0, %c0_i32 : i32, i32
  }
  func.func @transform_1(%arg0: i32) -> (i32, i32) {
    %c0_i32 = arith.constant 0 : i32
    %c0_i32_0 = arith.constant 0 : i32
    %c0_i32_1 = arith.constant 0 : i32
    return %c0_i32, %c0_i32_0 : i32, i32
  }
  func.func @transform_2(%arg0: i32) -> (i32, i32) {
    %c0_i32 = arith.constant 0 : i32
    %c0_i32_0 = arith.constant 0 : i32
    %c0_i32_1 = arith.constant 0 : i32
    return %c0_i32, %c0_i32_0 : i32, i32
  }
  func.func @transform_3(%arg0: i32) -> (i32, i32) {
    %c0_i32 = arith.constant 0 : i32
    %c0_i32_0 = arith.constant 0 : i32
    return %arg0, %c0_i32 : i32, i32
  }
}

module attributes {stable_mosaic.version = 11 : i64} {
  func.func @_conv3x3_kernel(%arg0: i32, %arg1: i32, %arg2: memref<1x4x6x16xbf16, #tpu.memory_space<vmem>>, %arg3: memref<1x4x6x16xbf16, #tpu.memory_space<vmem>>, %arg4: memref<1x4x6x16xbf16, #tpu.memory_space<vmem>>, %arg5: memref<9x16x16xbf16, #tpu.memory_space<vmem>>, %arg6: memref<1x4x4x16xbf16, #tpu.memory_space<vmem>>) attributes {dimension_semantics = [#tpu.dimension_semantics<parallel>, #tpu.dimension_semantics<parallel>], iteration_bounds = array<i64: 2, 1>, scalar_prefetch = 0 : i64, scratch_operands = 0 : i64, tpu.core_type = #tpu.core_type<tc>, window_params = [{transform_indices = @transform_0, window_bounds = array<i64: 1, 4, 6, 16>}, {transform_indices = @transform_1, window_bounds = array<i64: 1, 4, 6, 16>}, {transform_indices = @transform_2, window_bounds = array<i64: 1, 4, 6, 16>}, {pipeline_mode = #tpu.pipeline_mode<synchronous>, transform_indices = @transform_3, window_bounds = array<i64: 9, 16, 16>}, {transform_indices = @transform_4, window_bounds = array<i64: 1, 4, 4, 16>}]} {
    %cst = arith.constant 0.000000e+00 : f32
    %0 = vector.broadcast %cst : f32 to vector<16x16xf32>
    %c0 = arith.constant 0 : index
    %c0_0 = arith.constant 0 : index
    %c0_1 = arith.constant 0 : index
    %c0_2 = arith.constant 0 : index
    %1 = vector.load %arg2[%c0, %c0_0, %c0_1, %c0_2] : memref<1x4x6x16xbf16, #tpu.memory_space<vmem>>, vector<1x4x6x16xbf16>
    %2 = vector.shape_cast %1 : vector<1x4x6x16xbf16> to vector<4x6x16xbf16>
    %3 = vector.extract_strided_slice %2 {offsets = [0, 0, 0], sizes = [4, 4, 16], strides = [1, 1, 1]} : vector<4x6x16xbf16> to vector<4x4x16xbf16>
    %4 = vector.shape_cast %3 : vector<4x4x16xbf16> to vector<16x16xbf16>
    %c0_3 = arith.constant 0 : index
    %c0_4 = arith.constant 0 : index
    %c0_5 = arith.constant 0 : index
    %5 = vector.load %arg5[%c0_3, %c0_4, %c0_5] : memref<9x16x16xbf16, #tpu.memory_space<vmem>>, vector<1x16x16xbf16>
    %6 = vector.shape_cast %5 : vector<1x16x16xbf16> to vector<16x16xbf16>
    %cst_6 = arith.constant dense<0.000000e+00> : vector<16x16xf32>
    %7 = tpu.matmul %4, %6, %cst_6 {dimension_numbers = #tpu.dot_dimension_numbers<[1], [0], [0], [1], [0, 0, 1, 1], [], []>} : vector<16x16xbf16>, vector<16x16xbf16>, vector<16x16xf32> -> vector<16x16xf32>
    %8 = arith.addf %0, %7 : vector<16x16xf32>
    %9 = vector.extract_strided_slice %2 {offsets = [0, 1, 0], sizes = [4, 4, 16], strides = [1, 1, 1]} : vector<4x6x16xbf16> to vector<4x4x16xbf16>
    %10 = vector.shape_cast %9 : vector<4x4x16xbf16> to vector<16x16xbf16>
    %c1 = arith.constant 1 : index
    %c0_7 = arith.constant 0 : index
    %c0_8 = arith.constant 0 : index
    %11 = vector.load %arg5[%c1, %c0_7, %c0_8] : memref<9x16x16xbf16, #tpu.memory_space<vmem>>, vector<1x16x16xbf16>
    %12 = vector.shape_cast %11 : vector<1x16x16xbf16> to vector<16x16xbf16>
    %cst_9 = arith.constant dense<0.000000e+00> : vector<16x16xf32>
    %13 = tpu.matmul %10, %12, %cst_9 {dimension_numbers = #tpu.dot_dimension_numbers<[1], [0], [0], [1], [0, 0, 1, 1], [], []>} : vector<16x16xbf16>, vector<16x16xbf16>, vector<16x16xf32> -> vector<16x16xf32>
    %14 = arith.addf %8, %13 : vector<16x16xf32>
    %15 = vector.extract_strided_slice %2 {offsets = [0, 2, 0], sizes = [4, 4, 16], strides = [1, 1, 1]} : vector<4x6x16xbf16> to vector<4x4x16xbf16>
    %16 = vector.shape_cast %15 : vector<4x4x16xbf16> to vector<16x16xbf16>
    %c2 = arith.constant 2 : index
    %c0_10 = arith.constant 0 : index
    %c0_11 = arith.constant 0 : index
    %17 = vector.load %arg5[%c2, %c0_10, %c0_11] : memref<9x16x16xbf16, #tpu.memory_space<vmem>>, vector<1x16x16xbf16>
    %18 = vector.shape_cast %17 : vector<1x16x16xbf16> to vector<16x16xbf16>
    %cst_12 = arith.constant dense<0.000000e+00> : vector<16x16xf32>
    %19 = tpu.matmul %16, %18, %cst_12 {dimension_numbers = #tpu.dot_dimension_numbers<[1], [0], [0], [1], [0, 0, 1, 1], [], []>} : vector<16x16xbf16>, vector<16x16xbf16>, vector<16x16xf32> -> vector<16x16xf32>
    %20 = arith.addf %14, %19 : vector<16x16xf32>
    %c0_13 = arith.constant 0 : index
    %c0_14 = arith.constant 0 : index
    %c0_15 = arith.constant 0 : index
    %c0_16 = arith.constant 0 : index
    %21 = vector.load %arg3[%c0_13, %c0_14, %c0_15, %c0_16] : memref<1x4x6x16xbf16, #tpu.memory_space<vmem>>, vector<1x4x6x16xbf16>
    %22 = vector.shape_cast %21 : vector<1x4x6x16xbf16> to vector<4x6x16xbf16>
    %23 = vector.extract_strided_slice %22 {offsets = [0, 0, 0], sizes = [4, 4, 16], strides = [1, 1, 1]} : vector<4x6x16xbf16> to vector<4x4x16xbf16>
    %24 = vector.shape_cast %23 : vector<4x4x16xbf16> to vector<16x16xbf16>
    %c3 = arith.constant 3 : index
    %c0_17 = arith.constant 0 : index
    %c0_18 = arith.constant 0 : index
    %25 = vector.load %arg5[%c3, %c0_17, %c0_18] : memref<9x16x16xbf16, #tpu.memory_space<vmem>>, vector<1x16x16xbf16>
    %26 = vector.shape_cast %25 : vector<1x16x16xbf16> to vector<16x16xbf16>
    %cst_19 = arith.constant dense<0.000000e+00> : vector<16x16xf32>
    %27 = tpu.matmul %24, %26, %cst_19 {dimension_numbers = #tpu.dot_dimension_numbers<[1], [0], [0], [1], [0, 0, 1, 1], [], []>} : vector<16x16xbf16>, vector<16x16xbf16>, vector<16x16xf32> -> vector<16x16xf32>
    %28 = arith.addf %20, %27 : vector<16x16xf32>
    %29 = vector.extract_strided_slice %22 {offsets = [0, 1, 0], sizes = [4, 4, 16], strides = [1, 1, 1]} : vector<4x6x16xbf16> to vector<4x4x16xbf16>
    %30 = vector.shape_cast %29 : vector<4x4x16xbf16> to vector<16x16xbf16>
    %c4 = arith.constant 4 : index
    %c0_20 = arith.constant 0 : index
    %c0_21 = arith.constant 0 : index
    %31 = vector.load %arg5[%c4, %c0_20, %c0_21] : memref<9x16x16xbf16, #tpu.memory_space<vmem>>, vector<1x16x16xbf16>
    %32 = vector.shape_cast %31 : vector<1x16x16xbf16> to vector<16x16xbf16>
    %cst_22 = arith.constant dense<0.000000e+00> : vector<16x16xf32>
    %33 = tpu.matmul %30, %32, %cst_22 {dimension_numbers = #tpu.dot_dimension_numbers<[1], [0], [0], [1], [0, 0, 1, 1], [], []>} : vector<16x16xbf16>, vector<16x16xbf16>, vector<16x16xf32> -> vector<16x16xf32>
    %34 = arith.addf %28, %33 : vector<16x16xf32>
    %35 = vector.extract_strided_slice %22 {offsets = [0, 2, 0], sizes = [4, 4, 16], strides = [1, 1, 1]} : vector<4x6x16xbf16> to vector<4x4x16xbf16>
    %36 = vector.shape_cast %35 : vector<4x4x16xbf16> to vector<16x16xbf16>
    %c5 = arith.constant 5 : index
    %c0_23 = arith.constant 0 : index
    %c0_24 = arith.constant 0 : index
    %37 = vector.load %arg5[%c5, %c0_23, %c0_24] : memref<9x16x16xbf16, #tpu.memory_space<vmem>>, vector<1x16x16xbf16>
    %38 = vector.shape_cast %37 : vector<1x16x16xbf16> to vector<16x16xbf16>
    %cst_25 = arith.constant dense<0.000000e+00> : vector<16x16xf32>
    %39 = tpu.matmul %36, %38, %cst_25 {dimension_numbers = #tpu.dot_dimension_numbers<[1], [0], [0], [1], [0, 0, 1, 1], [], []>} : vector<16x16xbf16>, vector<16x16xbf16>, vector<16x16xf32> -> vector<16x16xf32>
    %40 = arith.addf %34, %39 : vector<16x16xf32>
    %c0_26 = arith.constant 0 : index
    %c0_27 = arith.constant 0 : index
    %c0_28 = arith.constant 0 : index
    %c0_29 = arith.constant 0 : index
    %41 = vector.load %arg4[%c0_26, %c0_27, %c0_28, %c0_29] : memref<1x4x6x16xbf16, #tpu.memory_space<vmem>>, vector<1x4x6x16xbf16>
    %42 = vector.shape_cast %41 : vector<1x4x6x16xbf16> to vector<4x6x16xbf16>
    %43 = vector.extract_strided_slice %42 {offsets = [0, 0, 0], sizes = [4, 4, 16], strides = [1, 1, 1]} : vector<4x6x16xbf16> to vector<4x4x16xbf16>
    %44 = vector.shape_cast %43 : vector<4x4x16xbf16> to vector<16x16xbf16>
    %c6 = arith.constant 6 : index
    %c0_30 = arith.constant 0 : index
    %c0_31 = arith.constant 0 : index
    %45 = vector.load %arg5[%c6, %c0_30, %c0_31] : memref<9x16x16xbf16, #tpu.memory_space<vmem>>, vector<1x16x16xbf16>
    %46 = vector.shape_cast %45 : vector<1x16x16xbf16> to vector<16x16xbf16>
    %cst_32 = arith.constant dense<0.000000e+00> : vector<16x16xf32>
    %47 = tpu.matmul %44, %46, %cst_32 {dimension_numbers = #tpu.dot_dimension_numbers<[1], [0], [0], [1], [0, 0, 1, 1], [], []>} : vector<16x16xbf16>, vector<16x16xbf16>, vector<16x16xf32> -> vector<16x16xf32>
    %48 = arith.addf %40, %47 : vector<16x16xf32>
    %49 = vector.extract_strided_slice %42 {offsets = [0, 1, 0], sizes = [4, 4, 16], strides = [1, 1, 1]} : vector<4x6x16xbf16> to vector<4x4x16xbf16>
    %50 = vector.shape_cast %49 : vector<4x4x16xbf16> to vector<16x16xbf16>
    %c7 = arith.constant 7 : index
    %c0_33 = arith.constant 0 : index
    %c0_34 = arith.constant 0 : index
    %51 = vector.load %arg5[%c7, %c0_33, %c0_34] : memref<9x16x16xbf16, #tpu.memory_space<vmem>>, vector<1x16x16xbf16>
    %52 = vector.shape_cast %51 : vector<1x16x16xbf16> to vector<16x16xbf16>
    %cst_35 = arith.constant dense<0.000000e+00> : vector<16x16xf32>
    %53 = tpu.matmul %50, %52, %cst_35 {dimension_numbers = #tpu.dot_dimension_numbers<[1], [0], [0], [1], [0, 0, 1, 1], [], []>} : vector<16x16xbf16>, vector<16x16xbf16>, vector<16x16xf32> -> vector<16x16xf32>
    %54 = arith.addf %48, %53 : vector<16x16xf32>
    %55 = vector.extract_strided_slice %42 {offsets = [0, 2, 0], sizes = [4, 4, 16], strides = [1, 1, 1]} : vector<4x6x16xbf16> to vector<4x4x16xbf16>
    %56 = vector.shape_cast %55 : vector<4x4x16xbf16> to vector<16x16xbf16>
    %c8 = arith.constant 8 : index
    %c0_36 = arith.constant 0 : index
    %c0_37 = arith.constant 0 : index
    %57 = vector.load %arg5[%c8, %c0_36, %c0_37] : memref<9x16x16xbf16, #tpu.memory_space<vmem>>, vector<1x16x16xbf16>
    %58 = vector.shape_cast %57 : vector<1x16x16xbf16> to vector<16x16xbf16>
    %cst_38 = arith.constant dense<0.000000e+00> : vector<16x16xf32>
    %59 = tpu.matmul %56, %58, %cst_38 {dimension_numbers = #tpu.dot_dimension_numbers<[1], [0], [0], [1], [0, 0, 1, 1], [], []>} : vector<16x16xbf16>, vector<16x16xbf16>, vector<16x16xf32> -> vector<16x16xf32>
    %60 = arith.addf %54, %59 : vector<16x16xf32>
    %61 = vector.shape_cast %60 : vector<16x16xf32> to vector<4x4x16xf32>
    %62 = arith.truncf %61 : vector<4x4x16xf32> to vector<4x4x16xbf16>
    %c0_39 = arith.constant 0 : index
    %c0_40 = arith.constant 0 : index
    %c0_41 = arith.constant 0 : index
    %c0_42 = arith.constant 0 : index
    %63 = vector.load %arg6[%c0_39, %c0_40, %c0_41, %c0_42] : memref<1x4x4x16xbf16, #tpu.memory_space<vmem>>, vector<1x4x4x16xbf16>
    %64 = vector.shape_cast %63 : vector<1x4x4x16xbf16> to vector<4x4x16xbf16>
    %65 = vector.shape_cast %62 : vector<4x4x16xbf16> to vector<1x4x4x16xbf16>
    tpu.vector_store %arg6[%c0_39, %c0_40, %c0_41, %c0_42], %65 {strides = array<i32>} : memref<1x4x4x16xbf16, #tpu.memory_space<vmem>>, vector<1x4x4x16xbf16>,
    return
  }
  func.func @transform_0(%arg0: i32, %arg1: i32) -> (i32, i32, i32, i32) {
    %c0_i32 = arith.constant 0 : i32
    %c0_i32_0 = arith.constant 0 : i32
    %c0_i32_1 = arith.constant 0 : i32
    return %arg0, %arg1, %c0_i32, %c0_i32_0 : i32, i32, i32, i32
  }
  func.func @transform_1(%arg0: i32, %arg1: i32) -> (i32, i32, i32, i32) {
    %c0_i32 = arith.constant 0 : i32
    %c0_i32_0 = arith.constant 0 : i32
    %c0_i32_1 = arith.constant 0 : i32
    return %arg0, %arg1, %c0_i32, %c0_i32_0 : i32, i32, i32, i32
  }
  func.func @transform_2(%arg0: i32, %arg1: i32) -> (i32, i32, i32, i32) {
    %c0_i32 = arith.constant 0 : i32
    %c0_i32_0 = arith.constant 0 : i32
    %c0_i32_1 = arith.constant 0 : i32
    return %arg0, %arg1, %c0_i32, %c0_i32_0 : i32, i32, i32, i32
  }
  func.func @transform_3(%arg0: i32, %arg1: i32) -> (i32, i32, i32) {
    %c0_i32 = arith.constant 0 : i32
    %c0_i32_0 = arith.constant 0 : i32
    %c0_i32_1 = arith.constant 0 : i32
    %c0_i32_2 = arith.constant 0 : i32
    return %c0_i32, %c0_i32_0, %c0_i32_1 : i32, i32, i32
  }
  func.func @transform_4(%arg0: i32, %arg1: i32) -> (i32, i32, i32, i32) {
    %c0_i32 = arith.constant 0 : i32
    %c0_i32_0 = arith.constant 0 : i32
    %c0_i32_1 = arith.constant 0 : i32
    return %arg0, %arg1, %c0_i32, %c0_i32_0 : i32, i32, i32, i32
  }
}

module attributes {stable_mosaic.version = 11 : i64} {
  func.func @_layernorm_kernel(%arg0: i32, %arg1: memref<32x16xbf16, #tpu.memory_space<vmem>>, %arg2: memref<1x16xf32, #tpu.memory_space<vmem>>, %arg3: memref<1x16xf32, #tpu.memory_space<vmem>>, %arg4: memref<32x16xf32, #tpu.memory_space<vmem>>) attributes {dimension_semantics = [#tpu.dimension_semantics<parallel>], iteration_bounds = array<i64: 1>, scalar_prefetch = 0 : i64, scratch_operands = 0 : i64, tpu.core_type = #tpu.core_type<tc>, window_params = [{transform_indices = @transform_0, window_bounds = array<i64: 32, 16>}, {pipeline_mode = #tpu.pipeline_mode<synchronous>, transform_indices = @transform_1, window_bounds = array<i64: 1, 16>}, {pipeline_mode = #tpu.pipeline_mode<synchronous>, transform_indices = @transform_2, window_bounds = array<i64: 1, 16>}, {transform_indices = @transform_3, window_bounds = array<i64: 32, 16>}]} {
    %c0 = arith.constant 0 : index
    %c0_0 = arith.constant 0 : index
    %0 = vector.load %arg1[%c0, %c0_0] : memref<32x16xbf16, #tpu.memory_space<vmem>>, vector<32x16xbf16>
    %1 = arith.extf %0 : vector<32x16xbf16> to vector<32x16xf32>
    %cst = arith.constant dense<0.000000e+00> : vector<32xf32>
    %2 = vector.multi_reduction <add>, %1, %cst [1] : vector<32x16xf32> to vector<32xf32>
    %3 = vector.shape_cast %2 : vector<32xf32> to vector<32x1xf32>
    %cst_1 = arith.constant 1.600000e+01 : f32
    %4 = vector.broadcast %cst_1 : f32 to vector<32x1xf32>
    %5 = arith.divf %3, %4 : vector<32x1xf32>
    %6 = vector.broadcast %5 : vector<32x1xf32> to vector<32x16xf32>
    %7 = arith.subf %1, %6 : vector<32x16xf32>
    %8 = arith.mulf %7, %7 : vector<32x16xf32>
    %cst_2 = arith.constant dense<0.000000e+00> : vector<32xf32>
    %9 = vector.multi_reduction <add>, %8, %cst_2 [1] : vector<32x16xf32> to vector<32xf32>
    %10 = vector.shape_cast %9 : vector<32xf32> to vector<32x1xf32>
    %cst_3 = arith.constant 1.600000e+01 : f32
    %11 = vector.broadcast %cst_3 : f32 to vector<32x1xf32>
    %12 = arith.divf %10, %11 : vector<32x1xf32>
    %13 = vector.broadcast %5 : vector<32x1xf32> to vector<32x16xf32>
    %14 = arith.subf %1, %13 : vector<32x16xf32>
    %cst_4 = arith.constant 9.99999997E-7 : f32
    %15 = vector.broadcast %cst_4 : f32 to vector<32x1xf32>
    %16 = arith.addf %12, %15 : vector<32x1xf32>
    %17 = math.rsqrt %16 : vector<32x1xf32>
    %18 = vector.broadcast %17 : vector<32x1xf32> to vector<32x16xf32>
    %19 = arith.mulf %14, %18 : vector<32x16xf32>
    %c0_5 = arith.constant 0 : index
    %c0_6 = arith.constant 0 : index
    %20 = vector.load %arg2[%c0_5, %c0_6] : memref<1x16xf32, #tpu.memory_space<vmem>>, vector<1x16xf32>
    %21 = vector.broadcast %20 : vector<1x16xf32> to vector<32x16xf32>
    %22 = arith.mulf %19, %21 : vector<32x16xf32>
    %c0_7 = arith.constant 0 : index
    %c0_8 = arith.constant 0 : index
    %23 = vector.load %arg3[%c0_7, %c0_8] : memref<1x16xf32, #tpu.memory_space<vmem>>, vector<1x16xf32>
    %24 = vector.broadcast %23 : vector<1x16xf32> to vector<32x16xf32>
    %25 = arith.addf %22, %24 : vector<32x16xf32>
    %c0_9 = arith.constant 0 : index
    %c0_10 = arith.constant 0 : index
    %26 = vector.load %arg4[%c0_9, %c0_10] : memref<32x16xf32, #tpu.memory_space<vmem>>, vector<32x16xf32>
    tpu.vector_store %arg4[%c0_9, %c0_10], %25 {strides = array<i32>} : memref<32x16xf32, #tpu.memory_space<vmem>>, vector<32x16xf32>,
    return
  }
  func.func @transform_0(%arg0: i32) -> (i32, i32) {
    %c0_i32 = arith.constant 0 : i32
    %c0_i32_0 = arith.constant 0 : i32
    return %arg0, %c0_i32 : i32, i32
  }
  func.func @transform_1(%arg0: i32) -> (i32, i32) {
    %c0_i32 = arith.constant 0 : i32
    %c0_i32_0 = arith.constant 0 : i32
    %c0_i32_1 = arith.constant 0 : i32
    return %c0_i32, %c0_i32_0 : i32, i32
  }
  func.func @transform_2(%arg0: i32) -> (i32, i32) {
    %c0_i32 = arith.constant 0 : i32
    %c0_i32_0 = arith.constant 0 : i32
    %c0_i32_1 = arith.constant 0 : i32
    return %c0_i32, %c0_i32_0 : i32, i32
  }
  func.func @transform_3(%arg0: i32) -> (i32, i32) {
    %c0_i32 = arith.constant 0 : i32
    %c0_i32_0 = arith.constant 0 : i32
    return %arg0, %c0_i32 : i32, i32
  }
}

</mosaic_0001>

<llo_original>
// kernel: _lambda_.16
$region0: #{_lambda_.16}
  #allocation0 [shape = 'u32[]', space=smem, size = 0x4, offset = 0x4, fixed_abs, tag = 'smem constant byte address 0x4 - core index']
  #allocation1 [shape = 'u32[144,128]{1,0:T(1,128)}', space=vmem, size = 0x12000, scoped, tag = 'internal scratch']
  %s0 = inlined_call_operand.vmem [shape: bf16[32,32], index: 0, kind: input, shape index: {}]
  %s1 = inlined_call_operand.vmem [shape: f32[1,32], index: 1, kind: input, shape index: {}]
  %s2 = inlined_call_operand.vmem [shape: f32[1,32], index: 2, kind: input, shape index: {}]
  %s3 = inlined_call_operand.vmem [shape: bf16[32,128], index: 3, kind: input, shape index: {}]
  %s4 = inlined_call_operand.vmem [shape: f32[1,128], index: 4, kind: input, shape index: {}]
  %s5 = inlined_call_operand.vmem [shape: bf16[32,128], index: 5, kind: output, shape index: {}]
  %s6 = sld [smem:[#allocation0]]
  $region30: #{_lambda_.16} parent=0
    _
  %s8 = ssub.s32 1, %s6
  %s9 = scalar_select 0, %s8, %s6
  // Predicated region
  $region2: #{_lambda_.16} parent=0 // pred_check
    _
  $region3: #{_lambda_.16} parent=0 // pred_check_branch
    %11 = sbr.rel (0) target = $region5
  $region4: #{_lambda_.16} parent=0 // pred_region
    _
  $region5: #{_lambda_.16} parent=0 // pred_fallthru
    _
  // Predicated region
  $region6: #{_lambda_.16} parent=0 // pred_check
    _
  $region7: #{_lambda_.16} parent=0 // pred_check_branch
    %13 = sbr.rel (0) target = $region9
  $region8: #{_lambda_.16} parent=0 // pred_region
    _
  $region9: #{_lambda_.16} parent=0 // pred_fallthru
    _
  // Predicated region
  $region10: #{_lambda_.16} parent=0 // pred_check
    _
  $region11: #{_lambda_.16} parent=0 // pred_check_branch
    %15 = sbr.rel (0) target = $region13
  $region12: #{_lambda_.16} parent=0 // pred_region
    _
  $region13: #{_lambda_.16} parent=0 // pred_fallthru
    _
  // Predicated region
  $region14: #{_lambda_.16} parent=0 // pred_check
    _
  $region15: #{_lambda_.16} parent=0 // pred_check_branch
    %17 = sbr.rel (0) target = $region17
  $region16: #{_lambda_.16} parent=0 // pred_region
    _
  $region17: #{_lambda_.16} parent=0 // pred_fallthru
    _
  // Predicated region
  $region18: #{_lambda_.16} parent=0 // pred_check
    _
  $region19: #{_lambda_.16} parent=0 // pred_check_branch
    %19 = sbr.rel (0) target = $region21
  $region20: #{_lambda_.16} parent=0 // pred_region
    _
  $region21: #{_lambda_.16} parent=0 // pred_fallthru
    _
  %v21 = vld [vmem:[%s0] sm:$0xf]
  %v22 = vld [vmem:[%s0 + $0x4] sm:$0xf]
  %v23 = vld [vmem:[%s0 + $0x8] sm:$0xf]
  %v24 = vld [vmem:[%s0 + $0xc] sm:$0xf]
  %v25 = vunpack.c.l.bf16 %v21
  %v26 = vunpack.c.l.bf16 %v22
  %v27 = vunpack.c.l.bf16 %v23
  %v28 = vunpack.c.l.bf16 %v24
  %vm29 = vcmask 261120
  %v30 = vsel %vm29, %v25, 0.0
  %31 = vadd.xlane.f32.xlu0 %v30
  %v32 = vpop.xlane.xlu0 %31
  %v33 = vsel %vm29, %v26, 0.0
  %34 = vadd.xlane.f32.xlu0 %v33
  %v35 = vpop.xlane.xlu0 %34
  %v36 = vsel %vm29, %v27, 0.0
  %37 = vadd.xlane.f32.xlu0 %v36
  %v38 = vpop.xlane.xlu0 %37
  %v39 = vsel %vm29, %v28, 0.0
  %40 = vadd.xlane.f32.xlu0 %v39
  %v41 = vpop.xlane.xlu0 %40
  %v42 = vrcp.pop 32.0
  %v43 = vmul.f32 %v32, %v42
  %v44 = vmul.f32 %v35, %v42
  %v45 = vmul.f32 %v38, %v42
  %v46 = vmul.f32 %v41, %v42
  %v47 = vsub.f32 %v25, %v43
  %v48 = vsub.f32 %v26, %v44
  %v49 = vsub.f32 %v27, %v45
  %v50 = vsub.f32 %v28, %v46
  %v51 = vmul.f32 %v47, %v47
  %v52 = vmul.f32 %v48, %v48
  %v53 = vmul.f32 %v49, %v49
  %v54 = vmul.f32 %v50, %v50
  %v55 = vsel %vm29, %v51, 0.0
  %56 = vadd.xlane.f32.xlu0 %v55
  %v57 = vpop.xlane.xlu0 %56
  %v58 = vsel %vm29, %v52, 0.0
  %59 = vadd.xlane.f32.xlu0 %v58
  %v60 = vpop.xlane.xlu0 %59
  %v61 = vsel %vm29, %v53, 0.0
  %62 = vadd.xlane.f32.xlu0 %v61
  %v63 = vpop.xlane.xlu0 %62
  %v64 = vsel %vm29, %v54, 0.0
  %65 = vadd.xlane.f32.xlu0 %v64
  %v66 = vpop.xlane.xlu0 %65
  %v67 = vmul.f32 %v57, %v42
  %v68 = vmul.f32 %v60, %v42
  %v69 = vmul.f32 %v63, %v42
  %v70 = vmul.f32 %v66, %v42
  %v71 = vadd.f32 %v67, 1e-05
  %v72 = vadd.f32 %v68, 1e-05
  %v73 = vadd.f32 %v69, 1e-05
  %v74 = vadd.f32 %v70, 1e-05
  %v75 = vrsqrt.pop %v71
  %v76 = vrsqrt.pop %v72
  %v77 = vrsqrt.pop %v73
  %v78 = vrsqrt.pop %v74
  %v79 = vmul.f32 %v47, %v75
  %v80 = vmul.f32 %v48, %v76
  %v81 = vmul.f32 %v49, %v77
  %v82 = vmul.f32 %v50, %v78
  %v83 = vld [vmem:[%s1] sm:$0x1]
  %v85 = vlaneseq
  %v86 = vshrl.u32 %v85, 7
  %v87 = vsub.s32 0, %v86
  %v88 = vrot.slane %v83, %v87
  %v90 = vmul.f32 %v79, %v88
  %v91 = vmul.f32 %v80, %v88
  %v92 = vmul.f32 %v81, %v88
  %v93 = vmul.f32 %v82, %v88
  %v94 = vld [vmem:[%s2] sm:$0x1]
  %v96 = vlaneseq
  %v97 = vshrl.u32 %v96, 7
  %v98 = vsub.s32 0, %v97
  %v99 = vrot.slane %v94, %v98
  %v101 = vadd.f32 %v90, %v99
  %v102 = vadd.f32 %v91, %v99
  %v103 = vadd.f32 %v92, %v99
  %v104 = vadd.f32 %v93, %v99
  %v105 = vpack.c.bf16 %v102, %v101
  %v106 = vpack.c.bf16 %v104, %v103
  %v107 = vld [vmem:[%s3] sm:$0xf]
  %v108 = vld [vmem:[%s3 + $0x4] sm:$0xf]
  %v109 = vld [vmem:[%s3 + $0x8] sm:$0xf]
  %v110 = vld [vmem:[%s3 + $0xc] sm:$0xf]
  %v111 = vld [vmem:[%s4] sm:$0x1]
  %v113 = vlaneseq
  %v114 = vshrl.u32 %v113, 7
  %v115 = vsub.s32 0, %v114
  %v116 = vrot.slane %v111, %v115
  %v122 = vunpack.c.l.b16 %v107
  %v123 = vunpack.c.l.b16 %v108
  %v124 = vunpack.c.l.b16 %v109
  %v125 = vunpack.c.l.b16 %v110
  %v126 = vpack.c.b16 %v123, %v122
  %v127 = vpack.c.b16 %v125, %v124
  %v131 = vsel %vm29, %v105, 0
  %v134 = vsel %vm29, %v106, 0
  %136 = vmatprep.subr.bf16.mxu0 0
  %137 = vmatpush1.bf16.msra.mxu0 0
  %138 = vmatprep.subr.bf16.mxu0 0
  %139 = vmatpush1.bf16.msra.mxu0 0
  %140 = vmatprep.subr.bf16.mxu0 0
  %141 = vmatpush1.bf16.msra.mxu0 0
  %142 = vmatprep.subr.bf16.mxu0 0
  %143 = vmatpush1.bf16.msra.mxu0 0
  %144 = vmatprep.subr.bf16.mxu0 0
  %145 = vmatpush1.bf16.msra.mxu0 0
  %146 = vmatprep.subr.bf16.mxu0 0
  %147 = vmatpush1.bf16.msra.mxu0 0
  %148 = vmatprep.subr.bf16.mxu0 0
  %149 = vmatpush1.bf16.msra.mxu0 %v127
  %150 = vmatprep.subr.bf16.mxu0 0
  %151 = vmatpush1.bf16.msra.mxu0 %v126
  %152 = vmatprep.subr.bf16.mxu0 0
  %153 = vmatpush2.bf16.msra.mxu0 0
  %154 = vmatprep.subr.bf16.mxu0 0
  %155 = vmatpush2.bf16.msra.mxu0 0
  %156 = vmatprep.subr.bf16.mxu0 0
  %157 = vmatpush2.bf16.msra.mxu0 0
  %158 = vmatprep.subr.bf16.mxu0 0
  %159 = vmatpush2.bf16.msra.mxu0 0
  %160 = vmatprep.subr.bf16.mxu0 0
  %161 = vmatpush2.bf16.msra.mxu0 0
  %162 = vmatprep.subr.bf16.mxu0 0
  %163 = vmatpush2.bf16.msra.mxu0 0
  %164 = vmatprep.subr.bf16.mxu0 0
  %165 = vmatpush2.bf16.msra.mxu0 0
  %166 = vmatprep.subr.bf16.mxu0 0
  %167 = vmatpush2.bf16.msra.mxu0 0
  %168 = vmatprep.mubr.bf16.mxu0 0
  %169 = vmatmul.mubr.bf16.gmra.mxu0 %v131
  %v170 = vpop.f32.mrf.mxu0
  %v171 = vadd.f32 %v116, %v170
  %v172 = vpop.f32.mrf.mxu0
  %v173 = vpop.f32.mrf.mxu0
  %v174 = vadd.f32 %v116, %v173
  %v175 = vpop.f32.mrf.mxu0
  %176 = vmatprep.mubr.bf16.mxu0 0
  %177 = vmatmul.mubr.bf16.gmra.mxu0 %v134
  %v178 = vpop.f32.mrf.mxu0
  %v179 = vadd.f32 %v116, %v178
  %v180 = vpop.f32.mrf.mxu0
  %v181 = vpop.f32.mrf.mxu0
  %v182 = vadd.f32 %v116, %v181
  %v183 = vpop.f32.mrf.mxu0
  %184 = vdwg.mxu0
  %v185 = vpack.c.bf16 %v174, %v171
  %v186 = vpack.c.bf16 %v182, %v179
  %v189 = vunpack.c.l.b16 %v185
  %v190 = vunpack.c.h.b16 %v185
  %v191 = vunpack.c.l.b16 %v186
  %v192 = vunpack.c.h.b16 %v186
  %v193 = vpack.c.b16 %v189, %v189
  %v194 = vpack.c.b16 %v190, %v190
  %v195 = vpack.c.b16 %v191, %v191
  %v196 = vpack.c.b16 %v192, %v192
  %201 = vst [vmem:[%s5] sm:$0xf] %v193
  %202 = vst [vmem:[%s5 + $0x4] sm:$0xf] %v194
  %203 = vst [vmem:[%s5 + $0x8] sm:$0xf] %v195
  %204 = vst [vmem:[%s5 + $0xc] sm:$0xf] %v196
  // Predicated region
  $region22: #{_lambda_.16} parent=0 // pred_check
    _
  $region23: #{_lambda_.16} parent=0 // pred_check_branch
    %206 = sbr.rel (0) target = $region25
  $region24: #{_lambda_.16} parent=0 // pred_region
    _
  $region25: #{_lambda_.16} parent=0 // pred_fallthru
    _
  // Predicated region
  $region26: #{_lambda_.16} parent=0 // pred_check
    _
  $region27: #{_lambda_.16} parent=0 // pred_check_branch
    %208 = sbr.rel (0) target = $region29
  $region28: #{_lambda_.16} parent=0 // pred_region
    _
  $region29: #{_lambda_.16} parent=0 // pred_fallthru
    _

// kernel: _lambda_.15
$region0: #{_lambda_.15}
  #allocation0 [shape = 'u32[]', space=smem, size = 0x4, offset = 0x4, fixed_abs, tag = 'smem constant byte address 0x4 - core index']
  #allocation1 [shape = 'u32[144,128]{1,0:T(1,128)}', space=vmem, size = 0x12000, scoped, tag = 'internal scratch']
  %s0 = inlined_call_operand.vmem [shape: bf16[32,192], index: 0, kind: input, shape index: {}]
  %s1 = inlined_call_operand.vmem [shape: bf16[192,128], index: 1, kind: input, shape index: {}]
  %s2 = inlined_call_operand.vmem [shape: f32[1,128], index: 2, kind: input, shape index: {}]
  %s3 = inlined_call_operand.vmem [shape: bf16[32,128], index: 3, kind: input, shape index: {}]
  %s4 = inlined_call_operand.vmem [shape: bf16[32,128], index: 4, kind: output, shape index: {}]
  %s5 = sld [smem:[#allocation0]]
  $region26: #{_lambda_.15} parent=0
    _
  %s7 = ssub.s32 1, %s5
  %s8 = scalar_select 0, %s7, %s5
  // Predicated region
  $region2: #{_lambda_.15} parent=0 // pred_check
    _
  $region3: #{_lambda_.15} parent=0 // pred_check_branch
    %10 = sbr.rel (0) target = $region5
  $region4: #{_lambda_.15} parent=0 // pred_region
    _
  $region5: #{_lambda_.15} parent=0 // pred_fallthru
    _
  // Predicated region
  $region6: #{_lambda_.15} parent=0 // pred_check
    _
  $region7: #{_lambda_.15} parent=0 // pred_check_branch
    %12 = sbr.rel (0) target = $region9
  $region8: #{_lambda_.15} parent=0 // pred_region
    _
  $region9: #{_lambda_.15} parent=0 // pred_fallthru
    _
  // Predicated region
  $region10: #{_lambda_.15} parent=0 // pred_check
    _
  $region11: #{_lambda_.15} parent=0 // pred_check_branch
    %14 = sbr.rel (0) target = $region13
  $region12: #{_lambda_.15} parent=0 // pred_region
    _
  $region13: #{_lambda_.15} parent=0 // pred_fallthru
    _
  // Predicated region
  $region14: #{_lambda_.15} parent=0 // pred_check
    _
  $region15: #{_lambda_.15} parent=0 // pred_check_branch
    %16 = sbr.rel (0) target = $region17
  $region16: #{_lambda_.15} parent=0 // pred_region
    _
  $region17: #{_lambda_.15} parent=0 // pred_fallthru
    _
  %v18 = vld [vmem:[%s0] sm:$0xff]
  %v19 = vld [vmem:[%s0 + $0x8] sm:$0xff]
  %v20 = vld [vmem:[%s0 + $0x10] sm:$0xff]
  %v21 = vld [vmem:[%s0 + $0x18] sm:$0xff]
  %v22 = vld [vmem:[%s1] sm:$0xf]
  %v23 = vld [vmem:[%s1 + $0x4] sm:$0xf]
  %v24 = vld [vmem:[%s1 + $0x8] sm:$0xf]
  %v25 = vld [vmem:[%s1 + $0xc] sm:$0xf]
  %v26 = vld [vmem:[%s1 + $0x10] sm:$0xf]
  %v27 = vld [vmem:[%s1 + $0x14] sm:$0xf]
  %v28 = vld [vmem:[%s1 + $0x18] sm:$0xf]
  %v29 = vld [vmem:[%s1 + $0x1c] sm:$0xf]
  %v30 = vld [vmem:[%s1 + $0x20] sm:$0xf]
  %v31 = vld [vmem:[%s1 + $0x24] sm:$0xf]
  %v32 = vld [vmem:[%s1 + $0x28] sm:$0xf]
  %v33 = vld [vmem:[%s1 + $0x2c] sm:$0xf]
  %v34 = vld [vmem:[%s1 + $0x30] sm:$0xf]
  %v35 = vld [vmem:[%s1 + $0x34] sm:$0xf]
  %v36 = vld [vmem:[%s1 + $0x38] sm:$0xf]
  %v37 = vld [vmem:[%s1 + $0x3c] sm:$0xf]
  %v38 = vld [vmem:[%s1 + $0x40] sm:$0xf]
  %v39 = vld [vmem:[%s1 + $0x44] sm:$0xf]
  %v40 = vld [vmem:[%s1 + $0x48] sm:$0xf]
  %v41 = vld [vmem:[%s1 + $0x4c] sm:$0xf]
  %v42 = vld [vmem:[%s1 + $0x50] sm:$0xf]
  %v43 = vld [vmem:[%s1 + $0x54] sm:$0xf]
  %v44 = vld [vmem:[%s1 + $0x58] sm:$0xf]
  %v45 = vld [vmem:[%s1 + $0x5c] sm:$0xf]
  %v46 = vld [vmem:[%s2] sm:$0x1]
  %v48 = vlaneseq
  %v49 = vshrl.u32 %v48, 7
  %v50 = vsub.s32 0, %v49
  %v51 = vrot.slane %v46, %v50
  %v57 = vunpack.c.l.b16 %v18
  %v58 = vunpack.c.h.b16 %v18
  %v59 = vunpack.c.l.b16 %v19
  %v60 = vunpack.c.h.b16 %v19
  %v61 = vunpack.c.l.b16 %v20
  %v62 = vunpack.c.h.b16 %v20
  %v63 = vunpack.c.l.b16 %v21
  %v64 = vunpack.c.h.b16 %v21
  %v65 = vpack.c.b16 %v59, %v57
  %v66 = vpack.c.b16 %v60, %v58
  %v67 = vpack.c.b16 %v63, %v61
  %v68 = vpack.c.b16 %v64, %v62
  %v95 = vunpack.c.l.b16 %v22
  %v96 = vunpack.c.l.b16 %v23
  %v97 = vunpack.c.l.b16 %v24
  %v98 = vunpack.c.l.b16 %v25
  %v99 = vunpack.c.l.b16 %v26
  %v100 = vunpack.c.l.b16 %v27
  %v101 = vunpack.c.l.b16 %v28
  %v102 = vunpack.c.l.b16 %v29
  %v103 = vunpack.c.l.b16 %v30
  %v104 = vunpack.c.l.b16 %v31
  %v105 = vunpack.c.l.b16 %v32
  %v106 = vunpack.c.l.b16 %v33
  %v107 = vunpack.c.l.b16 %v34
  %v108 = vunpack.c.l.b16 %v35
  %v109 = vunpack.c.l.b16 %v36
  %v110 = vunpack.c.l.b16 %v37
  %v111 = vunpack.c.l.b16 %v38
  %v112 = vunpack.c.l.b16 %v39
  %v113 = vunpack.c.l.b16 %v40
  %v114 = vunpack.c.l.b16 %v41
  %v115 = vunpack.c.l.b16 %v42
  %v116 = vunpack.c.l.b16 %v43
  %v117 = vunpack.c.l.b16 %v44
  %v118 = vunpack.c.l.b16 %v45
  %v119 = vpack.c.b16 %v96, %v95
  %v120 = vpack.c.b16 %v98, %v97
  %v121 = vpack.c.b16 %v100, %v99
  %v122 = vpack.c.b16 %v102, %v101
  %v123 = vpack.c.b16 %v104, %v103
  %v124 = vpack.c.b16 %v106, %v105
  %v125 = vpack.c.b16 %v108, %v107
  %v126 = vpack.c.b16 %v110, %v109
  %v127 = vpack.c.b16 %v112, %v111
  %v128 = vpack.c.b16 %v114, %v113
  %v129 = vpack.c.b16 %v116, %v115
  %v130 = vpack.c.b16 %v118, %v117
  %vm143 = vcmask 523264
  %v145 = vsel %vm143, %v66, 0
  %v148 = vsel %vm143, %v68, 0
  %150 = vmatprep.subr.bf16.mxu0 0
  %151 = vmatpush1.bf16.msra.mxu0 %v126
  %152 = vmatprep.subr.bf16.mxu0 0
  %153 = vmatpush1.bf16.msra.mxu0 %v125
  %154 = vmatprep.subr.bf16.mxu0 0
  %155 = vmatpush1.bf16.msra.mxu0 %v124
  %156 = vmatprep.subr.bf16.mxu0 0
  %157 = vmatpush1.bf16.msra.mxu0 %v123
  %158 = vmatprep.subr.bf16.mxu0 0
  %159 = vmatpush1.bf16.msra.mxu0 %v122
  %160 = vmatprep.subr.bf16.mxu0 0
  %161 = vmatpush1.bf16.msra.mxu0 %v121
  %162 = vmatprep.subr.bf16.mxu0 0
  %163 = vmatpush1.bf16.msra.mxu0 %v120
  %164 = vmatprep.subr.bf16.mxu0 0
  %165 = vmatpush1.bf16.msra.mxu0 %v119
  %166 = vmatprep.subr.bf16.mxu0 0
  %167 = vmatpush2.bf16.msra.mxu0 0
  %168 = vmatprep.subr.bf16.mxu0 0
  %169 = vmatpush2.bf16.msra.mxu0 0
  %170 = vmatprep.subr.bf16.mxu0 0
  %171 = vmatpush2.bf16.msra.mxu0 0
  %172 = vmatprep.subr.bf16.mxu0 0
  %173 = vmatpush2.bf16.msra.mxu0 0
  %174 = vmatprep.subr.bf16.mxu0 0
  %175 = vmatpush2.bf16.msra.mxu0 %v130
  %176 = vmatprep.subr.bf16.mxu0 0
  %177 = vmatpush2.bf16.msra.mxu0 %v129
  %178 = vmatprep.subr.bf16.mxu0 0
  %179 = vmatpush2.bf16.msra.mxu0 %v128
  %180 = vmatprep.subr.bf16.mxu0 0
  %181 = vmatpush2.bf16.msra.mxu0 %v127
  %182 = vmatprep.mubr.bf16.mxu0 %v145
  %183 = vmatmul.mubr.bf16.gmra.mxu0 %v65
  %v184 = vpop.f32.mrf.mxu0
  %v185 = vadd.f32 %v51, %v184
  %v186 = vpop.f32.mrf.mxu0
  %v187 = vpop.f32.mrf.mxu0
  %v188 = vadd.f32 %v51, %v187
  %v189 = vpop.f32.mrf.mxu0
  %190 = vmatprep.mubr.bf16.mxu0 %v148
  %191 = vmatmul.mubr.bf16.gmra.mxu0 %v67
  %v192 = vpop.f32.mrf.mxu0
  %v193 = vadd.f32 %v51, %v192
  %v194 = vpop.f32.mrf.mxu0
  %v195 = vpop.f32.mrf.mxu0
  %v196 = vadd.f32 %v51, %v195
  %v197 = vpop.f32.mrf.mxu0
  %198 = vdwg.mxu0
  %v199 = vld [vmem:[%s3] sm:$0xf]
  %v200 = vld [vmem:[%s3 + $0x4] sm:$0xf]
  %v201 = vld [vmem:[%s3 + $0x8] sm:$0xf]
  %v202 = vld [vmem:[%s3 + $0xc] sm:$0xf]
  %v203 = vunpack.c.l.bf16 %v199
  %v204 = vunpack.c.l.bf16 %v200
  %v205 = vunpack.c.l.bf16 %v201
  %v206 = vunpack.c.l.bf16 %v202
  %v207 = vadd.f32 %v185, %v203
  %v208 = vadd.f32 %v188, %v204
  %v209 = vadd.f32 %v193, %v205
  %v210 = vadd.f32 %v196, %v206
  %v211 = vpack.c.bf16 %v208, %v207
  %v212 = vpack.c.bf16 %v210, %v209
  %v215 = vunpack.c.l.b16 %v211
  %v216 = vunpack.c.h.b16 %v211
  %v217 = vunpack.c.l.b16 %v212
  %v218 = vunpack.c.h.b16 %v212
  %v219 = vpack.c.b16 %v215, %v215
  %v220 = vpack.c.b16 %v216, %v216
  %v221 = vpack.c.b16 %v217, %v217
  %v222 = vpack.c.b16 %v218, %v218
  %227 = vst [vmem:[%s4] sm:$0xf] %v219
  %228 = vst [vmem:[%s4 + $0x4] sm:$0xf] %v220
  %229 = vst [vmem:[%s4 + $0x8] sm:$0xf] %v221
  %230 = vst [vmem:[%s4 + $0xc] sm:$0xf] %v222
  // Predicated region
  $region18: #{_lambda_.15} parent=0 // pred_check
    _
  $region19: #{_lambda_.15} parent=0 // pred_check_branch
    %232 = sbr.rel (0) target = $region21
  $region20: #{_lambda_.15} parent=0 // pred_region
    _
  $region21: #{_lambda_.15} parent=0 // pred_fallthru
    _
  // Predicated region
  $region22: #{_lambda_.15} parent=0 // pred_check
    _
  $region23: #{_lambda_.15} parent=0 // pred_check_branch
    %234 = sbr.rel (0) target = $region25
  $region24: #{_lambda_.15} parent=0 // pred_region
    _
  $region25: #{_lambda_.15} parent=0 // pred_fallthru
    _

// kernel: _lambda_.18
$region0: #{_lambda_.18}
  #allocation0 [shape = 'u32[]', space=smem, size = 0x4, offset = 0x4, fixed_abs, tag = 'smem constant byte address 0x4 - core index']
  #allocation1 [shape = 'u32[144,128]{1,0:T(1,128)}', space=vmem, size = 0x12000, scoped, tag = 'internal scratch']
  %s0 = inlined_call_operand.vmem [shape: bf16[32,32], index: 0, kind: input, shape index: {}]
  %s1 = inlined_call_operand.vmem [shape: bf16[32,128], index: 1, kind: input, shape index: {}]
  %s2 = inlined_call_operand.vmem [shape: f32[1,128], index: 2, kind: input, shape index: {}]
  %s3 = inlined_call_operand.vmem [shape: bf16[32,128], index: 3, kind: output, shape index: {}]
  %s4 = sld [smem:[#allocation0]]
  $region22: #{_lambda_.18} parent=0
    _
  %s6 = ssub.s32 1, %s4
  %s7 = scalar_select 0, %s6, %s4
  // Predicated region
  $region2: #{_lambda_.18} parent=0 // pred_check
    _
  $region3: #{_lambda_.18} parent=0 // pred_check_branch
    %9 = sbr.rel (0) target = $region5
  $region4: #{_lambda_.18} parent=0 // pred_region
    _
  $region5: #{_lambda_.18} parent=0 // pred_fallthru
    _
  // Predicated region
  $region6: #{_lambda_.18} parent=0 // pred_check
    _
  $region7: #{_lambda_.18} parent=0 // pred_check_branch
    %11 = sbr.rel (0) target = $region9
  $region8: #{_lambda_.18} parent=0 // pred_region
    _
  $region9: #{_lambda_.18} parent=0 // pred_fallthru
    _
  // Predicated region
  $region10: #{_lambda_.18} parent=0 // pred_check
    _
  $region11: #{_lambda_.18} parent=0 // pred_check_branch
    %13 = sbr.rel (0) target = $region13
  $region12: #{_lambda_.18} parent=0 // pred_region
    _
  $region13: #{_lambda_.18} parent=0 // pred_fallthru
    _
  %v15 = vld [vmem:[%s0] sm:$0xf]
  %v16 = vld [vmem:[%s0 + $0x4] sm:$0xf]
  %v17 = vld [vmem:[%s0 + $0x8] sm:$0xf]
  %v18 = vld [vmem:[%s0 + $0xc] sm:$0xf]
  %v19 = vld [vmem:[%s1] sm:$0xf]
  %v20 = vld [vmem:[%s1 + $0x4] sm:$0xf]
  %v21 = vld [vmem:[%s1 + $0x8] sm:$0xf]
  %v22 = vld [vmem:[%s1 + $0xc] sm:$0xf]
  %v23 = vld [vmem:[%s2] sm:$0x1]
  %v25 = vlaneseq
  %v26 = vshrl.u32 %v25, 7
  %v27 = vsub.s32 0, %v26
  %v28 = vrot.slane %v23, %v27
  %v34 = vunpack.c.l.b16 %v15
  %v35 = vunpack.c.l.b16 %v16
  %v36 = vunpack.c.l.b16 %v17
  %v37 = vunpack.c.l.b16 %v18
  %v38 = vpack.c.b16 %v35, %v34
  %v39 = vpack.c.b16 %v37, %v36
  %v44 = vunpack.c.l.b16 %v19
  %v45 = vunpack.c.l.b16 %v20
  %v46 = vunpack.c.l.b16 %v21
  %v47 = vunpack.c.l.b16 %v22
  %v48 = vpack.c.b16 %v45, %v44
  %v49 = vpack.c.b16 %v47, %v46
  %vm52 = vcmask 261120
  %v54 = vsel %vm52, %v38, 0
  %v57 = vsel %vm52, %v39, 0
  %59 = vmatprep.subr.bf16.mxu0 0
  %60 = vmatpush1.bf16.msra.mxu0 0
  %61 = vmatprep.subr.bf16.mxu0 0
  %62 = vmatpush1.bf16.msra.mxu0 0
  %63 = vmatprep.subr.bf16.mxu0 0
  %64 = vmatpush1.bf16.msra.mxu0 0
  %65 = vmatprep.subr.bf16.mxu0 0
  %66 = vmatpush1.bf16.msra.mxu0 0
  %67 = vmatprep.subr.bf16.mxu0 0
  %68 = vmatpush1.bf16.msra.mxu0 0
  %69 = vmatprep.subr.bf16.mxu0 0
  %70 = vmatpush1.bf16.msra.mxu0 0
  %71 = vmatprep.subr.bf16.mxu0 0
  %72 = vmatpush1.bf16.msra.mxu0 %v49
  %73 = vmatprep.subr.bf16.mxu0 0
  %74 = vmatpush1.bf16.msra.mxu0 %v48
  %75 = vmatprep.subr.bf16.mxu0 0
  %76 = vmatpush2.bf16.msra.mxu0 0
  %77 = vmatprep.subr.bf16.mxu0 0
  %78 = vmatpush2.bf16.msra.mxu0 0
  %79 = vmatprep.subr.bf16.mxu0 0
  %80 = vmatpush2.bf16.msra.mxu0 0
  %81 = vmatprep.subr.bf16.mxu0 0
  %82 = vmatpush2.bf16.msra.mxu0 0
  %83 = vmatprep.subr.bf16.mxu0 0
  %84 = vmatpush2.bf16.msra.mxu0 0
  %85 = vmatprep.subr.bf16.mxu0 0
  %86 = vmatpush2.bf16.msra.mxu0 0
  %87 = vmatprep.subr.bf16.mxu0 0
  %88 = vmatpush2.bf16.msra.mxu0 0
  %89 = vmatprep.subr.bf16.mxu0 0
  %90 = vmatpush2.bf16.msra.mxu0 0
  %91 = vmatprep.mubr.bf16.mxu0 0
  %92 = vmatmul.mubr.bf16.gmra.mxu0 %v54
  %v93 = vpop.f32.mrf.mxu0
  %v94 = vadd.f32 %v28, %v93
  %v95 = vpop.f32.mrf.mxu0
  %v96 = vpop.f32.mrf.mxu0
  %v97 = vadd.f32 %v28, %v96
  %v98 = vpop.f32.mrf.mxu0
  %99 = vmatprep.mubr.bf16.mxu0 0
  %100 = vmatmul.mubr.bf16.gmra.mxu0 %v57
  %v101 = vpop.f32.mrf.mxu0
  %v102 = vadd.f32 %v28, %v101
  %v103 = vpop.f32.mrf.mxu0
  %v104 = vpop.f32.mrf.mxu0
  %v105 = vadd.f32 %v28, %v104
  %v106 = vpop.f32.mrf.mxu0
  %107 = vdwg.mxu0
  %v108 = vpack.c.bf16 %v97, %v94
  %v109 = vpack.c.bf16 %v105, %v102
  %v112 = vunpack.c.l.b16 %v108
  %v113 = vunpack.c.h.b16 %v108
  %v114 = vunpack.c.l.b16 %v109
  %v115 = vunpack.c.h.b16 %v109
  %v116 = vpack.c.b16 %v112, %v112
  %v117 = vpack.c.b16 %v113, %v113
  %v118 = vpack.c.b16 %v114, %v114
  %v119 = vpack.c.b16 %v115, %v115
  %124 = vst [vmem:[%s3] sm:$0xf] %v116
  %125 = vst [vmem:[%s3 + $0x4] sm:$0xf] %v117
  %126 = vst [vmem:[%s3 + $0x8] sm:$0xf] %v118
  %127 = vst [vmem:[%s3 + $0xc] sm:$0xf] %v119
  // Predicated region
  $region14: #{_lambda_.18} parent=0 // pred_check
    _
  $region15: #{_lambda_.18} parent=0 // pred_check_branch
    %129 = sbr.rel (0) target = $region17
  $region16: #{_lambda_.18} parent=0 // pred_region
    _
  $region17: #{_lambda_.18} parent=0 // pred_fallthru
    _
  // Predicated region
  $region18: #{_lambda_.18} parent=0 // pred_check
    _
  $region19: #{_lambda_.18} parent=0 // pred_check_branch
    %131 = sbr.rel (0) target = $region21
  $region20: #{_lambda_.18} parent=0 // pred_region
    _
  $region21: #{_lambda_.18} parent=0 // pred_fallthru
    _

// kernel: _lambda_.19
$region0: #{_lambda_.19}
  #allocation0 [shape = 'u32[]', space=smem, size = 0x4, offset = 0x4, fixed_abs, tag = 'smem constant byte address 0x4 - core index']
  #allocation1 [shape = 'u32[144,128]{1,0:T(1,128)}', space=vmem, size = 0x12000, scoped, tag = 'internal scratch']
  %s0 = inlined_call_operand.vmem [shape: bf16[32,32], index: 0, kind: input, shape index: {}]
  %s1 = inlined_call_operand.vmem [shape: f32[1,32], index: 1, kind: input, shape index: {}]
  %s2 = inlined_call_operand.vmem [shape: f32[1,32], index: 2, kind: input, shape index: {}]
  %s3 = inlined_call_operand.vmem [shape: bf16[32,128], index: 3, kind: input, shape index: {}]
  %s4 = inlined_call_operand.vmem [shape: f32[1,128], index: 4, kind: input, shape index: {}]
  %s5 = inlined_call_operand.vmem [shape: bf16[32,128], index: 5, kind: output, shape index: {}]
  %s6 = sld [smem:[#allocation0]]
  $region30: #{_lambda_.19} parent=0
    _
  %s8 = ssub.s32 1, %s6
  %s9 = scalar_select 0, %s8, %s6
  // Predicated region
  $region2: #{_lambda_.19} parent=0 // pred_check
    _
  $region3: #{_lambda_.19} parent=0 // pred_check_branch
    %11 = sbr.rel (0) target = $region5
  $region4: #{_lambda_.19} parent=0 // pred_region
    _
  $region5: #{_lambda_.19} parent=0 // pred_fallthru
    _
  // Predicated region
  $region6: #{_lambda_.19} parent=0 // pred_check
    _
  $region7: #{_lambda_.19} parent=0 // pred_check_branch
    %13 = sbr.rel (0) target = $region9
  $region8: #{_lambda_.19} parent=0 // pred_region
    _
  $region9: #{_lambda_.19} parent=0 // pred_fallthru
    _
  // Predicated region
  $region10: #{_lambda_.19} parent=0 // pred_check
    _
  $region11: #{_lambda_.19} parent=0 // pred_check_branch
    %15 = sbr.rel (0) target = $region13
  $region12: #{_lambda_.19} parent=0 // pred_region
    _
  $region13: #{_lambda_.19} parent=0 // pred_fallthru
    _
  // Predicated region
  $region14: #{_lambda_.19} parent=0 // pred_check
    _
  $region15: #{_lambda_.19} parent=0 // pred_check_branch
    %17 = sbr.rel (0) target = $region17
  $region16: #{_lambda_.19} parent=0 // pred_region
    _
  $region17: #{_lambda_.19} parent=0 // pred_fallthru
    _
  // Predicated region
  $region18: #{_lambda_.19} parent=0 // pred_check
    _
  $region19: #{_lambda_.19} parent=0 // pred_check_branch
    %19 = sbr.rel (0) target = $region21
  $region20: #{_lambda_.19} parent=0 // pred_region
    _
  $region21: #{_lambda_.19} parent=0 // pred_fallthru
    _
  %v21 = vld [vmem:[%s0] sm:$0xf]
  %v22 = vld [vmem:[%s0 + $0x4] sm:$0xf]
  %v23 = vld [vmem:[%s0 + $0x8] sm:$0xf]
  %v24 = vld [vmem:[%s0 + $0xc] sm:$0xf]
  %v25 = vunpack.c.l.bf16 %v21
  %v26 = vunpack.c.l.bf16 %v22
  %v27 = vunpack.c.l.bf16 %v23
  %v28 = vunpack.c.l.bf16 %v24
  %vm29 = vcmask 261120
  %v30 = vsel %vm29, %v25, 0.0
  %31 = vadd.xlane.f32.xlu0 %v30
  %v32 = vpop.xlane.xlu0 %31
  %v33 = vsel %vm29, %v26, 0.0
  %34 = vadd.xlane.f32.xlu0 %v33
  %v35 = vpop.xlane.xlu0 %34
  %v36 = vsel %vm29, %v27, 0.0
  %37 = vadd.xlane.f32.xlu0 %v36
  %v38 = vpop.xlane.xlu0 %37
  %v39 = vsel %vm29, %v28, 0.0
  %40 = vadd.xlane.f32.xlu0 %v39
  %v41 = vpop.xlane.xlu0 %40
  %v42 = vrcp.pop 32.0
  %v43 = vmul.f32 %v32, %v42
  %v44 = vmul.f32 %v35, %v42
  %v45 = vmul.f32 %v38, %v42
  %v46 = vmul.f32 %v41, %v42
  %v47 = vsub.f32 %v25, %v43
  %v48 = vsub.f32 %v26, %v44
  %v49 = vsub.f32 %v27, %v45
  %v50 = vsub.f32 %v28, %v46
  %v51 = vmul.f32 %v47, %v47
  %v52 = vmul.f32 %v48, %v48
  %v53 = vmul.f32 %v49, %v49
  %v54 = vmul.f32 %v50, %v50
  %v55 = vsel %vm29, %v51, 0.0
  %56 = vadd.xlane.f32.xlu0 %v55
  %v57 = vpop.xlane.xlu0 %56
  %v58 = vsel %vm29, %v52, 0.0
  %59 = vadd.xlane.f32.xlu0 %v58
  %v60 = vpop.xlane.xlu0 %59
  %v61 = vsel %vm29, %v53, 0.0
  %62 = vadd.xlane.f32.xlu0 %v61
  %v63 = vpop.xlane.xlu0 %62
  %v64 = vsel %vm29, %v54, 0.0
  %65 = vadd.xlane.f32.xlu0 %v64
  %v66 = vpop.xlane.xlu0 %65
  %v67 = vmul.f32 %v57, %v42
  %v68 = vmul.f32 %v60, %v42
  %v69 = vmul.f32 %v63, %v42
  %v70 = vmul.f32 %v66, %v42
  %v71 = vadd.f32 %v67, 1e-05
  %v72 = vadd.f32 %v68, 1e-05
  %v73 = vadd.f32 %v69, 1e-05
  %v74 = vadd.f32 %v70, 1e-05
  %v75 = vrsqrt.pop %v71
  %v76 = vrsqrt.pop %v72
  %v77 = vrsqrt.pop %v73
  %v78 = vrsqrt.pop %v74
  %v79 = vmul.f32 %v47, %v75
  %v80 = vmul.f32 %v48, %v76
  %v81 = vmul.f32 %v49, %v77
  %v82 = vmul.f32 %v50, %v78
  %v83 = vld [vmem:[%s1] sm:$0x1]
  %v85 = vlaneseq
  %v86 = vshrl.u32 %v85, 7
  %v87 = vsub.s32 0, %v86
  %v88 = vrot.slane %v83, %v87
  %v90 = vmul.f32 %v79, %v88
  %v91 = vmul.f32 %v80, %v88
  %v92 = vmul.f32 %v81, %v88
  %v93 = vmul.f32 %v82, %v88
  %v94 = vld [vmem:[%s2] sm:$0x1]
  %v96 = vlaneseq
  %v97 = vshrl.u32 %v96, 7
  %v98 = vsub.s32 0, %v97
  %v99 = vrot.slane %v94, %v98
  %v101 = vadd.f32 %v90, %v99
  %v102 = vadd.f32 %v91, %v99
  %v103 = vadd.f32 %v92, %v99
  %v104 = vadd.f32 %v93, %v99
  %v105 = vpack.c.bf16 %v102, %v101
  %v106 = vpack.c.bf16 %v104, %v103
  %v107 = vld [vmem:[%s3] sm:$0xf]
  %v108 = vld [vmem:[%s3 + $0x4] sm:$0xf]
  %v109 = vld [vmem:[%s3 + $0x8] sm:$0xf]
  %v110 = vld [vmem:[%s3 + $0xc] sm:$0xf]
  %v111 = vld [vmem:[%s4] sm:$0x1]
  %v113 = vlaneseq
  %v114 = vshrl.u32 %v113, 7
  %v115 = vsub.s32 0, %v114
  %v116 = vrot.slane %v111, %v115
  %v122 = vunpack.c.l.b16 %v107
  %v123 = vunpack.c.l.b16 %v108
  %v124 = vunpack.c.l.b16 %v109
  %v125 = vunpack.c.l.b16 %v110
  %v126 = vpack.c.b16 %v123, %v122
  %v127 = vpack.c.b16 %v125, %v124
  %v131 = vsel %vm29, %v105, 0
  %v134 = vsel %vm29, %v106, 0
  %136 = vmatprep.subr.bf16.mxu0 0
  %137 = vmatpush1.bf16.msra.mxu0 0
  %138 = vmatprep.subr.bf16.mxu0 0
  %139 = vmatpush1.bf16.msra.mxu0 0
  %140 = vmatprep.subr.bf16.mxu0 0
  %141 = vmatpush1.bf16.msra.mxu0 0
  %142 = vmatprep.subr.bf16.mxu0 0
  %143 = vmatpush1.bf16.msra.mxu0 0
  %144 = vmatprep.subr.bf16.mxu0 0
  %145 = vmatpush1.bf16.msra.mxu0 0
  %146 = vmatprep.subr.bf16.mxu0 0
  %147 = vmatpush1.bf16.msra.mxu0 0
  %148 = vmatprep.subr.bf16.mxu0 0
  %149 = vmatpush1.bf16.msra.mxu0 %v127
  %150 = vmatprep.subr.bf16.mxu0 0
  %151 = vmatpush1.bf16.msra.mxu0 %v126
  %152 = vmatprep.subr.bf16.mxu0 0
  %153 = vmatpush2.bf16.msra.mxu0 0
  %154 = vmatprep.subr.bf16.mxu0 0
  %155 = vmatpush2.bf16.msra.mxu0 0
  %156 = vmatprep.subr.bf16.mxu0 0
  %157 = vmatpush2.bf16.msra.mxu0 0
  %158 = vmatprep.subr.bf16.mxu0 0
  %159 = vmatpush2.bf16.msra.mxu0 0
  %160 = vmatprep.subr.bf16.mxu0 0
  %161 = vmatpush2.bf16.msra.mxu0 0
  %162 = vmatprep.subr.bf16.mxu0 0
  %163 = vmatpush2.bf16.msra.mxu0 0
  %164 = vmatprep.subr.bf16.mxu0 0
  %165 = vmatpush2.bf16.msra.mxu0 0
  %166 = vmatprep.subr.bf16.mxu0 0
  %167 = vmatpush2.bf16.msra.mxu0 0
  %168 = vmatprep.mubr.bf16.mxu0 0
  %169 = vmatmul.mubr.bf16.gmra.mxu0 %v131
  %v170 = vpop.f32.mrf.mxu0
  %v171 = vadd.f32 %v116, %v170
  %v172 = vpop.f32.mrf.mxu0
  %v173 = vpop.f32.mrf.mxu0
  %v174 = vadd.f32 %v116, %v173
  %v175 = vpop.f32.mrf.mxu0
  %176 = vmatprep.mubr.bf16.mxu0 0
  %177 = vmatmul.mubr.bf16.gmra.mxu0 %v134
  %v178 = vpop.f32.mrf.mxu0
  %v179 = vadd.f32 %v116, %v178
  %v180 = vpop.f32.mrf.mxu0
  %v181 = vpop.f32.mrf.mxu0
  %v182 = vadd.f32 %v116, %v181
  %v183 = vpop.f32.mrf.mxu0
  %184 = vdwg.mxu0
  %v185 = vmul.f32 %v171, 0.5
  %v186 = vmul.f32 %v174, 0.5
  %v187 = vmul.f32 %v179, 0.5
  %v188 = vmul.f32 %v182, 0.5
  %v189 = vmul.f32 %v171, 0.044715
  %v190 = vmul.f32 %v174, 0.044715
  %v191 = vmul.f32 %v179, 0.044715
  %v192 = vmul.f32 %v182, 0.044715
  %v193 = vmul.f32 %v189, %v171
  %v194 = vmul.f32 %v190, %v174
  %v195 = vmul.f32 %v191, %v179
  %v196 = vmul.f32 %v192, %v182
  %v197 = vmul.f32 %v193, %v171
  %v198 = vmul.f32 %v194, %v174
  %v199 = vmul.f32 %v195, %v179
  %v200 = vmul.f32 %v196, %v182
  %v201 = vadd.f32 %v171, %v197
  %v202 = vadd.f32 %v174, %v198
  %v203 = vadd.f32 %v179, %v199
  %v204 = vadd.f32 %v182, %v200
  %v205 = vmul.f32 %v201, 0.7978846
  %v206 = vmul.f32 %v202, 0.7978846
  %v207 = vmul.f32 %v203, 0.7978846
  %v208 = vmul.f32 %v204, 0.7978846
  %v209 = vtanh.pop %v205
  %v210 = vtanh.pop %v206
  %v211 = vtanh.pop %v207
  %v212 = vtanh.pop %v208
  %v213 = vadd.f32 %v209, 1.0
  %v214 = vadd.f32 %v210, 1.0
  %v215 = vadd.f32 %v211, 1.0
  %v216 = vadd.f32 %v212, 1.0
  %v217 = vmul.f32 %v185, %v213
  %v218 = vmul.f32 %v186, %v214
  %v219 = vmul.f32 %v187, %v215
  %v220 = vmul.f32 %v188, %v216
  %v221 = vpack.c.bf16 %v218, %v217
  %v222 = vpack.c.bf16 %v220, %v219
  %v225 = vunpack.c.l.b16 %v221
  %v226 = vunpack.c.h.b16 %v221
  %v227 = vunpack.c.l.b16 %v222
  %v228 = vunpack.c.h.b16 %v222
  %v229 = vpack.c.b16 %v225, %v225
  %v230 = vpack.c.b16 %v226, %v226
  %v231 = vpack.c.b16 %v227, %v227
  %v232 = vpack.c.b16 %v228, %v228
  %237 = vst [vmem:[%s5] sm:$0xf] %v229
  %238 = vst [vmem:[%s5 + $0x4] sm:$0xf] %v230
  %239 = vst [vmem:[%s5 + $0x8] sm:$0xf] %v231
  %240 = vst [vmem:[%s5 + $0xc] sm:$0xf] %v232
  // Predicated region
  $region22: #{_lambda_.19} parent=0 // pred_check
    _
  $region23: #{_lambda_.19} parent=0 // pred_check_branch
    %242 = sbr.rel (0) target = $region25
  $region24: #{_lambda_.19} parent=0 // pred_region
    _
  $region25: #{_lambda_.19} parent=0 // pred_fallthru
    _
  // Predicated region
  $region26: #{_lambda_.19} parent=0 // pred_check
    _
  $region27: #{_lambda_.19} parent=0 // pred_check_branch
    %244 = sbr.rel (0) target = $region29
  $region28: #{_lambda_.19} parent=0 // pred_region
    _
  $region29: #{_lambda_.19} parent=0 // pred_fallthru
    _

// kernel: _lambda_.20
$region0: #{_lambda_.20}
  #allocation0 [shape = 'u32[]', space=smem, size = 0x4, offset = 0x4, fixed_abs, tag = 'smem constant byte address 0x4 - core index']
  #allocation1 [shape = 'u32[144,128]{1,0:T(1,128)}', space=vmem, size = 0x12000, scoped, tag = 'internal scratch']
  %s0 = inlined_call_operand.vmem [shape: bf16[32,128], index: 0, kind: input, shape index: {}]
  %s1 = inlined_call_operand.vmem [shape: bf16[128,128], index: 1, kind: input, shape index: {}]
  %s2 = inlined_call_operand.vmem [shape: f32[1,128], index: 2, kind: input, shape index: {}]
  %s3 = inlined_call_operand.vmem [shape: bf16[32,128], index: 3, kind: input, shape index: {}]
  %s4 = inlined_call_operand.vmem [shape: bf16[32,128], index: 4, kind: output, shape index: {}]
  %s5 = sld [smem:[#allocation0]]
  $region26: #{_lambda_.20} parent=0
    _
  %s7 = ssub.s32 1, %s5
  %s8 = scalar_select 0, %s7, %s5
  // Predicated region
  $region2: #{_lambda_.20} parent=0 // pred_check
    _
  $region3: #{_lambda_.20} parent=0 // pred_check_branch
    %10 = sbr.rel (0) target = $region5
  $region4: #{_lambda_.20} parent=0 // pred_region
    _
  $region5: #{_lambda_.20} parent=0 // pred_fallthru
    _
  // Predicated region
  $region6: #{_lambda_.20} parent=0 // pred_check
    _
  $region7: #{_lambda_.20} parent=0 // pred_check_branch
    %12 = sbr.rel (0) target = $region9
  $region8: #{_lambda_.20} parent=0 // pred_region
    _
  $region9: #{_lambda_.20} parent=0 // pred_fallthru
    _
  // Predicated region
  $region10: #{_lambda_.20} parent=0 // pred_check
    _
  $region11: #{_lambda_.20} parent=0 // pred_check_branch
    %14 = sbr.rel (0) target = $region13
  $region12: #{_lambda_.20} parent=0 // pred_region
    _
  $region13: #{_lambda_.20} parent=0 // pred_fallthru
    _
  // Predicated region
  $region14: #{_lambda_.20} parent=0 // pred_check
    _
  $region15: #{_lambda_.20} parent=0 // pred_check_branch
    %16 = sbr.rel (0) target = $region17
  $region16: #{_lambda_.20} parent=0 // pred_region
    _
  $region17: #{_lambda_.20} parent=0 // pred_fallthru
    _
  %v18 = vld [vmem:[%s0] sm:$0xf]
  %v19 = vld [vmem:[%s0 + $0x4] sm:$0xf]
  %v20 = vld [vmem:[%s0 + $0x8] sm:$0xf]
  %v21 = vld [vmem:[%s0 + $0xc] sm:$0xf]
  %v22 = vld [vmem:[%s1] sm:$0xf]
  %v23 = vld [vmem:[%s1 + $0x4] sm:$0xf]
  %v24 = vld [vmem:[%s1 + $0x8] sm:$0xf]
  %v25 = vld [vmem:[%s1 + $0xc] sm:$0xf]
  %v26 = vld [vmem:[%s1 + $0x10] sm:$0xf]
  %v27 = vld [vmem:[%s1 + $0x14] sm:$0xf]
  %v28 = vld [vmem:[%s1 + $0x18] sm:$0xf]
  %v29 = vld [vmem:[%s1 + $0x1c] sm:$0xf]
  %v30 = vld [vmem:[%s1 + $0x20] sm:$0xf]
  %v31 = vld [vmem:[%s1 + $0x24] sm:$0xf]
  %v32 = vld [vmem:[%s1 + $0x28] sm:$0xf]
  %v33 = vld [vmem:[%s1 + $0x2c] sm:$0xf]
  %v34 = vld [vmem:[%s1 + $0x30] sm:$0xf]
  %v35 = vld [vmem:[%s1 + $0x34] sm:$0xf]
  %v36 = vld [vmem:[%s1 + $0x38] sm:$0xf]
  %v37 = vld [vmem:[%s1 + $0x3c] sm:$0xf]
  %v38 = vld [vmem:[%s2] sm:$0x1]
  %v40 = vlaneseq
  %v41 = vshrl.u32 %v40, 7
  %v42 = vsub.s32 0, %v41
  %v43 = vrot.slane %v38, %v42
  %v49 = vunpack.c.l.b16 %v18
  %v50 = vunpack.c.l.b16 %v19
  %v51 = vunpack.c.l.b16 %v20
  %v52 = vunpack.c.l.b16 %v21
  %v53 = vpack.c.b16 %v50, %v49
  %v54 = vpack.c.b16 %v52, %v51
  %v73 = vunpack.c.l.b16 %v22
  %v74 = vunpack.c.l.b16 %v23
  %v75 = vunpack.c.l.b16 %v24
  %v76 = vunpack.c.l.b16 %v25
  %v77 = vunpack.c.l.b16 %v26
  %v78 = vunpack.c.l.b16 %v27
  %v79 = vunpack.c.l.b16 %v28
  %v80 = vunpack.c.l.b16 %v29
  %v81 = vunpack.c.l.b16 %v30
  %v82 = vunpack.c.l.b16 %v31
  %v83 = vunpack.c.l.b16 %v32
  %v84 = vunpack.c.l.b16 %v33
  %v85 = vunpack.c.l.b16 %v34
  %v86 = vunpack.c.l.b16 %v35
  %v87 = vunpack.c.l.b16 %v36
  %v88 = vunpack.c.l.b16 %v37
  %v89 = vpack.c.b16 %v74, %v73
  %v90 = vpack.c.b16 %v76, %v75
  %v91 = vpack.c.b16 %v78, %v77
  %v92 = vpack.c.b16 %v80, %v79
  %v93 = vpack.c.b16 %v82, %v81
  %v94 = vpack.c.b16 %v84, %v83
  %v95 = vpack.c.b16 %v86, %v85
  %v96 = vpack.c.b16 %v88, %v87
  %105 = vmatprep.subr.bf16.mxu0 0
  %106 = vmatpush1.bf16.msra.mxu0 %v96
  %107 = vmatprep.subr.bf16.mxu0 0
  %108 = vmatpush1.bf16.msra.mxu0 %v95
  %109 = vmatprep.subr.bf16.mxu0 0
  %110 = vmatpush1.bf16.msra.mxu0 %v94
  %111 = vmatprep.subr.bf16.mxu0 0
  %112 = vmatpush1.bf16.msra.mxu0 %v93
  %113 = vmatprep.subr.bf16.mxu0 0
  %114 = vmatpush1.bf16.msra.mxu0 %v92
  %115 = vmatprep.subr.bf16.mxu0 0
  %116 = vmatpush1.bf16.msra.mxu0 %v91
  %117 = vmatprep.subr.bf16.mxu0 0
  %118 = vmatpush1.bf16.msra.mxu0 %v90
  %119 = vmatprep.subr.bf16.mxu0 0
  %120 = vmatpush1.bf16.msra.mxu0 %v89
  %121 = vmatprep.subr.bf16.mxu0 0
  %122 = vmatpush2.bf16.msra.mxu0 0
  %123 = vmatprep.subr.bf16.mxu0 0
  %124 = vmatpush2.bf16.msra.mxu0 0
  %125 = vmatprep.subr.bf16.mxu0 0
  %126 = vmatpush2.bf16.msra.mxu0 0
  %127 = vmatprep.subr.bf16.mxu0 0
  %128 = vmatpush2.bf16.msra.mxu0 0
  %129 = vmatprep.subr.bf16.mxu0 0
  %130 = vmatpush2.bf16.msra.mxu0 0
  %131 = vmatprep.subr.bf16.mxu0 0
  %132 = vmatpush2.bf16.msra.mxu0 0
  %133 = vmatprep.subr.bf16.mxu0 0
  %134 = vmatpush2.bf16.msra.mxu0 0
  %135 = vmatprep.subr.bf16.mxu0 0
  %136 = vmatpush2.bf16.msra.mxu0 0
  %137 = vmatprep.mubr.bf16.mxu0 0
  %138 = vmatmul.mubr.bf16.gmra.mxu0 %v53
  %v139 = vpop.f32.mrf.mxu0
  %v140 = vadd.f32 %v43, %v139
  %v141 = vpop.f32.mrf.mxu0
  %v142 = vpop.f32.mrf.mxu0
  %v143 = vadd.f32 %v43, %v142
  %v144 = vpop.f32.mrf.mxu0
  %145 = vmatprep.mubr.bf16.mxu0 0
  %146 = vmatmul.mubr.bf16.gmra.mxu0 %v54
  %v147 = vpop.f32.mrf.mxu0
  %v148 = vadd.f32 %v43, %v147
  %v149 = vpop.f32.mrf.mxu0
  %v150 = vpop.f32.mrf.mxu0
  %v151 = vadd.f32 %v43, %v150
  %v152 = vpop.f32.mrf.mxu0
  %153 = vdwg.mxu0
  %v154 = vld [vmem:[%s3] sm:$0xf]
  %v155 = vld [vmem:[%s3 + $0x4] sm:$0xf]
  %v156 = vld [vmem:[%s3 + $0x8] sm:$0xf]
  %v157 = vld [vmem:[%s3 + $0xc] sm:$0xf]
  %v158 = vunpack.c.l.bf16 %v154
  %v159 = vunpack.c.l.bf16 %v155
  %v160 = vunpack.c.l.bf16 %v156
  %v161 = vunpack.c.l.bf16 %v157
  %v162 = vadd.f32 %v140, %v158
  %v163 = vadd.f32 %v143, %v159
  %v164 = vadd.f32 %v148, %v160
  %v165 = vadd.f32 %v151, %v161
  %v166 = vpack.c.bf16 %v163, %v162
  %v167 = vpack.c.bf16 %v165, %v164
  %v170 = vunpack.c.l.b16 %v166
  %v171 = vunpack.c.h.b16 %v166
  %v172 = vunpack.c.l.b16 %v167
  %v173 = vunpack.c.h.b16 %v167
  %v174 = vpack.c.b16 %v170, %v170
  %v175 = vpack.c.b16 %v171, %v171
  %v176 = vpack.c.b16 %v172, %v172
  %v177 = vpack.c.b16 %v173, %v173
  %182 = vst [vmem:[%s4] sm:$0xf] %v174
  %183 = vst [vmem:[%s4 + $0x4] sm:$0xf] %v175
  %184 = vst [vmem:[%s4 + $0x8] sm:$0xf] %v176
  %185 = vst [vmem:[%s4 + $0xc] sm:$0xf] %v177
  // Predicated region
  $region18: #{_lambda_.20} parent=0 // pred_check
    _
  $region19: #{_lambda_.20} parent=0 // pred_check_branch
    %187 = sbr.rel (0) target = $region21
  $region20: #{_lambda_.20} parent=0 // pred_region
    _
  $region21: #{_lambda_.20} parent=0 // pred_fallthru
    _
  // Predicated region
  $region22: #{_lambda_.20} parent=0 // pred_check
    _
  $region23: #{_lambda_.20} parent=0 // pred_check_branch
    %189 = sbr.rel (0) target = $region25
  $region24: #{_lambda_.20} parent=0 // pred_region
    _
  $region25: #{_lambda_.20} parent=0 // pred_fallthru
    _

// kernel: _lambda_.17
$region0: #{_lambda_.17}
  #allocation0 [shape = 'u32[]', space=smem, size = 0x4, offset = 0x4, fixed_abs, tag = 'smem constant byte address 0x4 - core index']
  #allocation1 [shape = 'u32[144,128]{1,0:T(1,128)}', space=vmem, size = 0x12000, scoped, tag = 'internal scratch']
  #allocation2 [shape = 'f32[8,8,1]{2,1,0:T(8,128)}', space=vmem, size = 0x8000, scoped, tag = 'scratch operand']
  #allocation3 [shape = 'f32[8,8,1]{2,1,0:T(8,128)}', space=vmem, size = 0x8000, scoped, tag = 'scratch operand']
  #allocation4 [shape = 'f32[8,8,8]{2,1,0:T(8,128)}', space=vmem, size = 0x8000, scoped, tag = 'scratch operand']
  %s0 = inlined_call_operand.vmem [shape: bf16[32,8,8], index: 0, kind: input, shape index: {}]
  %s1 = inlined_call_operand.vmem [shape: bf16[32,128,8], index: 1, kind: input, shape index: {}]
  %s2 = inlined_call_operand.vmem [shape: bf16[32,128,8], index: 2, kind: input, shape index: {}]
  %s3 = inlined_call_operand.vmem [shape: bf16[32,8,8], index: 3, kind: output, shape index: {}]
  %s4 = sld [smem:[#allocation0]]
  $region53: #{_lambda_.17} parent=0
    _
  %s6 = ssub.s32 1, %s4
  %s7 = scalar_select 0, %s6, %s4
  loop: start=0, step=1, limit=6
  $region2: #{_lambda_.17} parent=0 // loop_pre_header
    _
  $region3: #{_lambda_.17} parent=0 // loop_header
    %s9 = sphi 0, %s13
    %p10 = scmp.ge.s32.totalorder %s9, 6
    %s16 = sphi 0, %s35
    %s17 = sphi 0, %s31
    %s18 = sphi 0, %s27
    %s19 = sphi 0, %s16
    %s20 = sphi 0, %s17
    %s21 = sphi 0, %s18
    %s22 = sphi 0, %s19
    %s23 = sphi 0, %s20
    %s24 = sphi 0, %s21
    %s40 = sphi 0, %s42
    %s43 = sphi 0, %s40
    %s44 = sphi 0, %s43
    %s60 = sphi 0, %s44
    %s68 = sphi 0, %s70
    %s71 = sphi 0, %s68
    %s72 = sphi 0, %s71
    %s88 = sphi 0, %s72
    %s96 = sphi 0, %s98
    %s99 = sphi 0, %s96
    %s100 = sphi 0, %s99
    %s116 = sphi 0, %s100
    %s124 = sphi 0, %s126
    %s127 = sphi 0, %s124
    %s128 = sphi 0, %s127
    %s144 = sphi 0, %s128
  $region4: #{_lambda_.17} parent=0 // loop_header_branch
    %12 = sbr.rel (%p10) target = $region8
  $region5: #{_lambda_.17} parent=0 // loop_body
    %s14 = ssub.s32 %s9, 1
    %s15 = ssub.s32 %s9, 2
    %s25 = sadd.s32 1, %s18
    %p26 = scmp.ge.s32.totalorder %s25, 1
    %s27 = scalar_select %p26, 0, %s25
    %s28 = sadd.s32 1, %s17
    %s29 = scalar_select %p26, %s28, %s17
    %p30 = scmp.ge.s32.totalorder %s29, 1
    %s31 = scalar_select %p30, 0, %s29
    %s32 = sadd.s32 1, %s16
    %s33 = scalar_select %p30, %s32, %s16
    %p34 = scmp.ge.s32.totalorder %s33, 4
    %s35 = scalar_select %p34, 0, %s33
    %s36 = ssub.s32 %s16, %s35
    %s37 = ssub.s32 %s17, %s31
    %s38 = sor.u32 %s36, %s37
    %p39 = scmp.eq.s32.totalorder %s38, 0
    %s41 = sadd.s32 %s40, 1
    %s42 = scalar_select %p39, %s40, %s41
    %p45 = pneg %p39
    %p46 = scmp.eq.s32.totalorder %s9, 3
    %p47 = por %p45, %p46
    %p48 = scmp.ne.s32.totalorder %s40, %s43
    %p49 = scmp.eq.s32.totalorder %s9, 0
    %p50 = por %p48, %p49
    %p51 = scmp.ne.s32.totalorder %s40, %s43
    %p52 = scmp.eq.s32.totalorder %s14, 3
    %p53 = por %p51, %p52
    %p54 = scmp.ne.s32.totalorder %s43, %s44
    %p55 = scmp.eq.s32.totalorder %s14, 0
    %p56 = por %p54, %p55
    %p57 = scmp.ne.s32.totalorder %s43, %s44
    %p58 = scmp.eq.s32.totalorder %s15, 3
    %p59 = por %p57, %p58
    %p61 = scmp.ne.s32.totalorder %s44, %s60
    %p62 = scmp.eq.s32.totalorder %s15, 0
    %p63 = por %p61, %p62
    %s64 = ssub.s32 %s16, %s35
    %s65 = ssub.s32 %s18, %s27
    %s66 = sor.u32 %s64, %s65
    %p67 = scmp.eq.s32.totalorder %s66, 0
    %s69 = sadd.s32 %s68, 1
    %s70 = scalar_select %p67, %s68, %s69
    %p73 = pneg %p67
    %p74 = scmp.eq.s32.totalorder %s9, 3
    %p75 = por %p73, %p74
    %p76 = scmp.ne.s32.totalorder %s68, %s71
    %p77 = scmp.eq.s32.totalorder %s9, 0
    %p78 = por %p76, %p77
    %p79 = scmp.ne.s32.totalorder %s68, %s71
    %p80 = scmp.eq.s32.totalorder %s14, 3
    %p81 = por %p79, %p80
    %p82 = scmp.ne.s32.totalorder %s71, %s72
    %p83 = scmp.eq.s32.totalorder %s14, 0
    %p84 = por %p82, %p83
    %p85 = scmp.ne.s32.totalorder %s71, %s72
    %p86 = scmp.eq.s32.totalorder %s15, 3
    %p87 = por %p85, %p86
    %p89 = scmp.ne.s32.totalorder %s72, %s88
    %p90 = scmp.eq.s32.totalorder %s15, 0
    %p91 = por %p89, %p90
    %s92 = ssub.s32 %s16, %s35
    %s93 = ssub.s32 %s18, %s27
    %s94 = sor.u32 %s92, %s93
    %p95 = scmp.eq.s32.totalorder %s94, 0
    %s97 = sadd.s32 %s96, 1
    %s98 = scalar_select %p95, %s96, %s97
    %p101 = pneg %p95
    %p102 = scmp.eq.s32.totalorder %s9, 3
    %p103 = por %p101, %p102
    %p104 = scmp.ne.s32.totalorder %s96, %s99
    %p105 = scmp.eq.s32.totalorder %s9, 0
    %p106 = por %p104, %p105
    %p107 = scmp.ne.s32.totalorder %s96, %s99
    %p108 = scmp.eq.s32.totalorder %s14, 3
    %p109 = por %p107, %p108
    %p110 = scmp.ne.s32.totalorder %s99, %s100
    %p111 = scmp.eq.s32.totalorder %s14, 0
    %p112 = por %p110, %p111
    %p113 = scmp.ne.s32.totalorder %s99, %s100
    %p114 = scmp.eq.s32.totalorder %s15, 3
    %p115 = por %p113, %p114
    %p117 = scmp.ne.s32.totalorder %s100, %s116
    %p118 = scmp.eq.s32.totalorder %s15, 0
    %p119 = por %p117, %p118
    %s120 = ssub.s32 %s16, %s35
    %s121 = ssub.s32 %s17, %s31
    %s122 = sor.u32 %s120, %s121
    %p123 = scmp.eq.s32.totalorder %s122, 0
    %s125 = sadd.s32 %s124, 1
    %s126 = scalar_select %p123, %s124, %s125
    %p129 = pneg %p123
    %p130 = scmp.eq.s32.totalorder %s9, 3
    %p131 = por %p129, %p130
    %p132 = scmp.ne.s32.totalorder %s124, %s127
    %p133 = scmp.eq.s32.totalorder %s9, 0
    %p134 = por %p132, %p133
    %p135 = scmp.ne.s32.totalorder %s124, %s127
    %p136 = scmp.eq.s32.totalorder %s14, 3
    %p137 = por %p135, %p136
    %p138 = scmp.ne.s32.totalorder %s127, %s128
    %p139 = scmp.eq.s32.totalorder %s14, 0
    %p140 = por %p138, %p139
    %p141 = scmp.ne.s32.totalorder %s127, %s128
    %p142 = scmp.eq.s32.totalorder %s15, 3
    %p143 = por %p141, %p142
    %p145 = scmp.ne.s32.totalorder %s128, %s144
    %p146 = scmp.eq.s32.totalorder %s15, 0
    %p147 = por %p145, %p146
    %p148 = scmp.le.s32.totalorder 1, %s9
    %p149 = scmp.lt.s32.totalorder %s9, 5
    %p150 = pnand %p148, %p149
    %p151 = pneg %p150
    // Predicated region
    $region9: #{_lambda_.17} parent=5 // pred_check
      _
    $region10: #{_lambda_.17} parent=5 // pred_check_branch
      %153 = sbr.rel (%p150) target = $region12
    $region11: #{_lambda_.17} parent=5 // pred_region
      %s154 = ssub.s32 %s9, 1
    $region12: #{_lambda_.17} parent=5 // pred_fallthru
      _
    %p155 = scmp.lt.s32.totalorder %s9, 4
    // Predicated region
    $region13: #{_lambda_.17} parent=5 // pred_check
      %p156 = pneg %p155
    $region14: #{_lambda_.17} parent=5 // pred_check_branch
      %158 = sbr.rel (%p156) target = $region16
    $region15: #{_lambda_.17} parent=5 // pred_region
      // Predicated region
      $region17: #{_lambda_.17} parent=15 // pred_check
        %p159 = pneg %p50
      $region18: #{_lambda_.17} parent=15 // pred_check_branch
        %161 = sbr.rel (%p159) target = $region20
      $region19: #{_lambda_.17} parent=15 // pred_region
        %s162 = smul.u32 8, %s16
        %p163 = scmp.lt.s32.totalorder %s162, 31
        %s164 = scalar_select %p163, %s162, 31
        %p165 = scmp.lt.s32.totalorder %s17, 0
        %s166 = scalar_select %p165, %s17, 0
        %s167 = sadd.s32 %s166, %s164
        %s168 = smul.addr %s167, 4
        %s169 = scalar_lea.vmem %s0, %s168
        %s170 = smul.u32 8, %s16
      $region20: #{_lambda_.17} parent=15 // pred_fallthru
        _
      // Predicated region
      $region21: #{_lambda_.17} parent=15 // pred_check
        %p171 = pneg %p78
      $region22: #{_lambda_.17} parent=15 // pred_check_branch
        %173 = sbr.rel (%p171) target = $region24
      $region23: #{_lambda_.17} parent=15 // pred_region
        %s174 = smul.u32 8, %s16
        %s175 = smul.u32 16, %s18
        %p176 = scmp.lt.s32.totalorder %s174, 31
        %s177 = scalar_select %p176, %s174, 31
        %p178 = scmp.lt.s32.totalorder %s175, 15
        %s179 = scalar_select %p178, %s175, 15
        %s180 = smul.addr %s177, 16
        %s181 = sadd.s32 %s179, %s180
        %s182 = smul.addr %s181, 4
        %s183 = scalar_lea.vmem %s1, %s182
        %s184 = smul.u32 8, %s16
        %s185 = smul.u32 16, %s18
      $region24: #{_lambda_.17} parent=15 // pred_fallthru
        _
      // Predicated region
      $region25: #{_lambda_.17} parent=15 // pred_check
        %p186 = pneg %p106
      $region26: #{_lambda_.17} parent=15 // pred_check_branch
        %188 = sbr.rel (%p186) target = $region28
      $region27: #{_lambda_.17} parent=15 // pred_region
        %s189 = smul.u32 8, %s16
        %s190 = smul.u32 16, %s18
        %p191 = scmp.lt.s32.totalorder %s189, 31
        %s192 = scalar_select %p191, %s189, 31
        %p193 = scmp.lt.s32.totalorder %s190, 15
        %s194 = scalar_select %p193, %s190, 15
        %s195 = smul.addr %s192, 16
        %s196 = sadd.s32 %s194, %s195
        %s197 = smul.addr %s196, 4
        %s198 = scalar_lea.vmem %s2, %s197
        %s199 = smul.u32 8, %s16
        %s200 = smul.u32 16, %s18
      $region28: #{_lambda_.17} parent=15 // pred_fallthru
        _
    $region16: #{_lambda_.17} parent=5 // pred_fallthru
      _
    %p201 = scmp.le.s32.totalorder 1, %s9
    %p202 = scmp.lt.s32.totalorder %s9, 5
    %p203 = pnand %p201, %p202
    %p204 = pneg %p203
    // Predicated region
    $region29: #{_lambda_.17} parent=5 // pred_check
      _
    $region30: #{_lambda_.17} parent=5 // pred_check_branch
      %206 = sbr.rel (%p203) target = $region32
    $region31: #{_lambda_.17} parent=5 // pred_region
      %s207 = ssub.s32 %s9, 1
      %s208 = smul.u32 8, %s19
      %p209 = scmp.lt.s32.totalorder %s208, 31
      %s210 = scalar_select %p209, %s208, 31
      %p211 = scmp.lt.s32.totalorder %s20, 0
      %s212 = scalar_select %p211, %s20, 0
      %s213 = sadd.s32 %s212, %s210
      %s214 = smul.addr %s213, 4
      %s215 = scalar_lea.vmem %s0, %s214
      %p216 = pneg %p56
      %p217 = pneg %p53
      %s218 = smul.u32 8, %s19
      %s219 = smul.u32 16, %s21
      %p220 = scmp.lt.s32.totalorder %s218, 31
      %s221 = scalar_select %p220, %s218, 31
      %p222 = scmp.lt.s32.totalorder %s219, 15
      %s223 = scalar_select %p222, %s219, 15
      %s224 = smul.addr %s221, 16
      %s225 = sadd.s32 %s223, %s224
      %s226 = smul.addr %s225, 4
      %s227 = scalar_lea.vmem %s1, %s226
      %p228 = pneg %p84
      %p229 = pneg %p81
      %s230 = smul.u32 8, %s19
      %s231 = smul.u32 16, %s21
      %p232 = scmp.lt.s32.totalorder %s230, 31
      %s233 = scalar_select %p232, %s230, 31
      %p234 = scmp.lt.s32.totalorder %s231, 15
      %s235 = scalar_select %p234, %s231, 15
      %s236 = smul.addr %s233, 16
      %s237 = sadd.s32 %s235, %s236
      %s238 = smul.addr %s237, 4
      %s239 = scalar_lea.vmem %s2, %s238
      %p240 = pneg %p112
      %p241 = pneg %p109
      %p242 = pneg %p140
      %p243 = pneg %p137
      %s244 = smul.u32 8, %s19
      %p245 = scmp.lt.s32.totalorder %s244, 31
      %s246 = scalar_select %p245, %s244, 31
      %p247 = scmp.lt.s32.totalorder %s20, 0
      %s248 = scalar_select %p247, %s20, 0
      %s249 = sadd.s32 %s248, %s246
      %s250 = smul.addr %s249, 4
      %s251 = scalar_lea.vmem %s3, %s250
      %s252 = smul.u32 8, %s19
      %p253 = scmp.lt.s32.totalorder %s252, 31
      %s254 = scalar_select %p253, %s252, 31
      %p255 = scmp.lt.s32.totalorder %s20, 0
      %s256 = scalar_select %p255, %s20, 0
      %s257 = sadd.s32 %s256, %s254
      %s258 = smul.addr %s257, 4
      %s259 = scalar_lea.vmem %s0, %s258
      %s260 = smul.u32 8, %s19
      %s261 = smul.u32 8, %s19
      %s262 = smul.u32 16, %s21
      %p263 = scmp.lt.s32.totalorder %s261, 31
      %s264 = scalar_select %p263, %s261, 31
      %p265 = scmp.lt.s32.totalorder %s262, 15
      %s266 = scalar_select %p265, %s262, 15
      %s267 = smul.addr %s264, 16
      %s268 = sadd.s32 %s266, %s267
      %s269 = smul.addr %s268, 4
      %s270 = scalar_lea.vmem %s1, %s269
      %s271 = smul.u32 8, %s19
      %s272 = smul.u32 16, %s21
      %s273 = smul.u32 8, %s19
      %s274 = smul.u32 16, %s21
      %p275 = scmp.lt.s32.totalorder %s273, 31
      %s276 = scalar_select %p275, %s273, 31
      %p277 = scmp.lt.s32.totalorder %s274, 15
      %s278 = scalar_select %p277, %s274, 15
      %s279 = smul.addr %s276, 16
      %s280 = sadd.s32 %s278, %s279
      %s281 = smul.addr %s280, 4
      %s282 = scalar_lea.vmem %s2, %s281
      %s283 = smul.u32 8, %s19
      %s284 = smul.u32 16, %s21
      %s285 = smul.u32 8, %s19
      %p286 = scmp.lt.s32.totalorder %s285, 31
      %s287 = scalar_select %p286, %s285, 31
      %p288 = scmp.lt.s32.totalorder %s20, 0
      %s289 = scalar_select %p288, %s20, 0
      %s290 = sadd.s32 %s289, %s287
      %s291 = smul.addr %s290, 4
      %s292 = scalar_lea.vmem %s3, %s291
      %s293 = smul.u32 8, %s19
      %p295 = scmp.eq.s32.totalorder %s21, 0
      // Predicated region
      $region33: #{_lambda_.17} parent=31 // pred_check
        %p296 = pneg %p295
      $region34: #{_lambda_.17} parent=31 // pred_check_branch
        %298 = sbr.rel (%p296) target = $region36
      $region35: #{_lambda_.17} parent=31 // pred_region
        %vm299 = vcmask 7168
        %300 = vst.msk [vmem:[#allocation2] sm:$0xff] %vm299, -inf
        %301 = vst.msk [vmem:[#allocation2 + $0x8] sm:$0xff] %vm299, -inf
        %302 = vst.msk [vmem:[#allocation2 + $0x10] sm:$0xff] %vm299, -inf
        %303 = vst.msk [vmem:[#allocation2 + $0x18] sm:$0xff] %vm299, -inf
        %304 = vst.msk [vmem:[#allocation2 + $0x20] sm:$0xff] %vm299, -inf
        %305 = vst.msk [vmem:[#allocation2 + $0x28] sm:$0xff] %vm299, -inf
        %306 = vst.msk [vmem:[#allocation2 + $0x30] sm:$0xff] %vm299, -inf
        %307 = vst.msk [vmem:[#allocation2 + $0x38] sm:$0xff] %vm299, -inf
        %308 = vst.msk [vmem:[#allocation3] sm:$0xff] %vm299, 0.0
        %309 = vst.msk [vmem:[#allocation3 + $0x8] sm:$0xff] %vm299, 0.0
        %310 = vst.msk [vmem:[#allocation3 + $0x10] sm:$0xff] %vm299, 0.0
        %311 = vst.msk [vmem:[#allocation3 + $0x18] sm:$0xff] %vm299, 0.0
        %312 = vst.msk [vmem:[#allocation3 + $0x20] sm:$0xff] %vm299, 0.0
        %313 = vst.msk [vmem:[#allocation3 + $0x28] sm:$0xff] %vm299, 0.0
        %314 = vst.msk [vmem:[#allocation3 + $0x30] sm:$0xff] %vm299, 0.0
        %315 = vst.msk [vmem:[#allocation3 + $0x38] sm:$0xff] %vm299, 0.0
        %vm316 = vcmask 64512
        %317 = vst.msk [vmem:[#allocation4] sm:$0xff] %vm316, 0.0
        %318 = vst.msk [vmem:[#allocation4 + $0x8] sm:$0xff] %vm316, 0.0
        %319 = vst.msk [vmem:[#allocation4 + $0x10] sm:$0xff] %vm316, 0.0
        %320 = vst.msk [vmem:[#allocation4 + $0x18] sm:$0xff] %vm316, 0.0
        %321 = vst.msk [vmem:[#allocation4 + $0x20] sm:$0xff] %vm316, 0.0
        %322 = vst.msk [vmem:[#allocation4 + $0x28] sm:$0xff] %vm316, 0.0
        %323 = vst.msk [vmem:[#allocation4 + $0x30] sm:$0xff] %vm316, 0.0
        %324 = vst.msk [vmem:[#allocation4 + $0x38] sm:$0xff] %vm316, 0.0
      $region36: #{_lambda_.17} parent=31 // pred_fallthru
        _
      %v325 = vld [vmem:[%s259] sm:$0xf]
      %v326 = vld [vmem:[%s259 + $0x4] sm:$0xf]
      %v327 = vld [vmem:[%s259 + $0x8] sm:$0xf]
      %v328 = vld [vmem:[%s259 + $0xc] sm:$0xf]
      %v329 = vld [vmem:[%s259 + $0x10] sm:$0xf]
      %v330 = vld [vmem:[%s259 + $0x14] sm:$0xf]
      %v331 = vld [vmem:[%s259 + $0x18] sm:$0xf]
      %v332 = vld [vmem:[%s259 + $0x1c] sm:$0xf]
      %v333 = vld [vmem:[%s270] sm:$0xf]
      %v334 = vld [vmem:[%s270 + $0x4] sm:$0xf]
      %v335 = vld [vmem:[%s270 + $0x8] sm:$0xf]
      %v336 = vld [vmem:[%s270 + $0xc] sm:$0xf]
      %v337 = vld [vmem:[%s270 + $0x10] sm:$0xf]
      %v338 = vld [vmem:[%s270 + $0x14] sm:$0xf]
      %v339 = vld [vmem:[%s270 + $0x18] sm:$0xf]
      %v340 = vld [vmem:[%s270 + $0x1c] sm:$0xf]
      %v341 = vld [vmem:[%s270 + $0x20] sm:$0xf]
      %v342 = vld [vmem:[%s270 + $0x24] sm:$0xf]
      %v343 = vld [vmem:[%s270 + $0x28] sm:$0xf]
      %v344 = vld [vmem:[%s270 + $0x2c] sm:$0xf]
      %v345 = vld [vmem:[%s270 + $0x30] sm:$0xf]
      %v346 = vld [vmem:[%s270 + $0x34] sm:$0xf]
      %v347 = vld [vmem:[%s270 + $0x38] sm:$0xf]
      %v348 = vld [vmem:[%s270 + $0x3c] sm:$0xf]
      %v349 = vld [vmem:[%s270 + $0x40] sm:$0xf]
      %v350 = vld [vmem:[%s270 + $0x44] sm:$0xf]
      %v351 = vld [vmem:[%s270 + $0x48] sm:$0xf]
      %v352 = vld [vmem:[%s270 + $0x4c] sm:$0xf]
      %v353 = vld [vmem:[%s270 + $0x50] sm:$0xf]
      %v354 = vld [vmem:[%s270 + $0x54] sm:$0xf]
      %v355 = vld [vmem:[%s270 + $0x58] sm:$0xf]
      %v356 = vld [vmem:[%s270 + $0x5c] sm:$0xf]
      %v357 = vld [vmem:[%s270 + $0x60] sm:$0xf]
      %v358 = vld [vmem:[%s270 + $0x64] sm:$0xf]
      %v359 = vld [vmem:[%s270 + $0x68] sm:$0xf]
      %v360 = vld [vmem:[%s270 + $0x6c] sm:$0xf]
      %v361 = vld [vmem:[%s270 + $0x70] sm:$0xf]
      %v362 = vld [vmem:[%s270 + $0x74] sm:$0xf]
      %v363 = vld [vmem:[%s270 + $0x78] sm:$0xf]
      %v364 = vld [vmem:[%s270 + $0x7c] sm:$0xf]
      %v365 = vld [vmem:[%s270 + $0x80] sm:$0xf]
      %v366 = vld [vmem:[%s270 + $0x84] sm:$0xf]
      %v367 = vld [vmem:[%s270 + $0x88] sm:$0xf]
      %v368 = vld [vmem:[%s270 + $0x8c] sm:$0xf]
      %v369 = vld [vmem:[%s270 + $0x90] sm:$0xf]
      %v370 = vld [vmem:[%s270 + $0x94] sm:$0xf]
      %v371 = vld [vmem:[%s270 + $0x98] sm:$0xf]
      %v372 = vld [vmem:[%s270 + $0x9c] sm:$0xf]
      %v373 = vld [vmem:[%s270 + $0xa0] sm:$0xf]
      %v374 = vld [vmem:[%s270 + $0xa4] sm:$0xf]
      %v375 = vld [vmem:[%s270 + $0xa8] sm:$0xf]
      %v376 = vld [vmem:[%s270 + $0xac] sm:$0xf]
      %v377 = vld [vmem:[%s270 + $0xb0] sm:$0xf]
      %v378 = vld [vmem:[%s270 + $0xb4] sm:$0xf]
      %v379 = vld [vmem:[%s270 + $0xb8] sm:$0xf]
      %v380 = vld [vmem:[%s270 + $0xbc] sm:$0xf]
      %v381 = vld [vmem:[%s270 + $0xc0] sm:$0xf]
      %v382 = vld [vmem:[%s270 + $0xc4] sm:$0xf]
      %v383 = vld [vmem:[%s270 + $0xc8] sm:$0xf]
      %v384 = vld [vmem:[%s270 + $0xcc] sm:$0xf]
      %v385 = vld [vmem:[%s270 + $0xd0] sm:$0xf]
      %v386 = vld [vmem:[%s270 + $0xd4] sm:$0xf]
      %v387 = vld [vmem:[%s270 + $0xd8] sm:$0xf]
      %v388 = vld [vmem:[%s270 + $0xdc] sm:$0xf]
      %v389 = vld [vmem:[%s270 + $0xe0] sm:$0xf]
      %v390 = vld [vmem:[%s270 + $0xe4] sm:$0xf]
      %v391 = vld [vmem:[%s270 + $0xe8] sm:$0xf]
      %v392 = vld [vmem:[%s270 + $0xec] sm:$0xf]
      %v393 = vld [vmem:[%s270 + $0xf0] sm:$0xf]
      %v394 = vld [vmem:[%s270 + $0xf4] sm:$0xf]
      %v395 = vld [vmem:[%s270 + $0xf8] sm:$0xf]
      %v396 = vld [vmem:[%s270 + $0xfc] sm:$0xf]
      %v397 = vld [vmem:[%s270 + $0x100] sm:$0xf]
      %v398 = vld [vmem:[%s270 + $0x104] sm:$0xf]
      %v399 = vld [vmem:[%s270 + $0x108] sm:$0xf]
      %v400 = vld [vmem:[%s270 + $0x10c] sm:$0xf]
      %v401 = vld [vmem:[%s270 + $0x110] sm:$0xf]
      %v402 = vld [vmem:[%s270 + $0x114] sm:$0xf]
      %v403 = vld [vmem:[%s270 + $0x118] sm:$0xf]
      %v404 = vld [vmem:[%s270 + $0x11c] sm:$0xf]
      %v405 = vld [vmem:[%s270 + $0x120] sm:$0xf]
      %v406 = vld [vmem:[%s270 + $0x124] sm:$0xf]
      %v407 = vld [vmem:[%s270 + $0x128] sm:$0xf]
      %v408 = vld [vmem:[%s270 + $0x12c] sm:$0xf]
      %v409 = vld [vmem:[%s270 + $0x130] sm:$0xf]
      %v410 = vld [vmem:[%s270 + $0x134] sm:$0xf]
      %v411 = vld [vmem:[%s270 + $0x138] sm:$0xf]
      %v412 = vld [vmem:[%s270 + $0x13c] sm:$0xf]
      %v413 = vld [vmem:[%s270 + $0x140] sm:$0xf]
      %v414 = vld [vmem:[%s270 + $0x144] sm:$0xf]
      %v415 = vld [vmem:[%s270 + $0x148] sm:$0xf]
      %v416 = vld [vmem:[%s270 + $0x14c] sm:$0xf]
      %v417 = vld [vmem:[%s270 + $0x150] sm:$0xf]
      %v418 = vld [vmem:[%s270 + $0x154] sm:$0xf]
      %v419 = vld [vmem:[%s270 + $0x158] sm:$0xf]
      %v420 = vld [vmem:[%s270 + $0x15c] sm:$0xf]
      %v421 = vld [vmem:[%s270 + $0x160] sm:$0xf]
      %v422 = vld [vmem:[%s270 + $0x164] sm:$0xf]
      %v423 = vld [vmem:[%s270 + $0x168] sm:$0xf]
      %v424 = vld [vmem:[%s270 + $0x16c] sm:$0xf]
      %v425 = vld [vmem:[%s270 + $0x170] sm:$0xf]
      %v426 = vld [vmem:[%s270 + $0x174] sm:$0xf]
      %v427 = vld [vmem:[%s270 + $0x178] sm:$0xf]
      %v428 = vld [vmem:[%s270 + $0x17c] sm:$0xf]
      %v429 = vld [vmem:[%s270 + $0x180] sm:$0xf]
      %v430 = vld [vmem:[%s270 + $0x184] sm:$0xf]
      %v431 = vld [vmem:[%s270 + $0x188] sm:$0xf]
      %v432 = vld [vmem:[%s270 + $0x18c] sm:$0xf]
      %v433 = vld [vmem:[%s270 + $0x190] sm:$0xf]
      %v434 = vld [vmem:[%s270 + $0x194] sm:$0xf]
      %v435 = vld [vmem:[%s270 + $0x198] sm:$0xf]
      %v436 = vld [vmem:[%s270 + $0x19c] sm:$0xf]
      %v437 = vld [vmem:[%s270 + $0x1a0] sm:$0xf]
      %v438 = vld [vmem:[%s270 + $0x1a4] sm:$0xf]
      %v439 = vld [vmem:[%s270 + $0x1a8] sm:$0xf]
      %v440 = vld [vmem:[%s270 + $0x1ac] sm:$0xf]
      %v441 = vld [vmem:[%s270 + $0x1b0] sm:$0xf]
      %v442 = vld [vmem:[%s270 + $0x1b4] sm:$0xf]
      %v443 = vld [vmem:[%s270 + $0x1b8] sm:$0xf]
      %v444 = vld [vmem:[%s270 + $0x1bc] sm:$0xf]
      %v445 = vld [vmem:[%s270 + $0x1c0] sm:$0xf]
      %v446 = vld [vmem:[%s270 + $0x1c4] sm:$0xf]
      %v447 = vld [vmem:[%s270 + $0x1c8] sm:$0xf]
      %v448 = vld [vmem:[%s270 + $0x1cc] sm:$0xf]
      %v449 = vld [vmem:[%s270 + $0x1d0] sm:$0xf]
      %v450 = vld [vmem:[%s270 + $0x1d4] sm:$0xf]
      %v451 = vld [vmem:[%s270 + $0x1d8] sm:$0xf]
      %v452 = vld [vmem:[%s270 + $0x1dc] sm:$0xf]
      %v453 = vld [vmem:[%s270 + $0x1e0] sm:$0xf]
      %v454 = vld [vmem:[%s270 + $0x1e4] sm:$0xf]
      %v455 = vld [vmem:[%s270 + $0x1e8] sm:$0xf]
      %v456 = vld [vmem:[%s270 + $0x1ec] sm:$0xf]
      %v457 = vld [vmem:[%s270 + $0x1f0] sm:$0xf]
      %v458 = vld [vmem:[%s270 + $0x1f4] sm:$0xf]
      %v459 = vld [vmem:[%s270 + $0x1f8] sm:$0xf]
      %v460 = vld [vmem:[%s270 + $0x1fc] sm:$0xf]
      %v477 = vunpack.c.l.b16 %v333
      %v478 = vunpack.c.l.b16 %v334
      %v479 = vunpack.c.l.b16 %v335
      %v480 = vunpack.c.l.b16 %v336
      %v481 = vunpack.c.l.b16 %v337
      %v482 = vunpack.c.l.b16 %v338
      %v483 = vunpack.c.l.b16 %v339
      %v484 = vunpack.c.l.b16 %v340
      %v485 = vunpack.c.l.b16 %v341
      %v486 = vunpack.c.l.b16 %v342
      %v487 = vunpack.c.l.b16 %v343
      %v488 = vunpack.c.l.b16 %v344
      %v489 = vunpack.c.l.b16 %v345
      %v490 = vunpack.c.l.b16 %v346
      %v491 = vunpack.c.l.b16 %v347
      %v492 = vunpack.c.l.b16 %v348
      %v493 = vpack.c.b16 %v478, %v477
      %v494 = vpack.c.b16 %v480, %v479
      %v495 = vpack.c.b16 %v482, %v481
      %v496 = vpack.c.b16 %v484, %v483
      %v497 = vpack.c.b16 %v486, %v485
      %v498 = vpack.c.b16 %v488, %v487
      %v499 = vpack.c.b16 %v490, %v489
      %v500 = vpack.c.b16 %v492, %v491
      %vm501 = vcmask 64512
      %v503 = vsel %vm501, %v325, 0
      %v506 = vsel %vm501, %v493, 0
      %v509 = vsel %vm501, %v494, 0
      %v512 = vsel %vm501, %v495, 0
      %v515 = vsel %vm501, %v496, 0
      %v518 = vsel %vm501, %v497, 0
      %v521 = vsel %vm501, %v498, 0
      %v524 = vsel %vm501, %v499, 0
      %v527 = vsel %vm501, %v500, 0
      %529 = vmatprep.subr.bf16.mxu0 0
      %530 = vmatpush1.bf16.xpose.msra.mxu0 %v527
      %531 = vmatprep.subr.bf16.mxu0 0
      %532 = vmatpush1.bf16.xpose.msra.mxu0 %v524
      %533 = vmatprep.subr.bf16.mxu0 0
      %534 = vmatpush1.bf16.xpose.msra.mxu0 %v521
      %535 = vmatprep.subr.bf16.mxu0 0
      %536 = vmatpush1.bf16.xpose.msra.mxu0 %v518
      %537 = vmatprep.subr.bf16.mxu0 0
      %538 = vmatpush1.bf16.xpose.msra.mxu0 %v515
      %539 = vmatprep.subr.bf16.mxu0 0
      %540 = vmatpush1.bf16.xpose.msra.mxu0 %v512
      %541 = vmatprep.subr.bf16.mxu0 0
      %542 = vmatpush1.bf16.xpose.msra.mxu0 %v509
      %543 = vmatprep.subr.bf16.mxu0 0
      %544 = vmatpush1.bf16.xpose.msra.mxu0 %v506
      %545 = vmatprep.subr.bf16.mxu0 0
      %546 = vmatpush2.bf16.xpose.msra.mxu0 0
      %547 = vmatprep.subr.bf16.mxu0 0
      %548 = vmatpush2.bf16.xpose.msra.mxu0 0
      %549 = vmatprep.subr.bf16.mxu0 0
      %550 = vmatpush2.bf16.xpose.msra.mxu0 0
      %551 = vmatprep.subr.bf16.mxu0 0
      %552 = vmatpush2.bf16.xpose.msra.mxu0 0
      %553 = vmatprep.subr.bf16.mxu0 0
      %554 = vmatpush2.bf16.xpose.msra.mxu0 0
      %555 = vmatprep.subr.bf16.mxu0 0
      %556 = vmatpush2.bf16.xpose.msra.mxu0 0
      %557 = vmatprep.subr.bf16.mxu0 0
      %558 = vmatpush2.bf16.xpose.msra.mxu0 0
      %559 = vmatprep.subr.bf16.mxu0 0
      %560 = vmatpush2.bf16.xpose.msra.mxu0 0
      %561 = vmatprep.mubr.bf16.mxu0 0
      %562 = vmatmul.mubr.bf16.gmra.mxu0 %v503
      %v563 = vpop.f32.mrf.mxu0
      %v564 = vadd.f32 0.0, %v563
      %v565 = vpop.f32.mrf.mxu0
      %v566 = vpop.f32.mrf.mxu0
      %v567 = vpop.f32.mrf.mxu0
      %568 = vdwg.mxu0
      %v585 = vunpack.c.l.b16 %v349
      %v586 = vunpack.c.l.b16 %v350
      %v587 = vunpack.c.l.b16 %v351
      %v588 = vunpack.c.l.b16 %v352
      %v589 = vunpack.c.l.b16 %v353
      %v590 = vunpack.c.l.b16 %v354
      %v591 = vunpack.c.l.b16 %v355
      %v592 = vunpack.c.l.b16 %v356
      %v593 = vunpack.c.l.b16 %v357
      %v594 = vunpack.c.l.b16 %v358
      %v595 = vunpack.c.l.b16 %v359
      %v596 = vunpack.c.l.b16 %v360
      %v597 = vunpack.c.l.b16 %v361
      %v598 = vunpack.c.l.b16 %v362
      %v599 = vunpack.c.l.b16 %v363
      %v600 = vunpack.c.l.b16 %v364
      %v601 = vpack.c.b16 %v586, %v585
      %v602 = vpack.c.b16 %v588, %v587
      %v603 = vpack.c.b16 %v590, %v589
      %v604 = vpack.c.b16 %v592, %v591
      %v605 = vpack.c.b16 %v594, %v593
      %v606 = vpack.c.b16 %v596, %v595
      %v607 = vpack.c.b16 %v598, %v597
      %v608 = vpack.c.b16 %v600, %v599
      %v610 = vsel %vm501, %v326, 0
      %v613 = vsel %vm501, %v601, 0
      %v616 = vsel %vm501, %v602, 0
      %v619 = vsel %vm501, %v603, 0
      %v622 = vsel %vm501, %v604, 0
      %v625 = vsel %vm501, %v605, 0
      %v628 = vsel %vm501, %v606, 0
      %v631 = vsel %vm501, %v607, 0
      %v634 = vsel %vm501, %v608, 0
      %636 = vmatprep.subr.bf16.mxu0 0
      %637 = vmatpush1.bf16.xpose.msra.mxu0 %v634
      %638 = vmatprep.subr.bf16.mxu0 0
      %639 = vmatpush1.bf16.xpose.msra.mxu0 %v631
      %640 = vmatprep.subr.bf16.mxu0 0
      %641 = vmatpush1.bf16.xpose.msra.mxu0 %v628
      %642 = vmatprep.subr.bf16.mxu0 0
      %643 = vmatpush1.bf16.xpose.msra.mxu0 %v625
      %644 = vmatprep.subr.bf16.mxu0 0
      %645 = vmatpush1.bf16.xpose.msra.mxu0 %v622
      %646 = vmatprep.subr.bf16.mxu0 0
      %647 = vmatpush1.bf16.xpose.msra.mxu0 %v619
      %648 = vmatprep.subr.bf16.mxu0 0
      %649 = vmatpush1.bf16.xpose.msra.mxu0 %v616
      %650 = vmatprep.subr.bf16.mxu0 0
      %651 = vmatpush1.bf16.xpose.msra.mxu0 %v613
      %652 = vmatprep.subr.bf16.mxu0 0
      %653 = vmatpush2.bf16.xpose.msra.mxu0 0
      %654 = vmatprep.subr.bf16.mxu0 0
      %655 = vmatpush2.bf16.xpose.msra.mxu0 0
      %656 = vmatprep.subr.bf16.mxu0 0
      %657 = vmatpush2.bf16.xpose.msra.mxu0 0
      %658 = vmatprep.subr.bf16.mxu0 0
      %659 = vmatpush2.bf16.xpose.msra.mxu0 0
      %660 = vmatprep.subr.bf16.mxu0 0
      %661 = vmatpush2.bf16.xpose.msra.mxu0 0
      %662 = vmatprep.subr.bf16.mxu0 0
      %663 = vmatpush2.bf16.xpose.msra.mxu0 0
      %664 = vmatprep.subr.bf16.mxu0 0
      %665 = vmatpush2.bf16.xpose.msra.mxu0 0
      %666 = vmatprep.subr.bf16.mxu0 0
      %667 = vmatpush2.bf16.xpose.msra.mxu0 0
      %668 = vmatprep.mubr.bf16.mxu0 0
      %669 = vmatmul.mubr.bf16.gmra.mxu0 %v610
      %v670 = vpop.f32.mrf.mxu0
      %v671 = vadd.f32 0.0, %v670
      %v672 = vpop.f32.mrf.mxu0
      %v673 = vpop.f32.mrf.mxu0
      %v674 = vpop.f32.mrf.mxu0
      %675 = vdwg.mxu0
      %v692 = vunpack.c.l.b16 %v365
      %v693 = vunpack.c.l.b16 %v366
      %v694 = vunpack.c.l.b16 %v367
      %v695 = vunpack.c.l.b16 %v368
      %v696 = vunpack.c.l.b16 %v369
      %v697 = vunpack.c.l.b16 %v370
      %v698 = vunpack.c.l.b16 %v371
      %v699 = vunpack.c.l.b16 %v372
      %v700 = vunpack.c.l.b16 %v373
      %v701 = vunpack.c.l.b16 %v374
      %v702 = vunpack.c.l.b16 %v375
      %v703 = vunpack.c.l.b16 %v376
      %v704 = vunpack.c.l.b16 %v377
      %v705 = vunpack.c.l.b16 %v378
      %v706 = vunpack.c.l.b16 %v379
      %v707 = vunpack.c.l.b16 %v380
      %v708 = vpack.c.b16 %v693, %v692
      %v709 = vpack.c.b16 %v695, %v694
      %v710 = vpack.c.b16 %v697, %v696
      %v711 = vpack.c.b16 %v699, %v698
      %v712 = vpack.c.b16 %v701, %v700
      %v713 = vpack.c.b16 %v703, %v702
      %v714 = vpack.c.b16 %v705, %v704
      %v715 = vpack.c.b16 %v707, %v706
      %v717 = vsel %vm501, %v327, 0
      %v720 = vsel %vm501, %v708, 0
      %v723 = vsel %vm501, %v709, 0
      %v726 = vsel %vm501, %v710, 0
      %v729 = vsel %vm501, %v711, 0
      %v732 = vsel %vm501, %v712, 0
      %v735 = vsel %vm501, %v713, 0
      %v738 = vsel %vm501, %v714, 0
      %v741 = vsel %vm501, %v715, 0
      %743 = vmatprep.subr.bf16.mxu0 0
      %744 = vmatpush1.bf16.xpose.msra.mxu0 %v741
      %745 = vmatprep.subr.bf16.mxu0 0
      %746 = vmatpush1.bf16.xpose.msra.mxu0 %v738
      %747 = vmatprep.subr.bf16.mxu0 0
      %748 = vmatpush1.bf16.xpose.msra.mxu0 %v735
      %749 = vmatprep.subr.bf16.mxu0 0
      %750 = vmatpush1.bf16.xpose.msra.mxu0 %v732
      %751 = vmatprep.subr.bf16.mxu0 0
      %752 = vmatpush1.bf16.xpose.msra.mxu0 %v729
      %753 = vmatprep.subr.bf16.mxu0 0
      %754 = vmatpush1.bf16.xpose.msra.mxu0 %v726
      %755 = vmatprep.subr.bf16.mxu0 0
      %756 = vmatpush1.bf16.xpose.msra.mxu0 %v723
      %757 = vmatprep.subr.bf16.mxu0 0
      %758 = vmatpush1.bf16.xpose.msra.mxu0 %v720
      %759 = vmatprep.subr.bf16.mxu0 0
      %760 = vmatpush2.bf16.xpose.msra.mxu0 0
      %761 = vmatprep.subr.bf16.mxu0 0
      %762 = vmatpush2.bf16.xpose.msra.mxu0 0
      %763 = vmatprep.subr.bf16.mxu0 0
      %764 = vmatpush2.bf16.xpose.msra.mxu0 0
      %765 = vmatprep.subr.bf16.mxu0 0
      %766 = vmatpush2.bf16.xpose.msra.mxu0 0
      %767 = vmatprep.subr.bf16.mxu0 0
      %768 = vmatpush2.bf16.xpose.msra.mxu0 0
      %769 = vmatprep.subr.bf16.mxu0 0
      %770 = vmatpush2.bf16.xpose.msra.mxu0 0
      %771 = vmatprep.subr.bf16.mxu0 0
      %772 = vmatpush2.bf16.xpose.msra.mxu0 0
      %773 = vmatprep.subr.bf16.mxu0 0
      %774 = vmatpush2.bf16.xpose.msra.mxu0 0
      %775 = vmatprep.mubr.bf16.mxu0 0
      %776 = vmatmul.mubr.bf16.gmra.mxu0 %v717
      %v777 = vpop.f32.mrf.mxu0
      %v778 = vadd.f32 0.0, %v777
      %v779 = vpop.f32.mrf.mxu0
      %v780 = vpop.f32.mrf.mxu0
      %v781 = vpop.f32.mrf.mxu0
      %782 = vdwg.mxu0
      %v799 = vunpack.c.l.b16 %v381
      %v800 = vunpack.c.l.b16 %v382
      %v801 = vunpack.c.l.b16 %v383
      %v802 = vunpack.c.l.b16 %v384
      %v803 = vunpack.c.l.b16 %v385
      %v804 = vunpack.c.l.b16 %v386
      %v805 = vunpack.c.l.b16 %v387
      %v806 = vunpack.c.l.b16 %v388
      %v807 = vunpack.c.l.b16 %v389
      %v808 = vunpack.c.l.b16 %v390
      %v809 = vunpack.c.l.b16 %v391
      %v810 = vunpack.c.l.b16 %v392
      %v811 = vunpack.c.l.b16 %v393
      %v812 = vunpack.c.l.b16 %v394
      %v813 = vunpack.c.l.b16 %v395
      %v814 = vunpack.c.l.b16 %v396
      %v815 = vpack.c.b16 %v800, %v799
      %v816 = vpack.c.b16 %v802, %v801
      %v817 = vpack.c.b16 %v804, %v803
      %v818 = vpack.c.b16 %v806, %v805
      %v819 = vpack.c.b16 %v808, %v807
      %v820 = vpack.c.b16 %v810, %v809
      %v821 = vpack.c.b16 %v812, %v811
      %v822 = vpack.c.b16 %v814, %v813
      %v824 = vsel %vm501, %v328, 0
      %v827 = vsel %vm501, %v815, 0
      %v830 = vsel %vm501, %v816, 0
      %v833 = vsel %vm501, %v817, 0
      %v836 = vsel %vm501, %v818, 0
      %v839 = vsel %vm501, %v819, 0
      %v842 = vsel %vm501, %v820, 0
      %v845 = vsel %vm501, %v821, 0
      %v848 = vsel %vm501, %v822, 0
      %850 = vmatprep.subr.bf16.mxu0 0
      %851 = vmatpush1.bf16.xpose.msra.mxu0 %v848
      %852 = vmatprep.subr.bf16.mxu0 0
      %853 = vmatpush1.bf16.xpose.msra.mxu0 %v845
      %854 = vmatprep.subr.bf16.mxu0 0
      %855 = vmatpush1.bf16.xpose.msra.mxu0 %v842
      %856 = vmatprep.subr.bf16.mxu0 0
      %857 = vmatpush1.bf16.xpose.msra.mxu0 %v839
      %858 = vmatprep.subr.bf16.mxu0 0
      %859 = vmatpush1.bf16.xpose.msra.mxu0 %v836
      %860 = vmatprep.subr.bf16.mxu0 0
      %861 = vmatpush1.bf16.xpose.msra.mxu0 %v833
      %862 = vmatprep.subr.bf16.mxu0 0
      %863 = vmatpush1.bf16.xpose.msra.mxu0 %v830
      %864 = vmatprep.subr.bf16.mxu0 0
      %865 = vmatpush1.bf16.xpose.msra.mxu0 %v827
      %866 = vmatprep.subr.bf16.mxu0 0
      %867 = vmatpush2.bf16.xpose.msra.mxu0 0
      %868 = vmatprep.subr.bf16.mxu0 0
      %869 = vmatpush2.bf16.xpose.msra.mxu0 0
      %870 = vmatprep.subr.bf16.mxu0 0
      %871 = vmatpush2.bf16.xpose.msra.mxu0 0
      %872 = vmatprep.subr.bf16.mxu0 0
      %873 = vmatpush2.bf16.xpose.msra.mxu0 0
      %874 = vmatprep.subr.bf16.mxu0 0
      %875 = vmatpush2.bf16.xpose.msra.mxu0 0
      %876 = vmatprep.subr.bf16.mxu0 0
      %877 = vmatpush2.bf16.xpose.msra.mxu0 0
      %878 = vmatprep.subr.bf16.mxu0 0
      %879 = vmatpush2.bf16.xpose.msra.mxu0 0
      %880 = vmatprep.subr.bf16.mxu0 0
      %881 = vmatpush2.bf16.xpose.msra.mxu0 0
      %882 = vmatprep.mubr.bf16.mxu0 0
      %883 = vmatmul.mubr.bf16.gmra.mxu0 %v824
      %v884 = vpop.f32.mrf.mxu0
      %v885 = vadd.f32 0.0, %v884
      %v886 = vpop.f32.mrf.mxu0
      %v887 = vpop.f32.mrf.mxu0
      %v888 = vpop.f32.mrf.mxu0
      %889 = vdwg.mxu0
      %v906 = vunpack.c.l.b16 %v397
      %v907 = vunpack.c.l.b16 %v398
      %v908 = vunpack.c.l.b16 %v399
      %v909 = vunpack.c.l.b16 %v400
      %v910 = vunpack.c.l.b16 %v401
      %v911 = vunpack.c.l.b16 %v402
      %v912 = vunpack.c.l.b16 %v403
      %v913 = vunpack.c.l.b16 %v404
      %v914 = vunpack.c.l.b16 %v405
      %v915 = vunpack.c.l.b16 %v406
      %v916 = vunpack.c.l.b16 %v407
      %v917 = vunpack.c.l.b16 %v408
      %v918 = vunpack.c.l.b16 %v409
      %v919 = vunpack.c.l.b16 %v410
      %v920 = vunpack.c.l.b16 %v411
      %v921 = vunpack.c.l.b16 %v412
      %v922 = vpack.c.b16 %v907, %v906
      %v923 = vpack.c.b16 %v909, %v908
      %v924 = vpack.c.b16 %v911, %v910
      %v925 = vpack.c.b16 %v913, %v912
      %v926 = vpack.c.b16 %v915, %v914
      %v927 = vpack.c.b16 %v917, %v916
      %v928 = vpack.c.b16 %v919, %v918
      %v929 = vpack.c.b16 %v921, %v920
      %v931 = vsel %vm501, %v329, 0
      %v934 = vsel %vm501, %v922, 0
      %v937 = vsel %vm501, %v923, 0
      %v940 = vsel %vm501, %v924, 0
      %v943 = vsel %vm501, %v925, 0
      %v946 = vsel %vm501, %v926, 0
      %v949 = vsel %vm501, %v927, 0
      %v952 = vsel %vm501, %v928, 0
      %v955 = vsel %vm501, %v929, 0
      %957 = vmatprep.subr.bf16.mxu0 0
      %958 = vmatpush1.bf16.xpose.msra.mxu0 %v955
      %959 = vmatprep.subr.bf16.mxu0 0
      %960 = vmatpush1.bf16.xpose.msra.mxu0 %v952
      %961 = vmatprep.subr.bf16.mxu0 0
      %962 = vmatpush1.bf16.xpose.msra.mxu0 %v949
      %963 = vmatprep.subr.bf16.mxu0 0
      %964 = vmatpush1.bf16.xpose.msra.mxu0 %v946
      %965 = vmatprep.subr.bf16.mxu0 0
      %966 = vmatpush1.bf16.xpose.msra.mxu0 %v943
      %967 = vmatprep.subr.bf16.mxu0 0
      %968 = vmatpush1.bf16.xpose.msra.mxu0 %v940
      %969 = vmatprep.subr.bf16.mxu0 0
      %970 = vmatpush1.bf16.xpose.msra.mxu0 %v937
      %971 = vmatprep.subr.bf16.mxu0 0
      %972 = vmatpush1.bf16.xpose.msra.mxu0 %v934
      %973 = vmatprep.subr.bf16.mxu0 0
      %974 = vmatpush2.bf16.xpose.msra.mxu0 0
      %975 = vmatprep.subr.bf16.mxu0 0
      %976 = vmatpush2.bf16.xpose.msra.mxu0 0
      %977 = vmatprep.subr.bf16.mxu0 0
      %978 = vmatpush2.bf16.xpose.msra.mxu0 0
      %979 = vmatprep.subr.bf16.mxu0 0
      %980 = vmatpush2.bf16.xpose.msra.mxu0 0
      %981 = vmatprep.subr.bf16.mxu0 0
      %982 = vmatpush2.bf16.xpose.msra.mxu0 0
      %983 = vmatprep.subr.bf16.mxu0 0
      %984 = vmatpush2.bf16.xpose.msra.mxu0 0
      %985 = vmatprep.subr.bf16.mxu0 0
      %986 = vmatpush2.bf16.xpose.msra.mxu0 0
      %987 = vmatprep.subr.bf16.mxu0 0
      %988 = vmatpush2.bf16.xpose.msra.mxu0 0
      %989 = vmatprep.mubr.bf16.mxu0 0
      %990 = vmatmul.mubr.bf16.gmra.mxu0 %v931
      %v991 = vpop.f32.mrf.mxu0
      %v992 = vadd.f32 0.0, %v991
      %v993 = vpop.f32.mrf.mxu0
      %v994 = vpop.f32.mrf.mxu0
      %v995 = vpop.f32.mrf.mxu0
      %996 = vdwg.mxu0
      %v1013 = vunpack.c.l.b16 %v413
      %v1014 = vunpack.c.l.b16 %v414
      %v1015 = vunpack.c.l.b16 %v415
      %v1016 = vunpack.c.l.b16 %v416
      %v1017 = vunpack.c.l.b16 %v417
      %v1018 = vunpack.c.l.b16 %v418
      %v1019 = vunpack.c.l.b16 %v419
      %v1020 = vunpack.c.l.b16 %v420
      %v1021 = vunpack.c.l.b16 %v421
      %v1022 = vunpack.c.l.b16 %v422
      %v1023 = vunpack.c.l.b16 %v423
      %v1024 = vunpack.c.l.b16 %v424
      %v1025 = vunpack.c.l.b16 %v425
      %v1026 = vunpack.c.l.b16 %v426
      %v1027 = vunpack.c.l.b16 %v427
      %v1028 = vunpack.c.l.b16 %v428
      %v1029 = vpack.c.b16 %v1014, %v1013
      %v1030 = vpack.c.b16 %v1016, %v1015
      %v1031 = vpack.c.b16 %v1018, %v1017
      %v1032 = vpack.c.b16 %v1020, %v1019
      %v1033 = vpack.c.b16 %v1022, %v1021
      %v1034 = vpack.c.b16 %v1024, %v1023
      %v1035 = vpack.c.b16 %v1026, %v1025
      %v1036 = vpack.c.b16 %v1028, %v1027
      %v1038 = vsel %vm501, %v330, 0
      %v1041 = vsel %vm501, %v1029, 0
      %v1044 = vsel %vm501, %v1030, 0
      %v1047 = vsel %vm501, %v1031, 0
      %v1050 = vsel %vm501, %v1032, 0
      %v1053 = vsel %vm501, %v1033, 0
      %v1056 = vsel %vm501, %v1034, 0
      %v1059 = vsel %vm501, %v1035, 0
      %v1062 = vsel %vm501, %v1036, 0
      %1064 = vmatprep.subr.bf16.mxu0 0
      %1065 = vmatpush1.bf16.xpose.msra.mxu0 %v1062
      %1066 = vmatprep.subr.bf16.mxu0 0
      %1067 = vmatpush1.bf16.xpose.msra.mxu0 %v1059
      %1068 = vmatprep.subr.bf16.mxu0 0
      %1069 = vmatpush1.bf16.xpose.msra.mxu0 %v1056
      %1070 = vmatprep.subr.bf16.mxu0 0
      %1071 = vmatpush1.bf16.xpose.msra.mxu0 %v1053
      %1072 = vmatprep.subr.bf16.mxu0 0
      %1073 = vmatpush1.bf16.xpose.msra.mxu0 %v1050
      %1074 = vmatprep.subr.bf16.mxu0 0
      %1075 = vmatpush1.bf16.xpose.msra.mxu0 %v1047
      %1076 = vmatprep.subr.bf16.mxu0 0
      %1077 = vmatpush1.bf16.xpose.msra.mxu0 %v1044
      %1078 = vmatprep.subr.bf16.mxu0 0
      %1079 = vmatpush1.bf16.xpose.msra.mxu0 %v1041
      %1080 = vmatprep.subr.bf16.mxu0 0
      %1081 = vmatpush2.bf16.xpose.msra.mxu0 0
      %1082 = vmatprep.subr.bf16.mxu0 0
      %1083 = vmatpush2.bf16.xpose.msra.mxu0 0
      %1084 = vmatprep.subr.bf16.mxu0 0
      %1085 = vmatpush2.bf16.xpose.msra.mxu0 0
      %1086 = vmatprep.subr.bf16.mxu0 0
      %1087 = vmatpush2.bf16.xpose.msra.mxu0 0
      %1088 = vmatprep.subr.bf16.mxu0 0
      %1089 = vmatpush2.bf16.xpose.msra.mxu0 0
      %1090 = vmatprep.subr.bf16.mxu0 0
      %1091 = vmatpush2.bf16.xpose.msra.mxu0 0
      %1092 = vmatprep.subr.bf16.mxu0 0
      %1093 = vmatpush2.bf16.xpose.msra.mxu0 0
      %1094 = vmatprep.subr.bf16.mxu0 0
      %1095 = vmatpush2.bf16.xpose.msra.mxu0 0
      %1096 = vmatprep.mubr.bf16.mxu0 0
      %1097 = vmatmul.mubr.bf16.gmra.mxu0 %v1038
      %v1098 = vpop.f32.mrf.mxu0
      %v1099 = vadd.f32 0.0, %v1098
      %v1100 = vpop.f32.mrf.mxu0
      %v1101 = vpop.f32.mrf.mxu0
      %v1102 = vpop.f32.mrf.mxu0
      %1103 = vdwg.mxu0
      %v1120 = vunpack.c.l.b16 %v429
      %v1121 = vunpack.c.l.b16 %v430
      %v1122 = vunpack.c.l.b16 %v431
      %v1123 = vunpack.c.l.b16 %v432
      %v1124 = vunpack.c.l.b16 %v433
      %v1125 = vunpack.c.l.b16 %v434
      %v1126 = vunpack.c.l.b16 %v435
      %v1127 = vunpack.c.l.b16 %v436
      %v1128 = vunpack.c.l.b16 %v437
      %v1129 = vunpack.c.l.b16 %v438
      %v1130 = vunpack.c.l.b16 %v439
      %v1131 = vunpack.c.l.b16 %v440
      %v1132 = vunpack.c.l.b16 %v441
      %v1133 = vunpack.c.l.b16 %v442
      %v1134 = vunpack.c.l.b16 %v443
      %v1135 = vunpack.c.l.b16 %v444
      %v1136 = vpack.c.b16 %v1121, %v1120
      %v1137 = vpack.c.b16 %v1123, %v1122
      %v1138 = vpack.c.b16 %v1125, %v1124
      %v1139 = vpack.c.b16 %v1127, %v1126
      %v1140 = vpack.c.b16 %v1129, %v1128
      %v1141 = vpack.c.b16 %v1131, %v1130
      %v1142 = vpack.c.b16 %v1133, %v1132
      %v1143 = vpack.c.b16 %v1135, %v1134
      %v1145 = vsel %vm501, %v331, 0
      %v1148 = vsel %vm501, %v1136, 0
      %v1151 = vsel %vm501, %v1137, 0
      %v1154 = vsel %vm501, %v1138, 0
      %v1157 = vsel %vm501, %v1139, 0
      %v1160 = vsel %vm501, %v1140, 0
      %v1163 = vsel %vm501, %v1141, 0
      %v1166 = vsel %vm501, %v1142, 0
      %v1169 = vsel %vm501, %v1143, 0
      %1171 = vmatprep.subr.bf16.mxu0 0
      %1172 = vmatpush1.bf16.xpose.msra.mxu0 %v1169
      %1173 = vmatprep.subr.bf16.mxu0 0
      %1174 = vmatpush1.bf16.xpose.msra.mxu0 %v1166
      %1175 = vmatprep.subr.bf16.mxu0 0
      %1176 = vmatpush1.bf16.xpose.msra.mxu0 %v1163
      %1177 = vmatprep.subr.bf16.mxu0 0
      %1178 = vmatpush1.bf16.xpose.msra.mxu0 %v1160
      %1179 = vmatprep.subr.bf16.mxu0 0
      %1180 = vmatpush1.bf16.xpose.msra.mxu0 %v1157
      %1181 = vmatprep.subr.bf16.mxu0 0
      %1182 = vmatpush1.bf16.xpose.msra.mxu0 %v1154
      %1183 = vmatprep.subr.bf16.mxu0 0
      %1184 = vmatpush1.bf16.xpose.msra.mxu0 %v1151
      %1185 = vmatprep.subr.bf16.mxu0 0
      %1186 = vmatpush1.bf16.xpose.msra.mxu0 %v1148
      %1187 = vmatprep.subr.bf16.mxu0 0
      %1188 = vmatpush2.bf16.xpose.msra.mxu0 0
      %1189 = vmatprep.subr.bf16.mxu0 0
      %1190 = vmatpush2.bf16.xpose.msra.mxu0 0
      %1191 = vmatprep.subr.bf16.mxu0 0
      %1192 = vmatpush2.bf16.xpose.msra.mxu0 0
      %1193 = vmatprep.subr.bf16.mxu0 0
      %1194 = vmatpush2.bf16.xpose.msra.mxu0 0
      %1195 = vmatprep.subr.bf16.mxu0 0
      %1196 = vmatpush2.bf16.xpose.msra.mxu0 0
      %1197 = vmatprep.subr.bf16.mxu0 0
      %1198 = vmatpush2.bf16.xpose.msra.mxu0 0
      %1199 = vmatprep.subr.bf16.mxu0 0
      %1200 = vmatpush2.bf16.xpose.msra.mxu0 0
      %1201 = vmatprep.subr.bf16.mxu0 0
      %1202 = vmatpush2.bf16.xpose.msra.mxu0 0
      %1203 = vmatprep.mubr.bf16.mxu0 0
      %1204 = vmatmul.mubr.bf16.gmra.mxu0 %v1145
      %v1205 = vpop.f32.mrf.mxu0
      %v1206 = vadd.f32 0.0, %v1205
      %v1207 = vpop.f32.mrf.mxu0
      %v1208 = vpop.f32.mrf.mxu0
      %v1209 = vpop.f32.mrf.mxu0
      %1210 = vdwg.mxu0
      %v1227 = vunpack.c.l.b16 %v445
      %v1228 = vunpack.c.l.b16 %v446
      %v1229 = vunpack.c.l.b16 %v447
      %v1230 = vunpack.c.l.b16 %v448
      %v1231 = vunpack.c.l.b16 %v449
      %v1232 = vunpack.c.l.b16 %v450
      %v1233 = vunpack.c.l.b16 %v451
      %v1234 = vunpack.c.l.b16 %v452
      %v1235 = vunpack.c.l.b16 %v453
      %v1236 = vunpack.c.l.b16 %v454
      %v1237 = vunpack.c.l.b16 %v455
      %v1238 = vunpack.c.l.b16 %v456
      %v1239 = vunpack.c.l.b16 %v457
      %v1240 = vunpack.c.l.b16 %v458
      %v1241 = vunpack.c.l.b16 %v459
      %v1242 = vunpack.c.l.b16 %v460
      %v1243 = vpack.c.b16 %v1228, %v1227
      %v1244 = vpack.c.b16 %v1230, %v1229
      %v1245 = vpack.c.b16 %v1232, %v1231
      %v1246 = vpack.c.b16 %v1234, %v1233
      %v1247 = vpack.c.b16 %v1236, %v1235
      %v1248 = vpack.c.b16 %v1238, %v1237
      %v1249 = vpack.c.b16 %v1240, %v1239
      %v1250 = vpack.c.b16 %v1242, %v1241
      %v1252 = vsel %vm501, %v332, 0
      %v1255 = vsel %vm501, %v1243, 0
      %v1258 = vsel %vm501, %v1244, 0
      %v1261 = vsel %vm501, %v1245, 0
      %v1264 = vsel %vm501, %v1246, 0
      %v1267 = vsel %vm501, %v1247, 0
      %v1270 = vsel %vm501, %v1248, 0
      %v1273 = vsel %vm501, %v1249, 0
      %v1276 = vsel %vm501, %v1250, 0
      %1278 = vmatprep.subr.bf16.mxu0 0
      %1279 = vmatpush1.bf16.xpose.msra.mxu0 %v1276
      %1280 = vmatprep.subr.bf16.mxu0 0
      %1281 = vmatpush1.bf16.xpose.msra.mxu0 %v1273
      %1282 = vmatprep.subr.bf16.mxu0 0
      %1283 = vmatpush1.bf16.xpose.msra.mxu0 %v1270
      %1284 = vmatprep.subr.bf16.mxu0 0
      %1285 = vmatpush1.bf16.xpose.msra.mxu0 %v1267
      %1286 = vmatprep.subr.bf16.mxu0 0
      %1287 = vmatpush1.bf16.xpose.msra.mxu0 %v1264
      %1288 = vmatprep.subr.bf16.mxu0 0
      %1289 = vmatpush1.bf16.xpose.msra.mxu0 %v1261
      %1290 = vmatprep.subr.bf16.mxu0 0
      %1291 = vmatpush1.bf16.xpose.msra.mxu0 %v1258
      %1292 = vmatprep.subr.bf16.mxu0 0
      %1293 = vmatpush1.bf16.xpose.msra.mxu0 %v1255
      %1294 = vmatprep.subr.bf16.mxu0 0
      %1295 = vmatpush2.bf16.xpose.msra.mxu0 0
      %1296 = vmatprep.subr.bf16.mxu0 0
      %1297 = vmatpush2.bf16.xpose.msra.mxu0 0
      %1298 = vmatprep.subr.bf16.mxu0 0
      %1299 = vmatpush2.bf16.xpose.msra.mxu0 0
      %1300 = vmatprep.subr.bf16.mxu0 0
      %1301 = vmatpush2.bf16.xpose.msra.mxu0 0
      %1302 = vmatprep.subr.bf16.mxu0 0
      %1303 = vmatpush2.bf16.xpose.msra.mxu0 0
      %1304 = vmatprep.subr.bf16.mxu0 0
      %1305 = vmatpush2.bf16.xpose.msra.mxu0 0
      %1306 = vmatprep.subr.bf16.mxu0 0
      %1307 = vmatpush2.bf16.xpose.msra.mxu0 0
      %1308 = vmatprep.subr.bf16.mxu0 0
      %1309 = vmatpush2.bf16.xpose.msra.mxu0 0
      %1310 = vmatprep.mubr.bf16.mxu0 0
      %1311 = vmatmul.mubr.bf16.gmra.mxu0 %v1252
      %v1312 = vpop.f32.mrf.mxu0
      %v1313 = vadd.f32 0.0, %v1312
      %v1314 = vpop.f32.mrf.mxu0
      %v1315 = vpop.f32.mrf.mxu0
      %v1316 = vpop.f32.mrf.mxu0
      %1317 = vdwg.mxu0
      %v1318 = vmul.f32 %v564, 0.35355338
      %v1319 = vmul.f32 %v671, 0.35355338
      %v1320 = vmul.f32 %v778, 0.35355338
      %v1321 = vmul.f32 %v885, 0.35355338
      %v1322 = vmul.f32 %v992, 0.35355338
      %v1323 = vmul.f32 %v1099, 0.35355338
      %v1324 = vmul.f32 %v1206, 0.35355338
      %v1325 = vmul.f32 %v1313, 0.35355338
      %s1326 = smul.u32 %s21, 128
      %v1327 = vlaneseq
      %v1328 = vand.u32 %v1327, 127
      %v1329 = vstv %s1326
      %v1330 = vadd.s32 %v1329, %v1328
      %vm1331 = vcmp.lt.s32.totalorder %v1330, 4
      %v1332 = vsel %vm1331, %v1318, -1e+30
      %v1333 = vsel %vm1331, %v1319, -1e+30
      %v1334 = vsel %vm1331, %v1320, -1e+30
      %v1335 = vsel %vm1331, %v1321, -1e+30
      %v1336 = vsel %vm1331, %v1322, -1e+30
      %v1337 = vsel %vm1331, %v1323, -1e+30
      %v1338 = vsel %vm1331, %v1324, -1e+30
      %v1339 = vsel %vm1331, %v1325, -1e+30
      %v1340 = vld [vmem:[#allocation2] sm:$0xff]
      %v1341 = vld [vmem:[#allocation2 + $0x8] sm:$0xff]
      %v1342 = vld [vmem:[#allocation2 + $0x10] sm:$0xff]
      %v1343 = vld [vmem:[#allocation2 + $0x18] sm:$0xff]
      %v1344 = vld [vmem:[#allocation2 + $0x20] sm:$0xff]
      %v1345 = vld [vmem:[#allocation2 + $0x28] sm:$0xff]
      %v1346 = vld [vmem:[#allocation2 + $0x30] sm:$0xff]
      %v1347 = vld [vmem:[#allocation2 + $0x38] sm:$0xff]
      %1348 = vmax.xlane.f32.xlu0 %v1332
      %v1349 = vpop.xlane.xlu0 %1348
      %1350 = vmax.xlane.f32.xlu0 %v1333
      %v1351 = vpop.xlane.xlu0 %1350
      %1352 = vmax.xlane.f32.xlu0 %v1334
      %v1353 = vpop.xlane.xlu0 %1352
      %1354 = vmax.xlane.f32.xlu0 %v1335
      %v1355 = vpop.xlane.xlu0 %1354
      %1356 = vmax.xlane.f32.xlu0 %v1336
      %v1357 = vpop.xlane.xlu0 %1356
      %1358 = vmax.xlane.f32.xlu0 %v1337
      %v1359 = vpop.xlane.xlu0 %1358
      %1360 = vmax.xlane.f32.xlu0 %v1338
      %v1361 = vpop.xlane.xlu0 %1360
      %1362 = vmax.xlane.f32.xlu0 %v1339
      %v1363 = vpop.xlane.xlu0 %1362
      %v1364 = vmax.f32 %v1340, %v1349
      %v1365 = vmax.f32 %v1341, %v1351
      %v1366 = vmax.f32 %v1342, %v1353
      %v1367 = vmax.f32 %v1343, %v1355
      %v1368 = vmax.f32 %v1344, %v1357
      %v1369 = vmax.f32 %v1345, %v1359
      %v1370 = vmax.f32 %v1346, %v1361
      %v1371 = vmax.f32 %v1347, %v1363
      %v1372 = vsub.f32 %v1340, %v1364
      %v1373 = vsub.f32 %v1341, %v1365
      %v1374 = vsub.f32 %v1342, %v1366
      %v1375 = vsub.f32 %v1343, %v1367
      %v1376 = vsub.f32 %v1344, %v1368
      %v1377 = vsub.f32 %v1345, %v1369
      %v1378 = vsub.f32 %v1346, %v1370
      %v1379 = vsub.f32 %v1347, %v1371
      %v1380 = vmul.f32 %v1372, 1.442695
      %v1381 = vpow.pop %v1380
      %v1382 = vmul.f32 %v1373, 1.442695
      %v1383 = vpow.pop %v1382
      %v1384 = vmul.f32 %v1374, 1.442695
      %v1385 = vpow.pop %v1384
      %v1386 = vmul.f32 %v1375, 1.442695
      %v1387 = vpow.pop %v1386
      %v1388 = vmul.f32 %v1376, 1.442695
      %v1389 = vpow.pop %v1388
      %v1390 = vmul.f32 %v1377, 1.442695
      %v1391 = vpow.pop %v1390
      %v1392 = vmul.f32 %v1378, 1.442695
      %v1393 = vpow.pop %v1392
      %v1394 = vmul.f32 %v1379, 1.442695
      %v1395 = vpow.pop %v1394
      %1397 = vset.pattern.permute.xlu0 0
      %1398 = vperm.xlu0 %1397, %v1364
      %v1399 = vpop.permute.xlu0 %1398
      %1402 = vset.pattern.permute.xlu0 0
      %1403 = vperm.xlu0 %1402, %v1365
      %v1404 = vpop.permute.xlu0 %1403
      %1407 = vset.pattern.permute.xlu0 0
      %1408 = vperm.xlu0 %1407, %v1366
      %v1409 = vpop.permute.xlu0 %1408
      %1412 = vset.pattern.permute.xlu0 0
      %1413 = vperm.xlu0 %1412, %v1367
      %v1414 = vpop.permute.xlu0 %1413
      %1417 = vset.pattern.permute.xlu0 0
      %1418 = vperm.xlu0 %1417, %v1368
      %v1419 = vpop.permute.xlu0 %1418
      %1422 = vset.pattern.permute.xlu0 0
      %1423 = vperm.xlu0 %1422, %v1369
      %v1424 = vpop.permute.xlu0 %1423
      %1427 = vset.pattern.permute.xlu0 0
      %1428 = vperm.xlu0 %1427, %v1370
      %v1429 = vpop.permute.xlu0 %1428
      %1432 = vset.pattern.permute.xlu0 0
      %1433 = vperm.xlu0 %1432, %v1371
      %v1434 = vpop.permute.xlu0 %1433
      %v1436 = vsub.f32 %v1332, %v1399
      %v1437 = vsub.f32 %v1333, %v1404
      %v1438 = vsub.f32 %v1334, %v1409
      %v1439 = vsub.f32 %v1335, %v1414
      %v1440 = vsub.f32 %v1336, %v1419
      %v1441 = vsub.f32 %v1337, %v1424
      %v1442 = vsub.f32 %v1338, %v1429
      %v1443 = vsub.f32 %v1339, %v1434
      %v1444 = vmul.f32 %v1436, 1.442695
      %v1445 = vpow.pop %v1444
      %v1446 = vmul.f32 %v1437, 1.442695
      %v1447 = vpow.pop %v1446
      %v1448 = vmul.f32 %v1438, 1.442695
      %v1449 = vpow.pop %v1448
      %v1450 = vmul.f32 %v1439, 1.442695
      %v1451 = vpow.pop %v1450
      %v1452 = vmul.f32 %v1440, 1.442695
      %v1453 = vpow.pop %v1452
      %v1454 = vmul.f32 %v1441, 1.442695
      %v1455 = vpow.pop %v1454
      %v1456 = vmul.f32 %v1442, 1.442695
      %v1457 = vpow.pop %v1456
      %v1458 = vmul.f32 %v1443, 1.442695
      %v1459 = vpow.pop %v1458
      %v1460 = vld [vmem:[#allocation3] sm:$0xff]
      %v1461 = vld [vmem:[#allocation3 + $0x8] sm:$0xff]
      %v1462 = vld [vmem:[#allocation3 + $0x10] sm:$0xff]
      %v1463 = vld [vmem:[#allocation3 + $0x18] sm:$0xff]
      %v1464 = vld [vmem:[#allocation3 + $0x20] sm:$0xff]
      %v1465 = vld [vmem:[#allocation3 + $0x28] sm:$0xff]
      %v1466 = vld [vmem:[#allocation3 + $0x30] sm:$0xff]
      %v1467 = vld [vmem:[#allocation3 + $0x38] sm:$0xff]
      %v1468 = vmul.f32 %v1381, %v1460
      %v1469 = vmul.f32 %v1383, %v1461
      %v1470 = vmul.f32 %v1385, %v1462
      %v1471 = vmul.f32 %v1387, %v1463
      %v1472 = vmul.f32 %v1389, %v1464
      %v1473 = vmul.f32 %v1391, %v1465
      %v1474 = vmul.f32 %v1393, %v1466
      %v1475 = vmul.f32 %v1395, %v1467
      %1476 = vadd.xlane.f32.xlu0 %v1445
      %v1477 = vpop.xlane.xlu0 %1476
      %1478 = vadd.xlane.f32.xlu0 %v1447
      %v1479 = vpop.xlane.xlu0 %1478
      %1480 = vadd.xlane.f32.xlu0 %v1449
      %v1481 = vpop.xlane.xlu0 %1480
      %1482 = vadd.xlane.f32.xlu0 %v1451
      %v1483 = vpop.xlane.xlu0 %1482
      %1484 = vadd.xlane.f32.xlu0 %v1453
      %v1485 = vpop.xlane.xlu0 %1484
      %1486 = vadd.xlane.f32.xlu0 %v1455
      %v1487 = vpop.xlane.xlu0 %1486
      %1488 = vadd.xlane.f32.xlu0 %v1457
      %v1489 = vpop.xlane.xlu0 %1488
      %1490 = vadd.xlane.f32.xlu0 %v1459
      %v1491 = vpop.xlane.xlu0 %1490
      %v1492 = vadd.f32 %v1468, %v1477
      %v1493 = vadd.f32 %v1469, %v1479
      %v1494 = vadd.f32 %v1470, %v1481
      %v1495 = vadd.f32 %v1471, %v1483
      %v1496 = vadd.f32 %v1472, %v1485
      %v1497 = vadd.f32 %v1473, %v1487
      %v1498 = vadd.f32 %v1474, %v1489
      %v1499 = vadd.f32 %v1475, %v1491
      %vm1500 = vcmask 7168
      %1501 = vst.msk [vmem:[#allocation3] sm:$0xff] %vm1500, %v1492
      %1502 = vst.msk [vmem:[#allocation3 + $0x8] sm:$0xff] %vm1500, %v1493
      %1503 = vst.msk [vmem:[#allocation3 + $0x10] sm:$0xff] %vm1500, %v1494
      %1504 = vst.msk [vmem:[#allocation3 + $0x18] sm:$0xff] %vm1500, %v1495
      %1505 = vst.msk [vmem:[#allocation3 + $0x20] sm:$0xff] %vm1500, %v1496
      %1506 = vst.msk [vmem:[#allocation3 + $0x28] sm:$0xff] %vm1500, %v1497
      %1507 = vst.msk [vmem:[#allocation3 + $0x30] sm:$0xff] %vm1500, %v1498
      %1508 = vst.msk [vmem:[#allocation3 + $0x38] sm:$0xff] %vm1500, %v1499
      %v1509 = vld [vmem:[#allocation4] sm:$0xff]
      %v1510 = vld [vmem:[#allocation4 + $0x8] sm:$0xff]
      %v1511 = vld [vmem:[#allocation4 + $0x10] sm:$0xff]
      %v1512 = vld [vmem:[#allocation4 + $0x18] sm:$0xff]
      %v1513 = vld [vmem:[#allocation4 + $0x20] sm:$0xff]
      %v1514 = vld [vmem:[#allocation4 + $0x28] sm:$0xff]
      %v1515 = vld [vmem:[#allocation4 + $0x30] sm:$0xff]
      %v1516 = vld [vmem:[#allocation4 + $0x38] sm:$0xff]
      %1518 = vset.pattern.permute.xlu0 0
      %1519 = vperm.xlu0 %1518, %v1381
      %v1520 = vpop.permute.xlu0 %1519
      %1523 = vset.pattern.permute.xlu0 0
      %1524 = vperm.xlu0 %1523, %v1383
      %v1525 = vpop.permute.xlu0 %1524
      %1528 = vset.pattern.permute.xlu0 0
      %1529 = vperm.xlu0 %1528, %v1385
      %v1530 = vpop.permute.xlu0 %1529
      %1533 = vset.pattern.permute.xlu0 0
      %1534 = vperm.xlu0 %1533, %v1387
      %v1535 = vpop.permute.xlu0 %1534
      %1538 = vset.pattern.permute.xlu0 0
      %1539 = vperm.xlu0 %1538, %v1389
      %v1540 = vpop.permute.xlu0 %1539
      %1543 = vset.pattern.permute.xlu0 0
      %1544 = vperm.xlu0 %1543, %v1391
      %v1545 = vpop.permute.xlu0 %1544
      %1548 = vset.pattern.permute.xlu0 0
      %1549 = vperm.xlu0 %1548, %v1393
      %v1550 = vpop.permute.xlu0 %1549
      %1553 = vset.pattern.permute.xlu0 0
      %1554 = vperm.xlu0 %1553, %v1395
      %v1555 = vpop.permute.xlu0 %1554
      %v1557 = vmul.f32 %v1520, %v1509
      %v1558 = vmul.f32 %v1525, %v1510
      %v1559 = vmul.f32 %v1530, %v1511
      %v1560 = vmul.f32 %v1535, %v1512
      %v1561 = vmul.f32 %v1540, %v1513
      %v1562 = vmul.f32 %v1545, %v1514
      %v1563 = vmul.f32 %v1550, %v1515
      %v1564 = vmul.f32 %v1555, %v1516
      %v1565 = vpack.c.bf16 %v1445, %v1445
      %v1566 = vpack.c.bf16 %v1447, %v1447
      %v1567 = vpack.c.bf16 %v1449, %v1449
      %v1568 = vpack.c.bf16 %v1451, %v1451
      %v1569 = vpack.c.bf16 %v1453, %v1453
      %v1570 = vpack.c.bf16 %v1455, %v1455
      %v1571 = vpack.c.bf16 %v1457, %v1457
      %v1572 = vpack.c.bf16 %v1459, %v1459
      %v1573 = vld [vmem:[%s282] sm:$0xf]
      %v1574 = vld [vmem:[%s282 + $0x4] sm:$0xf]
      %v1575 = vld [vmem:[%s282 + $0x8] sm:$0xf]
      %v1576 = vld [vmem:[%s282 + $0xc] sm:$0xf]
      %v1577 = vld [vmem:[%s282 + $0x10] sm:$0xf]
      %v1578 = vld [vmem:[%s282 + $0x14] sm:$0xf]
      %v1579 = vld [vmem:[%s282 + $0x18] sm:$0xf]
      %v1580 = vld [vmem:[%s282 + $0x1c] sm:$0xf]
      %v1581 = vld [vmem:[%s282 + $0x20] sm:$0xf]
      %v1582 = vld [vmem:[%s282 + $0x24] sm:$0xf]
      %v1583 = vld [vmem:[%s282 + $0x28] sm:$0xf]
      %v1584 = vld [vmem:[%s282 + $0x2c] sm:$0xf]
      %v1585 = vld [vmem:[%s282 + $0x30] sm:$0xf]
      %v1586 = vld [vmem:[%s282 + $0x34] sm:$0xf]
      %v1587 = vld [vmem:[%s282 + $0x38] sm:$0xf]
      %v1588 = vld [vmem:[%s282 + $0x3c] sm:$0xf]
      %v1589 = vld [vmem:[%s282 + $0x40] sm:$0xf]
      %v1590 = vld [vmem:[%s282 + $0x44] sm:$0xf]
      %v1591 = vld [vmem:[%s282 + $0x48] sm:$0xf]
      %v1592 = vld [vmem:[%s282 + $0x4c] sm:$0xf]
      %v1593 = vld [vmem:[%s282 + $0x50] sm:$0xf]
      %v1594 = vld [vmem:[%s282 + $0x54] sm:$0xf]
      %v1595 = vld [vmem:[%s282 + $0x58] sm:$0xf]
      %v1596 = vld [vmem:[%s282 + $0x5c] sm:$0xf]
      %v1597 = vld [vmem:[%s282 + $0x60] sm:$0xf]
      %v1598 = vld [vmem:[%s282 + $0x64] sm:$0xf]
      %v1599 = vld [vmem:[%s282 + $0x68] sm:$0xf]
      %v1600 = vld [vmem:[%s282 + $0x6c] sm:$0xf]
      %v1601 = vld [vmem:[%s282 + $0x70] sm:$0xf]
      %v1602 = vld [vmem:[%s282 + $0x74] sm:$0xf]
      %v1603 = vld [vmem:[%s282 + $0x78] sm:$0xf]
      %v1604 = vld [vmem:[%s282 + $0x7c] sm:$0xf]
      %v1605 = vld [vmem:[%s282 + $0x80] sm:$0xf]
      %v1606 = vld [vmem:[%s282 + $0x84] sm:$0xf]
      %v1607 = vld [vmem:[%s282 + $0x88] sm:$0xf]
      %v1608 = vld [vmem:[%s282 + $0x8c] sm:$0xf]
      %v1609 = vld [vmem:[%s282 + $0x90] sm:$0xf]
      %v1610 = vld [vmem:[%s282 + $0x94] sm:$0xf]
      %v1611 = vld [vmem:[%s282 + $0x98] sm:$0xf]
      %v1612 = vld [vmem:[%s282 + $0x9c] sm:$0xf]
      %v1613 = vld [vmem:[%s282 + $0xa0] sm:$0xf]
      %v1614 = vld [vmem:[%s282 + $0xa4] sm:$0xf]
      %v1615 = vld [vmem:[%s282 + $0xa8] sm:$0xf]
      %v1616 = vld [vmem:[%s282 + $0xac] sm:$0xf]
      %v1617 = vld [vmem:[%s282 + $0xb0] sm:$0xf]
      %v1618 = vld [vmem:[%s282 + $0xb4] sm:$0xf]
      %v1619 = vld [vmem:[%s282 + $0xb8] sm:$0xf]
      %v1620 = vld [vmem:[%s282 + $0xbc] sm:$0xf]
      %v1621 = vld [vmem:[%s282 + $0xc0] sm:$0xf]
      %v1622 = vld [vmem:[%s282 + $0xc4] sm:$0xf]
      %v1623 = vld [vmem:[%s282 + $0xc8] sm:$0xf]
      %v1624 = vld [vmem:[%s282 + $0xcc] sm:$0xf]
      %v1625 = vld [vmem:[%s282 + $0xd0] sm:$0xf]
      %v1626 = vld [vmem:[%s282 + $0xd4] sm:$0xf]
      %v1627 = vld [vmem:[%s282 + $0xd8] sm:$0xf]
      %v1628 = vld [vmem:[%s282 + $0xdc] sm:$0xf]
      %v1629 = vld [vmem:[%s282 + $0xe0] sm:$0xf]
      %v1630 = vld [vmem:[%s282 + $0xe4] sm:$0xf]
      %v1631 = vld [vmem:[%s282 + $0xe8] sm:$0xf]
      %v1632 = vld [vmem:[%s282 + $0xec] sm:$0xf]
      %v1633 = vld [vmem:[%s282 + $0xf0] sm:$0xf]
      %v1634 = vld [vmem:[%s282 + $0xf4] sm:$0xf]
      %v1635 = vld [vmem:[%s282 + $0xf8] sm:$0xf]
      %v1636 = vld [vmem:[%s282 + $0xfc] sm:$0xf]
      %v1637 = vld [vmem:[%s282 + $0x100] sm:$0xf]
      %v1638 = vld [vmem:[%s282 + $0x104] sm:$0xf]
      %v1639 = vld [vmem:[%s282 + $0x108] sm:$0xf]
      %v1640 = vld [vmem:[%s282 + $0x10c] sm:$0xf]
      %v1641 = vld [vmem:[%s282 + $0x110] sm:$0xf]
      %v1642 = vld [vmem:[%s282 + $0x114] sm:$0xf]
      %v1643 = vld [vmem:[%s282 + $0x118] sm:$0xf]
      %v1644 = vld [vmem:[%s282 + $0x11c] sm:$0xf]
      %v1645 = vld [vmem:[%s282 + $0x120] sm:$0xf]
      %v1646 = vld [vmem:[%s282 + $0x124] sm:$0xf]
      %v1647 = vld [vmem:[%s282 + $0x128] sm:$0xf]
      %v1648 = vld [vmem:[%s282 + $0x12c] sm:$0xf]
      %v1649 = vld [vmem:[%s282 + $0x130] sm:$0xf]
      %v1650 = vld [vmem:[%s282 + $0x134] sm:$0xf]
      %v1651 = vld [vmem:[%s282 + $0x138] sm:$0xf]
      %v1652 = vld [vmem:[%s282 + $0x13c] sm:$0xf]
      %v1653 = vld [vmem:[%s282 + $0x140] sm:$0xf]
      %v1654 = vld [vmem:[%s282 + $0x144] sm:$0xf]
      %v1655 = vld [vmem:[%s282 + $0x148] sm:$0xf]
      %v1656 = vld [vmem:[%s282 + $0x14c] sm:$0xf]
      %v1657 = vld [vmem:[%s282 + $0x150] sm:$0xf]
      %v1658 = vld [vmem:[%s282 + $0x154] sm:$0xf]
      %v1659 = vld [vmem:[%s282 + $0x158] sm:$0xf]
      %v1660 = vld [vmem:[%s282 + $0x15c] sm:$0xf]
      %v1661 = vld [vmem:[%s282 + $0x160] sm:$0xf]
      %v1662 = vld [vmem:[%s282 + $0x164] sm:$0xf]
      %v1663 = vld [vmem:[%s282 + $0x168] sm:$0xf]
      %v1664 = vld [vmem:[%s282 + $0x16c] sm:$0xf]
      %v1665 = vld [vmem:[%s282 + $0x170] sm:$0xf]
      %v1666 = vld [vmem:[%s282 + $0x174] sm:$0xf]
      %v1667 = vld [vmem:[%s282 + $0x178] sm:$0xf]
      %v1668 = vld [vmem:[%s282 + $0x17c] sm:$0xf]
      %v1669 = vld [vmem:[%s282 + $0x180] sm:$0xf]
      %v1670 = vld [vmem:[%s282 + $0x184] sm:$0xf]
      %v1671 = vld [vmem:[%s282 + $0x188] sm:$0xf]
      %v1672 = vld [vmem:[%s282 + $0x18c] sm:$0xf]
      %v1673 = vld [vmem:[%s282 + $0x190] sm:$0xf]
      %v1674 = vld [vmem:[%s282 + $0x194] sm:$0xf]
      %v1675 = vld [vmem:[%s282 + $0x198] sm:$0xf]
      %v1676 = vld [vmem:[%s282 + $0x19c] sm:$0xf]
      %v1677 = vld [vmem:[%s282 + $0x1a0] sm:$0xf]
      %v1678 = vld [vmem:[%s282 + $0x1a4] sm:$0xf]
      %v1679 = vld [vmem:[%s282 + $0x1a8] sm:$0xf]
      %v1680 = vld [vmem:[%s282 + $0x1ac] sm:$0xf]
      %v1681 = vld [vmem:[%s282 + $0x1b0] sm:$0xf]
      %v1682 = vld [vmem:[%s282 + $0x1b4] sm:$0xf]
      %v1683 = vld [vmem:[%s282 + $0x1b8] sm:$0xf]
      %v1684 = vld [vmem:[%s282 + $0x1bc] sm:$0xf]
      %v1685 = vld [vmem:[%s282 + $0x1c0] sm:$0xf]
      %v1686 = vld [vmem:[%s282 + $0x1c4] sm:$0xf]
      %v1687 = vld [vmem:[%s282 + $0x1c8] sm:$0xf]
      %v1688 = vld [vmem:[%s282 + $0x1cc] sm:$0xf]
      %v1689 = vld [vmem:[%s282 + $0x1d0] sm:$0xf]
      %v1690 = vld [vmem:[%s282 + $0x1d4] sm:$0xf]
      %v1691 = vld [vmem:[%s282 + $0x1d8] sm:$0xf]
      %v1692 = vld [vmem:[%s282 + $0x1dc] sm:$0xf]
      %v1693 = vld [vmem:[%s282 + $0x1e0] sm:$0xf]
      %v1694 = vld [vmem:[%s282 + $0x1e4] sm:$0xf]
      %v1695 = vld [vmem:[%s282 + $0x1e8] sm:$0xf]
      %v1696 = vld [vmem:[%s282 + $0x1ec] sm:$0xf]
      %v1697 = vld [vmem:[%s282 + $0x1f0] sm:$0xf]
      %v1698 = vld [vmem:[%s282 + $0x1f4] sm:$0xf]
      %v1699 = vld [vmem:[%s282 + $0x1f8] sm:$0xf]
      %v1700 = vld [vmem:[%s282 + $0x1fc] sm:$0xf]
      %v1717 = vunpack.c.l.b16 %v1573
      %v1718 = vunpack.c.l.b16 %v1574
      %v1719 = vunpack.c.l.b16 %v1575
      %v1720 = vunpack.c.l.b16 %v1576
      %v1721 = vunpack.c.l.b16 %v1577
      %v1722 = vunpack.c.l.b16 %v1578
      %v1723 = vunpack.c.l.b16 %v1579
      %v1724 = vunpack.c.l.b16 %v1580
      %v1725 = vunpack.c.l.b16 %v1581
      %v1726 = vunpack.c.l.b16 %v1582
      %v1727 = vunpack.c.l.b16 %v1583
      %v1728 = vunpack.c.l.b16 %v1584
      %v1729 = vunpack.c.l.b16 %v1585
      %v1730 = vunpack.c.l.b16 %v1586
      %v1731 = vunpack.c.l.b16 %v1587
      %v1732 = vunpack.c.l.b16 %v1588
      %v1733 = vpack.c.b16 %v1718, %v1717
      %v1734 = vpack.c.b16 %v1720, %v1719
      %v1735 = vpack.c.b16 %v1722, %v1721
      %v1736 = vpack.c.b16 %v1724, %v1723
      %v1737 = vpack.c.b16 %v1726, %v1725
      %v1738 = vpack.c.b16 %v1728, %v1727
      %v1739 = vpack.c.b16 %v1730, %v1729
      %v1740 = vpack.c.b16 %v1732, %v1731
      %1749 = vmatprep.subr.bf16.mxu0 0
      %1750 = vmatpush1.bf16.msra.mxu0 %v1740
      %1751 = vmatprep.subr.bf16.mxu0 0
      %1752 = vmatpush1.bf16.msra.mxu0 %v1739
      %1753 = vmatprep.subr.bf16.mxu0 0
      %1754 = vmatpush1.bf16.msra.mxu0 %v1738
      %1755 = vmatprep.subr.bf16.mxu0 0
      %1756 = vmatpush1.bf16.msra.mxu0 %v1737
      %1757 = vmatprep.subr.bf16.mxu0 0
      %1758 = vmatpush1.bf16.msra.mxu0 %v1736
      %1759 = vmatprep.subr.bf16.mxu0 0
      %1760 = vmatpush1.bf16.msra.mxu0 %v1735
      %1761 = vmatprep.subr.bf16.mxu0 0
      %1762 = vmatpush1.bf16.msra.mxu0 %v1734
      %1763 = vmatprep.subr.bf16.mxu0 0
      %1764 = vmatpush1.bf16.msra.mxu0 %v1733
      %1765 = vmatprep.subr.bf16.mxu0 0
      %1766 = vmatpush2.bf16.msra.mxu0 0
      %1767 = vmatprep.subr.bf16.mxu0 0
      %1768 = vmatpush2.bf16.msra.mxu0 0
      %1769 = vmatprep.subr.bf16.mxu0 0
      %1770 = vmatpush2.bf16.msra.mxu0 0
      %1771 = vmatprep.subr.bf16.mxu0 0
      %1772 = vmatpush2.bf16.msra.mxu0 0
      %1773 = vmatprep.subr.bf16.mxu0 0
      %1774 = vmatpush2.bf16.msra.mxu0 0
      %1775 = vmatprep.subr.bf16.mxu0 0
      %1776 = vmatpush2.bf16.msra.mxu0 0
      %1777 = vmatprep.subr.bf16.mxu0 0
      %1778 = vmatpush2.bf16.msra.mxu0 0
      %1779 = vmatprep.subr.bf16.mxu0 0
      %1780 = vmatpush2.bf16.msra.mxu0 0
      %1781 = vmatprep.mubr.bf16.mxu0 0
      %1782 = vmatmul.mubr.bf16.gmra.mxu0 %v1565
      %v1783 = vpop.f32.mrf.mxu0
      %v1784 = vadd.f32 0.0, %v1783
      %v1785 = vpop.f32.mrf.mxu0
      %v1786 = vpop.f32.mrf.mxu0
      %v1787 = vpop.f32.mrf.mxu0
      %1788 = vdwg.mxu0
      %v1805 = vunpack.c.l.b16 %v1589
      %v1806 = vunpack.c.l.b16 %v1590
      %v1807 = vunpack.c.l.b16 %v1591
      %v1808 = vunpack.c.l.b16 %v1592
      %v1809 = vunpack.c.l.b16 %v1593
      %v1810 = vunpack.c.l.b16 %v1594
      %v1811 = vunpack.c.l.b16 %v1595
      %v1812 = vunpack.c.l.b16 %v1596
      %v1813 = vunpack.c.l.b16 %v1597
      %v1814 = vunpack.c.l.b16 %v1598
      %v1815 = vunpack.c.l.b16 %v1599
      %v1816 = vunpack.c.l.b16 %v1600
      %v1817 = vunpack.c.l.b16 %v1601
      %v1818 = vunpack.c.l.b16 %v1602
      %v1819 = vunpack.c.l.b16 %v1603
      %v1820 = vunpack.c.l.b16 %v1604
      %v1821 = vpack.c.b16 %v1806, %v1805
      %v1822 = vpack.c.b16 %v1808, %v1807
      %v1823 = vpack.c.b16 %v1810, %v1809
      %v1824 = vpack.c.b16 %v1812, %v1811
      %v1825 = vpack.c.b16 %v1814, %v1813
      %v1826 = vpack.c.b16 %v1816, %v1815
      %v1827 = vpack.c.b16 %v1818, %v1817
      %v1828 = vpack.c.b16 %v1820, %v1819
      %1837 = vmatprep.subr.bf16.mxu0 0
      %1838 = vmatpush1.bf16.msra.mxu0 %v1828
      %1839 = vmatprep.subr.bf16.mxu0 0
      %1840 = vmatpush1.bf16.msra.mxu0 %v1827
      %1841 = vmatprep.subr.bf16.mxu0 0
      %1842 = vmatpush1.bf16.msra.mxu0 %v1826
      %1843 = vmatprep.subr.bf16.mxu0 0
      %1844 = vmatpush1.bf16.msra.mxu0 %v1825
      %1845 = vmatprep.subr.bf16.mxu0 0
      %1846 = vmatpush1.bf16.msra.mxu0 %v1824
      %1847 = vmatprep.subr.bf16.mxu0 0
      %1848 = vmatpush1.bf16.msra.mxu0 %v1823
      %1849 = vmatprep.subr.bf16.mxu0 0
      %1850 = vmatpush1.bf16.msra.mxu0 %v1822
      %1851 = vmatprep.subr.bf16.mxu0 0
      %1852 = vmatpush1.bf16.msra.mxu0 %v1821
      %1853 = vmatprep.subr.bf16.mxu0 0
      %1854 = vmatpush2.bf16.msra.mxu0 0
      %1855 = vmatprep.subr.bf16.mxu0 0
      %1856 = vmatpush2.bf16.msra.mxu0 0
      %1857 = vmatprep.subr.bf16.mxu0 0
      %1858 = vmatpush2.bf16.msra.mxu0 0
      %1859 = vmatprep.subr.bf16.mxu0 0
      %1860 = vmatpush2.bf16.msra.mxu0 0
      %1861 = vmatprep.subr.bf16.mxu0 0
      %1862 = vmatpush2.bf16.msra.mxu0 0
      %1863 = vmatprep.subr.bf16.mxu0 0
      %1864 = vmatpush2.bf16.msra.mxu0 0
      %1865 = vmatprep.subr.bf16.mxu0 0
      %1866 = vmatpush2.bf16.msra.mxu0 0
      %1867 = vmatprep.subr.bf16.mxu0 0
      %1868 = vmatpush2.bf16.msra.mxu0 0
      %1869 = vmatprep.mubr.bf16.mxu0 0
      %1870 = vmatmul.mubr.bf16.gmra.mxu0 %v1566
      %v1871 = vpop.f32.mrf.mxu0
      %v1872 = vadd.f32 0.0, %v1871
      %v1873 = vpop.f32.mrf.mxu0
      %v1874 = vpop.f32.mrf.mxu0
      %v1875 = vpop.f32.mrf.mxu0
      %1876 = vdwg.mxu0
      %v1893 = vunpack.c.l.b16 %v1605
      %v1894 = vunpack.c.l.b16 %v1606
      %v1895 = vunpack.c.l.b16 %v1607
      %v1896 = vunpack.c.l.b16 %v1608
      %v1897 = vunpack.c.l.b16 %v1609
      %v1898 = vunpack.c.l.b16 %v1610
      %v1899 = vunpack.c.l.b16 %v1611
      %v1900 = vunpack.c.l.b16 %v1612
      %v1901 = vunpack.c.l.b16 %v1613
      %v1902 = vunpack.c.l.b16 %v1614
      %v1903 = vunpack.c.l.b16 %v1615
      %v1904 = vunpack.c.l.b16 %v1616
      %v1905 = vunpack.c.l.b16 %v1617
      %v1906 = vunpack.c.l.b16 %v1618
      %v1907 = vunpack.c.l.b16 %v1619
      %v1908 = vunpack.c.l.b16 %v1620
      %v1909 = vpack.c.b16 %v1894, %v1893
      %v1910 = vpack.c.b16 %v1896, %v1895
      %v1911 = vpack.c.b16 %v1898, %v1897
      %v1912 = vpack.c.b16 %v1900, %v1899
      %v1913 = vpack.c.b16 %v1902, %v1901
      %v1914 = vpack.c.b16 %v1904, %v1903
      %v1915 = vpack.c.b16 %v1906, %v1905
      %v1916 = vpack.c.b16 %v1908, %v1907
      %1925 = vmatprep.subr.bf16.mxu0 0
      %1926 = vmatpush1.bf16.msra.mxu0 %v1916
      %1927 = vmatprep.subr.bf16.mxu0 0
      %1928 = vmatpush1.bf16.msra.mxu0 %v1915
      %1929 = vmatprep.subr.bf16.mxu0 0
      %1930 = vmatpush1.bf16.msra.mxu0 %v1914
      %1931 = vmatprep.subr.bf16.mxu0 0
      %1932 = vmatpush1.bf16.msra.mxu0 %v1913
      %1933 = vmatprep.subr.bf16.mxu0 0
      %1934 = vmatpush1.bf16.msra.mxu0 %v1912
      %1935 = vmatprep.subr.bf16.mxu0 0
      %1936 = vmatpush1.bf16.msra.mxu0 %v1911
      %1937 = vmatprep.subr.bf16.mxu0 0
      %1938 = vmatpush1.bf16.msra.mxu0 %v1910
      %1939 = vmatprep.subr.bf16.mxu0 0
      %1940 = vmatpush1.bf16.msra.mxu0 %v1909
      %1941 = vmatprep.subr.bf16.mxu0 0
      %1942 = vmatpush2.bf16.msra.mxu0 0
      %1943 = vmatprep.subr.bf16.mxu0 0
      %1944 = vmatpush2.bf16.msra.mxu0 0
      %1945 = vmatprep.subr.bf16.mxu0 0
      %1946 = vmatpush2.bf16.msra.mxu0 0
      %1947 = vmatprep.subr.bf16.mxu0 0
      %1948 = vmatpush2.bf16.msra.mxu0 0
      %1949 = vmatprep.subr.bf16.mxu0 0
      %1950 = vmatpush2.bf16.msra.mxu0 0
      %1951 = vmatprep.subr.bf16.mxu0 0
      %1952 = vmatpush2.bf16.msra.mxu0 0
      %1953 = vmatprep.subr.bf16.mxu0 0
      %1954 = vmatpush2.bf16.msra.mxu0 0
      %1955 = vmatprep.subr.bf16.mxu0 0
      %1956 = vmatpush2.bf16.msra.mxu0 0
      %1957 = vmatprep.mubr.bf16.mxu0 0
      %1958 = vmatmul.mubr.bf16.gmra.mxu0 %v1567
      %v1959 = vpop.f32.mrf.mxu0
      %v1960 = vadd.f32 0.0, %v1959
      %v1961 = vpop.f32.mrf.mxu0
      %v1962 = vpop.f32.mrf.mxu0
      %v1963 = vpop.f32.mrf.mxu0
      %1964 = vdwg.mxu0
      %v1981 = vunpack.c.l.b16 %v1621
      %v1982 = vunpack.c.l.b16 %v1622
      %v1983 = vunpack.c.l.b16 %v1623
      %v1984 = vunpack.c.l.b16 %v1624
      %v1985 = vunpack.c.l.b16 %v1625
      %v1986 = vunpack.c.l.b16 %v1626
      %v1987 = vunpack.c.l.b16 %v1627
      %v1988 = vunpack.c.l.b16 %v1628
      %v1989 = vunpack.c.l.b16 %v1629
      %v1990 = vunpack.c.l.b16 %v1630
      %v1991 = vunpack.c.l.b16 %v1631
      %v1992 = vunpack.c.l.b16 %v1632
      %v1993 = vunpack.c.l.b16 %v1633
      %v1994 = vunpack.c.l.b16 %v1634
      %v1995 = vunpack.c.l.b16 %v1635
      %v1996 = vunpack.c.l.b16 %v1636
      %v1997 = vpack.c.b16 %v1982, %v1981
      %v1998 = vpack.c.b16 %v1984, %v1983
      %v1999 = vpack.c.b16 %v1986, %v1985
      %v2000 = vpack.c.b16 %v1988, %v1987
      %v2001 = vpack.c.b16 %v1990, %v1989
      %v2002 = vpack.c.b16 %v1992, %v1991
      %v2003 = vpack.c.b16 %v1994, %v1993
      %v2004 = vpack.c.b16 %v1996, %v1995
      %2013 = vmatprep.subr.bf16.mxu0 0
      %2014 = vmatpush1.bf16.msra.mxu0 %v2004
      %2015 = vmatprep.subr.bf16.mxu0 0
      %2016 = vmatpush1.bf16.msra.mxu0 %v2003
      %2017 = vmatprep.subr.bf16.mxu0 0
      %2018 = vmatpush1.bf16.msra.mxu0 %v2002
      %2019 = vmatprep.subr.bf16.mxu0 0
      %2020 = vmatpush1.bf16.msra.mxu0 %v2001
      %2021 = vmatprep.subr.bf16.mxu0 0
      %2022 = vmatpush1.bf16.msra.mxu0 %v2000
      %2023 = vmatprep.subr.bf16.mxu0 0
      %2024 = vmatpush1.bf16.msra.mxu0 %v1999
      %2025 = vmatprep.subr.bf16.mxu0 0
      %2026 = vmatpush1.bf16.msra.mxu0 %v1998
      %2027 = vmatprep.subr.bf16.mxu0 0
      %2028 = vmatpush1.bf16.msra.mxu0 %v1997
      %2029 = vmatprep.subr.bf16.mxu0 0
      %2030 = vmatpush2.bf16.msra.mxu0 0
      %2031 = vmatprep.subr.bf16.mxu0 0
      %2032 = vmatpush2.bf16.msra.mxu0 0
      %2033 = vmatprep.subr.bf16.mxu0 0
      %2034 = vmatpush2.bf16.msra.mxu0 0
      %2035 = vmatprep.subr.bf16.mxu0 0
      %2036 = vmatpush2.bf16.msra.mxu0 0
      %2037 = vmatprep.subr.bf16.mxu0 0
      %2038 = vmatpush2.bf16.msra.mxu0 0
      %2039 = vmatprep.subr.bf16.mxu0 0
      %2040 = vmatpush2.bf16.msra.mxu0 0
      %2041 = vmatprep.subr.bf16.mxu0 0
      %2042 = vmatpush2.bf16.msra.mxu0 0
      %2043 = vmatprep.subr.bf16.mxu0 0
      %2044 = vmatpush2.bf16.msra.mxu0 0
      %2045 = vmatprep.mubr.bf16.mxu0 0
      %2046 = vmatmul.mubr.bf16.gmra.mxu0 %v1568
      %v2047 = vpop.f32.mrf.mxu0
      %v2048 = vadd.f32 0.0, %v2047
      %v2049 = vpop.f32.mrf.mxu0
      %v2050 = vpop.f32.mrf.mxu0
      %v2051 = vpop.f32.mrf.mxu0
      %2052 = vdwg.mxu0
      %v2069 = vunpack.c.l.b16 %v1637
      %v2070 = vunpack.c.l.b16 %v1638
      %v2071 = vunpack.c.l.b16 %v1639
      %v2072 = vunpack.c.l.b16 %v1640
      %v2073 = vunpack.c.l.b16 %v1641
      %v2074 = vunpack.c.l.b16 %v1642
      %v2075 = vunpack.c.l.b16 %v1643
      %v2076 = vunpack.c.l.b16 %v1644
      %v2077 = vunpack.c.l.b16 %v1645
      %v2078 = vunpack.c.l.b16 %v1646
      %v2079 = vunpack.c.l.b16 %v1647
      %v2080 = vunpack.c.l.b16 %v1648
      %v2081 = vunpack.c.l.b16 %v1649
      %v2082 = vunpack.c.l.b16 %v1650
      %v2083 = vunpack.c.l.b16 %v1651
      %v2084 = vunpack.c.l.b16 %v1652
      %v2085 = vpack.c.b16 %v2070, %v2069
      %v2086 = vpack.c.b16 %v2072, %v2071
      %v2087 = vpack.c.b16 %v2074, %v2073
      %v2088 = vpack.c.b16 %v2076, %v2075
      %v2089 = vpack.c.b16 %v2078, %v2077
      %v2090 = vpack.c.b16 %v2080, %v2079
      %v2091 = vpack.c.b16 %v2082, %v2081
      %v2092 = vpack.c.b16 %v2084, %v2083
      %2101 = vmatprep.subr.bf16.mxu0 0
      %2102 = vmatpush1.bf16.msra.mxu0 %v2092
      %2103 = vmatprep.subr.bf16.mxu0 0
      %2104 = vmatpush1.bf16.msra.mxu0 %v2091
      %2105 = vmatprep.subr.bf16.mxu0 0
      %2106 = vmatpush1.bf16.msra.mxu0 %v2090
      %2107 = vmatprep.subr.bf16.mxu0 0
      %2108 = vmatpush1.bf16.msra.mxu0 %v2089
      %2109 = vmatprep.subr.bf16.mxu0 0
      %2110 = vmatpush1.bf16.msra.mxu0 %v2088
      %2111 = vmatprep.subr.bf16.mxu0 0
      %2112 = vmatpush1.bf16.msra.mxu0 %v2087
      %2113 = vmatprep.subr.bf16.mxu0 0
      %2114 = vmatpush1.bf16.msra.mxu0 %v2086
      %2115 = vmatprep.subr.bf16.mxu0 0
      %2116 = vmatpush1.bf16.msra.mxu0 %v2085
      %2117 = vmatprep.subr.bf16.mxu0 0
      %2118 = vmatpush2.bf16.msra.mxu0 0
      %2119 = vmatprep.subr.bf16.mxu0 0
      %2120 = vmatpush2.bf16.msra.mxu0 0
      %2121 = vmatprep.subr.bf16.mxu0 0
      %2122 = vmatpush2.bf16.msra.mxu0 0
      %2123 = vmatprep.subr.bf16.mxu0 0
      %2124 = vmatpush2.bf16.msra.mxu0 0
      %2125 = vmatprep.subr.bf16.mxu0 0
      %2126 = vmatpush2.bf16.msra.mxu0 0
      %2127 = vmatprep.subr.bf16.mxu0 0
      %2128 = vmatpush2.bf16.msra.mxu0 0
      %2129 = vmatprep.subr.bf16.mxu0 0
      %2130 = vmatpush2.bf16.msra.mxu0 0
      %2131 = vmatprep.subr.bf16.mxu0 0
      %2132 = vmatpush2.bf16.msra.mxu0 0
      %2133 = vmatprep.mubr.bf16.mxu0 0
      %2134 = vmatmul.mubr.bf16.gmra.mxu0 %v1569
      %v2135 = vpop.f32.mrf.mxu0
      %v2136 = vadd.f32 0.0, %v2135
      %v2137 = vpop.f32.mrf.mxu0
      %v2138 = vpop.f32.mrf.mxu0
      %v2139 = vpop.f32.mrf.mxu0
      %2140 = vdwg.mxu0
      %v2157 = vunpack.c.l.b16 %v1653
      %v2158 = vunpack.c.l.b16 %v1654
      %v2159 = vunpack.c.l.b16 %v1655
      %v2160 = vunpack.c.l.b16 %v1656
      %v2161 = vunpack.c.l.b16 %v1657
      %v2162 = vunpack.c.l.b16 %v1658
      %v2163 = vunpack.c.l.b16 %v1659
      %v2164 = vunpack.c.l.b16 %v1660
      %v2165 = vunpack.c.l.b16 %v1661
      %v2166 = vunpack.c.l.b16 %v1662
      %v2167 = vunpack.c.l.b16 %v1663
      %v2168 = vunpack.c.l.b16 %v1664
      %v2169 = vunpack.c.l.b16 %v1665
      %v2170 = vunpack.c.l.b16 %v1666
      %v2171 = vunpack.c.l.b16 %v1667
      %v2172 = vunpack.c.l.b16 %v1668
      %v2173 = vpack.c.b16 %v2158, %v2157
      %v2174 = vpack.c.b16 %v2160, %v2159
      %v2175 = vpack.c.b16 %v2162, %v2161
      %v2176 = vpack.c.b16 %v2164, %v2163
      %v2177 = vpack.c.b16 %v2166, %v2165
      %v2178 = vpack.c.b16 %v2168, %v2167
      %v2179 = vpack.c.b16 %v2170, %v2169
      %v2180 = vpack.c.b16 %v2172, %v2171
      %2189 = vmatprep.subr.bf16.mxu0 0
      %2190 = vmatpush1.bf16.msra.mxu0 %v2180
      %2191 = vmatprep.subr.bf16.mxu0 0
      %2192 = vmatpush1.bf16.msra.mxu0 %v2179
      %2193 = vmatprep.subr.bf16.mxu0 0
      %2194 = vmatpush1.bf16.msra.mxu0 %v2178
      %2195 = vmatprep.subr.bf16.mxu0 0
      %2196 = vmatpush1.bf16.msra.mxu0 %v2177
      %2197 = vmatprep.subr.bf16.mxu0 0
      %2198 = vmatpush1.bf16.msra.mxu0 %v2176
      %2199 = vmatprep.subr.bf16.mxu0 0
      %2200 = vmatpush1.bf16.msra.mxu0 %v2175
      %2201 = vmatprep.subr.bf16.mxu0 0
      %2202 = vmatpush1.bf16.msra.mxu0 %v2174
      %2203 = vmatprep.subr.bf16.mxu0 0
      %2204 = vmatpush1.bf16.msra.mxu0 %v2173
      %2205 = vmatprep.subr.bf16.mxu0 0
      %2206 = vmatpush2.bf16.msra.mxu0 0
      %2207 = vmatprep.subr.bf16.mxu0 0
      %2208 = vmatpush2.bf16.msra.mxu0 0
      %2209 = vmatprep.subr.bf16.mxu0 0
      %2210 = vmatpush2.bf16.msra.mxu0 0
      %2211 = vmatprep.subr.bf16.mxu0 0
      %2212 = vmatpush2.bf16.msra.mxu0 0
      %2213 = vmatprep.subr.bf16.mxu0 0
      %2214 = vmatpush2.bf16.msra.mxu0 0
      %2215 = vmatprep.subr.bf16.mxu0 0
      %2216 = vmatpush2.bf16.msra.mxu0 0
      %2217 = vmatprep.subr.bf16.mxu0 0
      %2218 = vmatpush2.bf16.msra.mxu0 0
      %2219 = vmatprep.subr.bf16.mxu0 0
      %2220 = vmatpush2.bf16.msra.mxu0 0
      %2221 = vmatprep.mubr.bf16.mxu0 0
      %2222 = vmatmul.mubr.bf16.gmra.mxu0 %v1570
      %v2223 = vpop.f32.mrf.mxu0
      %v2224 = vadd.f32 0.0, %v2223
      %v2225 = vpop.f32.mrf.mxu0
      %v2226 = vpop.f32.mrf.mxu0
      %v2227 = vpop.f32.mrf.mxu0
      %2228 = vdwg.mxu0
      %v2245 = vunpack.c.l.b16 %v1669
      %v2246 = vunpack.c.l.b16 %v1670
      %v2247 = vunpack.c.l.b16 %v1671
      %v2248 = vunpack.c.l.b16 %v1672
      %v2249 = vunpack.c.l.b16 %v1673
      %v2250 = vunpack.c.l.b16 %v1674
      %v2251 = vunpack.c.l.b16 %v1675
      %v2252 = vunpack.c.l.b16 %v1676
      %v2253 = vunpack.c.l.b16 %v1677
      %v2254 = vunpack.c.l.b16 %v1678
      %v2255 = vunpack.c.l.b16 %v1679
      %v2256 = vunpack.c.l.b16 %v1680
      %v2257 = vunpack.c.l.b16 %v1681
      %v2258 = vunpack.c.l.b16 %v1682
      %v2259 = vunpack.c.l.b16 %v1683
      %v2260 = vunpack.c.l.b16 %v1684
      %v2261 = vpack.c.b16 %v2246, %v2245
      %v2262 = vpack.c.b16 %v2248, %v2247
      %v2263 = vpack.c.b16 %v2250, %v2249
      %v2264 = vpack.c.b16 %v2252, %v2251
      %v2265 = vpack.c.b16 %v2254, %v2253
      %v2266 = vpack.c.b16 %v2256, %v2255
      %v2267 = vpack.c.b16 %v2258, %v2257
      %v2268 = vpack.c.b16 %v2260, %v2259
      %2277 = vmatprep.subr.bf16.mxu0 0
      %2278 = vmatpush1.bf16.msra.mxu0 %v2268
      %2279 = vmatprep.subr.bf16.mxu0 0
      %2280 = vmatpush1.bf16.msra.mxu0 %v2267
      %2281 = vmatprep.subr.bf16.mxu0 0
      %2282 = vmatpush1.bf16.msra.mxu0 %v2266
      %2283 = vmatprep.subr.bf16.mxu0 0
      %2284 = vmatpush1.bf16.msra.mxu0 %v2265
      %2285 = vmatprep.subr.bf16.mxu0 0
      %2286 = vmatpush1.bf16.msra.mxu0 %v2264
      %2287 = vmatprep.subr.bf16.mxu0 0
      %2288 = vmatpush1.bf16.msra.mxu0 %v2263
      %2289 = vmatprep.subr.bf16.mxu0 0
      %2290 = vmatpush1.bf16.msra.mxu0 %v2262
      %2291 = vmatprep.subr.bf16.mxu0 0
      %2292 = vmatpush1.bf16.msra.mxu0 %v2261
      %2293 = vmatprep.subr.bf16.mxu0 0
      %2294 = vmatpush2.bf16.msra.mxu0 0
      %2295 = vmatprep.subr.bf16.mxu0 0
      %2296 = vmatpush2.bf16.msra.mxu0 0
      %2297 = vmatprep.subr.bf16.mxu0 0
      %2298 = vmatpush2.bf16.msra.mxu0 0
      %2299 = vmatprep.subr.bf16.mxu0 0
      %2300 = vmatpush2.bf16.msra.mxu0 0
      %2301 = vmatprep.subr.bf16.mxu0 0
      %2302 = vmatpush2.bf16.msra.mxu0 0
      %2303 = vmatprep.subr.bf16.mxu0 0
      %2304 = vmatpush2.bf16.msra.mxu0 0
      %2305 = vmatprep.subr.bf16.mxu0 0
      %2306 = vmatpush2.bf16.msra.mxu0 0
      %2307 = vmatprep.subr.bf16.mxu0 0
      %2308 = vmatpush2.bf16.msra.mxu0 0
      %2309 = vmatprep.mubr.bf16.mxu0 0
      %2310 = vmatmul.mubr.bf16.gmra.mxu0 %v1571
      %v2311 = vpop.f32.mrf.mxu0
      %v2312 = vadd.f32 0.0, %v2311
      %v2313 = vpop.f32.mrf.mxu0
      %v2314 = vpop.f32.mrf.mxu0
      %v2315 = vpop.f32.mrf.mxu0
      %2316 = vdwg.mxu0
      %v2333 = vunpack.c.l.b16 %v1685
      %v2334 = vunpack.c.l.b16 %v1686
      %v2335 = vunpack.c.l.b16 %v1687
      %v2336 = vunpack.c.l.b16 %v1688
      %v2337 = vunpack.c.l.b16 %v1689
      %v2338 = vunpack.c.l.b16 %v1690
      %v2339 = vunpack.c.l.b16 %v1691
      %v2340 = vunpack.c.l.b16 %v1692
      %v2341 = vunpack.c.l.b16 %v1693
      %v2342 = vunpack.c.l.b16 %v1694
      %v2343 = vunpack.c.l.b16 %v1695
      %v2344 = vunpack.c.l.b16 %v1696
      %v2345 = vunpack.c.l.b16 %v1697
      %v2346 = vunpack.c.l.b16 %v1698
      %v2347 = vunpack.c.l.b16 %v1699
      %v2348 = vunpack.c.l.b16 %v1700
      %v2349 = vpack.c.b16 %v2334, %v2333
      %v2350 = vpack.c.b16 %v2336, %v2335
      %v2351 = vpack.c.b16 %v2338, %v2337
      %v2352 = vpack.c.b16 %v2340, %v2339
      %v2353 = vpack.c.b16 %v2342, %v2341
      %v2354 = vpack.c.b16 %v2344, %v2343
      %v2355 = vpack.c.b16 %v2346, %v2345
      %v2356 = vpack.c.b16 %v2348, %v2347
      %2365 = vmatprep.subr.bf16.mxu0 0
      %2366 = vmatpush1.bf16.msra.mxu0 %v2356
      %2367 = vmatprep.subr.bf16.mxu0 0
      %2368 = vmatpush1.bf16.msra.mxu0 %v2355
      %2369 = vmatprep.subr.bf16.mxu0 0
      %2370 = vmatpush1.bf16.msra.mxu0 %v2354
      %2371 = vmatprep.subr.bf16.mxu0 0
      %2372 = vmatpush1.bf16.msra.mxu0 %v2353
      %2373 = vmatprep.subr.bf16.mxu0 0
      %2374 = vmatpush1.bf16.msra.mxu0 %v2352
      %2375 = vmatprep.subr.bf16.mxu0 0
      %2376 = vmatpush1.bf16.msra.mxu0 %v2351
      %2377 = vmatprep.subr.bf16.mxu0 0
      %2378 = vmatpush1.bf16.msra.mxu0 %v2350
      %2379 = vmatprep.subr.bf16.mxu0 0
      %2380 = vmatpush1.bf16.msra.mxu0 %v2349
      %2381 = vmatprep.subr.bf16.mxu0 0
      %2382 = vmatpush2.bf16.msra.mxu0 0
      %2383 = vmatprep.subr.bf16.mxu0 0
      %2384 = vmatpush2.bf16.msra.mxu0 0
      %2385 = vmatprep.subr.bf16.mxu0 0
      %2386 = vmatpush2.bf16.msra.mxu0 0
      %2387 = vmatprep.subr.bf16.mxu0 0
      %2388 = vmatpush2.bf16.msra.mxu0 0
      %2389 = vmatprep.subr.bf16.mxu0 0
      %2390 = vmatpush2.bf16.msra.mxu0 0
      %2391 = vmatprep.subr.bf16.mxu0 0
      %2392 = vmatpush2.bf16.msra.mxu0 0
      %2393 = vmatprep.subr.bf16.mxu0 0
      %2394 = vmatpush2.bf16.msra.mxu0 0
      %2395 = vmatprep.subr.bf16.mxu0 0
      %2396 = vmatpush2.bf16.msra.mxu0 0
      %2397 = vmatprep.mubr.bf16.mxu0 0
      %2398 = vmatmul.mubr.bf16.gmra.mxu0 %v1572
      %v2399 = vpop.f32.mrf.mxu0
      %v2400 = vadd.f32 0.0, %v2399
      %v2401 = vpop.f32.mrf.mxu0
      %v2402 = vpop.f32.mrf.mxu0
      %v2403 = vpop.f32.mrf.mxu0
      %2404 = vdwg.mxu0
      %v2405 = vadd.f32 %v1557, %v1784
      %v2406 = vadd.f32 %v1558, %v1872
      %v2407 = vadd.f32 %v1559, %v1960
      %v2408 = vadd.f32 %v1560, %v2048
      %v2409 = vadd.f32 %v1561, %v2136
      %v2410 = vadd.f32 %v1562, %v2224
      %v2411 = vadd.f32 %v1563, %v2312
      %v2412 = vadd.f32 %v1564, %v2400
      %2413 = vst.msk [vmem:[#allocation4] sm:$0xff] %vm501, %v2405
      %2414 = vst.msk [vmem:[#allocation4 + $0x8] sm:$0xff] %vm501, %v2406
      %2415 = vst.msk [vmem:[#allocation4 + $0x10] sm:$0xff] %vm501, %v2407
      %2416 = vst.msk [vmem:[#allocation4 + $0x18] sm:$0xff] %vm501, %v2408
      %2417 = vst.msk [vmem:[#allocation4 + $0x20] sm:$0xff] %vm501, %v2409
      %2418 = vst.msk [vmem:[#allocation4 + $0x28] sm:$0xff] %vm501, %v2410
      %2419 = vst.msk [vmem:[#allocation4 + $0x30] sm:$0xff] %vm501, %v2411
      %2420 = vst.msk [vmem:[#allocation4 + $0x38] sm:$0xff] %vm501, %v2412
      %2421 = vst.msk [vmem:[#allocation2] sm:$0xff] %vm1500, %v1364
      %2422 = vst.msk [vmem:[#allocation2 + $0x8] sm:$0xff] %vm1500, %v1365
      %2423 = vst.msk [vmem:[#allocation2 + $0x10] sm:$0xff] %vm1500, %v1366
      %2424 = vst.msk [vmem:[#allocation2 + $0x18] sm:$0xff] %vm1500, %v1367
      %2425 = vst.msk [vmem:[#allocation2 + $0x20] sm:$0xff] %vm1500, %v1368
      %2426 = vst.msk [vmem:[#allocation2 + $0x28] sm:$0xff] %vm1500, %v1369
      %2427 = vst.msk [vmem:[#allocation2 + $0x30] sm:$0xff] %vm1500, %v1370
      %2428 = vst.msk [vmem:[#allocation2 + $0x38] sm:$0xff] %vm1500, %v1371
      // Predicated region
      $region37: #{_lambda_.17} parent=31 // pred_check
        %p2429 = pneg %p295
      $region38: #{_lambda_.17} parent=31 // pred_check_branch
        %2431 = sbr.rel (%p2429) target = $region40
      $region39: #{_lambda_.17} parent=31 // pred_region
        %v2432 = vld [vmem:[#allocation4] sm:$0xff]
        %v2433 = vld [vmem:[#allocation4 + $0x8] sm:$0xff]
        %v2434 = vld [vmem:[#allocation4 + $0x10] sm:$0xff]
        %v2435 = vld [vmem:[#allocation4 + $0x18] sm:$0xff]
        %v2436 = vld [vmem:[#allocation4 + $0x20] sm:$0xff]
        %v2437 = vld [vmem:[#allocation4 + $0x28] sm:$0xff]
        %v2438 = vld [vmem:[#allocation4 + $0x30] sm:$0xff]
        %v2439 = vld [vmem:[#allocation4 + $0x38] sm:$0xff]
        %v2440 = vld [vmem:[#allocation3] sm:$0xff]
        %v2441 = vld [vmem:[#allocation3 + $0x8] sm:$0xff]
        %v2442 = vld [vmem:[#allocation3 + $0x10] sm:$0xff]
        %v2443 = vld [vmem:[#allocation3 + $0x18] sm:$0xff]
        %v2444 = vld [vmem:[#allocation3 + $0x20] sm:$0xff]
        %v2445 = vld [vmem:[#allocation3 + $0x28] sm:$0xff]
        %v2446 = vld [vmem:[#allocation3 + $0x30] sm:$0xff]
        %v2447 = vld [vmem:[#allocation3 + $0x38] sm:$0xff]
        %v2448 = vrcp.pop %v2440
        %v2449 = vrcp.pop %v2441
        %v2450 = vrcp.pop %v2442
        %v2451 = vrcp.pop %v2443
        %v2452 = vrcp.pop %v2444
        %v2453 = vrcp.pop %v2445
        %v2454 = vrcp.pop %v2446
        %v2455 = vrcp.pop %v2447
        %2457 = vset.pattern.permute.xlu0 0
        %2458 = vperm.xlu0 %2457, %v2448
        %v2459 = vpop.permute.xlu0 %2458
        %2462 = vset.pattern.permute.xlu0 0
        %2463 = vperm.xlu0 %2462, %v2449
        %v2464 = vpop.permute.xlu0 %2463
        %2467 = vset.pattern.permute.xlu0 0
        %2468 = vperm.xlu0 %2467, %v2450
        %v2469 = vpop.permute.xlu0 %2468
        %2472 = vset.pattern.permute.xlu0 0
        %2473 = vperm.xlu0 %2472, %v2451
        %v2474 = vpop.permute.xlu0 %2473
        %2477 = vset.pattern.permute.xlu0 0
        %2478 = vperm.xlu0 %2477, %v2452
        %v2479 = vpop.permute.xlu0 %2478
        %2482 = vset.pattern.permute.xlu0 0
        %2483 = vperm.xlu0 %2482, %v2453
        %v2484 = vpop.permute.xlu0 %2483
        %2487 = vset.pattern.permute.xlu0 0
        %2488 = vperm.xlu0 %2487, %v2454
        %v2489 = vpop.permute.xlu0 %2488
        %2492 = vset.pattern.permute.xlu0 0
        %2493 = vperm.xlu0 %2492, %v2455
        %v2494 = vpop.permute.xlu0 %2493
        %v2496 = vmul.f32 %v2432, %v2459
        %v2497 = vmul.f32 %v2433, %v2464
        %v2498 = vmul.f32 %v2434, %v2469
        %v2499 = vmul.f32 %v2435, %v2474
        %v2500 = vmul.f32 %v2436, %v2479
        %v2501 = vmul.f32 %v2437, %v2484
        %v2502 = vmul.f32 %v2438, %v2489
        %v2503 = vmul.f32 %v2439, %v2494
        %v2504 = vpack.c.bf16 %v2496, %v2496
        %v2505 = vpack.c.bf16 %v2497, %v2497
        %v2506 = vpack.c.bf16 %v2498, %v2498
        %v2507 = vpack.c.bf16 %v2499, %v2499
        %v2508 = vpack.c.bf16 %v2500, %v2500
        %v2509 = vpack.c.bf16 %v2501, %v2501
        %v2510 = vpack.c.bf16 %v2502, %v2502
        %v2511 = vpack.c.bf16 %v2503, %v2503
        %vm2512 = vcmask 60416
        %2513 = vst.msk [vmem:[%s292] sm:$0xf] %vm2512, %v2504
        %2514 = vst.msk [vmem:[%s292 + $0x4] sm:$0xf] %vm2512, %v2505
        %2515 = vst.msk [vmem:[%s292 + $0x8] sm:$0xf] %vm2512, %v2506
        %2516 = vst.msk [vmem:[%s292 + $0xc] sm:$0xf] %vm2512, %v2507
        %2517 = vst.msk [vmem:[%s292 + $0x10] sm:$0xf] %vm2512, %v2508
        %2518 = vst.msk [vmem:[%s292 + $0x14] sm:$0xf] %vm2512, %v2509
        %2519 = vst.msk [vmem:[%s292 + $0x18] sm:$0xf] %vm2512, %v2510
        %2520 = vst.msk [vmem:[%s292 + $0x1c] sm:$0xf] %vm2512, %v2511
      $region40: #{_lambda_.17} parent=31 // pred_fallthru
        _
      %s2521 = smul.u32 8, %s19
      %p2522 = scmp.lt.s32.totalorder %s2521, 31
      %s2523 = scalar_select %p2522, %s2521, 31
      %p2524 = scmp.lt.s32.totalorder %s20, 0
      %s2525 = scalar_select %p2524, %s20, 0
      %s2526 = sadd.s32 %s2525, %s2523
      %s2527 = smul.addr %s2526, 4
      %s2528 = scalar_lea.vmem %s3, %s2527
      // Predicated region
      $region41: #{_lambda_.17} parent=31 // pred_check
        %p2529 = pneg %p137
      $region42: #{_lambda_.17} parent=31 // pred_check_branch
        %2531 = sbr.rel (%p2529) target = $region44
      $region43: #{_lambda_.17} parent=31 // pred_region
        %s2532 = smul.u32 8, %s19
      $region44: #{_lambda_.17} parent=31 // pred_fallthru
        _
    $region32: #{_lambda_.17} parent=5 // pred_fallthru
      _
    %p2533 = scmp.le.s32.totalorder 2, %s9
    // Predicated region
    $region45: #{_lambda_.17} parent=5 // pred_check
      %p2534 = pneg %p2533
    $region46: #{_lambda_.17} parent=5 // pred_check_branch
      %2536 = sbr.rel (%p2534) target = $region48
    $region47: #{_lambda_.17} parent=5 // pred_region
      %s2537 = ssub.s32 %s9, 2
      // Predicated region
      $region49: #{_lambda_.17} parent=47 // pred_check
        %p2538 = pneg %p143
      $region50: #{_lambda_.17} parent=47 // pred_check_branch
        %2540 = sbr.rel (%p2538) target = $region52
      $region51: #{_lambda_.17} parent=47 // pred_region
        %s2541 = smul.u32 8, %s22
        %p2542 = scmp.lt.s32.totalorder %s2541, 31
        %s2543 = scalar_select %p2542, %s2541, 31
        %p2544 = scmp.lt.s32.totalorder %s23, 0
        %s2545 = scalar_select %p2544, %s23, 0
        %s2546 = sadd.s32 %s2545, %s2543
        %s2547 = smul.addr %s2546, 4
        %s2548 = scalar_lea.vmem %s3, %s2547
      $region52: #{_lambda_.17} parent=47 // pred_fallthru
        _
    $region48: #{_lambda_.17} parent=5 // pred_fallthru
      _
  $region6: #{_lambda_.17} parent=0 // loop_footer
    %s13 = sadd.s32 1, %s9
  $region7: #{_lambda_.17} parent=0 // loop_footer_branch
    %8 = sbr.rel target = $region3
  $region8: #{_lambda_.17} parent=0 // loop_exit
    _

// kernel: _lambda_.23
$region0: #{_lambda_.23}
  #allocation0 [shape = 'u32[]', space=smem, size = 0x4, offset = 0x4, fixed_abs, tag = 'smem constant byte address 0x4 - core index']
  #allocation1 [shape = 'u32[144,128]{1,0:T(1,128)}', space=vmem, size = 0x12000, scoped, tag = 'internal scratch']
  %s0 = inlined_call_operand.vmem [shape: bf16[32,32], index: 0, kind: input, shape index: {}]
  %s1 = inlined_call_operand.vmem [shape: bf16[32,128], index: 1, kind: input, shape index: {}]
  %s2 = inlined_call_operand.vmem [shape: f32[1,128], index: 2, kind: input, shape index: {}]
  %s3 = inlined_call_operand.vmem [shape: bf16[32,128], index: 3, kind: input, shape index: {}]
  %s4 = inlined_call_operand.vmem [shape: bf16[32,128], index: 4, kind: output, shape index: {}]
  %s5 = sld [smem:[#allocation0]]
  $region26: #{_lambda_.23} parent=0
    _
  %s7 = ssub.s32 1, %s5
  %s8 = scalar_select 0, %s7, %s5
  // Predicated region
  $region2: #{_lambda_.23} parent=0 // pred_check
    _
  $region3: #{_lambda_.23} parent=0 // pred_check_branch
    %10 = sbr.rel (0) target = $region5
  $region4: #{_lambda_.23} parent=0 // pred_region
    _
  $region5: #{_lambda_.23} parent=0 // pred_fallthru
    _
  // Predicated region
  $region6: #{_lambda_.23} parent=0 // pred_check
    _
  $region7: #{_lambda_.23} parent=0 // pred_check_branch
    %12 = sbr.rel (0) target = $region9
  $region8: #{_lambda_.23} parent=0 // pred_region
    _
  $region9: #{_lambda_.23} parent=0 // pred_fallthru
    _
  // Predicated region
  $region10: #{_lambda_.23} parent=0 // pred_check
    _
  $region11: #{_lambda_.23} parent=0 // pred_check_branch
    %14 = sbr.rel (0) target = $region13
  $region12: #{_lambda_.23} parent=0 // pred_region
    _
  $region13: #{_lambda_.23} parent=0 // pred_fallthru
    _
  // Predicated region
  $region14: #{_lambda_.23} parent=0 // pred_check
    _
  $region15: #{_lambda_.23} parent=0 // pred_check_branch
    %16 = sbr.rel (0) target = $region17
  $region16: #{_lambda_.23} parent=0 // pred_region
    _
  $region17: #{_lambda_.23} parent=0 // pred_fallthru
    _
  %v18 = vld [vmem:[%s0] sm:$0xf]
  %v19 = vld [vmem:[%s0 + $0x4] sm:$0xf]
  %v20 = vld [vmem:[%s0 + $0x8] sm:$0xf]
  %v21 = vld [vmem:[%s0 + $0xc] sm:$0xf]
  %v22 = vld [vmem:[%s1] sm:$0xf]
  %v23 = vld [vmem:[%s1 + $0x4] sm:$0xf]
  %v24 = vld [vmem:[%s1 + $0x8] sm:$0xf]
  %v25 = vld [vmem:[%s1 + $0xc] sm:$0xf]
  %v26 = vld [vmem:[%s2] sm:$0x1]
  %v28 = vlaneseq
  %v29 = vshrl.u32 %v28, 7
  %v30 = vsub.s32 0, %v29
  %v31 = vrot.slane %v26, %v30
  %v37 = vunpack.c.l.b16 %v18
  %v38 = vunpack.c.l.b16 %v19
  %v39 = vunpack.c.l.b16 %v20
  %v40 = vunpack.c.l.b16 %v21
  %v41 = vpack.c.b16 %v38, %v37
  %v42 = vpack.c.b16 %v40, %v39
  %v47 = vunpack.c.l.b16 %v22
  %v48 = vunpack.c.l.b16 %v23
  %v49 = vunpack.c.l.b16 %v24
  %v50 = vunpack.c.l.b16 %v25
  %v51 = vpack.c.b16 %v48, %v47
  %v52 = vpack.c.b16 %v50, %v49
  %vm55 = vcmask 261120
  %v57 = vsel %vm55, %v41, 0
  %v60 = vsel %vm55, %v42, 0
  %62 = vmatprep.subr.bf16.mxu0 0
  %63 = vmatpush1.bf16.msra.mxu0 0
  %64 = vmatprep.subr.bf16.mxu0 0
  %65 = vmatpush1.bf16.msra.mxu0 0
  %66 = vmatprep.subr.bf16.mxu0 0
  %67 = vmatpush1.bf16.msra.mxu0 0
  %68 = vmatprep.subr.bf16.mxu0 0
  %69 = vmatpush1.bf16.msra.mxu0 0
  %70 = vmatprep.subr.bf16.mxu0 0
  %71 = vmatpush1.bf16.msra.mxu0 0
  %72 = vmatprep.subr.bf16.mxu0 0
  %73 = vmatpush1.bf16.msra.mxu0 0
  %74 = vmatprep.subr.bf16.mxu0 0
  %75 = vmatpush1.bf16.msra.mxu0 %v52
  %76 = vmatprep.subr.bf16.mxu0 0
  %77 = vmatpush1.bf16.msra.mxu0 %v51
  %78 = vmatprep.subr.bf16.mxu0 0
  %79 = vmatpush2.bf16.msra.mxu0 0
  %80 = vmatprep.subr.bf16.mxu0 0
  %81 = vmatpush2.bf16.msra.mxu0 0
  %82 = vmatprep.subr.bf16.mxu0 0
  %83 = vmatpush2.bf16.msra.mxu0 0
  %84 = vmatprep.subr.bf16.mxu0 0
  %85 = vmatpush2.bf16.msra.mxu0 0
  %86 = vmatprep.subr.bf16.mxu0 0
  %87 = vmatpush2.bf16.msra.mxu0 0
  %88 = vmatprep.subr.bf16.mxu0 0
  %89 = vmatpush2.bf16.msra.mxu0 0
  %90 = vmatprep.subr.bf16.mxu0 0
  %91 = vmatpush2.bf16.msra.mxu0 0
  %92 = vmatprep.subr.bf16.mxu0 0
  %93 = vmatpush2.bf16.msra.mxu0 0
  %94 = vmatprep.mubr.bf16.mxu0 0
  %95 = vmatmul.mubr.bf16.gmra.mxu0 %v57
  %v96 = vpop.f32.mrf.mxu0
  %v97 = vadd.f32 %v31, %v96
  %v98 = vpop.f32.mrf.mxu0
  %v99 = vpop.f32.mrf.mxu0
  %v100 = vadd.f32 %v31, %v99
  %v101 = vpop.f32.mrf.mxu0
  %102 = vmatprep.mubr.bf16.mxu0 0
  %103 = vmatmul.mubr.bf16.gmra.mxu0 %v60
  %v104 = vpop.f32.mrf.mxu0
  %v105 = vadd.f32 %v31, %v104
  %v106 = vpop.f32.mrf.mxu0
  %v107 = vpop.f32.mrf.mxu0
  %v108 = vadd.f32 %v31, %v107
  %v109 = vpop.f32.mrf.mxu0
  %110 = vdwg.mxu0
  %v111 = vld [vmem:[%s3] sm:$0xf]
  %v112 = vld [vmem:[%s3 + $0x4] sm:$0xf]
  %v113 = vld [vmem:[%s3 + $0x8] sm:$0xf]
  %v114 = vld [vmem:[%s3 + $0xc] sm:$0xf]
  %v115 = vunpack.c.l.bf16 %v111
  %v116 = vunpack.c.l.bf16 %v112
  %v117 = vunpack.c.l.bf16 %v113
  %v118 = vunpack.c.l.bf16 %v114
  %v119 = vadd.f32 %v97, %v115
  %v120 = vadd.f32 %v100, %v116
  %v121 = vadd.f32 %v105, %v117
  %v122 = vadd.f32 %v108, %v118
  %v123 = vpack.c.bf16 %v120, %v119
  %v124 = vpack.c.bf16 %v122, %v121
  %v127 = vunpack.c.l.b16 %v123
  %v128 = vunpack.c.h.b16 %v123
  %v129 = vunpack.c.l.b16 %v124
  %v130 = vunpack.c.h.b16 %v124
  %v131 = vpack.c.b16 %v127, %v127
  %v132 = vpack.c.b16 %v128, %v128
  %v133 = vpack.c.b16 %v129, %v129
  %v134 = vpack.c.b16 %v130, %v130
  %139 = vst [vmem:[%s4] sm:$0xf] %v131
  %140 = vst [vmem:[%s4 + $0x4] sm:$0xf] %v132
  %141 = vst [vmem:[%s4 + $0x8] sm:$0xf] %v133
  %142 = vst [vmem:[%s4 + $0xc] sm:$0xf] %v134
  // Predicated region
  $region18: #{_lambda_.23} parent=0 // pred_check
    _
  $region19: #{_lambda_.23} parent=0 // pred_check_branch
    %144 = sbr.rel (0) target = $region21
  $region20: #{_lambda_.23} parent=0 // pred_region
    _
  $region21: #{_lambda_.23} parent=0 // pred_fallthru
    _
  // Predicated region
  $region22: #{_lambda_.23} parent=0 // pred_check
    _
  $region23: #{_lambda_.23} parent=0 // pred_check_branch
    %146 = sbr.rel (0) target = $region25
  $region24: #{_lambda_.23} parent=0 // pred_region
    _
  $region25: #{_lambda_.23} parent=0 // pred_fallthru
    _

// kernel: _lambda_.27
$region0: #{_lambda_.27}
  #allocation0 [shape = 'u32[]', space=smem, size = 0x4, offset = 0x4, fixed_abs, tag = 'smem constant byte address 0x4 - core index']
  #allocation1 [shape = 'u32[144,128]{1,0:T(1,128)}', space=vmem, size = 0x12000, scoped, tag = 'internal scratch']
  %s0 = inlined_call_operand.vmem [shape: bf16[32,16], index: 0, kind: input, shape index: {}]
  %s1 = inlined_call_operand.vmem [shape: f32[1,16], index: 1, kind: input, shape index: {}]
  %s2 = inlined_call_operand.vmem [shape: f32[1,16], index: 2, kind: input, shape index: {}]
  %s3 = inlined_call_operand.vmem [shape: bf16[32,16], index: 3, kind: output, shape index: {}]
  %s4 = sld [smem:[#allocation0]]
  $region22: #{_lambda_.27} parent=0
    _
  %s6 = ssub.s32 1, %s4
  %s7 = scalar_select 0, %s6, %s4
  // Predicated region
  $region2: #{_lambda_.27} parent=0 // pred_check
    _
  $region3: #{_lambda_.27} parent=0 // pred_check_branch
    %9 = sbr.rel (0) target = $region5
  $region4: #{_lambda_.27} parent=0 // pred_region
    _
  $region5: #{_lambda_.27} parent=0 // pred_fallthru
    _
  // Predicated region
  $region6: #{_lambda_.27} parent=0 // pred_check
    _
  $region7: #{_lambda_.27} parent=0 // pred_check_branch
    %11 = sbr.rel (0) target = $region9
  $region8: #{_lambda_.27} parent=0 // pred_region
    _
  $region9: #{_lambda_.27} parent=0 // pred_fallthru
    _
  // Predicated region
  $region10: #{_lambda_.27} parent=0 // pred_check
    _
  $region11: #{_lambda_.27} parent=0 // pred_check_branch
    %13 = sbr.rel (0) target = $region13
  $region12: #{_lambda_.27} parent=0 // pred_region
    _
  $region13: #{_lambda_.27} parent=0 // pred_fallthru
    _
  %v14 = vld [vmem:[%s0] sm:$0xf]
  %v15 = vld [vmem:[%s0 + $0x4] sm:$0xf]
  %v16 = vld [vmem:[%s0 + $0x8] sm:$0xf]
  %v17 = vld [vmem:[%s0 + $0xc] sm:$0xf]
  %v18 = vunpack.c.l.bf16 %v14
  %v19 = vunpack.c.l.bf16 %v15
  %v20 = vunpack.c.l.bf16 %v16
  %v21 = vunpack.c.l.bf16 %v17
  %vm22 = vcmask 130048
  %v23 = vsel %vm22, %v18, 0.0
  %24 = vadd.xlane.f32.xlu0 %v23
  %v25 = vpop.xlane.xlu0 %24
  %v26 = vsel %vm22, %v19, 0.0
  %27 = vadd.xlane.f32.xlu0 %v26
  %v28 = vpop.xlane.xlu0 %27
  %v29 = vsel %vm22, %v20, 0.0
  %30 = vadd.xlane.f32.xlu0 %v29
  %v31 = vpop.xlane.xlu0 %30
  %v32 = vsel %vm22, %v21, 0.0
  %33 = vadd.xlane.f32.xlu0 %v32
  %v34 = vpop.xlane.xlu0 %33
  %v35 = vrcp.pop 16.0
  %v36 = vmul.f32 %v25, %v35
  %v37 = vmul.f32 %v28, %v35
  %v38 = vmul.f32 %v31, %v35
  %v39 = vmul.f32 %v34, %v35
  %v40 = vsub.f32 %v18, %v36
  %v41 = vsub.f32 %v19, %v37
  %v42 = vsub.f32 %v20, %v38
  %v43 = vsub.f32 %v21, %v39
  %v44 = vmul.f32 %v40, %v40
  %v45 = vmul.f32 %v41, %v41
  %v46 = vmul.f32 %v42, %v42
  %v47 = vmul.f32 %v43, %v43
  %v48 = vsel %vm22, %v44, 0.0
  %49 = vadd.xlane.f32.xlu0 %v48
  %v50 = vpop.xlane.xlu0 %49
  %v51 = vsel %vm22, %v45, 0.0
  %52 = vadd.xlane.f32.xlu0 %v51
  %v53 = vpop.xlane.xlu0 %52
  %v54 = vsel %vm22, %v46, 0.0
  %55 = vadd.xlane.f32.xlu0 %v54
  %v56 = vpop.xlane.xlu0 %55
  %v57 = vsel %vm22, %v47, 0.0
  %58 = vadd.xlane.f32.xlu0 %v57
  %v59 = vpop.xlane.xlu0 %58
  %v60 = vmul.f32 %v50, %v35
  %v61 = vmul.f32 %v53, %v35
  %v62 = vmul.f32 %v56, %v35
  %v63 = vmul.f32 %v59, %v35
  %v64 = vadd.f32 %v60, 1e-06
  %v65 = vadd.f32 %v61, 1e-06
  %v66 = vadd.f32 %v62, 1e-06
  %v67 = vadd.f32 %v63, 1e-06
  %v68 = vrsqrt.pop %v64
  %v69 = vrsqrt.pop %v65
  %v70 = vrsqrt.pop %v66
  %v71 = vrsqrt.pop %v67
  %v72 = vmul.f32 %v40, %v68
  %v73 = vmul.f32 %v41, %v69
  %v74 = vmul.f32 %v42, %v70
  %v75 = vmul.f32 %v43, %v71
  %v76 = vld [vmem:[%s1] sm:$0x1]
  %v78 = vlaneseq
  %v79 = vshrl.u32 %v78, 7
  %v80 = vsub.s32 0, %v79
  %v81 = vrot.slane %v76, %v80
  %v83 = vmul.f32 %v72, %v81
  %v84 = vmul.f32 %v73, %v81
  %v85 = vmul.f32 %v74, %v81
  %v86 = vmul.f32 %v75, %v81
  %v87 = vld [vmem:[%s2] sm:$0x1]
  %v89 = vlaneseq
  %v90 = vshrl.u32 %v89, 7
  %v91 = vsub.s32 0, %v90
  %v92 = vrot.slane %v87, %v91
  %v94 = vadd.f32 %v83, %v92
  %v95 = vadd.f32 %v84, %v92
  %v96 = vadd.f32 %v85, %v92
  %v97 = vadd.f32 %v86, %v92
  %v98 = vpack.c.bf16 %v95, %v94
  %v99 = vpack.c.bf16 %v97, %v96
  %v102 = vunpack.c.l.b16 %v98
  %v103 = vunpack.c.h.b16 %v98
  %v104 = vunpack.c.l.b16 %v99
  %v105 = vunpack.c.h.b16 %v99
  %v106 = vpack.c.b16 %v102, %v102
  %v107 = vpack.c.b16 %v103, %v103
  %v108 = vpack.c.b16 %v104, %v104
  %v109 = vpack.c.b16 %v105, %v105
  %vm114 = vcmask 125952
  %115 = vst.msk [vmem:[%s3] sm:$0xf] %vm114, %v106
  %116 = vst.msk [vmem:[%s3 + $0x4] sm:$0xf] %vm114, %v107
  %117 = vst.msk [vmem:[%s3 + $0x8] sm:$0xf] %vm114, %v108
  %118 = vst.msk [vmem:[%s3 + $0xc] sm:$0xf] %vm114, %v109
  // Predicated region
  $region14: #{_lambda_.27} parent=0 // pred_check
    _
  $region15: #{_lambda_.27} parent=0 // pred_check_branch
    %120 = sbr.rel (0) target = $region17
  $region16: #{_lambda_.27} parent=0 // pred_region
    _
  $region17: #{_lambda_.27} parent=0 // pred_fallthru
    _
  // Predicated region
  $region18: #{_lambda_.27} parent=0 // pred_check
    _
  $region19: #{_lambda_.27} parent=0 // pred_check_branch
    %122 = sbr.rel (0) target = $region21
  $region20: #{_lambda_.27} parent=0 // pred_region
    _
  $region21: #{_lambda_.27} parent=0 // pred_fallthru
    _

// kernel: _lambda_.29
$region0: #{_lambda_.29}
  #allocation0 [shape = 'u32[]', space=smem, size = 0x4, offset = 0x4, fixed_abs, tag = 'smem constant byte address 0x4 - core index']
  #allocation1 [shape = 'u32[144,128]{1,0:T(1,128)}', space=vmem, size = 0x12000, scoped, tag = 'internal scratch']
  %s0 = inlined_call_operand.vmem [shape: bf16[32,16], index: 0, kind: input, shape index: {}]
  %s1 = inlined_call_operand.vmem [shape: f32[1,16], index: 1, kind: input, shape index: {}]
  %s2 = inlined_call_operand.vmem [shape: f32[1,16], index: 2, kind: input, shape index: {}]
  %s3 = inlined_call_operand.hbm [shape: f32[32,16], index: 3, kind: output, shape index: {}]
  %s4 = sld [smem:[#allocation0]]
  $region22: #{_lambda_.29} parent=0
    _
  %s6 = ssub.s32 1, %s4
  %s7 = scalar_select 0, %s6, %s4
  $region1: #{_lambda_.29} parent=0
    #allocation2 [shape = 'u8[16384]{0}', space=vmem, size = 0x4000, scoped, tag = 'output window, operand 0, single buffered']
    #allocation3 [shape = 's32[1]{0}', space=sflag, size = 0x4, scoped, tag = 'scoped memory for _lambda_.29']
    %8 = vsyncpa [#allocation3], 0
    // Predicated region
    $region2: #{_lambda_.29} parent=1 // pred_check
      _
    $region3: #{_lambda_.29} parent=1 // pred_check_branch
      %10 = sbr.rel (0) target = $region5
    $region4: #{_lambda_.29} parent=1 // pred_region
      _
    $region5: #{_lambda_.29} parent=1 // pred_fallthru
      _
    // Predicated region
    $region6: #{_lambda_.29} parent=1 // pred_check
      _
    $region7: #{_lambda_.29} parent=1 // pred_check_branch
      %12 = sbr.rel (0) target = $region9
    $region8: #{_lambda_.29} parent=1 // pred_region
      _
    $region9: #{_lambda_.29} parent=1 // pred_fallthru
      _
    // Predicated region
    $region10: #{_lambda_.29} parent=1 // pred_check
      _
    $region11: #{_lambda_.29} parent=1 // pred_check_branch
      %14 = sbr.rel (0) target = $region13
    $region12: #{_lambda_.29} parent=1 // pred_region
      _
    $region13: #{_lambda_.29} parent=1 // pred_fallthru
      _
    %v15 = vld [vmem:[%s0] sm:$0xf]
    %v16 = vld [vmem:[%s0 + $0x4] sm:$0xf]
    %v17 = vld [vmem:[%s0 + $0x8] sm:$0xf]
    %v18 = vld [vmem:[%s0 + $0xc] sm:$0xf]
    %v19 = vunpack.c.l.bf16 %v15
    %v20 = vunpack.c.l.bf16 %v16
    %v21 = vunpack.c.l.bf16 %v17
    %v22 = vunpack.c.l.bf16 %v18
    %vm23 = vcmask 130048
    %v24 = vsel %vm23, %v19, 0.0
    %25 = vadd.xlane.f32.xlu0 %v24
    %v26 = vpop.xlane.xlu0 %25
    %v27 = vsel %vm23, %v20, 0.0
    %28 = vadd.xlane.f32.xlu0 %v27
    %v29 = vpop.xlane.xlu0 %28
    %v30 = vsel %vm23, %v21, 0.0
    %31 = vadd.xlane.f32.xlu0 %v30
    %v32 = vpop.xlane.xlu0 %31
    %v33 = vsel %vm23, %v22, 0.0
    %34 = vadd.xlane.f32.xlu0 %v33
    %v35 = vpop.xlane.xlu0 %34
    %v36 = vrcp.pop 16.0
    %v37 = vmul.f32 %v26, %v36
    %v38 = vmul.f32 %v29, %v36
    %v39 = vmul.f32 %v32, %v36
    %v40 = vmul.f32 %v35, %v36
    %v41 = vsub.f32 %v19, %v37
    %v42 = vsub.f32 %v20, %v38
    %v43 = vsub.f32 %v21, %v39
    %v44 = vsub.f32 %v22, %v40
    %v45 = vmul.f32 %v41, %v41
    %v46 = vmul.f32 %v42, %v42
    %v47 = vmul.f32 %v43, %v43
    %v48 = vmul.f32 %v44, %v44
    %v49 = vsel %vm23, %v45, 0.0
    %50 = vadd.xlane.f32.xlu0 %v49
    %v51 = vpop.xlane.xlu0 %50
    %v52 = vsel %vm23, %v46, 0.0
    %53 = vadd.xlane.f32.xlu0 %v52
    %v54 = vpop.xlane.xlu0 %53
    %v55 = vsel %vm23, %v47, 0.0
    %56 = vadd.xlane.f32.xlu0 %v55
    %v57 = vpop.xlane.xlu0 %56
    %v58 = vsel %vm23, %v48, 0.0
    %59 = vadd.xlane.f32.xlu0 %v58
    %v60 = vpop.xlane.xlu0 %59
    %v61 = vmul.f32 %v51, %v36
    %v62 = vmul.f32 %v54, %v36
    %v63 = vmul.f32 %v57, %v36
    %v64 = vmul.f32 %v60, %v36
    %v65 = vadd.f32 %v61, 1e-06
    %v66 = vadd.f32 %v62, 1e-06
    %v67 = vadd.f32 %v63, 1e-06
    %v68 = vadd.f32 %v64, 1e-06
    %v69 = vrsqrt.pop %v65
    %v70 = vrsqrt.pop %v66
    %v71 = vrsqrt.pop %v67
    %v72 = vrsqrt.pop %v68
    %v73 = vmul.f32 %v41, %v69
    %v74 = vmul.f32 %v42, %v70
    %v75 = vmul.f32 %v43, %v71
    %v76 = vmul.f32 %v44, %v72
    %v77 = vld [vmem:[%s1] sm:$0x1]
    %v79 = vlaneseq
    %v80 = vshrl.u32 %v79, 7
    %v81 = vsub.s32 0, %v80
    %v82 = vrot.slane %v77, %v81
    %v84 = vmul.f32 %v73, %v82
    %v85 = vmul.f32 %v74, %v82
    %v86 = vmul.f32 %v75, %v82
    %v87 = vmul.f32 %v76, %v82
    %v88 = vld [vmem:[%s2] sm:$0x1]
    %v90 = vlaneseq
    %v91 = vshrl.u32 %v90, 7
    %v92 = vsub.s32 0, %v91
    %v93 = vrot.slane %v88, %v92
    %v95 = vadd.f32 %v84, %v93
    %v96 = vadd.f32 %v85, %v93
    %v97 = vadd.f32 %v86, %v93
    %v98 = vadd.f32 %v87, %v93
    %99 = vst.msk [vmem:[#allocation2] sm:$0xff] %vm23, %v95
    %100 = vst.msk [vmem:[#allocation2 + $0x8] sm:$0xff] %vm23, %v96
    %101 = vst.msk [vmem:[#allocation2 + $0x10] sm:$0xff] %vm23, %v97
    %102 = vst.msk [vmem:[#allocation2 + $0x18] sm:$0xff] %vm23, %v98
    // Predicated region
    $region14: #{_lambda_.29} parent=1 // pred_check
      _
    $region15: #{_lambda_.29} parent=1 // pred_check_branch
      %104 = sbr.rel (0) target = $region17
    $region16: #{_lambda_.29} parent=1 // pred_region
      %s106 = ssub.s32 512, 512
      %107 = vsyncadd [#allocation3], %s106
      %s108 = sshll.u32 [#allocation2], 4
      %s109 = int_to_ptr.vmem [resolvable:$true] %s108
      %114 = dma.vmem_to_hbm [thread:$0]  %s109, 512, %s3, [#allocation3], 128, 128, 8
    $region17: #{_lambda_.29} parent=1 // pred_fallthru
      _
    // Predicated region
    $region18: #{_lambda_.29} parent=1 // pred_check
      _
    $region19: #{_lambda_.29} parent=1 // pred_check_branch
      %116 = sbr.rel (0) target = $region21
    $region20: #{_lambda_.29} parent=1 // pred_region
      %117 = dma.done [#allocation3], 512
    $region21: #{_lambda_.29} parent=1 // pred_fallthru
      _
    %118 = vsyncpa [#allocation3], 1

// kernel: _lambda_.22
$region0: #{_lambda_.22}
  #allocation0 [shape = 'u32[]', space=smem, size = 0x4, offset = 0x4, fixed_abs, tag = 'smem constant byte address 0x4 - core index']
  #allocation1 [shape = 'u32[144,128]{1,0:T(1,128)}', space=vmem, size = 0x12000, scoped, tag = 'internal scratch']
  #allocation2 [shape = 'f32[8,16,1]{2,1,0:T(8,128)}', space=vmem, size = 0x10000, scoped, tag = 'scratch operand']
  #allocation3 [shape = 'f32[8,16,1]{2,1,0:T(8,128)}', space=vmem, size = 0x10000, scoped, tag = 'scratch operand']
  #allocation4 [shape = 'f32[8,16,8]{2,1,0:T(8,128)}', space=vmem, size = 0x10000, scoped, tag = 'scratch operand']
  %s0 = inlined_call_operand.vmem [shape: bf16[8,16,8], index: 0, kind: input, shape index: {}]
  %s1 = inlined_call_operand.vmem [shape: bf16[8,128,8], index: 1, kind: input, shape index: {}]
  %s2 = inlined_call_operand.vmem [shape: bf16[8,128,8], index: 2, kind: input, shape index: {}]
  %s3 = inlined_call_operand.vmem [shape: bf16[8,16,8], index: 3, kind: output, shape index: {}]
  %s4 = sld [smem:[#allocation0]]
  $region30: #{_lambda_.22} parent=0
    _
  %s6 = ssub.s32 1, %s4
  %s7 = scalar_select 0, %s6, %s4
  // Predicated region
  $region2: #{_lambda_.22} parent=0 // pred_check
    _
  $region3: #{_lambda_.22} parent=0 // pred_check_branch
    %9 = sbr.rel (0) target = $region5
  $region4: #{_lambda_.22} parent=0 // pred_region
    _
  $region5: #{_lambda_.22} parent=0 // pred_fallthru
    _
  // Predicated region
  $region6: #{_lambda_.22} parent=0 // pred_check
    _
  $region7: #{_lambda_.22} parent=0 // pred_check_branch
    %11 = sbr.rel (0) target = $region9
  $region8: #{_lambda_.22} parent=0 // pred_region
    _
  $region9: #{_lambda_.22} parent=0 // pred_fallthru
    _
  // Predicated region
  $region10: #{_lambda_.22} parent=0 // pred_check
    _
  $region11: #{_lambda_.22} parent=0 // pred_check_branch
    %13 = sbr.rel (0) target = $region13
  $region12: #{_lambda_.22} parent=0 // pred_region
    _
  $region13: #{_lambda_.22} parent=0 // pred_fallthru
    _
  %p15 = scmp.eq.s32.totalorder 0, 0
  // Predicated region
  $region14: #{_lambda_.22} parent=0 // pred_check
    %p16 = pneg %p15
  $region15: #{_lambda_.22} parent=0 // pred_check_branch
    %18 = sbr.rel (%p16) target = $region17
  $region16: #{_lambda_.22} parent=0 // pred_region
    %vm19 = vcmask 7168
    %20 = vst.msk [vmem:[#allocation2] sm:$0xff] %vm19, -inf
    %21 = vst.msk [vmem:[#allocation2 + $0x8] sm:$0xff] %vm19, -inf
    %22 = vst.msk [vmem:[#allocation2 + $0x10] sm:$0xff] %vm19, -inf
    %23 = vst.msk [vmem:[#allocation2 + $0x18] sm:$0xff] %vm19, -inf
    %24 = vst.msk [vmem:[#allocation2 + $0x20] sm:$0xff] %vm19, -inf
    %25 = vst.msk [vmem:[#allocation2 + $0x28] sm:$0xff] %vm19, -inf
    %26 = vst.msk [vmem:[#allocation2 + $0x30] sm:$0xff] %vm19, -inf
    %27 = vst.msk [vmem:[#allocation2 + $0x38] sm:$0xff] %vm19, -inf
    %28 = vst.msk [vmem:[#allocation2 + $0x40] sm:$0xff] %vm19, -inf
    %29 = vst.msk [vmem:[#allocation2 + $0x48] sm:$0xff] %vm19, -inf
    %30 = vst.msk [vmem:[#allocation2 + $0x50] sm:$0xff] %vm19, -inf
    %31 = vst.msk [vmem:[#allocation2 + $0x58] sm:$0xff] %vm19, -inf
    %32 = vst.msk [vmem:[#allocation2 + $0x60] sm:$0xff] %vm19, -inf
    %33 = vst.msk [vmem:[#allocation2 + $0x68] sm:$0xff] %vm19, -inf
    %34 = vst.msk [vmem:[#allocation2 + $0x70] sm:$0xff] %vm19, -inf
    %35 = vst.msk [vmem:[#allocation2 + $0x78] sm:$0xff] %vm19, -inf
    %36 = vst.msk [vmem:[#allocation3] sm:$0xff] %vm19, 0.0
    %37 = vst.msk [vmem:[#allocation3 + $0x8] sm:$0xff] %vm19, 0.0
    %38 = vst.msk [vmem:[#allocation3 + $0x10] sm:$0xff] %vm19, 0.0
    %39 = vst.msk [vmem:[#allocation3 + $0x18] sm:$0xff] %vm19, 0.0
    %40 = vst.msk [vmem:[#allocation3 + $0x20] sm:$0xff] %vm19, 0.0
    %41 = vst.msk [vmem:[#allocation3 + $0x28] sm:$0xff] %vm19, 0.0
    %42 = vst.msk [vmem:[#allocation3 + $0x30] sm:$0xff] %vm19, 0.0
    %43 = vst.msk [vmem:[#allocation3 + $0x38] sm:$0xff] %vm19, 0.0
    %44 = vst.msk [vmem:[#allocation3 + $0x40] sm:$0xff] %vm19, 0.0
    %45 = vst.msk [vmem:[#allocation3 + $0x48] sm:$0xff] %vm19, 0.0
    %46 = vst.msk [vmem:[#allocation3 + $0x50] sm:$0xff] %vm19, 0.0
    %47 = vst.msk [vmem:[#allocation3 + $0x58] sm:$0xff] %vm19, 0.0
    %48 = vst.msk [vmem:[#allocation3 + $0x60] sm:$0xff] %vm19, 0.0
    %49 = vst.msk [vmem:[#allocation3 + $0x68] sm:$0xff] %vm19, 0.0
    %50 = vst.msk [vmem:[#allocation3 + $0x70] sm:$0xff] %vm19, 0.0
    %51 = vst.msk [vmem:[#allocation3 + $0x78] sm:$0xff] %vm19, 0.0
    %vm52 = vcmask 64512
    %53 = vst.msk [vmem:[#allocation4] sm:$0xff] %vm52, 0.0
    %54 = vst.msk [vmem:[#allocation4 + $0x8] sm:$0xff] %vm52, 0.0
    %55 = vst.msk [vmem:[#allocation4 + $0x10] sm:$0xff] %vm52, 0.0
    %56 = vst.msk [vmem:[#allocation4 + $0x18] sm:$0xff] %vm52, 0.0
    %57 = vst.msk [vmem:[#allocation4 + $0x20] sm:$0xff] %vm52, 0.0
    %58 = vst.msk [vmem:[#allocation4 + $0x28] sm:$0xff] %vm52, 0.0
    %59 = vst.msk [vmem:[#allocation4 + $0x30] sm:$0xff] %vm52, 0.0
    %60 = vst.msk [vmem:[#allocation4 + $0x38] sm:$0xff] %vm52, 0.0
    %61 = vst.msk [vmem:[#allocation4 + $0x40] sm:$0xff] %vm52, 0.0
    %62 = vst.msk [vmem:[#allocation4 + $0x48] sm:$0xff] %vm52, 0.0
    %63 = vst.msk [vmem:[#allocation4 + $0x50] sm:$0xff] %vm52, 0.0
    %64 = vst.msk [vmem:[#allocation4 + $0x58] sm:$0xff] %vm52, 0.0
    %65 = vst.msk [vmem:[#allocation4 + $0x60] sm:$0xff] %vm52, 0.0
    %66 = vst.msk [vmem:[#allocation4 + $0x68] sm:$0xff] %vm52, 0.0
    %67 = vst.msk [vmem:[#allocation4 + $0x70] sm:$0xff] %vm52, 0.0
    %68 = vst.msk [vmem:[#allocation4 + $0x78] sm:$0xff] %vm52, 0.0
  $region17: #{_lambda_.22} parent=0 // pred_fallthru
    _
  %v69 = vld [vmem:[%s0] sm:$0xf]
  %v70 = vld [vmem:[%s0 + $0x4] sm:$0xf]
  %v71 = vld [vmem:[%s0 + $0x8] sm:$0xf]
  %v72 = vld [vmem:[%s0 + $0xc] sm:$0xf]
  %v73 = vld [vmem:[%s0 + $0x10] sm:$0xf]
  %v74 = vld [vmem:[%s0 + $0x14] sm:$0xf]
  %v75 = vld [vmem:[%s0 + $0x18] sm:$0xf]
  %v76 = vld [vmem:[%s0 + $0x1c] sm:$0xf]
  %v77 = vld [vmem:[%s0 + $0x20] sm:$0xf]
  %v78 = vld [vmem:[%s0 + $0x24] sm:$0xf]
  %v79 = vld [vmem:[%s0 + $0x28] sm:$0xf]
  %v80 = vld [vmem:[%s0 + $0x2c] sm:$0xf]
  %v81 = vld [vmem:[%s0 + $0x30] sm:$0xf]
  %v82 = vld [vmem:[%s0 + $0x34] sm:$0xf]
  %v83 = vld [vmem:[%s0 + $0x38] sm:$0xf]
  %v84 = vld [vmem:[%s0 + $0x3c] sm:$0xf]
  %v85 = vld [vmem:[%s1] sm:$0xf]
  %v86 = vld [vmem:[%s1 + $0x4] sm:$0xf]
  %v87 = vld [vmem:[%s1 + $0x8] sm:$0xf]
  %v88 = vld [vmem:[%s1 + $0xc] sm:$0xf]
  %v89 = vld [vmem:[%s1 + $0x10] sm:$0xf]
  %v90 = vld [vmem:[%s1 + $0x14] sm:$0xf]
  %v91 = vld [vmem:[%s1 + $0x18] sm:$0xf]
  %v92 = vld [vmem:[%s1 + $0x1c] sm:$0xf]
  %v93 = vld [vmem:[%s1 + $0x20] sm:$0xf]
  %v94 = vld [vmem:[%s1 + $0x24] sm:$0xf]
  %v95 = vld [vmem:[%s1 + $0x28] sm:$0xf]
  %v96 = vld [vmem:[%s1 + $0x2c] sm:$0xf]
  %v97 = vld [vmem:[%s1 + $0x30] sm:$0xf]
  %v98 = vld [vmem:[%s1 + $0x34] sm:$0xf]
  %v99 = vld [vmem:[%s1 + $0x38] sm:$0xf]
  %v100 = vld [vmem:[%s1 + $0x3c] sm:$0xf]
  %v101 = vld [vmem:[%s1 + $0x40] sm:$0xf]
  %v102 = vld [vmem:[%s1 + $0x44] sm:$0xf]
  %v103 = vld [vmem:[%s1 + $0x48] sm:$0xf]
  %v104 = vld [vmem:[%s1 + $0x4c] sm:$0xf]
  %v105 = vld [vmem:[%s1 + $0x50] sm:$0xf]
  %v106 = vld [vmem:[%s1 + $0x54] sm:$0xf]
  %v107 = vld [vmem:[%s1 + $0x58] sm:$0xf]
  %v108 = vld [vmem:[%s1 + $0x5c] sm:$0xf]
  %v109 = vld [vmem:[%s1 + $0x60] sm:$0xf]
  %v110 = vld [vmem:[%s1 + $0x64] sm:$0xf]
  %v111 = vld [vmem:[%s1 + $0x68] sm:$0xf]
  %v112 = vld [vmem:[%s1 + $0x6c] sm:$0xf]
  %v113 = vld [vmem:[%s1 + $0x70] sm:$0xf]
  %v114 = vld [vmem:[%s1 + $0x74] sm:$0xf]
  %v115 = vld [vmem:[%s1 + $0x78] sm:$0xf]
  %v116 = vld [vmem:[%s1 + $0x7c] sm:$0xf]
  %v117 = vld [vmem:[%s1 + $0x80] sm:$0xf]
  %v118 = vld [vmem:[%s1 + $0x84] sm:$0xf]
  %v119 = vld [vmem:[%s1 + $0x88] sm:$0xf]
  %v120 = vld [vmem:[%s1 + $0x8c] sm:$0xf]
  %v121 = vld [vmem:[%s1 + $0x90] sm:$0xf]
  %v122 = vld [vmem:[%s1 + $0x94] sm:$0xf]
  %v123 = vld [vmem:[%s1 + $0x98] sm:$0xf]
  %v124 = vld [vmem:[%s1 + $0x9c] sm:$0xf]
  %v125 = vld [vmem:[%s1 + $0xa0] sm:$0xf]
  %v126 = vld [vmem:[%s1 + $0xa4] sm:$0xf]
  %v127 = vld [vmem:[%s1 + $0xa8] sm:$0xf]
  %v128 = vld [vmem:[%s1 + $0xac] sm:$0xf]
  %v129 = vld [vmem:[%s1 + $0xb0] sm:$0xf]
  %v130 = vld [vmem:[%s1 + $0xb4] sm:$0xf]
  %v131 = vld [vmem:[%s1 + $0xb8] sm:$0xf]
  %v132 = vld [vmem:[%s1 + $0xbc] sm:$0xf]
  %v133 = vld [vmem:[%s1 + $0xc0] sm:$0xf]
  %v134 = vld [vmem:[%s1 + $0xc4] sm:$0xf]
  %v135 = vld [vmem:[%s1 + $0xc8] sm:$0xf]
  %v136 = vld [vmem:[%s1 + $0xcc] sm:$0xf]
  %v137 = vld [vmem:[%s1 + $0xd0] sm:$0xf]
  %v138 = vld [vmem:[%s1 + $0xd4] sm:$0xf]
  %v139 = vld [vmem:[%s1 + $0xd8] sm:$0xf]
  %v140 = vld [vmem:[%s1 + $0xdc] sm:$0xf]
  %v141 = vld [vmem:[%s1 + $0xe0] sm:$0xf]
  %v142 = vld [vmem:[%s1 + $0xe4] sm:$0xf]
  %v143 = vld [vmem:[%s1 + $0xe8] sm:$0xf]
  %v144 = vld [vmem:[%s1 + $0xec] sm:$0xf]
  %v145 = vld [vmem:[%s1 + $0xf0] sm:$0xf]
  %v146 = vld [vmem:[%s1 + $0xf4] sm:$0xf]
  %v147 = vld [vmem:[%s1 + $0xf8] sm:$0xf]
  %v148 = vld [vmem:[%s1 + $0xfc] sm:$0xf]
  %v149 = vld [vmem:[%s1 + $0x100] sm:$0xf]
  %v150 = vld [vmem:[%s1 + $0x104] sm:$0xf]
  %v151 = vld [vmem:[%s1 + $0x108] sm:$0xf]
  %v152 = vld [vmem:[%s1 + $0x10c] sm:$0xf]
  %v153 = vld [vmem:[%s1 + $0x110] sm:$0xf]
  %v154 = vld [vmem:[%s1 + $0x114] sm:$0xf]
  %v155 = vld [vmem:[%s1 + $0x118] sm:$0xf]
  %v156 = vld [vmem:[%s1 + $0x11c] sm:$0xf]
  %v157 = vld [vmem:[%s1 + $0x120] sm:$0xf]
  %v158 = vld [vmem:[%s1 + $0x124] sm:$0xf]
  %v159 = vld [vmem:[%s1 + $0x128] sm:$0xf]
  %v160 = vld [vmem:[%s1 + $0x12c] sm:$0xf]
  %v161 = vld [vmem:[%s1 + $0x130] sm:$0xf]
  %v162 = vld [vmem:[%s1 + $0x134] sm:$0xf]
  %v163 = vld [vmem:[%s1 + $0x138] sm:$0xf]
  %v164 = vld [vmem:[%s1 + $0x13c] sm:$0xf]
  %v165 = vld [vmem:[%s1 + $0x140] sm:$0xf]
  %v166 = vld [vmem:[%s1 + $0x144] sm:$0xf]
  %v167 = vld [vmem:[%s1 + $0x148] sm:$0xf]
  %v168 = vld [vmem:[%s1 + $0x14c] sm:$0xf]
  %v169 = vld [vmem:[%s1 + $0x150] sm:$0xf]
  %v170 = vld [vmem:[%s1 + $0x154] sm:$0xf]
  %v171 = vld [vmem:[%s1 + $0x158] sm:$0xf]
  %v172 = vld [vmem:[%s1 + $0x15c] sm:$0xf]
  %v173 = vld [vmem:[%s1 + $0x160] sm:$0xf]
  %v174 = vld [vmem:[%s1 + $0x164] sm:$0xf]
  %v175 = vld [vmem:[%s1 + $0x168] sm:$0xf]
  %v176 = vld [vmem:[%s1 + $0x16c] sm:$0xf]
  %v177 = vld [vmem:[%s1 + $0x170] sm:$0xf]
  %v178 = vld [vmem:[%s1 + $0x174] sm:$0xf]
  %v179 = vld [vmem:[%s1 + $0x178] sm:$0xf]
  %v180 = vld [vmem:[%s1 + $0x17c] sm:$0xf]
  %v181 = vld [vmem:[%s1 + $0x180] sm:$0xf]
  %v182 = vld [vmem:[%s1 + $0x184] sm:$0xf]
  %v183 = vld [vmem:[%s1 + $0x188] sm:$0xf]
  %v184 = vld [vmem:[%s1 + $0x18c] sm:$0xf]
  %v185 = vld [vmem:[%s1 + $0x190] sm:$0xf]
  %v186 = vld [vmem:[%s1 + $0x194] sm:$0xf]
  %v187 = vld [vmem:[%s1 + $0x198] sm:$0xf]
  %v188 = vld [vmem:[%s1 + $0x19c] sm:$0xf]
  %v189 = vld [vmem:[%s1 + $0x1a0] sm:$0xf]
  %v190 = vld [vmem:[%s1 + $0x1a4] sm:$0xf]
  %v191 = vld [vmem:[%s1 + $0x1a8] sm:$0xf]
  %v192 = vld [vmem:[%s1 + $0x1ac] sm:$0xf]
  %v193 = vld [vmem:[%s1 + $0x1b0] sm:$0xf]
  %v194 = vld [vmem:[%s1 + $0x1b4] sm:$0xf]
  %v195 = vld [vmem:[%s1 + $0x1b8] sm:$0xf]
  %v196 = vld [vmem:[%s1 + $0x1bc] sm:$0xf]
  %v197 = vld [vmem:[%s1 + $0x1c0] sm:$0xf]
  %v198 = vld [vmem:[%s1 + $0x1c4] sm:$0xf]
  %v199 = vld [vmem:[%s1 + $0x1c8] sm:$0xf]
  %v200 = vld [vmem:[%s1 + $0x1cc] sm:$0xf]
  %v201 = vld [vmem:[%s1 + $0x1d0] sm:$0xf]
  %v202 = vld [vmem:[%s1 + $0x1d4] sm:$0xf]
  %v203 = vld [vmem:[%s1 + $0x1d8] sm:$0xf]
  %v204 = vld [vmem:[%s1 + $0x1dc] sm:$0xf]
  %v205 = vld [vmem:[%s1 + $0x1e0] sm:$0xf]
  %v206 = vld [vmem:[%s1 + $0x1e4] sm:$0xf]
  %v207 = vld [vmem:[%s1 + $0x1e8] sm:$0xf]
  %v208 = vld [vmem:[%s1 + $0x1ec] sm:$0xf]
  %v209 = vld [vmem:[%s1 + $0x1f0] sm:$0xf]
  %v210 = vld [vmem:[%s1 + $0x1f4] sm:$0xf]
  %v211 = vld [vmem:[%s1 + $0x1f8] sm:$0xf]
  %v212 = vld [vmem:[%s1 + $0x1fc] sm:$0xf]
  %v215 = vunpack.c.l.b16 %v69
  %v216 = vunpack.c.l.b16 %v70
  %v217 = vpack.c.b16 %v216, %v215
  %v234 = vunpack.c.l.b16 %v85
  %v235 = vunpack.c.l.b16 %v86
  %v236 = vunpack.c.l.b16 %v87
  %v237 = vunpack.c.l.b16 %v88
  %v238 = vunpack.c.l.b16 %v89
  %v239 = vunpack.c.l.b16 %v90
  %v240 = vunpack.c.l.b16 %v91
  %v241 = vunpack.c.l.b16 %v92
  %v242 = vunpack.c.l.b16 %v93
  %v243 = vunpack.c.l.b16 %v94
  %v244 = vunpack.c.l.b16 %v95
  %v245 = vunpack.c.l.b16 %v96
  %v246 = vunpack.c.l.b16 %v97
  %v247 = vunpack.c.l.b16 %v98
  %v248 = vunpack.c.l.b16 %v99
  %v249 = vunpack.c.l.b16 %v100
  %v250 = vpack.c.b16 %v235, %v234
  %v251 = vpack.c.b16 %v237, %v236
  %v252 = vpack.c.b16 %v239, %v238
  %v253 = vpack.c.b16 %v241, %v240
  %v254 = vpack.c.b16 %v243, %v242
  %v255 = vpack.c.b16 %v245, %v244
  %v256 = vpack.c.b16 %v247, %v246
  %v257 = vpack.c.b16 %v249, %v248
  %vm258 = vcmask 64512
  %v260 = vsel %vm258, %v217, 0
  %v263 = vsel %vm258, %v250, 0
  %v266 = vsel %vm258, %v251, 0
  %v269 = vsel %vm258, %v252, 0
  %v272 = vsel %vm258, %v253, 0
  %v275 = vsel %vm258, %v254, 0
  %v278 = vsel %vm258, %v255, 0
  %v281 = vsel %vm258, %v256, 0
  %v284 = vsel %vm258, %v257, 0
  %286 = vmatprep.subr.bf16.mxu0 0
  %287 = vmatpush1.bf16.xpose.msra.mxu0 %v284
  %288 = vmatprep.subr.bf16.mxu0 0
  %289 = vmatpush1.bf16.xpose.msra.mxu0 %v281
  %290 = vmatprep.subr.bf16.mxu0 0
  %291 = vmatpush1.bf16.xpose.msra.mxu0 %v278
  %292 = vmatprep.subr.bf16.mxu0 0
  %293 = vmatpush1.bf16.xpose.msra.mxu0 %v275
  %294 = vmatprep.subr.bf16.mxu0 0
  %295 = vmatpush1.bf16.xpose.msra.mxu0 %v272
  %296 = vmatprep.subr.bf16.mxu0 0
  %297 = vmatpush1.bf16.xpose.msra.mxu0 %v269
  %298 = vmatprep.subr.bf16.mxu0 0
  %299 = vmatpush1.bf16.xpose.msra.mxu0 %v266
  %300 = vmatprep.subr.bf16.mxu0 0
  %301 = vmatpush1.bf16.xpose.msra.mxu0 %v263
  %302 = vmatprep.subr.bf16.mxu0 0
  %303 = vmatpush2.bf16.xpose.msra.mxu0 0
  %304 = vmatprep.subr.bf16.mxu0 0
  %305 = vmatpush2.bf16.xpose.msra.mxu0 0
  %306 = vmatprep.subr.bf16.mxu0 0
  %307 = vmatpush2.bf16.xpose.msra.mxu0 0
  %308 = vmatprep.subr.bf16.mxu0 0
  %309 = vmatpush2.bf16.xpose.msra.mxu0 0
  %310 = vmatprep.subr.bf16.mxu0 0
  %311 = vmatpush2.bf16.xpose.msra.mxu0 0
  %312 = vmatprep.subr.bf16.mxu0 0
  %313 = vmatpush2.bf16.xpose.msra.mxu0 0
  %314 = vmatprep.subr.bf16.mxu0 0
  %315 = vmatpush2.bf16.xpose.msra.mxu0 0
  %316 = vmatprep.subr.bf16.mxu0 0
  %317 = vmatpush2.bf16.xpose.msra.mxu0 0
  %318 = vmatprep.mubr.bf16.mxu0 0
  %319 = vmatmul.mubr.bf16.gmra.mxu0 %v260
  %v320 = vpop.f32.mrf.mxu0
  %v321 = vadd.f32 0.0, %v320
  %v322 = vpop.f32.mrf.mxu0
  %v323 = vpop.f32.mrf.mxu0
  %v324 = vadd.f32 0.0, %v323
  %v325 = vpop.f32.mrf.mxu0
  %326 = vdwg.mxu0
  %v329 = vunpack.c.l.b16 %v71
  %v330 = vunpack.c.l.b16 %v72
  %v331 = vpack.c.b16 %v330, %v329
  %v348 = vunpack.c.l.b16 %v101
  %v349 = vunpack.c.l.b16 %v102
  %v350 = vunpack.c.l.b16 %v103
  %v351 = vunpack.c.l.b16 %v104
  %v352 = vunpack.c.l.b16 %v105
  %v353 = vunpack.c.l.b16 %v106
  %v354 = vunpack.c.l.b16 %v107
  %v355 = vunpack.c.l.b16 %v108
  %v356 = vunpack.c.l.b16 %v109
  %v357 = vunpack.c.l.b16 %v110
  %v358 = vunpack.c.l.b16 %v111
  %v359 = vunpack.c.l.b16 %v112
  %v360 = vunpack.c.l.b16 %v113
  %v361 = vunpack.c.l.b16 %v114
  %v362 = vunpack.c.l.b16 %v115
  %v363 = vunpack.c.l.b16 %v116
  %v364 = vpack.c.b16 %v349, %v348
  %v365 = vpack.c.b16 %v351, %v350
  %v366 = vpack.c.b16 %v353, %v352
  %v367 = vpack.c.b16 %v355, %v354
  %v368 = vpack.c.b16 %v357, %v356
  %v369 = vpack.c.b16 %v359, %v358
  %v370 = vpack.c.b16 %v361, %v360
  %v371 = vpack.c.b16 %v363, %v362
  %v373 = vsel %vm258, %v331, 0
  %v376 = vsel %vm258, %v364, 0
  %v379 = vsel %vm258, %v365, 0
  %v382 = vsel %vm258, %v366, 0
  %v385 = vsel %vm258, %v367, 0
  %v388 = vsel %vm258, %v368, 0
  %v391 = vsel %vm258, %v369, 0
  %v394 = vsel %vm258, %v370, 0
  %v397 = vsel %vm258, %v371, 0
  %399 = vmatprep.subr.bf16.mxu0 0
  %400 = vmatpush1.bf16.xpose.msra.mxu0 %v397
  %401 = vmatprep.subr.bf16.mxu0 0
  %402 = vmatpush1.bf16.xpose.msra.mxu0 %v394
  %403 = vmatprep.subr.bf16.mxu0 0
  %404 = vmatpush1.bf16.xpose.msra.mxu0 %v391
  %405 = vmatprep.subr.bf16.mxu0 0
  %406 = vmatpush1.bf16.xpose.msra.mxu0 %v388
  %407 = vmatprep.subr.bf16.mxu0 0
  %408 = vmatpush1.bf16.xpose.msra.mxu0 %v385
  %409 = vmatprep.subr.bf16.mxu0 0
  %410 = vmatpush1.bf16.xpose.msra.mxu0 %v382
  %411 = vmatprep.subr.bf16.mxu0 0
  %412 = vmatpush1.bf16.xpose.msra.mxu0 %v379
  %413 = vmatprep.subr.bf16.mxu0 0
  %414 = vmatpush1.bf16.xpose.msra.mxu0 %v376
  %415 = vmatprep.subr.bf16.mxu0 0
  %416 = vmatpush2.bf16.xpose.msra.mxu0 0
  %417 = vmatprep.subr.bf16.mxu0 0
  %418 = vmatpush2.bf16.xpose.msra.mxu0 0
  %419 = vmatprep.subr.bf16.mxu0 0
  %420 = vmatpush2.bf16.xpose.msra.mxu0 0
  %421 = vmatprep.subr.bf16.mxu0 0
  %422 = vmatpush2.bf16.xpose.msra.mxu0 0
  %423 = vmatprep.subr.bf16.mxu0 0
  %424 = vmatpush2.bf16.xpose.msra.mxu0 0
  %425 = vmatprep.subr.bf16.mxu0 0
  %426 = vmatpush2.bf16.xpose.msra.mxu0 0
  %427 = vmatprep.subr.bf16.mxu0 0
  %428 = vmatpush2.bf16.xpose.msra.mxu0 0
  %429 = vmatprep.subr.bf16.mxu0 0
  %430 = vmatpush2.bf16.xpose.msra.mxu0 0
  %431 = vmatprep.mubr.bf16.mxu0 0
  %432 = vmatmul.mubr.bf16.gmra.mxu0 %v373
  %v433 = vpop.f32.mrf.mxu0
  %v434 = vadd.f32 0.0, %v433
  %v435 = vpop.f32.mrf.mxu0
  %v436 = vpop.f32.mrf.mxu0
  %v437 = vadd.f32 0.0, %v436
  %v438 = vpop.f32.mrf.mxu0
  %439 = vdwg.mxu0
  %v442 = vunpack.c.l.b16 %v73
  %v443 = vunpack.c.l.b16 %v74
  %v444 = vpack.c.b16 %v443, %v442
  %v461 = vunpack.c.l.b16 %v117
  %v462 = vunpack.c.l.b16 %v118
  %v463 = vunpack.c.l.b16 %v119
  %v464 = vunpack.c.l.b16 %v120
  %v465 = vunpack.c.l.b16 %v121
  %v466 = vunpack.c.l.b16 %v122
  %v467 = vunpack.c.l.b16 %v123
  %v468 = vunpack.c.l.b16 %v124
  %v469 = vunpack.c.l.b16 %v125
  %v470 = vunpack.c.l.b16 %v126
  %v471 = vunpack.c.l.b16 %v127
  %v472 = vunpack.c.l.b16 %v128
  %v473 = vunpack.c.l.b16 %v129
  %v474 = vunpack.c.l.b16 %v130
  %v475 = vunpack.c.l.b16 %v131
  %v476 = vunpack.c.l.b16 %v132
  %v477 = vpack.c.b16 %v462, %v461
  %v478 = vpack.c.b16 %v464, %v463
  %v479 = vpack.c.b16 %v466, %v465
  %v480 = vpack.c.b16 %v468, %v467
  %v481 = vpack.c.b16 %v470, %v469
  %v482 = vpack.c.b16 %v472, %v471
  %v483 = vpack.c.b16 %v474, %v473
  %v484 = vpack.c.b16 %v476, %v475
  %v486 = vsel %vm258, %v444, 0
  %v489 = vsel %vm258, %v477, 0
  %v492 = vsel %vm258, %v478, 0
  %v495 = vsel %vm258, %v479, 0
  %v498 = vsel %vm258, %v480, 0
  %v501 = vsel %vm258, %v481, 0
  %v504 = vsel %vm258, %v482, 0
  %v507 = vsel %vm258, %v483, 0
  %v510 = vsel %vm258, %v484, 0
  %512 = vmatprep.subr.bf16.mxu0 0
  %513 = vmatpush1.bf16.xpose.msra.mxu0 %v510
  %514 = vmatprep.subr.bf16.mxu0 0
  %515 = vmatpush1.bf16.xpose.msra.mxu0 %v507
  %516 = vmatprep.subr.bf16.mxu0 0
  %517 = vmatpush1.bf16.xpose.msra.mxu0 %v504
  %518 = vmatprep.subr.bf16.mxu0 0
  %519 = vmatpush1.bf16.xpose.msra.mxu0 %v501
  %520 = vmatprep.subr.bf16.mxu0 0
  %521 = vmatpush1.bf16.xpose.msra.mxu0 %v498
  %522 = vmatprep.subr.bf16.mxu0 0
  %523 = vmatpush1.bf16.xpose.msra.mxu0 %v495
  %524 = vmatprep.subr.bf16.mxu0 0
  %525 = vmatpush1.bf16.xpose.msra.mxu0 %v492
  %526 = vmatprep.subr.bf16.mxu0 0
  %527 = vmatpush1.bf16.xpose.msra.mxu0 %v489
  %528 = vmatprep.subr.bf16.mxu0 0
  %529 = vmatpush2.bf16.xpose.msra.mxu0 0
  %530 = vmatprep.subr.bf16.mxu0 0
  %531 = vmatpush2.bf16.xpose.msra.mxu0 0
  %532 = vmatprep.subr.bf16.mxu0 0
  %533 = vmatpush2.bf16.xpose.msra.mxu0 0
  %534 = vmatprep.subr.bf16.mxu0 0
  %535 = vmatpush2.bf16.xpose.msra.mxu0 0
  %536 = vmatprep.subr.bf16.mxu0 0
  %537 = vmatpush2.bf16.xpose.msra.mxu0 0
  %538 = vmatprep.subr.bf16.mxu0 0
  %539 = vmatpush2.bf16.xpose.msra.mxu0 0
  %540 = vmatprep.subr.bf16.mxu0 0
  %541 = vmatpush2.bf16.xpose.msra.mxu0 0
  %542 = vmatprep.subr.bf16.mxu0 0
  %543 = vmatpush2.bf16.xpose.msra.mxu0 0
  %544 = vmatprep.mubr.bf16.mxu0 0
  %545 = vmatmul.mubr.bf16.gmra.mxu0 %v486
  %v546 = vpop.f32.mrf.mxu0
  %v547 = vadd.f32 0.0, %v546
  %v548 = vpop.f32.mrf.mxu0
  %v549 = vpop.f32.mrf.mxu0
  %v550 = vadd.f32 0.0, %v549
  %v551 = vpop.f32.mrf.mxu0
  %552 = vdwg.mxu0
  %v555 = vunpack.c.l.b16 %v75
  %v556 = vunpack.c.l.b16 %v76
  %v557 = vpack.c.b16 %v556, %v555
  %v574 = vunpack.c.l.b16 %v133
  %v575 = vunpack.c.l.b16 %v134
  %v576 = vunpack.c.l.b16 %v135
  %v577 = vunpack.c.l.b16 %v136
  %v578 = vunpack.c.l.b16 %v137
  %v579 = vunpack.c.l.b16 %v138
  %v580 = vunpack.c.l.b16 %v139
  %v581 = vunpack.c.l.b16 %v140
  %v582 = vunpack.c.l.b16 %v141
  %v583 = vunpack.c.l.b16 %v142
  %v584 = vunpack.c.l.b16 %v143
  %v585 = vunpack.c.l.b16 %v144
  %v586 = vunpack.c.l.b16 %v145
  %v587 = vunpack.c.l.b16 %v146
  %v588 = vunpack.c.l.b16 %v147
  %v589 = vunpack.c.l.b16 %v148
  %v590 = vpack.c.b16 %v575, %v574
  %v591 = vpack.c.b16 %v577, %v576
  %v592 = vpack.c.b16 %v579, %v578
  %v593 = vpack.c.b16 %v581, %v580
  %v594 = vpack.c.b16 %v583, %v582
  %v595 = vpack.c.b16 %v585, %v584
  %v596 = vpack.c.b16 %v587, %v586
  %v597 = vpack.c.b16 %v589, %v588
  %v599 = vsel %vm258, %v557, 0
  %v602 = vsel %vm258, %v590, 0
  %v605 = vsel %vm258, %v591, 0
  %v608 = vsel %vm258, %v592, 0
  %v611 = vsel %vm258, %v593, 0
  %v614 = vsel %vm258, %v594, 0
  %v617 = vsel %vm258, %v595, 0
  %v620 = vsel %vm258, %v596, 0
  %v623 = vsel %vm258, %v597, 0
  %625 = vmatprep.subr.bf16.mxu0 0
  %626 = vmatpush1.bf16.xpose.msra.mxu0 %v623
  %627 = vmatprep.subr.bf16.mxu0 0
  %628 = vmatpush1.bf16.xpose.msra.mxu0 %v620
  %629 = vmatprep.subr.bf16.mxu0 0
  %630 = vmatpush1.bf16.xpose.msra.mxu0 %v617
  %631 = vmatprep.subr.bf16.mxu0 0
  %632 = vmatpush1.bf16.xpose.msra.mxu0 %v614
  %633 = vmatprep.subr.bf16.mxu0 0
  %634 = vmatpush1.bf16.xpose.msra.mxu0 %v611
  %635 = vmatprep.subr.bf16.mxu0 0
  %636 = vmatpush1.bf16.xpose.msra.mxu0 %v608
  %637 = vmatprep.subr.bf16.mxu0 0
  %638 = vmatpush1.bf16.xpose.msra.mxu0 %v605
  %639 = vmatprep.subr.bf16.mxu0 0
  %640 = vmatpush1.bf16.xpose.msra.mxu0 %v602
  %641 = vmatprep.subr.bf16.mxu0 0
  %642 = vmatpush2.bf16.xpose.msra.mxu0 0
  %643 = vmatprep.subr.bf16.mxu0 0
  %644 = vmatpush2.bf16.xpose.msra.mxu0 0
  %645 = vmatprep.subr.bf16.mxu0 0
  %646 = vmatpush2.bf16.xpose.msra.mxu0 0
  %647 = vmatprep.subr.bf16.mxu0 0
  %648 = vmatpush2.bf16.xpose.msra.mxu0 0
  %649 = vmatprep.subr.bf16.mxu0 0
  %650 = vmatpush2.bf16.xpose.msra.mxu0 0
  %651 = vmatprep.subr.bf16.mxu0 0
  %652 = vmatpush2.bf16.xpose.msra.mxu0 0
  %653 = vmatprep.subr.bf16.mxu0 0
  %654 = vmatpush2.bf16.xpose.msra.mxu0 0
  %655 = vmatprep.subr.bf16.mxu0 0
  %656 = vmatpush2.bf16.xpose.msra.mxu0 0
  %657 = vmatprep.mubr.bf16.mxu0 0
  %658 = vmatmul.mubr.bf16.gmra.mxu0 %v599
  %v659 = vpop.f32.mrf.mxu0
  %v660 = vadd.f32 0.0, %v659
  %v661 = vpop.f32.mrf.mxu0
  %v662 = vpop.f32.mrf.mxu0
  %v663 = vadd.f32 0.0, %v662
  %v664 = vpop.f32.mrf.mxu0
  %665 = vdwg.mxu0
  %v668 = vunpack.c.l.b16 %v77
  %v669 = vunpack.c.l.b16 %v78
  %v670 = vpack.c.b16 %v669, %v668
  %v687 = vunpack.c.l.b16 %v149
  %v688 = vunpack.c.l.b16 %v150
  %v689 = vunpack.c.l.b16 %v151
  %v690 = vunpack.c.l.b16 %v152
  %v691 = vunpack.c.l.b16 %v153
  %v692 = vunpack.c.l.b16 %v154
  %v693 = vunpack.c.l.b16 %v155
  %v694 = vunpack.c.l.b16 %v156
  %v695 = vunpack.c.l.b16 %v157
  %v696 = vunpack.c.l.b16 %v158
  %v697 = vunpack.c.l.b16 %v159
  %v698 = vunpack.c.l.b16 %v160
  %v699 = vunpack.c.l.b16 %v161
  %v700 = vunpack.c.l.b16 %v162
  %v701 = vunpack.c.l.b16 %v163
  %v702 = vunpack.c.l.b16 %v164
  %v703 = vpack.c.b16 %v688, %v687
  %v704 = vpack.c.b16 %v690, %v689
  %v705 = vpack.c.b16 %v692, %v691
  %v706 = vpack.c.b16 %v694, %v693
  %v707 = vpack.c.b16 %v696, %v695
  %v708 = vpack.c.b16 %v698, %v697
  %v709 = vpack.c.b16 %v700, %v699
  %v710 = vpack.c.b16 %v702, %v701
  %v712 = vsel %vm258, %v670, 0
  %v715 = vsel %vm258, %v703, 0
  %v718 = vsel %vm258, %v704, 0
  %v721 = vsel %vm258, %v705, 0
  %v724 = vsel %vm258, %v706, 0
  %v727 = vsel %vm258, %v707, 0
  %v730 = vsel %vm258, %v708, 0
  %v733 = vsel %vm258, %v709, 0
  %v736 = vsel %vm258, %v710, 0
  %738 = vmatprep.subr.bf16.mxu0 0
  %739 = vmatpush1.bf16.xpose.msra.mxu0 %v736
  %740 = vmatprep.subr.bf16.mxu0 0
  %741 = vmatpush1.bf16.xpose.msra.mxu0 %v733
  %742 = vmatprep.subr.bf16.mxu0 0
  %743 = vmatpush1.bf16.xpose.msra.mxu0 %v730
  %744 = vmatprep.subr.bf16.mxu0 0
  %745 = vmatpush1.bf16.xpose.msra.mxu0 %v727
  %746 = vmatprep.subr.bf16.mxu0 0
  %747 = vmatpush1.bf16.xpose.msra.mxu0 %v724
  %748 = vmatprep.subr.bf16.mxu0 0
  %749 = vmatpush1.bf16.xpose.msra.mxu0 %v721
  %750 = vmatprep.subr.bf16.mxu0 0
  %751 = vmatpush1.bf16.xpose.msra.mxu0 %v718
  %752 = vmatprep.subr.bf16.mxu0 0
  %753 = vmatpush1.bf16.xpose.msra.mxu0 %v715
  %754 = vmatprep.subr.bf16.mxu0 0
  %755 = vmatpush2.bf16.xpose.msra.mxu0 0
  %756 = vmatprep.subr.bf16.mxu0 0
  %757 = vmatpush2.bf16.xpose.msra.mxu0 0
  %758 = vmatprep.subr.bf16.mxu0 0
  %759 = vmatpush2.bf16.xpose.msra.mxu0 0
  %760 = vmatprep.subr.bf16.mxu0 0
  %761 = vmatpush2.bf16.xpose.msra.mxu0 0
  %762 = vmatprep.subr.bf16.mxu0 0
  %763 = vmatpush2.bf16.xpose.msra.mxu0 0
  %764 = vmatprep.subr.bf16.mxu0 0
  %765 = vmatpush2.bf16.xpose.msra.mxu0 0
  %766 = vmatprep.subr.bf16.mxu0 0
  %767 = vmatpush2.bf16.xpose.msra.mxu0 0
  %768 = vmatprep.subr.bf16.mxu0 0
  %769 = vmatpush2.bf16.xpose.msra.mxu0 0
  %770 = vmatprep.mubr.bf16.mxu0 0
  %771 = vmatmul.mubr.bf16.gmra.mxu0 %v712
  %v772 = vpop.f32.mrf.mxu0
  %v773 = vadd.f32 0.0, %v772
  %v774 = vpop.f32.mrf.mxu0
  %v775 = vpop.f32.mrf.mxu0
  %v776 = vadd.f32 0.0, %v775
  %v777 = vpop.f32.mrf.mxu0
  %778 = vdwg.mxu0
  %v781 = vunpack.c.l.b16 %v79
  %v782 = vunpack.c.l.b16 %v80
  %v783 = vpack.c.b16 %v782, %v781
  %v800 = vunpack.c.l.b16 %v165
  %v801 = vunpack.c.l.b16 %v166
  %v802 = vunpack.c.l.b16 %v167
  %v803 = vunpack.c.l.b16 %v168
  %v804 = vunpack.c.l.b16 %v169
  %v805 = vunpack.c.l.b16 %v170
  %v806 = vunpack.c.l.b16 %v171
  %v807 = vunpack.c.l.b16 %v172
  %v808 = vunpack.c.l.b16 %v173
  %v809 = vunpack.c.l.b16 %v174
  %v810 = vunpack.c.l.b16 %v175
  %v811 = vunpack.c.l.b16 %v176
  %v812 = vunpack.c.l.b16 %v177
  %v813 = vunpack.c.l.b16 %v178
  %v814 = vunpack.c.l.b16 %v179
  %v815 = vunpack.c.l.b16 %v180
  %v816 = vpack.c.b16 %v801, %v800
  %v817 = vpack.c.b16 %v803, %v802
  %v818 = vpack.c.b16 %v805, %v804
  %v819 = vpack.c.b16 %v807, %v806
  %v820 = vpack.c.b16 %v809, %v808
  %v821 = vpack.c.b16 %v811, %v810
  %v822 = vpack.c.b16 %v813, %v812
  %v823 = vpack.c.b16 %v815, %v814
  %v825 = vsel %vm258, %v783, 0
  %v828 = vsel %vm258, %v816, 0
  %v831 = vsel %vm258, %v817, 0
  %v834 = vsel %vm258, %v818, 0
  %v837 = vsel %vm258, %v819, 0
  %v840 = vsel %vm258, %v820, 0
  %v843 = vsel %vm258, %v821, 0
  %v846 = vsel %vm258, %v822, 0
  %v849 = vsel %vm258, %v823, 0
  %851 = vmatprep.subr.bf16.mxu0 0
  %852 = vmatpush1.bf16.xpose.msra.mxu0 %v849
  %853 = vmatprep.subr.bf16.mxu0 0
  %854 = vmatpush1.bf16.xpose.msra.mxu0 %v846
  %855 = vmatprep.subr.bf16.mxu0 0
  %856 = vmatpush1.bf16.xpose.msra.mxu0 %v843
  %857 = vmatprep.subr.bf16.mxu0 0
  %858 = vmatpush1.bf16.xpose.msra.mxu0 %v840
  %859 = vmatprep.subr.bf16.mxu0 0
  %860 = vmatpush1.bf16.xpose.msra.mxu0 %v837
  %861 = vmatprep.subr.bf16.mxu0 0
  %862 = vmatpush1.bf16.xpose.msra.mxu0 %v834
  %863 = vmatprep.subr.bf16.mxu0 0
  %864 = vmatpush1.bf16.xpose.msra.mxu0 %v831
  %865 = vmatprep.subr.bf16.mxu0 0
  %866 = vmatpush1.bf16.xpose.msra.mxu0 %v828
  %867 = vmatprep.subr.bf16.mxu0 0
  %868 = vmatpush2.bf16.xpose.msra.mxu0 0
  %869 = vmatprep.subr.bf16.mxu0 0
  %870 = vmatpush2.bf16.xpose.msra.mxu0 0
  %871 = vmatprep.subr.bf16.mxu0 0
  %872 = vmatpush2.bf16.xpose.msra.mxu0 0
  %873 = vmatprep.subr.bf16.mxu0 0
  %874 = vmatpush2.bf16.xpose.msra.mxu0 0
  %875 = vmatprep.subr.bf16.mxu0 0
  %876 = vmatpush2.bf16.xpose.msra.mxu0 0
  %877 = vmatprep.subr.bf16.mxu0 0
  %878 = vmatpush2.bf16.xpose.msra.mxu0 0
  %879 = vmatprep.subr.bf16.mxu0 0
  %880 = vmatpush2.bf16.xpose.msra.mxu0 0
  %881 = vmatprep.subr.bf16.mxu0 0
  %882 = vmatpush2.bf16.xpose.msra.mxu0 0
  %883 = vmatprep.mubr.bf16.mxu0 0
  %884 = vmatmul.mubr.bf16.gmra.mxu0 %v825
  %v885 = vpop.f32.mrf.mxu0
  %v886 = vadd.f32 0.0, %v885
  %v887 = vpop.f32.mrf.mxu0
  %v888 = vpop.f32.mrf.mxu0
  %v889 = vadd.f32 0.0, %v888
  %v890 = vpop.f32.mrf.mxu0
  %891 = vdwg.mxu0
  %v894 = vunpack.c.l.b16 %v81
  %v895 = vunpack.c.l.b16 %v82
  %v896 = vpack.c.b16 %v895, %v894
  %v913 = vunpack.c.l.b16 %v181
  %v914 = vunpack.c.l.b16 %v182
  %v915 = vunpack.c.l.b16 %v183
  %v916 = vunpack.c.l.b16 %v184
  %v917 = vunpack.c.l.b16 %v185
  %v918 = vunpack.c.l.b16 %v186
  %v919 = vunpack.c.l.b16 %v187
  %v920 = vunpack.c.l.b16 %v188
  %v921 = vunpack.c.l.b16 %v189
  %v922 = vunpack.c.l.b16 %v190
  %v923 = vunpack.c.l.b16 %v191
  %v924 = vunpack.c.l.b16 %v192
  %v925 = vunpack.c.l.b16 %v193
  %v926 = vunpack.c.l.b16 %v194
  %v927 = vunpack.c.l.b16 %v195
  %v928 = vunpack.c.l.b16 %v196
  %v929 = vpack.c.b16 %v914, %v913
  %v930 = vpack.c.b16 %v916, %v915
  %v931 = vpack.c.b16 %v918, %v917
  %v932 = vpack.c.b16 %v920, %v919
  %v933 = vpack.c.b16 %v922, %v921
  %v934 = vpack.c.b16 %v924, %v923
  %v935 = vpack.c.b16 %v926, %v925
  %v936 = vpack.c.b16 %v928, %v927
  %v938 = vsel %vm258, %v896, 0
  %v941 = vsel %vm258, %v929, 0
  %v944 = vsel %vm258, %v930, 0
  %v947 = vsel %vm258, %v931, 0
  %v950 = vsel %vm258, %v932, 0
  %v953 = vsel %vm258, %v933, 0
  %v956 = vsel %vm258, %v934, 0
  %v959 = vsel %vm258, %v935, 0
  %v962 = vsel %vm258, %v936, 0
  %964 = vmatprep.subr.bf16.mxu0 0
  %965 = vmatpush1.bf16.xpose.msra.mxu0 %v962
  %966 = vmatprep.subr.bf16.mxu0 0
  %967 = vmatpush1.bf16.xpose.msra.mxu0 %v959
  %968 = vmatprep.subr.bf16.mxu0 0
  %969 = vmatpush1.bf16.xpose.msra.mxu0 %v956
  %970 = vmatprep.subr.bf16.mxu0 0
  %971 = vmatpush1.bf16.xpose.msra.mxu0 %v953
  %972 = vmatprep.subr.bf16.mxu0 0
  %973 = vmatpush1.bf16.xpose.msra.mxu0 %v950
  %974 = vmatprep.subr.bf16.mxu0 0
  %975 = vmatpush1.bf16.xpose.msra.mxu0 %v947
  %976 = vmatprep.subr.bf16.mxu0 0
  %977 = vmatpush1.bf16.xpose.msra.mxu0 %v944
  %978 = vmatprep.subr.bf16.mxu0 0
  %979 = vmatpush1.bf16.xpose.msra.mxu0 %v941
  %980 = vmatprep.subr.bf16.mxu0 0
  %981 = vmatpush2.bf16.xpose.msra.mxu0 0
  %982 = vmatprep.subr.bf16.mxu0 0
  %983 = vmatpush2.bf16.xpose.msra.mxu0 0
  %984 = vmatprep.subr.bf16.mxu0 0
  %985 = vmatpush2.bf16.xpose.msra.mxu0 0
  %986 = vmatprep.subr.bf16.mxu0 0
  %987 = vmatpush2.bf16.xpose.msra.mxu0 0
  %988 = vmatprep.subr.bf16.mxu0 0
  %989 = vmatpush2.bf16.xpose.msra.mxu0 0
  %990 = vmatprep.subr.bf16.mxu0 0
  %991 = vmatpush2.bf16.xpose.msra.mxu0 0
  %992 = vmatprep.subr.bf16.mxu0 0
  %993 = vmatpush2.bf16.xpose.msra.mxu0 0
  %994 = vmatprep.subr.bf16.mxu0 0
  %995 = vmatpush2.bf16.xpose.msra.mxu0 0
  %996 = vmatprep.mubr.bf16.mxu0 0
  %997 = vmatmul.mubr.bf16.gmra.mxu0 %v938
  %v998 = vpop.f32.mrf.mxu0
  %v999 = vadd.f32 0.0, %v998
  %v1000 = vpop.f32.mrf.mxu0
  %v1001 = vpop.f32.mrf.mxu0
  %v1002 = vadd.f32 0.0, %v1001
  %v1003 = vpop.f32.mrf.mxu0
  %1004 = vdwg.mxu0
  %v1007 = vunpack.c.l.b16 %v83
  %v1008 = vunpack.c.l.b16 %v84
  %v1009 = vpack.c.b16 %v1008, %v1007
  %v1026 = vunpack.c.l.b16 %v197
  %v1027 = vunpack.c.l.b16 %v198
  %v1028 = vunpack.c.l.b16 %v199
  %v1029 = vunpack.c.l.b16 %v200
  %v1030 = vunpack.c.l.b16 %v201
  %v1031 = vunpack.c.l.b16 %v202
  %v1032 = vunpack.c.l.b16 %v203
  %v1033 = vunpack.c.l.b16 %v204
  %v1034 = vunpack.c.l.b16 %v205
  %v1035 = vunpack.c.l.b16 %v206
  %v1036 = vunpack.c.l.b16 %v207
  %v1037 = vunpack.c.l.b16 %v208
  %v1038 = vunpack.c.l.b16 %v209
  %v1039 = vunpack.c.l.b16 %v210
  %v1040 = vunpack.c.l.b16 %v211
  %v1041 = vunpack.c.l.b16 %v212
  %v1042 = vpack.c.b16 %v1027, %v1026
  %v1043 = vpack.c.b16 %v1029, %v1028
  %v1044 = vpack.c.b16 %v1031, %v1030
  %v1045 = vpack.c.b16 %v1033, %v1032
  %v1046 = vpack.c.b16 %v1035, %v1034
  %v1047 = vpack.c.b16 %v1037, %v1036
  %v1048 = vpack.c.b16 %v1039, %v1038
  %v1049 = vpack.c.b16 %v1041, %v1040
  %v1051 = vsel %vm258, %v1009, 0
  %v1054 = vsel %vm258, %v1042, 0
  %v1057 = vsel %vm258, %v1043, 0
  %v1060 = vsel %vm258, %v1044, 0
  %v1063 = vsel %vm258, %v1045, 0
  %v1066 = vsel %vm258, %v1046, 0
  %v1069 = vsel %vm258, %v1047, 0
  %v1072 = vsel %vm258, %v1048, 0
  %v1075 = vsel %vm258, %v1049, 0
  %1077 = vmatprep.subr.bf16.mxu0 0
  %1078 = vmatpush1.bf16.xpose.msra.mxu0 %v1075
  %1079 = vmatprep.subr.bf16.mxu0 0
  %1080 = vmatpush1.bf16.xpose.msra.mxu0 %v1072
  %1081 = vmatprep.subr.bf16.mxu0 0
  %1082 = vmatpush1.bf16.xpose.msra.mxu0 %v1069
  %1083 = vmatprep.subr.bf16.mxu0 0
  %1084 = vmatpush1.bf16.xpose.msra.mxu0 %v1066
  %1085 = vmatprep.subr.bf16.mxu0 0
  %1086 = vmatpush1.bf16.xpose.msra.mxu0 %v1063
  %1087 = vmatprep.subr.bf16.mxu0 0
  %1088 = vmatpush1.bf16.xpose.msra.mxu0 %v1060
  %1089 = vmatprep.subr.bf16.mxu0 0
  %1090 = vmatpush1.bf16.xpose.msra.mxu0 %v1057
  %1091 = vmatprep.subr.bf16.mxu0 0
  %1092 = vmatpush1.bf16.xpose.msra.mxu0 %v1054
  %1093 = vmatprep.subr.bf16.mxu0 0
  %1094 = vmatpush2.bf16.xpose.msra.mxu0 0
  %1095 = vmatprep.subr.bf16.mxu0 0
  %1096 = vmatpush2.bf16.xpose.msra.mxu0 0
  %1097 = vmatprep.subr.bf16.mxu0 0
  %1098 = vmatpush2.bf16.xpose.msra.mxu0 0
  %1099 = vmatprep.subr.bf16.mxu0 0
  %1100 = vmatpush2.bf16.xpose.msra.mxu0 0
  %1101 = vmatprep.subr.bf16.mxu0 0
  %1102 = vmatpush2.bf16.xpose.msra.mxu0 0
  %1103 = vmatprep.subr.bf16.mxu0 0
  %1104 = vmatpush2.bf16.xpose.msra.mxu0 0
  %1105 = vmatprep.subr.bf16.mxu0 0
  %1106 = vmatpush2.bf16.xpose.msra.mxu0 0
  %1107 = vmatprep.subr.bf16.mxu0 0
  %1108 = vmatpush2.bf16.xpose.msra.mxu0 0
  %1109 = vmatprep.mubr.bf16.mxu0 0
  %1110 = vmatmul.mubr.bf16.gmra.mxu0 %v1051
  %v1111 = vpop.f32.mrf.mxu0
  %v1112 = vadd.f32 0.0, %v1111
  %v1113 = vpop.f32.mrf.mxu0
  %v1114 = vpop.f32.mrf.mxu0
  %v1115 = vadd.f32 0.0, %v1114
  %v1116 = vpop.f32.mrf.mxu0
  %1117 = vdwg.mxu0
  %v1118 = vmul.f32 %v321, 0.35355338
  %v1119 = vmul.f32 %v324, 0.35355338
  %v1120 = vmul.f32 %v434, 0.35355338
  %v1121 = vmul.f32 %v437, 0.35355338
  %v1122 = vmul.f32 %v547, 0.35355338
  %v1123 = vmul.f32 %v550, 0.35355338
  %v1124 = vmul.f32 %v660, 0.35355338
  %v1125 = vmul.f32 %v663, 0.35355338
  %v1126 = vmul.f32 %v773, 0.35355338
  %v1127 = vmul.f32 %v776, 0.35355338
  %v1128 = vmul.f32 %v886, 0.35355338
  %v1129 = vmul.f32 %v889, 0.35355338
  %v1130 = vmul.f32 %v999, 0.35355338
  %v1131 = vmul.f32 %v1002, 0.35355338
  %v1132 = vmul.f32 %v1112, 0.35355338
  %v1133 = vmul.f32 %v1115, 0.35355338
  %s1134 = smul.u32 0, 128
  %v1135 = vlaneseq
  %v1136 = vand.u32 %v1135, 127
  %v1137 = vstv %s1134
  %v1138 = vadd.s32 %v1137, %v1136
  %vm1139 = vcmp.lt.s32.totalorder %v1138, 16
  %v1140 = vsel %vm1139, %v1118, -1e+30
  %v1141 = vsel %vm1139, %v1119, -1e+30
  %v1142 = vsel %vm1139, %v1120, -1e+30
  %v1143 = vsel %vm1139, %v1121, -1e+30
  %v1144 = vsel %vm1139, %v1122, -1e+30
  %v1145 = vsel %vm1139, %v1123, -1e+30
  %v1146 = vsel %vm1139, %v1124, -1e+30
  %v1147 = vsel %vm1139, %v1125, -1e+30
  %v1148 = vsel %vm1139, %v1126, -1e+30
  %v1149 = vsel %vm1139, %v1127, -1e+30
  %v1150 = vsel %vm1139, %v1128, -1e+30
  %v1151 = vsel %vm1139, %v1129, -1e+30
  %v1152 = vsel %vm1139, %v1130, -1e+30
  %v1153 = vsel %vm1139, %v1131, -1e+30
  %v1154 = vsel %vm1139, %v1132, -1e+30
  %v1155 = vsel %vm1139, %v1133, -1e+30
  %v1156 = vld [vmem:[#allocation2] sm:$0xff]
  %v1157 = vld [vmem:[#allocation2 + $0x8] sm:$0xff]
  %v1158 = vld [vmem:[#allocation2 + $0x10] sm:$0xff]
  %v1159 = vld [vmem:[#allocation2 + $0x18] sm:$0xff]
  %v1160 = vld [vmem:[#allocation2 + $0x20] sm:$0xff]
  %v1161 = vld [vmem:[#allocation2 + $0x28] sm:$0xff]
  %v1162 = vld [vmem:[#allocation2 + $0x30] sm:$0xff]
  %v1163 = vld [vmem:[#allocation2 + $0x38] sm:$0xff]
  %v1164 = vld [vmem:[#allocation2 + $0x40] sm:$0xff]
  %v1165 = vld [vmem:[#allocation2 + $0x48] sm:$0xff]
  %v1166 = vld [vmem:[#allocation2 + $0x50] sm:$0xff]
  %v1167 = vld [vmem:[#allocation2 + $0x58] sm:$0xff]
  %v1168 = vld [vmem:[#allocation2 + $0x60] sm:$0xff]
  %v1169 = vld [vmem:[#allocation2 + $0x68] sm:$0xff]
  %v1170 = vld [vmem:[#allocation2 + $0x70] sm:$0xff]
  %v1171 = vld [vmem:[#allocation2 + $0x78] sm:$0xff]
  %1172 = vmax.xlane.f32.xlu0 %v1140
  %v1173 = vpop.xlane.xlu0 %1172
  %1174 = vmax.xlane.f32.xlu0 %v1141
  %v1175 = vpop.xlane.xlu0 %1174
  %1176 = vmax.xlane.f32.xlu0 %v1142
  %v1177 = vpop.xlane.xlu0 %1176
  %1178 = vmax.xlane.f32.xlu0 %v1143
  %v1179 = vpop.xlane.xlu0 %1178
  %1180 = vmax.xlane.f32.xlu0 %v1144
  %v1181 = vpop.xlane.xlu0 %1180
  %1182 = vmax.xlane.f32.xlu0 %v1145
  %v1183 = vpop.xlane.xlu0 %1182
  %1184 = vmax.xlane.f32.xlu0 %v1146
  %v1185 = vpop.xlane.xlu0 %1184
  %1186 = vmax.xlane.f32.xlu0 %v1147
  %v1187 = vpop.xlane.xlu0 %1186
  %1188 = vmax.xlane.f32.xlu0 %v1148
  %v1189 = vpop.xlane.xlu0 %1188
  %1190 = vmax.xlane.f32.xlu0 %v1149
  %v1191 = vpop.xlane.xlu0 %1190
  %1192 = vmax.xlane.f32.xlu0 %v1150
  %v1193 = vpop.xlane.xlu0 %1192
  %1194 = vmax.xlane.f32.xlu0 %v1151
  %v1195 = vpop.xlane.xlu0 %1194
  %1196 = vmax.xlane.f32.xlu0 %v1152
  %v1197 = vpop.xlane.xlu0 %1196
  %1198 = vmax.xlane.f32.xlu0 %v1153
  %v1199 = vpop.xlane.xlu0 %1198
  %1200 = vmax.xlane.f32.xlu0 %v1154
  %v1201 = vpop.xlane.xlu0 %1200
  %1202 = vmax.xlane.f32.xlu0 %v1155
  %v1203 = vpop.xlane.xlu0 %1202
  %v1204 = vmax.f32 %v1156, %v1173
  %v1205 = vmax.f32 %v1157, %v1175
  %v1206 = vmax.f32 %v1158, %v1177
  %v1207 = vmax.f32 %v1159, %v1179
  %v1208 = vmax.f32 %v1160, %v1181
  %v1209 = vmax.f32 %v1161, %v1183
  %v1210 = vmax.f32 %v1162, %v1185
  %v1211 = vmax.f32 %v1163, %v1187
  %v1212 = vmax.f32 %v1164, %v1189
  %v1213 = vmax.f32 %v1165, %v1191
  %v1214 = vmax.f32 %v1166, %v1193
  %v1215 = vmax.f32 %v1167, %v1195
  %v1216 = vmax.f32 %v1168, %v1197
  %v1217 = vmax.f32 %v1169, %v1199
  %v1218 = vmax.f32 %v1170, %v1201
  %v1219 = vmax.f32 %v1171, %v1203
  %v1220 = vsub.f32 %v1156, %v1204
  %v1221 = vsub.f32 %v1157, %v1205
  %v1222 = vsub.f32 %v1158, %v1206
  %v1223 = vsub.f32 %v1159, %v1207
  %v1224 = vsub.f32 %v1160, %v1208
  %v1225 = vsub.f32 %v1161, %v1209
  %v1226 = vsub.f32 %v1162, %v1210
  %v1227 = vsub.f32 %v1163, %v1211
  %v1228 = vsub.f32 %v1164, %v1212
  %v1229 = vsub.f32 %v1165, %v1213
  %v1230 = vsub.f32 %v1166, %v1214
  %v1231 = vsub.f32 %v1167, %v1215
  %v1232 = vsub.f32 %v1168, %v1216
  %v1233 = vsub.f32 %v1169, %v1217
  %v1234 = vsub.f32 %v1170, %v1218
  %v1235 = vsub.f32 %v1171, %v1219
  %v1236 = vmul.f32 %v1220, 1.442695
  %v1237 = vpow.pop %v1236
  %v1238 = vmul.f32 %v1221, 1.442695
  %v1239 = vpow.pop %v1238
  %v1240 = vmul.f32 %v1222, 1.442695
  %v1241 = vpow.pop %v1240
  %v1242 = vmul.f32 %v1223, 1.442695
  %v1243 = vpow.pop %v1242
  %v1244 = vmul.f32 %v1224, 1.442695
  %v1245 = vpow.pop %v1244
  %v1246 = vmul.f32 %v1225, 1.442695
  %v1247 = vpow.pop %v1246
  %v1248 = vmul.f32 %v1226, 1.442695
  %v1249 = vpow.pop %v1248
  %v1250 = vmul.f32 %v1227, 1.442695
  %v1251 = vpow.pop %v1250
  %v1252 = vmul.f32 %v1228, 1.442695
  %v1253 = vpow.pop %v1252
  %v1254 = vmul.f32 %v1229, 1.442695
  %v1255 = vpow.pop %v1254
  %v1256 = vmul.f32 %v1230, 1.442695
  %v1257 = vpow.pop %v1256
  %v1258 = vmul.f32 %v1231, 1.442695
  %v1259 = vpow.pop %v1258
  %v1260 = vmul.f32 %v1232, 1.442695
  %v1261 = vpow.pop %v1260
  %v1262 = vmul.f32 %v1233, 1.442695
  %v1263 = vpow.pop %v1262
  %v1264 = vmul.f32 %v1234, 1.442695
  %v1265 = vpow.pop %v1264
  %v1266 = vmul.f32 %v1235, 1.442695
  %v1267 = vpow.pop %v1266
  %1269 = vset.pattern.permute.xlu0 0
  %1270 = vperm.xlu0 %1269, %v1204
  %v1271 = vpop.permute.xlu0 %1270
  %1274 = vset.pattern.permute.xlu0 0
  %1275 = vperm.xlu0 %1274, %v1205
  %v1276 = vpop.permute.xlu0 %1275
  %1279 = vset.pattern.permute.xlu0 0
  %1280 = vperm.xlu0 %1279, %v1206
  %v1281 = vpop.permute.xlu0 %1280
  %1284 = vset.pattern.permute.xlu0 0
  %1285 = vperm.xlu0 %1284, %v1207
  %v1286 = vpop.permute.xlu0 %1285
  %1289 = vset.pattern.permute.xlu0 0
  %1290 = vperm.xlu0 %1289, %v1208
  %v1291 = vpop.permute.xlu0 %1290
  %1294 = vset.pattern.permute.xlu0 0
  %1295 = vperm.xlu0 %1294, %v1209
  %v1296 = vpop.permute.xlu0 %1295
  %1299 = vset.pattern.permute.xlu0 0
  %1300 = vperm.xlu0 %1299, %v1210
  %v1301 = vpop.permute.xlu0 %1300
  %1304 = vset.pattern.permute.xlu0 0
  %1305 = vperm.xlu0 %1304, %v1211
  %v1306 = vpop.permute.xlu0 %1305
  %1309 = vset.pattern.permute.xlu0 0
  %1310 = vperm.xlu0 %1309, %v1212
  %v1311 = vpop.permute.xlu0 %1310
  %1314 = vset.pattern.permute.xlu0 0
  %1315 = vperm.xlu0 %1314, %v1213
  %v1316 = vpop.permute.xlu0 %1315
  %1319 = vset.pattern.permute.xlu0 0
  %1320 = vperm.xlu0 %1319, %v1214
  %v1321 = vpop.permute.xlu0 %1320
  %1324 = vset.pattern.permute.xlu0 0
  %1325 = vperm.xlu0 %1324, %v1215
  %v1326 = vpop.permute.xlu0 %1325
  %1329 = vset.pattern.permute.xlu0 0
  %1330 = vperm.xlu0 %1329, %v1216
  %v1331 = vpop.permute.xlu0 %1330
  %1334 = vset.pattern.permute.xlu0 0
  %1335 = vperm.xlu0 %1334, %v1217
  %v1336 = vpop.permute.xlu0 %1335
  %1339 = vset.pattern.permute.xlu0 0
  %1340 = vperm.xlu0 %1339, %v1218
  %v1341 = vpop.permute.xlu0 %1340
  %1344 = vset.pattern.permute.xlu0 0
  %1345 = vperm.xlu0 %1344, %v1219
  %v1346 = vpop.permute.xlu0 %1345
  %v1348 = vsub.f32 %v1140, %v1271
  %v1349 = vsub.f32 %v1141, %v1276
  %v1350 = vsub.f32 %v1142, %v1281
  %v1351 = vsub.f32 %v1143, %v1286
  %v1352 = vsub.f32 %v1144, %v1291
  %v1353 = vsub.f32 %v1145, %v1296
  %v1354 = vsub.f32 %v1146, %v1301
  %v1355 = vsub.f32 %v1147, %v1306
  %v1356 = vsub.f32 %v1148, %v1311
  %v1357 = vsub.f32 %v1149, %v1316
  %v1358 = vsub.f32 %v1150, %v1321
  %v1359 = vsub.f32 %v1151, %v1326
  %v1360 = vsub.f32 %v1152, %v1331
  %v1361 = vsub.f32 %v1153, %v1336
  %v1362 = vsub.f32 %v1154, %v1341
  %v1363 = vsub.f32 %v1155, %v1346
  %v1364 = vmul.f32 %v1348, 1.442695
  %v1365 = vpow.pop %v1364
  %v1366 = vmul.f32 %v1349, 1.442695
  %v1367 = vpow.pop %v1366
  %v1368 = vmul.f32 %v1350, 1.442695
  %v1369 = vpow.pop %v1368
  %v1370 = vmul.f32 %v1351, 1.442695
  %v1371 = vpow.pop %v1370
  %v1372 = vmul.f32 %v1352, 1.442695
  %v1373 = vpow.pop %v1372
  %v1374 = vmul.f32 %v1353, 1.442695
  %v1375 = vpow.pop %v1374
  %v1376 = vmul.f32 %v1354, 1.442695
  %v1377 = vpow.pop %v1376
  %v1378 = vmul.f32 %v1355, 1.442695
  %v1379 = vpow.pop %v1378
  %v1380 = vmul.f32 %v1356, 1.442695
  %v1381 = vpow.pop %v1380
  %v1382 = vmul.f32 %v1357, 1.442695
  %v1383 = vpow.pop %v1382
  %v1384 = vmul.f32 %v1358, 1.442695
  %v1385 = vpow.pop %v1384
  %v1386 = vmul.f32 %v1359, 1.442695
  %v1387 = vpow.pop %v1386
  %v1388 = vmul.f32 %v1360, 1.442695
  %v1389 = vpow.pop %v1388
  %v1390 = vmul.f32 %v1361, 1.442695
  %v1391 = vpow.pop %v1390
  %v1392 = vmul.f32 %v1362, 1.442695
  %v1393 = vpow.pop %v1392
  %v1394 = vmul.f32 %v1363, 1.442695
  %v1395 = vpow.pop %v1394
  %v1396 = vld [vmem:[#allocation3] sm:$0xff]
  %v1397 = vld [vmem:[#allocation3 + $0x8] sm:$0xff]
  %v1398 = vld [vmem:[#allocation3 + $0x10] sm:$0xff]
  %v1399 = vld [vmem:[#allocation3 + $0x18] sm:$0xff]
  %v1400 = vld [vmem:[#allocation3 + $0x20] sm:$0xff]
  %v1401 = vld [vmem:[#allocation3 + $0x28] sm:$0xff]
  %v1402 = vld [vmem:[#allocation3 + $0x30] sm:$0xff]
  %v1403 = vld [vmem:[#allocation3 + $0x38] sm:$0xff]
  %v1404 = vld [vmem:[#allocation3 + $0x40] sm:$0xff]
  %v1405 = vld [vmem:[#allocation3 + $0x48] sm:$0xff]
  %v1406 = vld [vmem:[#allocation3 + $0x50] sm:$0xff]
  %v1407 = vld [vmem:[#allocation3 + $0x58] sm:$0xff]
  %v1408 = vld [vmem:[#allocation3 + $0x60] sm:$0xff]
  %v1409 = vld [vmem:[#allocation3 + $0x68] sm:$0xff]
  %v1410 = vld [vmem:[#allocation3 + $0x70] sm:$0xff]
  %v1411 = vld [vmem:[#allocation3 + $0x78] sm:$0xff]
  %v1412 = vmul.f32 %v1237, %v1396
  %v1413 = vmul.f32 %v1239, %v1397
  %v1414 = vmul.f32 %v1241, %v1398
  %v1415 = vmul.f32 %v1243, %v1399
  %v1416 = vmul.f32 %v1245, %v1400
  %v1417 = vmul.f32 %v1247, %v1401
  %v1418 = vmul.f32 %v1249, %v1402
  %v1419 = vmul.f32 %v1251, %v1403
  %v1420 = vmul.f32 %v1253, %v1404
  %v1421 = vmul.f32 %v1255, %v1405
  %v1422 = vmul.f32 %v1257, %v1406
  %v1423 = vmul.f32 %v1259, %v1407
  %v1424 = vmul.f32 %v1261, %v1408
  %v1425 = vmul.f32 %v1263, %v1409
  %v1426 = vmul.f32 %v1265, %v1410
  %v1427 = vmul.f32 %v1267, %v1411
  %1428 = vadd.xlane.f32.xlu0 %v1365
  %v1429 = vpop.xlane.xlu0 %1428
  %1430 = vadd.xlane.f32.xlu0 %v1367
  %v1431 = vpop.xlane.xlu0 %1430
  %1432 = vadd.xlane.f32.xlu0 %v1369
  %v1433 = vpop.xlane.xlu0 %1432
  %1434 = vadd.xlane.f32.xlu0 %v1371
  %v1435 = vpop.xlane.xlu0 %1434
  %1436 = vadd.xlane.f32.xlu0 %v1373
  %v1437 = vpop.xlane.xlu0 %1436
  %1438 = vadd.xlane.f32.xlu0 %v1375
  %v1439 = vpop.xlane.xlu0 %1438
  %1440 = vadd.xlane.f32.xlu0 %v1377
  %v1441 = vpop.xlane.xlu0 %1440
  %1442 = vadd.xlane.f32.xlu0 %v1379
  %v1443 = vpop.xlane.xlu0 %1442
  %1444 = vadd.xlane.f32.xlu0 %v1381
  %v1445 = vpop.xlane.xlu0 %1444
  %1446 = vadd.xlane.f32.xlu0 %v1383
  %v1447 = vpop.xlane.xlu0 %1446
  %1448 = vadd.xlane.f32.xlu0 %v1385
  %v1449 = vpop.xlane.xlu0 %1448
  %1450 = vadd.xlane.f32.xlu0 %v1387
  %v1451 = vpop.xlane.xlu0 %1450
  %1452 = vadd.xlane.f32.xlu0 %v1389
  %v1453 = vpop.xlane.xlu0 %1452
  %1454 = vadd.xlane.f32.xlu0 %v1391
  %v1455 = vpop.xlane.xlu0 %1454
  %1456 = vadd.xlane.f32.xlu0 %v1393
  %v1457 = vpop.xlane.xlu0 %1456
  %1458 = vadd.xlane.f32.xlu0 %v1395
  %v1459 = vpop.xlane.xlu0 %1458
  %v1460 = vadd.f32 %v1412, %v1429
  %v1461 = vadd.f32 %v1413, %v1431
  %v1462 = vadd.f32 %v1414, %v1433
  %v1463 = vadd.f32 %v1415, %v1435
  %v1464 = vadd.f32 %v1416, %v1437
  %v1465 = vadd.f32 %v1417, %v1439
  %v1466 = vadd.f32 %v1418, %v1441
  %v1467 = vadd.f32 %v1419, %v1443
  %v1468 = vadd.f32 %v1420, %v1445
  %v1469 = vadd.f32 %v1421, %v1447
  %v1470 = vadd.f32 %v1422, %v1449
  %v1471 = vadd.f32 %v1423, %v1451
  %v1472 = vadd.f32 %v1424, %v1453
  %v1473 = vadd.f32 %v1425, %v1455
  %v1474 = vadd.f32 %v1426, %v1457
  %v1475 = vadd.f32 %v1427, %v1459
  %vm1476 = vcmask 7168
  %1477 = vst.msk [vmem:[#allocation3] sm:$0xff] %vm1476, %v1460
  %1478 = vst.msk [vmem:[#allocation3 + $0x8] sm:$0xff] %vm1476, %v1461
  %1479 = vst.msk [vmem:[#allocation3 + $0x10] sm:$0xff] %vm1476, %v1462
  %1480 = vst.msk [vmem:[#allocation3 + $0x18] sm:$0xff] %vm1476, %v1463
  %1481 = vst.msk [vmem:[#allocation3 + $0x20] sm:$0xff] %vm1476, %v1464
  %1482 = vst.msk [vmem:[#allocation3 + $0x28] sm:$0xff] %vm1476, %v1465
  %1483 = vst.msk [vmem:[#allocation3 + $0x30] sm:$0xff] %vm1476, %v1466
  %1484 = vst.msk [vmem:[#allocation3 + $0x38] sm:$0xff] %vm1476, %v1467
  %1485 = vst.msk [vmem:[#allocation3 + $0x40] sm:$0xff] %vm1476, %v1468
  %1486 = vst.msk [vmem:[#allocation3 + $0x48] sm:$0xff] %vm1476, %v1469
  %1487 = vst.msk [vmem:[#allocation3 + $0x50] sm:$0xff] %vm1476, %v1470
  %1488 = vst.msk [vmem:[#allocation3 + $0x58] sm:$0xff] %vm1476, %v1471
  %1489 = vst.msk [vmem:[#allocation3 + $0x60] sm:$0xff] %vm1476, %v1472
  %1490 = vst.msk [vmem:[#allocation3 + $0x68] sm:$0xff] %vm1476, %v1473
  %1491 = vst.msk [vmem:[#allocation3 + $0x70] sm:$0xff] %vm1476, %v1474
  %1492 = vst.msk [vmem:[#allocation3 + $0x78] sm:$0xff] %vm1476, %v1475
  %v1493 = vld [vmem:[#allocation4] sm:$0xff]
  %v1494 = vld [vmem:[#allocation4 + $0x8] sm:$0xff]
  %v1495 = vld [vmem:[#allocation4 + $0x10] sm:$0xff]
  %v1496 = vld [vmem:[#allocation4 + $0x18] sm:$0xff]
  %v1497 = vld [vmem:[#allocation4 + $0x20] sm:$0xff]
  %v1498 = vld [vmem:[#allocation4 + $0x28] sm:$0xff]
  %v1499 = vld [vmem:[#allocation4 + $0x30] sm:$0xff]
  %v1500 = vld [vmem:[#allocation4 + $0x38] sm:$0xff]
  %v1501 = vld [vmem:[#allocation4 + $0x40] sm:$0xff]
  %v1502 = vld [vmem:[#allocation4 + $0x48] sm:$0xff]
  %v1503 = vld [vmem:[#allocation4 + $0x50] sm:$0xff]
  %v1504 = vld [vmem:[#allocation4 + $0x58] sm:$0xff]
  %v1505 = vld [vmem:[#allocation4 + $0x60] sm:$0xff]
  %v1506 = vld [vmem:[#allocation4 + $0x68] sm:$0xff]
  %v1507 = vld [vmem:[#allocation4 + $0x70] sm:$0xff]
  %v1508 = vld [vmem:[#allocation4 + $0x78] sm:$0xff]
  %1510 = vset.pattern.permute.xlu0 0
  %1511 = vperm.xlu0 %1510, %v1237
  %v1512 = vpop.permute.xlu0 %1511
  %1515 = vset.pattern.permute.xlu0 0
  %1516 = vperm.xlu0 %1515, %v1239
  %v1517 = vpop.permute.xlu0 %1516
  %1520 = vset.pattern.permute.xlu0 0
  %1521 = vperm.xlu0 %1520, %v1241
  %v1522 = vpop.permute.xlu0 %1521
  %1525 = vset.pattern.permute.xlu0 0
  %1526 = vperm.xlu0 %1525, %v1243
  %v1527 = vpop.permute.xlu0 %1526
  %1530 = vset.pattern.permute.xlu0 0
  %1531 = vperm.xlu0 %1530, %v1245
  %v1532 = vpop.permute.xlu0 %1531
  %1535 = vset.pattern.permute.xlu0 0
  %1536 = vperm.xlu0 %1535, %v1247
  %v1537 = vpop.permute.xlu0 %1536
  %1540 = vset.pattern.permute.xlu0 0
  %1541 = vperm.xlu0 %1540, %v1249
  %v1542 = vpop.permute.xlu0 %1541
  %1545 = vset.pattern.permute.xlu0 0
  %1546 = vperm.xlu0 %1545, %v1251
  %v1547 = vpop.permute.xlu0 %1546
  %1550 = vset.pattern.permute.xlu0 0
  %1551 = vperm.xlu0 %1550, %v1253
  %v1552 = vpop.permute.xlu0 %1551
  %1555 = vset.pattern.permute.xlu0 0
  %1556 = vperm.xlu0 %1555, %v1255
  %v1557 = vpop.permute.xlu0 %1556
  %1560 = vset.pattern.permute.xlu0 0
  %1561 = vperm.xlu0 %1560, %v1257
  %v1562 = vpop.permute.xlu0 %1561
  %1565 = vset.pattern.permute.xlu0 0
  %1566 = vperm.xlu0 %1565, %v1259
  %v1567 = vpop.permute.xlu0 %1566
  %1570 = vset.pattern.permute.xlu0 0
  %1571 = vperm.xlu0 %1570, %v1261
  %v1572 = vpop.permute.xlu0 %1571
  %1575 = vset.pattern.permute.xlu0 0
  %1576 = vperm.xlu0 %1575, %v1263
  %v1577 = vpop.permute.xlu0 %1576
  %1580 = vset.pattern.permute.xlu0 0
  %1581 = vperm.xlu0 %1580, %v1265
  %v1582 = vpop.permute.xlu0 %1581
  %1585 = vset.pattern.permute.xlu0 0
  %1586 = vperm.xlu0 %1585, %v1267
  %v1587 = vpop.permute.xlu0 %1586
  %v1589 = vmul.f32 %v1512, %v1493
  %v1590 = vmul.f32 %v1517, %v1494
  %v1591 = vmul.f32 %v1522, %v1495
  %v1592 = vmul.f32 %v1527, %v1496
  %v1593 = vmul.f32 %v1532, %v1497
  %v1594 = vmul.f32 %v1537, %v1498
  %v1595 = vmul.f32 %v1542, %v1499
  %v1596 = vmul.f32 %v1547, %v1500
  %v1597 = vmul.f32 %v1552, %v1501
  %v1598 = vmul.f32 %v1557, %v1502
  %v1599 = vmul.f32 %v1562, %v1503
  %v1600 = vmul.f32 %v1567, %v1504
  %v1601 = vmul.f32 %v1572, %v1505
  %v1602 = vmul.f32 %v1577, %v1506
  %v1603 = vmul.f32 %v1582, %v1507
  %v1604 = vmul.f32 %v1587, %v1508
  %v1605 = vpack.c.bf16 %v1367, %v1365
  %v1606 = vpack.c.bf16 %v1371, %v1369
  %v1607 = vpack.c.bf16 %v1375, %v1373
  %v1608 = vpack.c.bf16 %v1379, %v1377
  %v1609 = vpack.c.bf16 %v1383, %v1381
  %v1610 = vpack.c.bf16 %v1387, %v1385
  %v1611 = vpack.c.bf16 %v1391, %v1389
  %v1612 = vpack.c.bf16 %v1395, %v1393
  %v1613 = vld [vmem:[%s2] sm:$0xf]
  %v1614 = vld [vmem:[%s2 + $0x4] sm:$0xf]
  %v1615 = vld [vmem:[%s2 + $0x8] sm:$0xf]
  %v1616 = vld [vmem:[%s2 + $0xc] sm:$0xf]
  %v1617 = vld [vmem:[%s2 + $0x10] sm:$0xf]
  %v1618 = vld [vmem:[%s2 + $0x14] sm:$0xf]
  %v1619 = vld [vmem:[%s2 + $0x18] sm:$0xf]
  %v1620 = vld [vmem:[%s2 + $0x1c] sm:$0xf]
  %v1621 = vld [vmem:[%s2 + $0x20] sm:$0xf]
  %v1622 = vld [vmem:[%s2 + $0x24] sm:$0xf]
  %v1623 = vld [vmem:[%s2 + $0x28] sm:$0xf]
  %v1624 = vld [vmem:[%s2 + $0x2c] sm:$0xf]
  %v1625 = vld [vmem:[%s2 + $0x30] sm:$0xf]
  %v1626 = vld [vmem:[%s2 + $0x34] sm:$0xf]
  %v1627 = vld [vmem:[%s2 + $0x38] sm:$0xf]
  %v1628 = vld [vmem:[%s2 + $0x3c] sm:$0xf]
  %v1629 = vld [vmem:[%s2 + $0x40] sm:$0xf]
  %v1630 = vld [vmem:[%s2 + $0x44] sm:$0xf]
  %v1631 = vld [vmem:[%s2 + $0x48] sm:$0xf]
  %v1632 = vld [vmem:[%s2 + $0x4c] sm:$0xf]
  %v1633 = vld [vmem:[%s2 + $0x50] sm:$0xf]
  %v1634 = vld [vmem:[%s2 + $0x54] sm:$0xf]
  %v1635 = vld [vmem:[%s2 + $0x58] sm:$0xf]
  %v1636 = vld [vmem:[%s2 + $0x5c] sm:$0xf]
  %v1637 = vld [vmem:[%s2 + $0x60] sm:$0xf]
  %v1638 = vld [vmem:[%s2 + $0x64] sm:$0xf]
  %v1639 = vld [vmem:[%s2 + $0x68] sm:$0xf]
  %v1640 = vld [vmem:[%s2 + $0x6c] sm:$0xf]
  %v1641 = vld [vmem:[%s2 + $0x70] sm:$0xf]
  %v1642 = vld [vmem:[%s2 + $0x74] sm:$0xf]
  %v1643 = vld [vmem:[%s2 + $0x78] sm:$0xf]
  %v1644 = vld [vmem:[%s2 + $0x7c] sm:$0xf]
  %v1645 = vld [vmem:[%s2 + $0x80] sm:$0xf]
  %v1646 = vld [vmem:[%s2 + $0x84] sm:$0xf]
  %v1647 = vld [vmem:[%s2 + $0x88] sm:$0xf]
  %v1648 = vld [vmem:[%s2 + $0x8c] sm:$0xf]
  %v1649 = vld [vmem:[%s2 + $0x90] sm:$0xf]
  %v1650 = vld [vmem:[%s2 + $0x94] sm:$0xf]
  %v1651 = vld [vmem:[%s2 + $0x98] sm:$0xf]
  %v1652 = vld [vmem:[%s2 + $0x9c] sm:$0xf]
  %v1653 = vld [vmem:[%s2 + $0xa0] sm:$0xf]
  %v1654 = vld [vmem:[%s2 + $0xa4] sm:$0xf]
  %v1655 = vld [vmem:[%s2 + $0xa8] sm:$0xf]
  %v1656 = vld [vmem:[%s2 + $0xac] sm:$0xf]
  %v1657 = vld [vmem:[%s2 + $0xb0] sm:$0xf]
  %v1658 = vld [vmem:[%s2 + $0xb4] sm:$0xf]
  %v1659 = vld [vmem:[%s2 + $0xb8] sm:$0xf]
  %v1660 = vld [vmem:[%s2 + $0xbc] sm:$0xf]
  %v1661 = vld [vmem:[%s2 + $0xc0] sm:$0xf]
  %v1662 = vld [vmem:[%s2 + $0xc4] sm:$0xf]
  %v1663 = vld [vmem:[%s2 + $0xc8] sm:$0xf]
  %v1664 = vld [vmem:[%s2 + $0xcc] sm:$0xf]
  %v1665 = vld [vmem:[%s2 + $0xd0] sm:$0xf]
  %v1666 = vld [vmem:[%s2 + $0xd4] sm:$0xf]
  %v1667 = vld [vmem:[%s2 + $0xd8] sm:$0xf]
  %v1668 = vld [vmem:[%s2 + $0xdc] sm:$0xf]
  %v1669 = vld [vmem:[%s2 + $0xe0] sm:$0xf]
  %v1670 = vld [vmem:[%s2 + $0xe4] sm:$0xf]
  %v1671 = vld [vmem:[%s2 + $0xe8] sm:$0xf]
  %v1672 = vld [vmem:[%s2 + $0xec] sm:$0xf]
  %v1673 = vld [vmem:[%s2 + $0xf0] sm:$0xf]
  %v1674 = vld [vmem:[%s2 + $0xf4] sm:$0xf]
  %v1675 = vld [vmem:[%s2 + $0xf8] sm:$0xf]
  %v1676 = vld [vmem:[%s2 + $0xfc] sm:$0xf]
  %v1677 = vld [vmem:[%s2 + $0x100] sm:$0xf]
  %v1678 = vld [vmem:[%s2 + $0x104] sm:$0xf]
  %v1679 = vld [vmem:[%s2 + $0x108] sm:$0xf]
  %v1680 = vld [vmem:[%s2 + $0x10c] sm:$0xf]
  %v1681 = vld [vmem:[%s2 + $0x110] sm:$0xf]
  %v1682 = vld [vmem:[%s2 + $0x114] sm:$0xf]
  %v1683 = vld [vmem:[%s2 + $0x118] sm:$0xf]
  %v1684 = vld [vmem:[%s2 + $0x11c] sm:$0xf]
  %v1685 = vld [vmem:[%s2 + $0x120] sm:$0xf]
  %v1686 = vld [vmem:[%s2 + $0x124] sm:$0xf]
  %v1687 = vld [vmem:[%s2 + $0x128] sm:$0xf]
  %v1688 = vld [vmem:[%s2 + $0x12c] sm:$0xf]
  %v1689 = vld [vmem:[%s2 + $0x130] sm:$0xf]
  %v1690 = vld [vmem:[%s2 + $0x134] sm:$0xf]
  %v1691 = vld [vmem:[%s2 + $0x138] sm:$0xf]
  %v1692 = vld [vmem:[%s2 + $0x13c] sm:$0xf]
  %v1693 = vld [vmem:[%s2 + $0x140] sm:$0xf]
  %v1694 = vld [vmem:[%s2 + $0x144] sm:$0xf]
  %v1695 = vld [vmem:[%s2 + $0x148] sm:$0xf]
  %v1696 = vld [vmem:[%s2 + $0x14c] sm:$0xf]
  %v1697 = vld [vmem:[%s2 + $0x150] sm:$0xf]
  %v1698 = vld [vmem:[%s2 + $0x154] sm:$0xf]
  %v1699 = vld [vmem:[%s2 + $0x158] sm:$0xf]
  %v1700 = vld [vmem:[%s2 + $0x15c] sm:$0xf]
  %v1701 = vld [vmem:[%s2 + $0x160] sm:$0xf]
  %v1702 = vld [vmem:[%s2 + $0x164] sm:$0xf]
  %v1703 = vld [vmem:[%s2 + $0x168] sm:$0xf]
  %v1704 = vld [vmem:[%s2 + $0x16c] sm:$0xf]
  %v1705 = vld [vmem:[%s2 + $0x170] sm:$0xf]
  %v1706 = vld [vmem:[%s2 + $0x174] sm:$0xf]
  %v1707 = vld [vmem:[%s2 + $0x178] sm:$0xf]
  %v1708 = vld [vmem:[%s2 + $0x17c] sm:$0xf]
  %v1709 = vld [vmem:[%s2 + $0x180] sm:$0xf]
  %v1710 = vld [vmem:[%s2 + $0x184] sm:$0xf]
  %v1711 = vld [vmem:[%s2 + $0x188] sm:$0xf]
  %v1712 = vld [vmem:[%s2 + $0x18c] sm:$0xf]
  %v1713 = vld [vmem:[%s2 + $0x190] sm:$0xf]
  %v1714 = vld [vmem:[%s2 + $0x194] sm:$0xf]
  %v1715 = vld [vmem:[%s2 + $0x198] sm:$0xf]
  %v1716 = vld [vmem:[%s2 + $0x19c] sm:$0xf]
  %v1717 = vld [vmem:[%s2 + $0x1a0] sm:$0xf]
  %v1718 = vld [vmem:[%s2 + $0x1a4] sm:$0xf]
  %v1719 = vld [vmem:[%s2 + $0x1a8] sm:$0xf]
  %v1720 = vld [vmem:[%s2 + $0x1ac] sm:$0xf]
  %v1721 = vld [vmem:[%s2 + $0x1b0] sm:$0xf]
  %v1722 = vld [vmem:[%s2 + $0x1b4] sm:$0xf]
  %v1723 = vld [vmem:[%s2 + $0x1b8] sm:$0xf]
  %v1724 = vld [vmem:[%s2 + $0x1bc] sm:$0xf]
  %v1725 = vld [vmem:[%s2 + $0x1c0] sm:$0xf]
  %v1726 = vld [vmem:[%s2 + $0x1c4] sm:$0xf]
  %v1727 = vld [vmem:[%s2 + $0x1c8] sm:$0xf]
  %v1728 = vld [vmem:[%s2 + $0x1cc] sm:$0xf]
  %v1729 = vld [vmem:[%s2 + $0x1d0] sm:$0xf]
  %v1730 = vld [vmem:[%s2 + $0x1d4] sm:$0xf]
  %v1731 = vld [vmem:[%s2 + $0x1d8] sm:$0xf]
  %v1732 = vld [vmem:[%s2 + $0x1dc] sm:$0xf]
  %v1733 = vld [vmem:[%s2 + $0x1e0] sm:$0xf]
  %v1734 = vld [vmem:[%s2 + $0x1e4] sm:$0xf]
  %v1735 = vld [vmem:[%s2 + $0x1e8] sm:$0xf]
  %v1736 = vld [vmem:[%s2 + $0x1ec] sm:$0xf]
  %v1737 = vld [vmem:[%s2 + $0x1f0] sm:$0xf]
  %v1738 = vld [vmem:[%s2 + $0x1f4] sm:$0xf]
  %v1739 = vld [vmem:[%s2 + $0x1f8] sm:$0xf]
  %v1740 = vld [vmem:[%s2 + $0x1fc] sm:$0xf]
  %v1757 = vunpack.c.l.b16 %v1613
  %v1758 = vunpack.c.l.b16 %v1614
  %v1759 = vunpack.c.l.b16 %v1615
  %v1760 = vunpack.c.l.b16 %v1616
  %v1761 = vunpack.c.l.b16 %v1617
  %v1762 = vunpack.c.l.b16 %v1618
  %v1763 = vunpack.c.l.b16 %v1619
  %v1764 = vunpack.c.l.b16 %v1620
  %v1765 = vunpack.c.l.b16 %v1621
  %v1766 = vunpack.c.l.b16 %v1622
  %v1767 = vunpack.c.l.b16 %v1623
  %v1768 = vunpack.c.l.b16 %v1624
  %v1769 = vunpack.c.l.b16 %v1625
  %v1770 = vunpack.c.l.b16 %v1626
  %v1771 = vunpack.c.l.b16 %v1627
  %v1772 = vunpack.c.l.b16 %v1628
  %v1773 = vpack.c.b16 %v1758, %v1757
  %v1774 = vpack.c.b16 %v1760, %v1759
  %v1775 = vpack.c.b16 %v1762, %v1761
  %v1776 = vpack.c.b16 %v1764, %v1763
  %v1777 = vpack.c.b16 %v1766, %v1765
  %v1778 = vpack.c.b16 %v1768, %v1767
  %v1779 = vpack.c.b16 %v1770, %v1769
  %v1780 = vpack.c.b16 %v1772, %v1771
  %1789 = vmatprep.subr.bf16.mxu0 0
  %1790 = vmatpush1.bf16.msra.mxu0 %v1780
  %1791 = vmatprep.subr.bf16.mxu0 0
  %1792 = vmatpush1.bf16.msra.mxu0 %v1779
  %1793 = vmatprep.subr.bf16.mxu0 0
  %1794 = vmatpush1.bf16.msra.mxu0 %v1778
  %1795 = vmatprep.subr.bf16.mxu0 0
  %1796 = vmatpush1.bf16.msra.mxu0 %v1777
  %1797 = vmatprep.subr.bf16.mxu0 0
  %1798 = vmatpush1.bf16.msra.mxu0 %v1776
  %1799 = vmatprep.subr.bf16.mxu0 0
  %1800 = vmatpush1.bf16.msra.mxu0 %v1775
  %1801 = vmatprep.subr.bf16.mxu0 0
  %1802 = vmatpush1.bf16.msra.mxu0 %v1774
  %1803 = vmatprep.subr.bf16.mxu0 0
  %1804 = vmatpush1.bf16.msra.mxu0 %v1773
  %1805 = vmatprep.subr.bf16.mxu0 0
  %1806 = vmatpush2.bf16.msra.mxu0 0
  %1807 = vmatprep.subr.bf16.mxu0 0
  %1808 = vmatpush2.bf16.msra.mxu0 0
  %1809 = vmatprep.subr.bf16.mxu0 0
  %1810 = vmatpush2.bf16.msra.mxu0 0
  %1811 = vmatprep.subr.bf16.mxu0 0
  %1812 = vmatpush2.bf16.msra.mxu0 0
  %1813 = vmatprep.subr.bf16.mxu0 0
  %1814 = vmatpush2.bf16.msra.mxu0 0
  %1815 = vmatprep.subr.bf16.mxu0 0
  %1816 = vmatpush2.bf16.msra.mxu0 0
  %1817 = vmatprep.subr.bf16.mxu0 0
  %1818 = vmatpush2.bf16.msra.mxu0 0
  %1819 = vmatprep.subr.bf16.mxu0 0
  %1820 = vmatpush2.bf16.msra.mxu0 0
  %1821 = vmatprep.mubr.bf16.mxu0 0
  %1822 = vmatmul.mubr.bf16.gmra.mxu0 %v1605
  %v1823 = vpop.f32.mrf.mxu0
  %v1824 = vadd.f32 0.0, %v1823
  %v1825 = vpop.f32.mrf.mxu0
  %v1826 = vpop.f32.mrf.mxu0
  %v1827 = vadd.f32 0.0, %v1826
  %v1828 = vpop.f32.mrf.mxu0
  %1829 = vdwg.mxu0
  %v1846 = vunpack.c.l.b16 %v1629
  %v1847 = vunpack.c.l.b16 %v1630
  %v1848 = vunpack.c.l.b16 %v1631
  %v1849 = vunpack.c.l.b16 %v1632
  %v1850 = vunpack.c.l.b16 %v1633
  %v1851 = vunpack.c.l.b16 %v1634
  %v1852 = vunpack.c.l.b16 %v1635
  %v1853 = vunpack.c.l.b16 %v1636
  %v1854 = vunpack.c.l.b16 %v1637
  %v1855 = vunpack.c.l.b16 %v1638
  %v1856 = vunpack.c.l.b16 %v1639
  %v1857 = vunpack.c.l.b16 %v1640
  %v1858 = vunpack.c.l.b16 %v1641
  %v1859 = vunpack.c.l.b16 %v1642
  %v1860 = vunpack.c.l.b16 %v1643
  %v1861 = vunpack.c.l.b16 %v1644
  %v1862 = vpack.c.b16 %v1847, %v1846
  %v1863 = vpack.c.b16 %v1849, %v1848
  %v1864 = vpack.c.b16 %v1851, %v1850
  %v1865 = vpack.c.b16 %v1853, %v1852
  %v1866 = vpack.c.b16 %v1855, %v1854
  %v1867 = vpack.c.b16 %v1857, %v1856
  %v1868 = vpack.c.b16 %v1859, %v1858
  %v1869 = vpack.c.b16 %v1861, %v1860
  %1878 = vmatprep.subr.bf16.mxu0 0
  %1879 = vmatpush1.bf16.msra.mxu0 %v1869
  %1880 = vmatprep.subr.bf16.mxu0 0
  %1881 = vmatpush1.bf16.msra.mxu0 %v1868
  %1882 = vmatprep.subr.bf16.mxu0 0
  %1883 = vmatpush1.bf16.msra.mxu0 %v1867
  %1884 = vmatprep.subr.bf16.mxu0 0
  %1885 = vmatpush1.bf16.msra.mxu0 %v1866
  %1886 = vmatprep.subr.bf16.mxu0 0
  %1887 = vmatpush1.bf16.msra.mxu0 %v1865
  %1888 = vmatprep.subr.bf16.mxu0 0
  %1889 = vmatpush1.bf16.msra.mxu0 %v1864
  %1890 = vmatprep.subr.bf16.mxu0 0
  %1891 = vmatpush1.bf16.msra.mxu0 %v1863
  %1892 = vmatprep.subr.bf16.mxu0 0
  %1893 = vmatpush1.bf16.msra.mxu0 %v1862
  %1894 = vmatprep.subr.bf16.mxu0 0
  %1895 = vmatpush2.bf16.msra.mxu0 0
  %1896 = vmatprep.subr.bf16.mxu0 0
  %1897 = vmatpush2.bf16.msra.mxu0 0
  %1898 = vmatprep.subr.bf16.mxu0 0
  %1899 = vmatpush2.bf16.msra.mxu0 0
  %1900 = vmatprep.subr.bf16.mxu0 0
  %1901 = vmatpush2.bf16.msra.mxu0 0
  %1902 = vmatprep.subr.bf16.mxu0 0
  %1903 = vmatpush2.bf16.msra.mxu0 0
  %1904 = vmatprep.subr.bf16.mxu0 0
  %1905 = vmatpush2.bf16.msra.mxu0 0
  %1906 = vmatprep.subr.bf16.mxu0 0
  %1907 = vmatpush2.bf16.msra.mxu0 0
  %1908 = vmatprep.subr.bf16.mxu0 0
  %1909 = vmatpush2.bf16.msra.mxu0 0
  %1910 = vmatprep.mubr.bf16.mxu0 0
  %1911 = vmatmul.mubr.bf16.gmra.mxu0 %v1606
  %v1912 = vpop.f32.mrf.mxu0
  %v1913 = vadd.f32 0.0, %v1912
  %v1914 = vpop.f32.mrf.mxu0
  %v1915 = vpop.f32.mrf.mxu0
  %v1916 = vadd.f32 0.0, %v1915
  %v1917 = vpop.f32.mrf.mxu0
  %1918 = vdwg.mxu0
  %v1935 = vunpack.c.l.b16 %v1645
  %v1936 = vunpack.c.l.b16 %v1646
  %v1937 = vunpack.c.l.b16 %v1647
  %v1938 = vunpack.c.l.b16 %v1648
  %v1939 = vunpack.c.l.b16 %v1649
  %v1940 = vunpack.c.l.b16 %v1650
  %v1941 = vunpack.c.l.b16 %v1651
  %v1942 = vunpack.c.l.b16 %v1652
  %v1943 = vunpack.c.l.b16 %v1653
  %v1944 = vunpack.c.l.b16 %v1654
  %v1945 = vunpack.c.l.b16 %v1655
  %v1946 = vunpack.c.l.b16 %v1656
  %v1947 = vunpack.c.l.b16 %v1657
  %v1948 = vunpack.c.l.b16 %v1658
  %v1949 = vunpack.c.l.b16 %v1659
  %v1950 = vunpack.c.l.b16 %v1660
  %v1951 = vpack.c.b16 %v1936, %v1935
  %v1952 = vpack.c.b16 %v1938, %v1937
  %v1953 = vpack.c.b16 %v1940, %v1939
  %v1954 = vpack.c.b16 %v1942, %v1941
  %v1955 = vpack.c.b16 %v1944, %v1943
  %v1956 = vpack.c.b16 %v1946, %v1945
  %v1957 = vpack.c.b16 %v1948, %v1947
  %v1958 = vpack.c.b16 %v1950, %v1949
  %1967 = vmatprep.subr.bf16.mxu0 0
  %1968 = vmatpush1.bf16.msra.mxu0 %v1958
  %1969 = vmatprep.subr.bf16.mxu0 0
  %1970 = vmatpush1.bf16.msra.mxu0 %v1957
  %1971 = vmatprep.subr.bf16.mxu0 0
  %1972 = vmatpush1.bf16.msra.mxu0 %v1956
  %1973 = vmatprep.subr.bf16.mxu0 0
  %1974 = vmatpush1.bf16.msra.mxu0 %v1955
  %1975 = vmatprep.subr.bf16.mxu0 0
  %1976 = vmatpush1.bf16.msra.mxu0 %v1954
  %1977 = vmatprep.subr.bf16.mxu0 0
  %1978 = vmatpush1.bf16.msra.mxu0 %v1953
  %1979 = vmatprep.subr.bf16.mxu0 0
  %1980 = vmatpush1.bf16.msra.mxu0 %v1952
  %1981 = vmatprep.subr.bf16.mxu0 0
  %1982 = vmatpush1.bf16.msra.mxu0 %v1951
  %1983 = vmatprep.subr.bf16.mxu0 0
  %1984 = vmatpush2.bf16.msra.mxu0 0
  %1985 = vmatprep.subr.bf16.mxu0 0
  %1986 = vmatpush2.bf16.msra.mxu0 0
  %1987 = vmatprep.subr.bf16.mxu0 0
  %1988 = vmatpush2.bf16.msra.mxu0 0
  %1989 = vmatprep.subr.bf16.mxu0 0
  %1990 = vmatpush2.bf16.msra.mxu0 0
  %1991 = vmatprep.subr.bf16.mxu0 0
  %1992 = vmatpush2.bf16.msra.mxu0 0
  %1993 = vmatprep.subr.bf16.mxu0 0
  %1994 = vmatpush2.bf16.msra.mxu0 0
  %1995 = vmatprep.subr.bf16.mxu0 0
  %1996 = vmatpush2.bf16.msra.mxu0 0
  %1997 = vmatprep.subr.bf16.mxu0 0
  %1998 = vmatpush2.bf16.msra.mxu0 0
  %1999 = vmatprep.mubr.bf16.mxu0 0
  %2000 = vmatmul.mubr.bf16.gmra.mxu0 %v1607
  %v2001 = vpop.f32.mrf.mxu0
  %v2002 = vadd.f32 0.0, %v2001
  %v2003 = vpop.f32.mrf.mxu0
  %v2004 = vpop.f32.mrf.mxu0
  %v2005 = vadd.f32 0.0, %v2004
  %v2006 = vpop.f32.mrf.mxu0
  %2007 = vdwg.mxu0
  %v2024 = vunpack.c.l.b16 %v1661
  %v2025 = vunpack.c.l.b16 %v1662
  %v2026 = vunpack.c.l.b16 %v1663
  %v2027 = vunpack.c.l.b16 %v1664
  %v2028 = vunpack.c.l.b16 %v1665
  %v2029 = vunpack.c.l.b16 %v1666
  %v2030 = vunpack.c.l.b16 %v1667
  %v2031 = vunpack.c.l.b16 %v1668
  %v2032 = vunpack.c.l.b16 %v1669
  %v2033 = vunpack.c.l.b16 %v1670
  %v2034 = vunpack.c.l.b16 %v1671
  %v2035 = vunpack.c.l.b16 %v1672
  %v2036 = vunpack.c.l.b16 %v1673
  %v2037 = vunpack.c.l.b16 %v1674
  %v2038 = vunpack.c.l.b16 %v1675
  %v2039 = vunpack.c.l.b16 %v1676
  %v2040 = vpack.c.b16 %v2025, %v2024
  %v2041 = vpack.c.b16 %v2027, %v2026
  %v2042 = vpack.c.b16 %v2029, %v2028
  %v2043 = vpack.c.b16 %v2031, %v2030
  %v2044 = vpack.c.b16 %v2033, %v2032
  %v2045 = vpack.c.b16 %v2035, %v2034
  %v2046 = vpack.c.b16 %v2037, %v2036
  %v2047 = vpack.c.b16 %v2039, %v2038
  %2056 = vmatprep.subr.bf16.mxu0 0
  %2057 = vmatpush1.bf16.msra.mxu0 %v2047
  %2058 = vmatprep.subr.bf16.mxu0 0
  %2059 = vmatpush1.bf16.msra.mxu0 %v2046
  %2060 = vmatprep.subr.bf16.mxu0 0
  %2061 = vmatpush1.bf16.msra.mxu0 %v2045
  %2062 = vmatprep.subr.bf16.mxu0 0
  %2063 = vmatpush1.bf16.msra.mxu0 %v2044
  %2064 = vmatprep.subr.bf16.mxu0 0
  %2065 = vmatpush1.bf16.msra.mxu0 %v2043
  %2066 = vmatprep.subr.bf16.mxu0 0
  %2067 = vmatpush1.bf16.msra.mxu0 %v2042
  %2068 = vmatprep.subr.bf16.mxu0 0
  %2069 = vmatpush1.bf16.msra.mxu0 %v2041
  %2070 = vmatprep.subr.bf16.mxu0 0
  %2071 = vmatpush1.bf16.msra.mxu0 %v2040
  %2072 = vmatprep.subr.bf16.mxu0 0
  %2073 = vmatpush2.bf16.msra.mxu0 0
  %2074 = vmatprep.subr.bf16.mxu0 0
  %2075 = vmatpush2.bf16.msra.mxu0 0
  %2076 = vmatprep.subr.bf16.mxu0 0
  %2077 = vmatpush2.bf16.msra.mxu0 0
  %2078 = vmatprep.subr.bf16.mxu0 0
  %2079 = vmatpush2.bf16.msra.mxu0 0
  %2080 = vmatprep.subr.bf16.mxu0 0
  %2081 = vmatpush2.bf16.msra.mxu0 0
  %2082 = vmatprep.subr.bf16.mxu0 0
  %2083 = vmatpush2.bf16.msra.mxu0 0
  %2084 = vmatprep.subr.bf16.mxu0 0
  %2085 = vmatpush2.bf16.msra.mxu0 0
  %2086 = vmatprep.subr.bf16.mxu0 0
  %2087 = vmatpush2.bf16.msra.mxu0 0
  %2088 = vmatprep.mubr.bf16.mxu0 0
  %2089 = vmatmul.mubr.bf16.gmra.mxu0 %v1608
  %v2090 = vpop.f32.mrf.mxu0
  %v2091 = vadd.f32 0.0, %v2090
  %v2092 = vpop.f32.mrf.mxu0
  %v2093 = vpop.f32.mrf.mxu0
  %v2094 = vadd.f32 0.0, %v2093
  %v2095 = vpop.f32.mrf.mxu0
  %2096 = vdwg.mxu0
  %v2113 = vunpack.c.l.b16 %v1677
  %v2114 = vunpack.c.l.b16 %v1678
  %v2115 = vunpack.c.l.b16 %v1679
  %v2116 = vunpack.c.l.b16 %v1680
  %v2117 = vunpack.c.l.b16 %v1681
  %v2118 = vunpack.c.l.b16 %v1682
  %v2119 = vunpack.c.l.b16 %v1683
  %v2120 = vunpack.c.l.b16 %v1684
  %v2121 = vunpack.c.l.b16 %v1685
  %v2122 = vunpack.c.l.b16 %v1686
  %v2123 = vunpack.c.l.b16 %v1687
  %v2124 = vunpack.c.l.b16 %v1688
  %v2125 = vunpack.c.l.b16 %v1689
  %v2126 = vunpack.c.l.b16 %v1690
  %v2127 = vunpack.c.l.b16 %v1691
  %v2128 = vunpack.c.l.b16 %v1692
  %v2129 = vpack.c.b16 %v2114, %v2113
  %v2130 = vpack.c.b16 %v2116, %v2115
  %v2131 = vpack.c.b16 %v2118, %v2117
  %v2132 = vpack.c.b16 %v2120, %v2119
  %v2133 = vpack.c.b16 %v2122, %v2121
  %v2134 = vpack.c.b16 %v2124, %v2123
  %v2135 = vpack.c.b16 %v2126, %v2125
  %v2136 = vpack.c.b16 %v2128, %v2127
  %2145 = vmatprep.subr.bf16.mxu0 0
  %2146 = vmatpush1.bf16.msra.mxu0 %v2136
  %2147 = vmatprep.subr.bf16.mxu0 0
  %2148 = vmatpush1.bf16.msra.mxu0 %v2135
  %2149 = vmatprep.subr.bf16.mxu0 0
  %2150 = vmatpush1.bf16.msra.mxu0 %v2134
  %2151 = vmatprep.subr.bf16.mxu0 0
  %2152 = vmatpush1.bf16.msra.mxu0 %v2133
  %2153 = vmatprep.subr.bf16.mxu0 0
  %2154 = vmatpush1.bf16.msra.mxu0 %v2132
  %2155 = vmatprep.subr.bf16.mxu0 0
  %2156 = vmatpush1.bf16.msra.mxu0 %v2131
  %2157 = vmatprep.subr.bf16.mxu0 0
  %2158 = vmatpush1.bf16.msra.mxu0 %v2130
  %2159 = vmatprep.subr.bf16.mxu0 0
  %2160 = vmatpush1.bf16.msra.mxu0 %v2129
  %2161 = vmatprep.subr.bf16.mxu0 0
  %2162 = vmatpush2.bf16.msra.mxu0 0
  %2163 = vmatprep.subr.bf16.mxu0 0
  %2164 = vmatpush2.bf16.msra.mxu0 0
  %2165 = vmatprep.subr.bf16.mxu0 0
  %2166 = vmatpush2.bf16.msra.mxu0 0
  %2167 = vmatprep.subr.bf16.mxu0 0
  %2168 = vmatpush2.bf16.msra.mxu0 0
  %2169 = vmatprep.subr.bf16.mxu0 0
  %2170 = vmatpush2.bf16.msra.mxu0 0
  %2171 = vmatprep.subr.bf16.mxu0 0
  %2172 = vmatpush2.bf16.msra.mxu0 0
  %2173 = vmatprep.subr.bf16.mxu0 0
  %2174 = vmatpush2.bf16.msra.mxu0 0
  %2175 = vmatprep.subr.bf16.mxu0 0
  %2176 = vmatpush2.bf16.msra.mxu0 0
  %2177 = vmatprep.mubr.bf16.mxu0 0
  %2178 = vmatmul.mubr.bf16.gmra.mxu0 %v1609
  %v2179 = vpop.f32.mrf.mxu0
  %v2180 = vadd.f32 0.0, %v2179
  %v2181 = vpop.f32.mrf.mxu0
  %v2182 = vpop.f32.mrf.mxu0
  %v2183 = vadd.f32 0.0, %v2182
  %v2184 = vpop.f32.mrf.mxu0
  %2185 = vdwg.mxu0
  %v2202 = vunpack.c.l.b16 %v1693
  %v2203 = vunpack.c.l.b16 %v1694
  %v2204 = vunpack.c.l.b16 %v1695
  %v2205 = vunpack.c.l.b16 %v1696
  %v2206 = vunpack.c.l.b16 %v1697
  %v2207 = vunpack.c.l.b16 %v1698
  %v2208 = vunpack.c.l.b16 %v1699
  %v2209 = vunpack.c.l.b16 %v1700
  %v2210 = vunpack.c.l.b16 %v1701
  %v2211 = vunpack.c.l.b16 %v1702
  %v2212 = vunpack.c.l.b16 %v1703
  %v2213 = vunpack.c.l.b16 %v1704
  %v2214 = vunpack.c.l.b16 %v1705
  %v2215 = vunpack.c.l.b16 %v1706
  %v2216 = vunpack.c.l.b16 %v1707
  %v2217 = vunpack.c.l.b16 %v1708
  %v2218 = vpack.c.b16 %v2203, %v2202
  %v2219 = vpack.c.b16 %v2205, %v2204
  %v2220 = vpack.c.b16 %v2207, %v2206
  %v2221 = vpack.c.b16 %v2209, %v2208
  %v2222 = vpack.c.b16 %v2211, %v2210
  %v2223 = vpack.c.b16 %v2213, %v2212
  %v2224 = vpack.c.b16 %v2215, %v2214
  %v2225 = vpack.c.b16 %v2217, %v2216
  %2234 = vmatprep.subr.bf16.mxu0 0
  %2235 = vmatpush1.bf16.msra.mxu0 %v2225
  %2236 = vmatprep.subr.bf16.mxu0 0
  %2237 = vmatpush1.bf16.msra.mxu0 %v2224
  %2238 = vmatprep.subr.bf16.mxu0 0
  %2239 = vmatpush1.bf16.msra.mxu0 %v2223
  %2240 = vmatprep.subr.bf16.mxu0 0
  %2241 = vmatpush1.bf16.msra.mxu0 %v2222
  %2242 = vmatprep.subr.bf16.mxu0 0
  %2243 = vmatpush1.bf16.msra.mxu0 %v2221
  %2244 = vmatprep.subr.bf16.mxu0 0
  %2245 = vmatpush1.bf16.msra.mxu0 %v2220
  %2246 = vmatprep.subr.bf16.mxu0 0
  %2247 = vmatpush1.bf16.msra.mxu0 %v2219
  %2248 = vmatprep.subr.bf16.mxu0 0
  %2249 = vmatpush1.bf16.msra.mxu0 %v2218
  %2250 = vmatprep.subr.bf16.mxu0 0
  %2251 = vmatpush2.bf16.msra.mxu0 0
  %2252 = vmatprep.subr.bf16.mxu0 0
  %2253 = vmatpush2.bf16.msra.mxu0 0
  %2254 = vmatprep.subr.bf16.mxu0 0
  %2255 = vmatpush2.bf16.msra.mxu0 0
  %2256 = vmatprep.subr.bf16.mxu0 0
  %2257 = vmatpush2.bf16.msra.mxu0 0
  %2258 = vmatprep.subr.bf16.mxu0 0
  %2259 = vmatpush2.bf16.msra.mxu0 0
  %2260 = vmatprep.subr.bf16.mxu0 0
  %2261 = vmatpush2.bf16.msra.mxu0 0
  %2262 = vmatprep.subr.bf16.mxu0 0
  %2263 = vmatpush2.bf16.msra.mxu0 0
  %2264 = vmatprep.subr.bf16.mxu0 0
  %2265 = vmatpush2.bf16.msra.mxu0 0
  %2266 = vmatprep.mubr.bf16.mxu0 0
  %2267 = vmatmul.mubr.bf16.gmra.mxu0 %v1610
  %v2268 = vpop.f32.mrf.mxu0
  %v2269 = vadd.f32 0.0, %v2268
  %v2270 = vpop.f32.mrf.mxu0
  %v2271 = vpop.f32.mrf.mxu0
  %v2272 = vadd.f32 0.0, %v2271
  %v2273 = vpop.f32.mrf.mxu0
  %2274 = vdwg.mxu0
  %v2291 = vunpack.c.l.b16 %v1709
  %v2292 = vunpack.c.l.b16 %v1710
  %v2293 = vunpack.c.l.b16 %v1711
  %v2294 = vunpack.c.l.b16 %v1712
  %v2295 = vunpack.c.l.b16 %v1713
  %v2296 = vunpack.c.l.b16 %v1714
  %v2297 = vunpack.c.l.b16 %v1715
  %v2298 = vunpack.c.l.b16 %v1716
  %v2299 = vunpack.c.l.b16 %v1717
  %v2300 = vunpack.c.l.b16 %v1718
  %v2301 = vunpack.c.l.b16 %v1719
  %v2302 = vunpack.c.l.b16 %v1720
  %v2303 = vunpack.c.l.b16 %v1721
  %v2304 = vunpack.c.l.b16 %v1722
  %v2305 = vunpack.c.l.b16 %v1723
  %v2306 = vunpack.c.l.b16 %v1724
  %v2307 = vpack.c.b16 %v2292, %v2291
  %v2308 = vpack.c.b16 %v2294, %v2293
  %v2309 = vpack.c.b16 %v2296, %v2295
  %v2310 = vpack.c.b16 %v2298, %v2297
  %v2311 = vpack.c.b16 %v2300, %v2299
  %v2312 = vpack.c.b16 %v2302, %v2301
  %v2313 = vpack.c.b16 %v2304, %v2303
  %v2314 = vpack.c.b16 %v2306, %v2305
  %2323 = vmatprep.subr.bf16.mxu0 0
  %2324 = vmatpush1.bf16.msra.mxu0 %v2314
  %2325 = vmatprep.subr.bf16.mxu0 0
  %2326 = vmatpush1.bf16.msra.mxu0 %v2313
  %2327 = vmatprep.subr.bf16.mxu0 0
  %2328 = vmatpush1.bf16.msra.mxu0 %v2312
  %2329 = vmatprep.subr.bf16.mxu0 0
  %2330 = vmatpush1.bf16.msra.mxu0 %v2311
  %2331 = vmatprep.subr.bf16.mxu0 0
  %2332 = vmatpush1.bf16.msra.mxu0 %v2310
  %2333 = vmatprep.subr.bf16.mxu0 0
  %2334 = vmatpush1.bf16.msra.mxu0 %v2309
  %2335 = vmatprep.subr.bf16.mxu0 0
  %2336 = vmatpush1.bf16.msra.mxu0 %v2308
  %2337 = vmatprep.subr.bf16.mxu0 0
  %2338 = vmatpush1.bf16.msra.mxu0 %v2307
  %2339 = vmatprep.subr.bf16.mxu0 0
  %2340 = vmatpush2.bf16.msra.mxu0 0
  %2341 = vmatprep.subr.bf16.mxu0 0
  %2342 = vmatpush2.bf16.msra.mxu0 0
  %2343 = vmatprep.subr.bf16.mxu0 0
  %2344 = vmatpush2.bf16.msra.mxu0 0
  %2345 = vmatprep.subr.bf16.mxu0 0
  %2346 = vmatpush2.bf16.msra.mxu0 0
  %2347 = vmatprep.subr.bf16.mxu0 0
  %2348 = vmatpush2.bf16.msra.mxu0 0
  %2349 = vmatprep.subr.bf16.mxu0 0
  %2350 = vmatpush2.bf16.msra.mxu0 0
  %2351 = vmatprep.subr.bf16.mxu0 0
  %2352 = vmatpush2.bf16.msra.mxu0 0
  %2353 = vmatprep.subr.bf16.mxu0 0
  %2354 = vmatpush2.bf16.msra.mxu0 0
  %2355 = vmatprep.mubr.bf16.mxu0 0
  %2356 = vmatmul.mubr.bf16.gmra.mxu0 %v1611
  %v2357 = vpop.f32.mrf.mxu0
  %v2358 = vadd.f32 0.0, %v2357
  %v2359 = vpop.f32.mrf.mxu0
  %v2360 = vpop.f32.mrf.mxu0
  %v2361 = vadd.f32 0.0, %v2360
  %v2362 = vpop.f32.mrf.mxu0
  %2363 = vdwg.mxu0
  %v2380 = vunpack.c.l.b16 %v1725
  %v2381 = vunpack.c.l.b16 %v1726
  %v2382 = vunpack.c.l.b16 %v1727
  %v2383 = vunpack.c.l.b16 %v1728
  %v2384 = vunpack.c.l.b16 %v1729
  %v2385 = vunpack.c.l.b16 %v1730
  %v2386 = vunpack.c.l.b16 %v1731
  %v2387 = vunpack.c.l.b16 %v1732
  %v2388 = vunpack.c.l.b16 %v1733
  %v2389 = vunpack.c.l.b16 %v1734
  %v2390 = vunpack.c.l.b16 %v1735
  %v2391 = vunpack.c.l.b16 %v1736
  %v2392 = vunpack.c.l.b16 %v1737
  %v2393 = vunpack.c.l.b16 %v1738
  %v2394 = vunpack.c.l.b16 %v1739
  %v2395 = vunpack.c.l.b16 %v1740
  %v2396 = vpack.c.b16 %v2381, %v2380
  %v2397 = vpack.c.b16 %v2383, %v2382
  %v2398 = vpack.c.b16 %v2385, %v2384
  %v2399 = vpack.c.b16 %v2387, %v2386
  %v2400 = vpack.c.b16 %v2389, %v2388
  %v2401 = vpack.c.b16 %v2391, %v2390
  %v2402 = vpack.c.b16 %v2393, %v2392
  %v2403 = vpack.c.b16 %v2395, %v2394
  %2412 = vmatprep.subr.bf16.mxu0 0
  %2413 = vmatpush1.bf16.msra.mxu0 %v2403
  %2414 = vmatprep.subr.bf16.mxu0 0
  %2415 = vmatpush1.bf16.msra.mxu0 %v2402
  %2416 = vmatprep.subr.bf16.mxu0 0
  %2417 = vmatpush1.bf16.msra.mxu0 %v2401
  %2418 = vmatprep.subr.bf16.mxu0 0
  %2419 = vmatpush1.bf16.msra.mxu0 %v2400
  %2420 = vmatprep.subr.bf16.mxu0 0
  %2421 = vmatpush1.bf16.msra.mxu0 %v2399
  %2422 = vmatprep.subr.bf16.mxu0 0
  %2423 = vmatpush1.bf16.msra.mxu0 %v2398
  %2424 = vmatprep.subr.bf16.mxu0 0
  %2425 = vmatpush1.bf16.msra.mxu0 %v2397
  %2426 = vmatprep.subr.bf16.mxu0 0
  %2427 = vmatpush1.bf16.msra.mxu0 %v2396
  %2428 = vmatprep.subr.bf16.mxu0 0
  %2429 = vmatpush2.bf16.msra.mxu0 0
  %2430 = vmatprep.subr.bf16.mxu0 0
  %2431 = vmatpush2.bf16.msra.mxu0 0
  %2432 = vmatprep.subr.bf16.mxu0 0
  %2433 = vmatpush2.bf16.msra.mxu0 0
  %2434 = vmatprep.subr.bf16.mxu0 0
  %2435 = vmatpush2.bf16.msra.mxu0 0
  %2436 = vmatprep.subr.bf16.mxu0 0
  %2437 = vmatpush2.bf16.msra.mxu0 0
  %2438 = vmatprep.subr.bf16.mxu0 0
  %2439 = vmatpush2.bf16.msra.mxu0 0
  %2440 = vmatprep.subr.bf16.mxu0 0
  %2441 = vmatpush2.bf16.msra.mxu0 0
  %2442 = vmatprep.subr.bf16.mxu0 0
  %2443 = vmatpush2.bf16.msra.mxu0 0
  %2444 = vmatprep.mubr.bf16.mxu0 0
  %2445 = vmatmul.mubr.bf16.gmra.mxu0 %v1612
  %v2446 = vpop.f32.mrf.mxu0
  %v2447 = vadd.f32 0.0, %v2446
  %v2448 = vpop.f32.mrf.mxu0
  %v2449 = vpop.f32.mrf.mxu0
  %v2450 = vadd.f32 0.0, %v2449
  %v2451 = vpop.f32.mrf.mxu0
  %2452 = vdwg.mxu0
  %v2453 = vadd.f32 %v1589, %v1824
  %v2454 = vadd.f32 %v1590, %v1827
  %v2455 = vadd.f32 %v1591, %v1913
  %v2456 = vadd.f32 %v1592, %v1916
  %v2457 = vadd.f32 %v1593, %v2002
  %v2458 = vadd.f32 %v1594, %v2005
  %v2459 = vadd.f32 %v1595, %v2091
  %v2460 = vadd.f32 %v1596, %v2094
  %v2461 = vadd.f32 %v1597, %v2180
  %v2462 = vadd.f32 %v1598, %v2183
  %v2463 = vadd.f32 %v1599, %v2269
  %v2464 = vadd.f32 %v1600, %v2272
  %v2465 = vadd.f32 %v1601, %v2358
  %v2466 = vadd.f32 %v1602, %v2361
  %v2467 = vadd.f32 %v1603, %v2447
  %v2468 = vadd.f32 %v1604, %v2450
  %2469 = vst.msk [vmem:[#allocation4] sm:$0xff] %vm258, %v2453
  %2470 = vst.msk [vmem:[#allocation4 + $0x8] sm:$0xff] %vm258, %v2454
  %2471 = vst.msk [vmem:[#allocation4 + $0x10] sm:$0xff] %vm258, %v2455
  %2472 = vst.msk [vmem:[#allocation4 + $0x18] sm:$0xff] %vm258, %v2456
  %2473 = vst.msk [vmem:[#allocation4 + $0x20] sm:$0xff] %vm258, %v2457
  %2474 = vst.msk [vmem:[#allocation4 + $0x28] sm:$0xff] %vm258, %v2458
  %2475 = vst.msk [vmem:[#allocation4 + $0x30] sm:$0xff] %vm258, %v2459
  %2476 = vst.msk [vmem:[#allocation4 + $0x38] sm:$0xff] %vm258, %v2460
  %2477 = vst.msk [vmem:[#allocation4 + $0x40] sm:$0xff] %vm258, %v2461
  %2478 = vst.msk [vmem:[#allocation4 + $0x48] sm:$0xff] %vm258, %v2462
  %2479 = vst.msk [vmem:[#allocation4 + $0x50] sm:$0xff] %vm258, %v2463
  %2480 = vst.msk [vmem:[#allocation4 + $0x58] sm:$0xff] %vm258, %v2464
  %2481 = vst.msk [vmem:[#allocation4 + $0x60] sm:$0xff] %vm258, %v2465
  %2482 = vst.msk [vmem:[#allocation4 + $0x68] sm:$0xff] %vm258, %v2466
  %2483 = vst.msk [vmem:[#allocation4 + $0x70] sm:$0xff] %vm258, %v2467
  %2484 = vst.msk [vmem:[#allocation4 + $0x78] sm:$0xff] %vm258, %v2468
  %2485 = vst.msk [vmem:[#allocation2] sm:$0xff] %vm1476, %v1204
  %2486 = vst.msk [vmem:[#allocation2 + $0x8] sm:$0xff] %vm1476, %v1205
  %2487 = vst.msk [vmem:[#allocation2 + $0x10] sm:$0xff] %vm1476, %v1206
  %2488 = vst.msk [vmem:[#allocation2 + $0x18] sm:$0xff] %vm1476, %v1207
  %2489 = vst.msk [vmem:[#allocation2 + $0x20] sm:$0xff] %vm1476, %v1208
  %2490 = vst.msk [vmem:[#allocation2 + $0x28] sm:$0xff] %vm1476, %v1209
  %2491 = vst.msk [vmem:[#allocation2 + $0x30] sm:$0xff] %vm1476, %v1210
  %2492 = vst.msk [vmem:[#allocation2 + $0x38] sm:$0xff] %vm1476, %v1211
  %2493 = vst.msk [vmem:[#allocation2 + $0x40] sm:$0xff] %vm1476, %v1212
  %2494 = vst.msk [vmem:[#allocation2 + $0x48] sm:$0xff] %vm1476, %v1213
  %2495 = vst.msk [vmem:[#allocation2 + $0x50] sm:$0xff] %vm1476, %v1214
  %2496 = vst.msk [vmem:[#allocation2 + $0x58] sm:$0xff] %vm1476, %v1215
  %2497 = vst.msk [vmem:[#allocation2 + $0x60] sm:$0xff] %vm1476, %v1216
  %2498 = vst.msk [vmem:[#allocation2 + $0x68] sm:$0xff] %vm1476, %v1217
  %2499 = vst.msk [vmem:[#allocation2 + $0x70] sm:$0xff] %vm1476, %v1218
  %2500 = vst.msk [vmem:[#allocation2 + $0x78] sm:$0xff] %vm1476, %v1219
  // Predicated region
  $region18: #{_lambda_.22} parent=0 // pred_check
    %p2501 = pneg %p15
  $region19: #{_lambda_.22} parent=0 // pred_check_branch
    %2503 = sbr.rel (%p2501) target = $region21
  $region20: #{_lambda_.22} parent=0 // pred_region
    %v2504 = vld [vmem:[#allocation4] sm:$0xff]
    %v2505 = vld [vmem:[#allocation4 + $0x8] sm:$0xff]
    %v2506 = vld [vmem:[#allocation4 + $0x10] sm:$0xff]
    %v2507 = vld [vmem:[#allocation4 + $0x18] sm:$0xff]
    %v2508 = vld [vmem:[#allocation4 + $0x20] sm:$0xff]
    %v2509 = vld [vmem:[#allocation4 + $0x28] sm:$0xff]
    %v2510 = vld [vmem:[#allocation4 + $0x30] sm:$0xff]
    %v2511 = vld [vmem:[#allocation4 + $0x38] sm:$0xff]
    %v2512 = vld [vmem:[#allocation4 + $0x40] sm:$0xff]
    %v2513 = vld [vmem:[#allocation4 + $0x48] sm:$0xff]
    %v2514 = vld [vmem:[#allocation4 + $0x50] sm:$0xff]
    %v2515 = vld [vmem:[#allocation4 + $0x58] sm:$0xff]
    %v2516 = vld [vmem:[#allocation4 + $0x60] sm:$0xff]
    %v2517 = vld [vmem:[#allocation4 + $0x68] sm:$0xff]
    %v2518 = vld [vmem:[#allocation4 + $0x70] sm:$0xff]
    %v2519 = vld [vmem:[#allocation4 + $0x78] sm:$0xff]
    %v2520 = vld [vmem:[#allocation3] sm:$0xff]
    %v2521 = vld [vmem:[#allocation3 + $0x8] sm:$0xff]
    %v2522 = vld [vmem:[#allocation3 + $0x10] sm:$0xff]
    %v2523 = vld [vmem:[#allocation3 + $0x18] sm:$0xff]
    %v2524 = vld [vmem:[#allocation3 + $0x20] sm:$0xff]
    %v2525 = vld [vmem:[#allocation3 + $0x28] sm:$0xff]
    %v2526 = vld [vmem:[#allocation3 + $0x30] sm:$0xff]
    %v2527 = vld [vmem:[#allocation3 + $0x38] sm:$0xff]
    %v2528 = vld [vmem:[#allocation3 + $0x40] sm:$0xff]
    %v2529 = vld [vmem:[#allocation3 + $0x48] sm:$0xff]
    %v2530 = vld [vmem:[#allocation3 + $0x50] sm:$0xff]
    %v2531 = vld [vmem:[#allocation3 + $0x58] sm:$0xff]
    %v2532 = vld [vmem:[#allocation3 + $0x60] sm:$0xff]
    %v2533 = vld [vmem:[#allocation3 + $0x68] sm:$0xff]
    %v2534 = vld [vmem:[#allocation3 + $0x70] sm:$0xff]
    %v2535 = vld [vmem:[#allocation3 + $0x78] sm:$0xff]
    %v2536 = vrcp.pop %v2520
    %v2537 = vrcp.pop %v2521
    %v2538 = vrcp.pop %v2522
    %v2539 = vrcp.pop %v2523
    %v2540 = vrcp.pop %v2524
    %v2541 = vrcp.pop %v2525
    %v2542 = vrcp.pop %v2526
    %v2543 = vrcp.pop %v2527
    %v2544 = vrcp.pop %v2528
    %v2545 = vrcp.pop %v2529
    %v2546 = vrcp.pop %v2530
    %v2547 = vrcp.pop %v2531
    %v2548 = vrcp.pop %v2532
    %v2549 = vrcp.pop %v2533
    %v2550 = vrcp.pop %v2534
    %v2551 = vrcp.pop %v2535
    %2553 = vset.pattern.permute.xlu0 0
    %2554 = vperm.xlu0 %2553, %v2536
    %v2555 = vpop.permute.xlu0 %2554
    %2558 = vset.pattern.permute.xlu0 0
    %2559 = vperm.xlu0 %2558, %v2537
    %v2560 = vpop.permute.xlu0 %2559
    %2563 = vset.pattern.permute.xlu0 0
    %2564 = vperm.xlu0 %2563, %v2538
    %v2565 = vpop.permute.xlu0 %2564
    %2568 = vset.pattern.permute.xlu0 0
    %2569 = vperm.xlu0 %2568, %v2539
    %v2570 = vpop.permute.xlu0 %2569
    %2573 = vset.pattern.permute.xlu0 0
    %2574 = vperm.xlu0 %2573, %v2540
    %v2575 = vpop.permute.xlu0 %2574
    %2578 = vset.pattern.permute.xlu0 0
    %2579 = vperm.xlu0 %2578, %v2541
    %v2580 = vpop.permute.xlu0 %2579
    %2583 = vset.pattern.permute.xlu0 0
    %2584 = vperm.xlu0 %2583, %v2542
    %v2585 = vpop.permute.xlu0 %2584
    %2588 = vset.pattern.permute.xlu0 0
    %2589 = vperm.xlu0 %2588, %v2543
    %v2590 = vpop.permute.xlu0 %2589
    %2593 = vset.pattern.permute.xlu0 0
    %2594 = vperm.xlu0 %2593, %v2544
    %v2595 = vpop.permute.xlu0 %2594
    %2598 = vset.pattern.permute.xlu0 0
    %2599 = vperm.xlu0 %2598, %v2545
    %v2600 = vpop.permute.xlu0 %2599
    %2603 = vset.pattern.permute.xlu0 0
    %2604 = vperm.xlu0 %2603, %v2546
    %v2605 = vpop.permute.xlu0 %2604
    %2608 = vset.pattern.permute.xlu0 0
    %2609 = vperm.xlu0 %2608, %v2547
    %v2610 = vpop.permute.xlu0 %2609
    %2613 = vset.pattern.permute.xlu0 0
    %2614 = vperm.xlu0 %2613, %v2548
    %v2615 = vpop.permute.xlu0 %2614
    %2618 = vset.pattern.permute.xlu0 0
    %2619 = vperm.xlu0 %2618, %v2549
    %v2620 = vpop.permute.xlu0 %2619
    %2623 = vset.pattern.permute.xlu0 0
    %2624 = vperm.xlu0 %2623, %v2550
    %v2625 = vpop.permute.xlu0 %2624
    %2628 = vset.pattern.permute.xlu0 0
    %2629 = vperm.xlu0 %2628, %v2551
    %v2630 = vpop.permute.xlu0 %2629
    %v2632 = vmul.f32 %v2504, %v2555
    %v2633 = vmul.f32 %v2505, %v2560
    %v2634 = vmul.f32 %v2506, %v2565
    %v2635 = vmul.f32 %v2507, %v2570
    %v2636 = vmul.f32 %v2508, %v2575
    %v2637 = vmul.f32 %v2509, %v2580
    %v2638 = vmul.f32 %v2510, %v2585
    %v2639 = vmul.f32 %v2511, %v2590
    %v2640 = vmul.f32 %v2512, %v2595
    %v2641 = vmul.f32 %v2513, %v2600
    %v2642 = vmul.f32 %v2514, %v2605
    %v2643 = vmul.f32 %v2515, %v2610
    %v2644 = vmul.f32 %v2516, %v2615
    %v2645 = vmul.f32 %v2517, %v2620
    %v2646 = vmul.f32 %v2518, %v2625
    %v2647 = vmul.f32 %v2519, %v2630
    %v2648 = vpack.c.bf16 %v2633, %v2632
    %v2649 = vpack.c.bf16 %v2635, %v2634
    %v2650 = vpack.c.bf16 %v2637, %v2636
    %v2651 = vpack.c.bf16 %v2639, %v2638
    %v2652 = vpack.c.bf16 %v2641, %v2640
    %v2653 = vpack.c.bf16 %v2643, %v2642
    %v2654 = vpack.c.bf16 %v2645, %v2644
    %v2655 = vpack.c.bf16 %v2647, %v2646
    %v2664 = vunpack.c.l.b16 %v2648
    %v2665 = vunpack.c.h.b16 %v2648
    %v2666 = vunpack.c.l.b16 %v2649
    %v2667 = vunpack.c.h.b16 %v2649
    %v2668 = vunpack.c.l.b16 %v2650
    %v2669 = vunpack.c.h.b16 %v2650
    %v2670 = vunpack.c.l.b16 %v2651
    %v2671 = vunpack.c.h.b16 %v2651
    %v2672 = vunpack.c.l.b16 %v2652
    %v2673 = vunpack.c.h.b16 %v2652
    %v2674 = vunpack.c.l.b16 %v2653
    %v2675 = vunpack.c.h.b16 %v2653
    %v2676 = vunpack.c.l.b16 %v2654
    %v2677 = vunpack.c.h.b16 %v2654
    %v2678 = vunpack.c.l.b16 %v2655
    %v2679 = vunpack.c.h.b16 %v2655
    %v2680 = vpack.c.b16 %v2664, %v2664
    %v2681 = vpack.c.b16 %v2665, %v2665
    %v2682 = vpack.c.b16 %v2666, %v2666
    %v2683 = vpack.c.b16 %v2667, %v2667
    %v2684 = vpack.c.b16 %v2668, %v2668
    %v2685 = vpack.c.b16 %v2669, %v2669
    %v2686 = vpack.c.b16 %v2670, %v2670
    %v2687 = vpack.c.b16 %v2671, %v2671
    %v2688 = vpack.c.b16 %v2672, %v2672
    %v2689 = vpack.c.b16 %v2673, %v2673
    %v2690 = vpack.c.b16 %v2674, %v2674
    %v2691 = vpack.c.b16 %v2675, %v2675
    %v2692 = vpack.c.b16 %v2676, %v2676
    %v2693 = vpack.c.b16 %v2677, %v2677
    %v2694 = vpack.c.b16 %v2678, %v2678
    %v2695 = vpack.c.b16 %v2679, %v2679
    %vm2712 = vcmask 60416
    %2713 = vst.msk [vmem:[%s3] sm:$0xf] %vm2712, %v2680
    %2714 = vst.msk [vmem:[%s3 + $0x4] sm:$0xf] %vm2712, %v2681
    %2715 = vst.msk [vmem:[%s3 + $0x8] sm:$0xf] %vm2712, %v2682
    %2716 = vst.msk [vmem:[%s3 + $0xc] sm:$0xf] %vm2712, %v2683
    %2717 = vst.msk [vmem:[%s3 + $0x10] sm:$0xf] %vm2712, %v2684
    %2718 = vst.msk [vmem:[%s3 + $0x14] sm:$0xf] %vm2712, %v2685
    %2719 = vst.msk [vmem:[%s3 + $0x18] sm:$0xf] %vm2712, %v2686
    %2720 = vst.msk [vmem:[%s3 + $0x1c] sm:$0xf] %vm2712, %v2687
    %2721 = vst.msk [vmem:[%s3 + $0x20] sm:$0xf] %vm2712, %v2688
    %2722 = vst.msk [vmem:[%s3 + $0x24] sm:$0xf] %vm2712, %v2689
    %2723 = vst.msk [vmem:[%s3 + $0x28] sm:$0xf] %vm2712, %v2690
    %2724 = vst.msk [vmem:[%s3 + $0x2c] sm:$0xf] %vm2712, %v2691
    %2725 = vst.msk [vmem:[%s3 + $0x30] sm:$0xf] %vm2712, %v2692
    %2726 = vst.msk [vmem:[%s3 + $0x34] sm:$0xf] %vm2712, %v2693
    %2727 = vst.msk [vmem:[%s3 + $0x38] sm:$0xf] %vm2712, %v2694
    %2728 = vst.msk [vmem:[%s3 + $0x3c] sm:$0xf] %vm2712, %v2695
  $region21: #{_lambda_.22} parent=0 // pred_fallthru
    _
  // Predicated region
  $region22: #{_lambda_.22} parent=0 // pred_check
    _
  $region23: #{_lambda_.22} parent=0 // pred_check_branch
    %2730 = sbr.rel (0) target = $region25
  $region24: #{_lambda_.22} parent=0 // pred_region
    _
  $region25: #{_lambda_.22} parent=0 // pred_fallthru
    _
  // Predicated region
  $region26: #{_lambda_.22} parent=0 // pred_check
    _
  $region27: #{_lambda_.22} parent=0 // pred_check_branch
    %2732 = sbr.rel (0) target = $region29
  $region28: #{_lambda_.22} parent=0 // pred_region
    _
  $region29: #{_lambda_.22} parent=0 // pred_fallthru
    _

// kernel: _lambda_.28
$region0: #{_lambda_.28}
  #allocation0 [shape = 'u32[]', space=smem, size = 0x4, offset = 0x4, fixed_abs, tag = 'smem constant byte address 0x4 - core index']
  #allocation1 [shape = 'u32[144,128]{1,0:T(1,128)}', space=vmem, size = 0x12000, scoped, tag = 'internal scratch']
  %s0 = inlined_call_operand.vmem [shape: bf16[2,4,6,16], index: 0, kind: input, shape index: {}]
  %s1 = inlined_call_operand.vmem [shape: bf16[2,4,6,16], index: 1, kind: input, shape index: {}]
  %s2 = inlined_call_operand.vmem [shape: bf16[2,4,6,16], index: 2, kind: input, shape index: {}]
  %s3 = inlined_call_operand.vmem [shape: bf16[9,16,16], index: 3, kind: input, shape index: {}]
  %s4 = inlined_call_operand.vmem [shape: bf16[2,4,4,16], index: 4, kind: output, shape index: {}]
  %s5 = sld [smem:[#allocation0]]
  $region49: #{_lambda_.28} parent=0
    _
  %s7 = ssub.s32 1, %s5
  %s8 = scalar_select 0, %s7, %s5
  loop: start=0, step=1, limit=4
  $region2: #{_lambda_.28} parent=0 // loop_pre_header
    _
  $region3: #{_lambda_.28} parent=0 // loop_header
    %s10 = sphi 0, %s14
    %p11 = scmp.ge.s32.totalorder %s10, 4
    %s17 = sphi 0, %s29
    %s18 = sphi 0, %s25
    %s19 = sphi 0, %s17
    %s20 = sphi 0, %s18
    %s21 = sphi 0, %s19
    %s22 = sphi 0, %s20
    %s34 = sphi 0, %s36
    %s37 = sphi 0, %s34
    %s38 = sphi 0, %s37
    %s54 = sphi 0, %s38
    %s62 = sphi 0, %s64
    %s65 = sphi 0, %s62
    %s66 = sphi 0, %s65
    %s82 = sphi 0, %s66
    %s90 = sphi 0, %s92
    %s93 = sphi 0, %s90
    %s94 = sphi 0, %s93
    %s110 = sphi 0, %s94
    %s114 = sphi 0, %s114
    %s116 = sphi 0, %s114
    %s117 = sphi 0, %s116
    %s131 = sphi 0, %s117
    %s139 = sphi 0, %s141
    %s142 = sphi 0, %s139
    %s143 = sphi 0, %s142
    %s159 = sphi 0, %s143
  $region4: #{_lambda_.28} parent=0 // loop_header_branch
    %13 = sbr.rel (%p11) target = $region8
  $region5: #{_lambda_.28} parent=0 // loop_body
    %s15 = ssub.s32 %s10, 1
    %s16 = ssub.s32 %s10, 2
    %s23 = sadd.s32 1, %s18
    %p24 = scmp.ge.s32.totalorder %s23, 1
    %s25 = scalar_select %p24, 0, %s23
    %s26 = sadd.s32 1, %s17
    %s27 = scalar_select %p24, %s26, %s17
    %p28 = scmp.ge.s32.totalorder %s27, 2
    %s29 = scalar_select %p28, 0, %s27
    %s30 = ssub.s32 %s17, %s29
    %s31 = ssub.s32 %s18, %s25
    %s32 = sor.u32 %s30, %s31
    %p33 = scmp.eq.s32.totalorder %s32, 0
    %s35 = sadd.s32 %s34, 1
    %s36 = scalar_select %p33, %s34, %s35
    %p39 = pneg %p33
    %p40 = scmp.eq.s32.totalorder %s10, 1
    %p41 = por %p39, %p40
    %p42 = scmp.ne.s32.totalorder %s34, %s37
    %p43 = scmp.eq.s32.totalorder %s10, 0
    %p44 = por %p42, %p43
    %p45 = scmp.ne.s32.totalorder %s34, %s37
    %p46 = scmp.eq.s32.totalorder %s15, 1
    %p47 = por %p45, %p46
    %p48 = scmp.ne.s32.totalorder %s37, %s38
    %p49 = scmp.eq.s32.totalorder %s15, 0
    %p50 = por %p48, %p49
    %p51 = scmp.ne.s32.totalorder %s37, %s38
    %p52 = scmp.eq.s32.totalorder %s16, 1
    %p53 = por %p51, %p52
    %p55 = scmp.ne.s32.totalorder %s38, %s54
    %p56 = scmp.eq.s32.totalorder %s16, 0
    %p57 = por %p55, %p56
    %s58 = ssub.s32 %s17, %s29
    %s59 = ssub.s32 %s18, %s25
    %s60 = sor.u32 %s58, %s59
    %p61 = scmp.eq.s32.totalorder %s60, 0
    %s63 = sadd.s32 %s62, 1
    %s64 = scalar_select %p61, %s62, %s63
    %p67 = pneg %p61
    %p68 = scmp.eq.s32.totalorder %s10, 1
    %p69 = por %p67, %p68
    %p70 = scmp.ne.s32.totalorder %s62, %s65
    %p71 = scmp.eq.s32.totalorder %s10, 0
    %p72 = por %p70, %p71
    %p73 = scmp.ne.s32.totalorder %s62, %s65
    %p74 = scmp.eq.s32.totalorder %s15, 1
    %p75 = por %p73, %p74
    %p76 = scmp.ne.s32.totalorder %s65, %s66
    %p77 = scmp.eq.s32.totalorder %s15, 0
    %p78 = por %p76, %p77
    %p79 = scmp.ne.s32.totalorder %s65, %s66
    %p80 = scmp.eq.s32.totalorder %s16, 1
    %p81 = por %p79, %p80
    %p83 = scmp.ne.s32.totalorder %s66, %s82
    %p84 = scmp.eq.s32.totalorder %s16, 0
    %p85 = por %p83, %p84
    %s86 = ssub.s32 %s17, %s29
    %s87 = ssub.s32 %s18, %s25
    %s88 = sor.u32 %s86, %s87
    %p89 = scmp.eq.s32.totalorder %s88, 0
    %s91 = sadd.s32 %s90, 1
    %s92 = scalar_select %p89, %s90, %s91
    %p95 = pneg %p89
    %p96 = scmp.eq.s32.totalorder %s10, 1
    %p97 = por %p95, %p96
    %p98 = scmp.ne.s32.totalorder %s90, %s93
    %p99 = scmp.eq.s32.totalorder %s10, 0
    %p100 = por %p98, %p99
    %p101 = scmp.ne.s32.totalorder %s90, %s93
    %p102 = scmp.eq.s32.totalorder %s15, 1
    %p103 = por %p101, %p102
    %p104 = scmp.ne.s32.totalorder %s93, %s94
    %p105 = scmp.eq.s32.totalorder %s15, 0
    %p106 = por %p104, %p105
    %p107 = scmp.ne.s32.totalorder %s93, %s94
    %p108 = scmp.eq.s32.totalorder %s16, 1
    %p109 = por %p107, %p108
    %p111 = scmp.ne.s32.totalorder %s94, %s110
    %p112 = scmp.eq.s32.totalorder %s16, 0
    %p113 = por %p111, %p112
    %s115 = sadd.s32 %s114, 1
    %p118 = scmp.eq.s32.totalorder %s10, 1
    %p119 = scmp.ne.s32.totalorder %s114, %s116
    %p120 = scmp.eq.s32.totalorder %s10, 0
    %p121 = por %p119, %p120
    %p122 = scmp.ne.s32.totalorder %s114, %s116
    %p123 = scmp.eq.s32.totalorder %s15, 1
    %p124 = por %p122, %p123
    %p125 = scmp.ne.s32.totalorder %s116, %s117
    %p126 = scmp.eq.s32.totalorder %s15, 0
    %p127 = por %p125, %p126
    %p128 = scmp.ne.s32.totalorder %s116, %s117
    %p129 = scmp.eq.s32.totalorder %s16, 1
    %p130 = por %p128, %p129
    %p132 = scmp.ne.s32.totalorder %s117, %s131
    %p133 = scmp.eq.s32.totalorder %s16, 0
    %p134 = por %p132, %p133
    %s135 = ssub.s32 %s17, %s29
    %s136 = ssub.s32 %s18, %s25
    %s137 = sor.u32 %s135, %s136
    %p138 = scmp.eq.s32.totalorder %s137, 0
    %s140 = sadd.s32 %s139, 1
    %s141 = scalar_select %p138, %s139, %s140
    %p144 = pneg %p138
    %p145 = scmp.eq.s32.totalorder %s10, 1
    %p146 = por %p144, %p145
    %p147 = scmp.ne.s32.totalorder %s139, %s142
    %p148 = scmp.eq.s32.totalorder %s10, 0
    %p149 = por %p147, %p148
    %p150 = scmp.ne.s32.totalorder %s139, %s142
    %p151 = scmp.eq.s32.totalorder %s15, 1
    %p152 = por %p150, %p151
    %p153 = scmp.ne.s32.totalorder %s142, %s143
    %p154 = scmp.eq.s32.totalorder %s15, 0
    %p155 = por %p153, %p154
    %p156 = scmp.ne.s32.totalorder %s142, %s143
    %p157 = scmp.eq.s32.totalorder %s16, 1
    %p158 = por %p156, %p157
    %p160 = scmp.ne.s32.totalorder %s143, %s159
    %p161 = scmp.eq.s32.totalorder %s16, 0
    %p162 = por %p160, %p161
    %p163 = scmp.le.s32.totalorder 1, %s10
    %p164 = scmp.lt.s32.totalorder %s10, 3
    %p165 = pnand %p163, %p164
    %p166 = pneg %p165
    // Predicated region
    $region9: #{_lambda_.28} parent=5 // pred_check
      _
    $region10: #{_lambda_.28} parent=5 // pred_check_branch
      %168 = sbr.rel (%p165) target = $region12
    $region11: #{_lambda_.28} parent=5 // pred_region
      %s169 = ssub.s32 %s10, 1
      // Predicated region
      $region13: #{_lambda_.28} parent=11 // pred_check
        %p170 = pneg %p127
      $region14: #{_lambda_.28} parent=11 // pred_check_branch
        %172 = sbr.rel (%p170) target = $region16
      $region15: #{_lambda_.28} parent=11 // pred_region
        _
      $region16: #{_lambda_.28} parent=11 // pred_fallthru
        _
    $region12: #{_lambda_.28} parent=5 // pred_fallthru
      _
    %p173 = scmp.lt.s32.totalorder %s10, 2
    // Predicated region
    $region17: #{_lambda_.28} parent=5 // pred_check
      %p174 = pneg %p173
    $region18: #{_lambda_.28} parent=5 // pred_check_branch
      %176 = sbr.rel (%p174) target = $region20
    $region19: #{_lambda_.28} parent=5 // pred_region
      // Predicated region
      $region21: #{_lambda_.28} parent=19 // pred_check
        %p177 = pneg %p44
      $region22: #{_lambda_.28} parent=19 // pred_check_branch
        %179 = sbr.rel (%p177) target = $region24
      $region23: #{_lambda_.28} parent=19 // pred_region
        %s180 = smul.u32 4, %s18
        %p181 = scmp.lt.s32.totalorder %s17, 1
        %s182 = scalar_select %p181, %s17, 1
        %p183 = scmp.lt.s32.totalorder %s180, 3
        %s184 = scalar_select %p183, %s180, 3
        %s185 = smul.addr %s182, 4
        %s186 = sadd.s32 %s184, %s185
        %s187 = smul.addr %s186, 4
        %s188 = scalar_lea.vmem %s0, %s187
        %s189 = smul.u32 4, %s18
      $region24: #{_lambda_.28} parent=19 // pred_fallthru
        _
      // Predicated region
      $region25: #{_lambda_.28} parent=19 // pred_check
        %p190 = pneg %p72
      $region26: #{_lambda_.28} parent=19 // pred_check_branch
        %192 = sbr.rel (%p190) target = $region28
      $region27: #{_lambda_.28} parent=19 // pred_region
        %s193 = smul.u32 4, %s18
        %p194 = scmp.lt.s32.totalorder %s17, 1
        %s195 = scalar_select %p194, %s17, 1
        %p196 = scmp.lt.s32.totalorder %s193, 3
        %s197 = scalar_select %p196, %s193, 3
        %s198 = smul.addr %s195, 4
        %s199 = sadd.s32 %s197, %s198
        %s200 = smul.addr %s199, 4
        %s201 = scalar_lea.vmem %s1, %s200
        %s202 = smul.u32 4, %s18
      $region28: #{_lambda_.28} parent=19 // pred_fallthru
        _
      // Predicated region
      $region29: #{_lambda_.28} parent=19 // pred_check
        %p203 = pneg %p100
      $region30: #{_lambda_.28} parent=19 // pred_check_branch
        %205 = sbr.rel (%p203) target = $region32
      $region31: #{_lambda_.28} parent=19 // pred_region
        %s206 = smul.u32 4, %s18
        %p207 = scmp.lt.s32.totalorder %s17, 1
        %s208 = scalar_select %p207, %s17, 1
        %p209 = scmp.lt.s32.totalorder %s206, 3
        %s210 = scalar_select %p209, %s206, 3
        %s211 = smul.addr %s208, 4
        %s212 = sadd.s32 %s210, %s211
        %s213 = smul.addr %s212, 4
        %s214 = scalar_lea.vmem %s2, %s213
        %s215 = smul.u32 4, %s18
      $region32: #{_lambda_.28} parent=19 // pred_fallthru
        _
    $region20: #{_lambda_.28} parent=5 // pred_fallthru
      _
    %p216 = scmp.le.s32.totalorder 1, %s10
    %p217 = scmp.lt.s32.totalorder %s10, 3
    %p218 = pnand %p216, %p217
    %p219 = pneg %p218
    // Predicated region
    $region33: #{_lambda_.28} parent=5 // pred_check
      _
    $region34: #{_lambda_.28} parent=5 // pred_check_branch
      %221 = sbr.rel (%p218) target = $region36
    $region35: #{_lambda_.28} parent=5 // pred_region
      %s222 = ssub.s32 %s10, 1
      %s223 = smul.u32 4, %s20
      %p224 = scmp.lt.s32.totalorder %s19, 1
      %s225 = scalar_select %p224, %s19, 1
      %p226 = scmp.lt.s32.totalorder %s223, 3
      %s227 = scalar_select %p226, %s223, 3
      %s228 = smul.addr %s225, 4
      %s229 = sadd.s32 %s227, %s228
      %s230 = smul.addr %s229, 4
      %s231 = scalar_lea.vmem %s0, %s230
      %p232 = pneg %p50
      %p233 = pneg %p47
      %s234 = smul.u32 4, %s20
      %p235 = scmp.lt.s32.totalorder %s19, 1
      %s236 = scalar_select %p235, %s19, 1
      %p237 = scmp.lt.s32.totalorder %s234, 3
      %s238 = scalar_select %p237, %s234, 3
      %s239 = smul.addr %s236, 4
      %s240 = sadd.s32 %s238, %s239
      %s241 = smul.addr %s240, 4
      %s242 = scalar_lea.vmem %s1, %s241
      %p243 = pneg %p78
      %p244 = pneg %p75
      %s245 = smul.u32 4, %s20
      %p246 = scmp.lt.s32.totalorder %s19, 1
      %s247 = scalar_select %p246, %s19, 1
      %p248 = scmp.lt.s32.totalorder %s245, 3
      %s249 = scalar_select %p248, %s245, 3
      %s250 = smul.addr %s247, 4
      %s251 = sadd.s32 %s249, %s250
      %s252 = smul.addr %s251, 4
      %s253 = scalar_lea.vmem %s2, %s252
      %p254 = pneg %p106
      %p255 = pneg %p103
      %p256 = pneg %p127
      %p257 = pneg %p124
      %p258 = pneg %p155
      %p259 = pneg %p152
      %s260 = smul.u32 4, %s20
      %p261 = scmp.lt.s32.totalorder %s19, 1
      %s262 = scalar_select %p261, %s19, 1
      %p263 = scmp.lt.s32.totalorder %s260, 3
      %s264 = scalar_select %p263, %s260, 3
      %s265 = smul.addr %s262, 4
      %s266 = sadd.s32 %s264, %s265
      %s267 = smul.addr %s266, 2
      %s268 = scalar_lea.vmem %s4, %s267
      %s269 = smul.u32 4, %s20
      %p270 = scmp.lt.s32.totalorder %s19, 1
      %s271 = scalar_select %p270, %s19, 1
      %p272 = scmp.lt.s32.totalorder %s269, 3
      %s273 = scalar_select %p272, %s269, 3
      %s274 = smul.addr %s271, 4
      %s275 = sadd.s32 %s273, %s274
      %s276 = smul.addr %s275, 4
      %s277 = scalar_lea.vmem %s0, %s276
      %s278 = smul.u32 4, %s20
      %s279 = smul.u32 4, %s20
      %p280 = scmp.lt.s32.totalorder %s19, 1
      %s281 = scalar_select %p280, %s19, 1
      %p282 = scmp.lt.s32.totalorder %s279, 3
      %s283 = scalar_select %p282, %s279, 3
      %s284 = smul.addr %s281, 4
      %s285 = sadd.s32 %s283, %s284
      %s286 = smul.addr %s285, 4
      %s287 = scalar_lea.vmem %s1, %s286
      %s288 = smul.u32 4, %s20
      %s289 = smul.u32 4, %s20
      %p290 = scmp.lt.s32.totalorder %s19, 1
      %s291 = scalar_select %p290, %s19, 1
      %p292 = scmp.lt.s32.totalorder %s289, 3
      %s293 = scalar_select %p292, %s289, 3
      %s294 = smul.addr %s291, 4
      %s295 = sadd.s32 %s293, %s294
      %s296 = smul.addr %s295, 4
      %s297 = scalar_lea.vmem %s2, %s296
      %s298 = smul.u32 4, %s20
      %s299 = smul.u32 4, %s20
      %p300 = scmp.lt.s32.totalorder %s19, 1
      %s301 = scalar_select %p300, %s19, 1
      %p302 = scmp.lt.s32.totalorder %s299, 3
      %s303 = scalar_select %p302, %s299, 3
      %s304 = smul.addr %s301, 4
      %s305 = sadd.s32 %s303, %s304
      %s306 = smul.addr %s305, 2
      %s307 = scalar_lea.vmem %s4, %s306
      %s308 = smul.u32 4, %s20
      %v310 = vld [vmem:[%s277] sm:$0x7]
      %v311 = vld [vmem:[%s277 + $0x4] sm:$0x7]
      %v312 = vld [vmem:[%s277 + $0x8] sm:$0x7]
      %v313 = vld [vmem:[%s277 + $0xc] sm:$0x7]
      %v314 = vld [vmem:[%s3] sm:$0xf]
      %v315 = vld [vmem:[%s3 + $0x4] sm:$0xf]
      %v321 = vunpack.c.l.s4 1983009808
      %v322 = vunpack.c.0.s8 %v321
      %v323 = vlaneseq
      %v324 = vshrl.u32 %v323, 7
      %v325 = vsub.s32 %v322, %v324
      %v326 = vrot.slane %v310, %v325
      %v327 = vcombine.high %v326, %v326
      %v329 = vunpack.c.l.s4 1983009808
      %v330 = vunpack.c.0.s8 %v329
      %v331 = vlaneseq
      %v332 = vshrl.u32 %v331, 7
      %v333 = vsub.s32 %v330, %v332
      %v334 = vrot.slane %v311, %v333
      %v335 = vcombine.high %v334, %v334
      %v337 = vunpack.c.l.s4 1983009808
      %v338 = vunpack.c.0.s8 %v337
      %v339 = vlaneseq
      %v340 = vshrl.u32 %v339, 7
      %v341 = vsub.s32 %v338, %v340
      %v342 = vrot.slane %v312, %v341
      %v343 = vcombine.high %v342, %v342
      %v345 = vunpack.c.l.s4 1983009808
      %v346 = vunpack.c.0.s8 %v345
      %v347 = vlaneseq
      %v348 = vshrl.u32 %v347, 7
      %v349 = vsub.s32 %v346, %v348
      %v350 = vrot.slane %v313, %v349
      %v351 = vcombine.high %v350, %v350
      %vm352 = vsmask.f32 1280
      %vm353 = vsmask.f32 3336
      %vm354 = vmor %vm352, %vm353
      %vm355 = vsmask.f32 5392
      %vm356 = vmor %vm354, %vm355
      %vm357 = vsmask.f32 7448
      %vm358 = vmor %vm356, %vm357
      %v360 = vshrl.u32 %v326, 16
      %v362 = vrot.slane %v360, 6
      %v363 = vshll.u32 %v326, 16
      %v365 = vrot.slane %v363, 7
      %v366 = vor.u32 %v362, %v365
      %v367 = vrot.slane %v366, 2
      %v369 = vshll.u32 %v327, 16
      %v371 = vrot.slane %v369, 7
      %v372 = vsel %vm358, %v367, %v371
      %v374 = vshrl.u32 %v334, 16
      %v376 = vrot.slane %v374, 6
      %v377 = vshll.u32 %v334, 16
      %v379 = vrot.slane %v377, 7
      %v380 = vor.u32 %v376, %v379
      %v381 = vrot.slane %v380, 2
      %v383 = vshll.u32 %v335, 16
      %v385 = vrot.slane %v383, 7
      %v386 = vsel %vm358, %v381, %v385
      %v388 = vshrl.u32 %v342, 16
      %v390 = vrot.slane %v388, 6
      %v391 = vshll.u32 %v342, 16
      %v393 = vrot.slane %v391, 7
      %v394 = vor.u32 %v390, %v393
      %v395 = vrot.slane %v394, 2
      %v397 = vshll.u32 %v343, 16
      %v399 = vrot.slane %v397, 7
      %v400 = vsel %vm358, %v395, %v399
      %v402 = vshrl.u32 %v350, 16
      %v404 = vrot.slane %v402, 6
      %v405 = vshll.u32 %v350, 16
      %v407 = vrot.slane %v405, 7
      %v408 = vor.u32 %v404, %v407
      %v409 = vrot.slane %v408, 2
      %v411 = vshll.u32 %v351, 16
      %v413 = vrot.slane %v411, 7
      %v414 = vsel %vm358, %v409, %v413
      %s415 = scalar_lea.vmem %s3, 8
      %v416 = vld [vmem:[%s415] sm:$0xf]
      %v417 = vld [vmem:[%s415 + $0x4] sm:$0xf]
      %v418 = vcombine.low %v372, %v386
      %v419 = vcombine.low %v400, %v414
      %v421 = vunpack.c.l.s4 1983009808
      %v422 = vunpack.c.0.s8 %v421
      %v423 = vlaneseq
      %v424 = vshrl.u32 %v423, 7
      %v425 = vsub.s32 %v422, %v424
      %v426 = vrot.slane %v418, %v425
      %v428 = vunpack.c.l.s4 1983009808
      %v429 = vunpack.c.0.s8 %v428
      %v430 = vlaneseq
      %v431 = vshrl.u32 %v430, 7
      %v432 = vsub.s32 %v429, %v431
      %v433 = vrot.slane %v419, %v432
      %v434 = vcombine.low %v426, %v433
      %v437 = vunpack.c.l.b16 %v416
      %v438 = vunpack.c.l.b16 %v417
      %v439 = vpack.c.b16 %v438, %v437
      %vm441 = vcmask 130048
      %v443 = vsel %vm441, %v434, 0
      %445 = vmatprep.subr.bf16.mxu0 0
      %446 = vmatpush1.bf16.msra.mxu0 0
      %447 = vmatprep.subr.bf16.mxu0 0
      %448 = vmatpush1.bf16.msra.mxu0 0
      %449 = vmatprep.subr.bf16.mxu0 0
      %450 = vmatpush1.bf16.msra.mxu0 0
      %451 = vmatprep.subr.bf16.mxu0 0
      %452 = vmatpush1.bf16.msra.mxu0 0
      %453 = vmatprep.subr.bf16.mxu0 0
      %454 = vmatpush1.bf16.msra.mxu0 0
      %455 = vmatprep.subr.bf16.mxu0 0
      %456 = vmatpush1.bf16.msra.mxu0 0
      %457 = vmatprep.subr.bf16.mxu0 0
      %458 = vmatpush1.bf16.msra.mxu0 0
      %459 = vmatprep.subr.bf16.mxu0 0
      %460 = vmatpush1.bf16.msra.mxu0 %v439
      %461 = vmatprep.subr.bf16.mxu0 0
      %462 = vmatpush2.bf16.msra.mxu0 0
      %463 = vmatprep.subr.bf16.mxu0 0
      %464 = vmatpush2.bf16.msra.mxu0 0
      %465 = vmatprep.subr.bf16.mxu0 0
      %466 = vmatpush2.bf16.msra.mxu0 0
      %467 = vmatprep.subr.bf16.mxu0 0
      %468 = vmatpush2.bf16.msra.mxu0 0
      %469 = vmatprep.subr.bf16.mxu0 0
      %470 = vmatpush2.bf16.msra.mxu0 0
      %471 = vmatprep.subr.bf16.mxu0 0
      %472 = vmatpush2.bf16.msra.mxu0 0
      %473 = vmatprep.subr.bf16.mxu0 0
      %474 = vmatpush2.bf16.msra.mxu0 0
      %475 = vmatprep.subr.bf16.mxu0 0
      %476 = vmatpush2.bf16.msra.mxu0 0
      %477 = vmatprep.mubr.bf16.mxu0 0
      %478 = vmatmul.mubr.bf16.gmra.mxu0 %v443
      %v479 = vpop.f32.mrf.mxu0
      %v480 = vadd.f32 0.0, %v479
      %v481 = vpop.f32.mrf.mxu0
      %v482 = vpop.f32.mrf.mxu0
      %v483 = vadd.f32 0.0, %v482
      %v484 = vpop.f32.mrf.mxu0
      %485 = vdwg.mxu0
      %v486 = vcombine.low %v310, %v311
      %v487 = vcombine.low %v312, %v313
      %v489 = vunpack.c.l.s4 1983009808
      %v490 = vunpack.c.0.s8 %v489
      %v491 = vlaneseq
      %v492 = vshrl.u32 %v491, 7
      %v493 = vsub.s32 %v490, %v492
      %v494 = vrot.slane %v486, %v493
      %v496 = vunpack.c.l.s4 1983009808
      %v497 = vunpack.c.0.s8 %v496
      %v498 = vlaneseq
      %v499 = vshrl.u32 %v498, 7
      %v500 = vsub.s32 %v497, %v499
      %v501 = vrot.slane %v487, %v500
      %v502 = vcombine.low %v494, %v501
      %v505 = vunpack.c.l.b16 %v314
      %v506 = vunpack.c.l.b16 %v315
      %v507 = vpack.c.b16 %v506, %v505
      %v510 = vsel %vm441, %v502, 0
      %512 = vmatprep.subr.bf16.mxu0 0
      %513 = vmatpush1.bf16.msra.mxu0 0
      %514 = vmatprep.subr.bf16.mxu0 0
      %515 = vmatpush1.bf16.msra.mxu0 0
      %516 = vmatprep.subr.bf16.mxu0 0
      %517 = vmatpush1.bf16.msra.mxu0 0
      %518 = vmatprep.subr.bf16.mxu0 0
      %519 = vmatpush1.bf16.msra.mxu0 0
      %520 = vmatprep.subr.bf16.mxu0 0
      %521 = vmatpush1.bf16.msra.mxu0 0
      %522 = vmatprep.subr.bf16.mxu0 0
      %523 = vmatpush1.bf16.msra.mxu0 0
      %524 = vmatprep.subr.bf16.mxu0 0
      %525 = vmatpush1.bf16.msra.mxu0 0
      %526 = vmatprep.subr.bf16.mxu0 0
      %527 = vmatpush1.bf16.msra.mxu0 %v507
      %528 = vmatprep.subr.bf16.mxu0 0
      %529 = vmatpush2.bf16.msra.mxu0 0
      %530 = vmatprep.subr.bf16.mxu0 0
      %531 = vmatpush2.bf16.msra.mxu0 0
      %532 = vmatprep.subr.bf16.mxu0 0
      %533 = vmatpush2.bf16.msra.mxu0 0
      %534 = vmatprep.subr.bf16.mxu0 0
      %535 = vmatpush2.bf16.msra.mxu0 0
      %536 = vmatprep.subr.bf16.mxu0 0
      %537 = vmatpush2.bf16.msra.mxu0 0
      %538 = vmatprep.subr.bf16.mxu0 0
      %539 = vmatpush2.bf16.msra.mxu0 0
      %540 = vmatprep.subr.bf16.mxu0 0
      %541 = vmatpush2.bf16.msra.mxu0 0
      %542 = vmatprep.subr.bf16.mxu0 0
      %543 = vmatpush2.bf16.msra.mxu0 0
      %544 = vmatprep.mubr.bf16.mxu0 0
      %545 = vmatmul.mubr.bf16.gmra.mxu0 %v510
      %v546 = vpop.f32.mrf.mxu0
      %v547 = vadd.f32 %v480, %v546
      %v548 = vpop.f32.mrf.mxu0
      %v549 = vpop.f32.mrf.mxu0
      %v550 = vadd.f32 %v483, %v549
      %v551 = vpop.f32.mrf.mxu0
      %552 = vdwg.mxu0
      %vm553 = vcmask 1040384
      %vm554 = vcmask 1042434
      %vm555 = vmor %vm553, %vm554
      %vm556 = vcmask 1044484
      %vm557 = vmor %vm555, %vm556
      %vm558 = vcmask 1046534
      %vm559 = vmor %vm557, %vm558
      %v560 = vrot.slane %v326, 7
      %v561 = vrot.slane %v560, 2
      %v562 = vrot.slane %v327, 7
      %v563 = vsel %vm559, %v561, %v562
      %v564 = vrot.slane %v334, 7
      %v565 = vrot.slane %v564, 2
      %v566 = vrot.slane %v335, 7
      %v567 = vsel %vm559, %v565, %v566
      %v568 = vrot.slane %v342, 7
      %v569 = vrot.slane %v568, 2
      %v570 = vrot.slane %v343, 7
      %v571 = vsel %vm559, %v569, %v570
      %v572 = vrot.slane %v350, 7
      %v573 = vrot.slane %v572, 2
      %v574 = vrot.slane %v351, 7
      %v575 = vsel %vm559, %v573, %v574
      %s576 = scalar_lea.vmem %s3, 16
      %v577 = vld [vmem:[%s576] sm:$0xf]
      %v578 = vld [vmem:[%s576 + $0x4] sm:$0xf]
      %v579 = vcombine.low %v563, %v567
      %v580 = vcombine.low %v571, %v575
      %v582 = vunpack.c.l.s4 1983009808
      %v583 = vunpack.c.0.s8 %v582
      %v584 = vlaneseq
      %v585 = vshrl.u32 %v584, 7
      %v586 = vsub.s32 %v583, %v585
      %v587 = vrot.slane %v579, %v586
      %v589 = vunpack.c.l.s4 1983009808
      %v590 = vunpack.c.0.s8 %v589
      %v591 = vlaneseq
      %v592 = vshrl.u32 %v591, 7
      %v593 = vsub.s32 %v590, %v592
      %v594 = vrot.slane %v580, %v593
      %v595 = vcombine.low %v587, %v594
      %v598 = vunpack.c.l.b16 %v577
      %v599 = vunpack.c.l.b16 %v578
      %v600 = vpack.c.b16 %v599, %v598
      %v603 = vsel %vm441, %v595, 0
      %605 = vmatprep.subr.bf16.mxu0 0
      %606 = vmatpush1.bf16.msra.mxu0 0
      %607 = vmatprep.subr.bf16.mxu0 0
      %608 = vmatpush1.bf16.msra.mxu0 0
      %609 = vmatprep.subr.bf16.mxu0 0
      %610 = vmatpush1.bf16.msra.mxu0 0
      %611 = vmatprep.subr.bf16.mxu0 0
      %612 = vmatpush1.bf16.msra.mxu0 0
      %613 = vmatprep.subr.bf16.mxu0 0
      %614 = vmatpush1.bf16.msra.mxu0 0
      %615 = vmatprep.subr.bf16.mxu0 0
      %616 = vmatpush1.bf16.msra.mxu0 0
      %617 = vmatprep.subr.bf16.mxu0 0
      %618 = vmatpush1.bf16.msra.mxu0 0
      %619 = vmatprep.subr.bf16.mxu0 0
      %620 = vmatpush1.bf16.msra.mxu0 %v600
      %621 = vmatprep.subr.bf16.mxu0 0
      %622 = vmatpush2.bf16.msra.mxu0 0
      %623 = vmatprep.subr.bf16.mxu0 0
      %624 = vmatpush2.bf16.msra.mxu0 0
      %625 = vmatprep.subr.bf16.mxu0 0
      %626 = vmatpush2.bf16.msra.mxu0 0
      %627 = vmatprep.subr.bf16.mxu0 0
      %628 = vmatpush2.bf16.msra.mxu0 0
      %629 = vmatprep.subr.bf16.mxu0 0
      %630 = vmatpush2.bf16.msra.mxu0 0
      %631 = vmatprep.subr.bf16.mxu0 0
      %632 = vmatpush2.bf16.msra.mxu0 0
      %633 = vmatprep.subr.bf16.mxu0 0
      %634 = vmatpush2.bf16.msra.mxu0 0
      %635 = vmatprep.subr.bf16.mxu0 0
      %636 = vmatpush2.bf16.msra.mxu0 0
      %637 = vmatprep.mubr.bf16.mxu0 0
      %638 = vmatmul.mubr.bf16.gmra.mxu0 %v603
      %v639 = vpop.f32.mrf.mxu0
      %v640 = vadd.f32 0.0, %v639
      %v641 = vpop.f32.mrf.mxu0
      %v642 = vpop.f32.mrf.mxu0
      %v643 = vadd.f32 0.0, %v642
      %v644 = vpop.f32.mrf.mxu0
      %645 = vdwg.mxu0
      %v646 = vadd.f32 %v547, %v640
      %v647 = vadd.f32 %v550, %v643
      %v648 = vld [vmem:[%s287] sm:$0x7]
      %v649 = vld [vmem:[%s287 + $0x4] sm:$0x7]
      %v650 = vld [vmem:[%s287 + $0x8] sm:$0x7]
      %v651 = vld [vmem:[%s287 + $0xc] sm:$0x7]
      %s652 = scalar_lea.vmem %s3, 24
      %v653 = vld [vmem:[%s652] sm:$0xf]
      %v654 = vld [vmem:[%s652 + $0x4] sm:$0xf]
      %v659 = vcombine.low %v648, %v649
      %v660 = vcombine.low %v650, %v651
      %v662 = vunpack.c.l.s4 1983009808
      %v663 = vunpack.c.0.s8 %v662
      %v664 = vlaneseq
      %v665 = vshrl.u32 %v664, 7
      %v666 = vsub.s32 %v663, %v665
      %v667 = vrot.slane %v659, %v666
      %v669 = vunpack.c.l.s4 1983009808
      %v670 = vunpack.c.0.s8 %v669
      %v671 = vlaneseq
      %v672 = vshrl.u32 %v671, 7
      %v673 = vsub.s32 %v670, %v672
      %v674 = vrot.slane %v660, %v673
      %v675 = vcombine.low %v667, %v674
      %v678 = vunpack.c.l.b16 %v653
      %v679 = vunpack.c.l.b16 %v654
      %v680 = vpack.c.b16 %v679, %v678
      %v683 = vsel %vm441, %v675, 0
      %685 = vmatprep.subr.bf16.mxu0 0
      %686 = vmatpush1.bf16.msra.mxu0 0
      %687 = vmatprep.subr.bf16.mxu0 0
      %688 = vmatpush1.bf16.msra.mxu0 0
      %689 = vmatprep.subr.bf16.mxu0 0
      %690 = vmatpush1.bf16.msra.mxu0 0
      %691 = vmatprep.subr.bf16.mxu0 0
      %692 = vmatpush1.bf16.msra.mxu0 0
      %693 = vmatprep.subr.bf16.mxu0 0
      %694 = vmatpush1.bf16.msra.mxu0 0
      %695 = vmatprep.subr.bf16.mxu0 0
      %696 = vmatpush1.bf16.msra.mxu0 0
      %697 = vmatprep.subr.bf16.mxu0 0
      %698 = vmatpush1.bf16.msra.mxu0 0
      %699 = vmatprep.subr.bf16.mxu0 0
      %700 = vmatpush1.bf16.msra.mxu0 %v680
      %701 = vmatprep.subr.bf16.mxu0 0
      %702 = vmatpush2.bf16.msra.mxu0 0
      %703 = vmatprep.subr.bf16.mxu0 0
      %704 = vmatpush2.bf16.msra.mxu0 0
      %705 = vmatprep.subr.bf16.mxu0 0
      %706 = vmatpush2.bf16.msra.mxu0 0
      %707 = vmatprep.subr.bf16.mxu0 0
      %708 = vmatpush2.bf16.msra.mxu0 0
      %709 = vmatprep.subr.bf16.mxu0 0
      %710 = vmatpush2.bf16.msra.mxu0 0
      %711 = vmatprep.subr.bf16.mxu0 0
      %712 = vmatpush2.bf16.msra.mxu0 0
      %713 = vmatprep.subr.bf16.mxu0 0
      %714 = vmatpush2.bf16.msra.mxu0 0
      %715 = vmatprep.subr.bf16.mxu0 0
      %716 = vmatpush2.bf16.msra.mxu0 0
      %717 = vmatprep.mubr.bf16.mxu0 0
      %718 = vmatmul.mubr.bf16.gmra.mxu0 %v683
      %v719 = vpop.f32.mrf.mxu0
      %v720 = vadd.f32 0.0, %v719
      %v721 = vpop.f32.mrf.mxu0
      %v722 = vpop.f32.mrf.mxu0
      %v723 = vadd.f32 0.0, %v722
      %v724 = vpop.f32.mrf.mxu0
      %725 = vdwg.mxu0
      %v726 = vadd.f32 %v646, %v720
      %v727 = vadd.f32 %v647, %v723
      %v729 = vunpack.c.l.s4 1983009808
      %v730 = vunpack.c.0.s8 %v729
      %v731 = vlaneseq
      %v732 = vshrl.u32 %v731, 7
      %v733 = vsub.s32 %v730, %v732
      %v734 = vrot.slane %v648, %v733
      %v735 = vcombine.high %v734, %v734
      %v737 = vunpack.c.l.s4 1983009808
      %v738 = vunpack.c.0.s8 %v737
      %v739 = vlaneseq
      %v740 = vshrl.u32 %v739, 7
      %v741 = vsub.s32 %v738, %v740
      %v742 = vrot.slane %v649, %v741
      %v743 = vcombine.high %v742, %v742
      %v745 = vunpack.c.l.s4 1983009808
      %v746 = vunpack.c.0.s8 %v745
      %v747 = vlaneseq
      %v748 = vshrl.u32 %v747, 7
      %v749 = vsub.s32 %v746, %v748
      %v750 = vrot.slane %v650, %v749
      %v751 = vcombine.high %v750, %v750
      %v753 = vunpack.c.l.s4 1983009808
      %v754 = vunpack.c.0.s8 %v753
      %v755 = vlaneseq
      %v756 = vshrl.u32 %v755, 7
      %v757 = vsub.s32 %v754, %v756
      %v758 = vrot.slane %v651, %v757
      %v759 = vcombine.high %v758, %v758
      %v761 = vshrl.u32 %v734, 16
      %v763 = vrot.slane %v761, 6
      %v764 = vshll.u32 %v734, 16
      %v766 = vrot.slane %v764, 7
      %v767 = vor.u32 %v763, %v766
      %v768 = vrot.slane %v767, 2
      %v770 = vshll.u32 %v735, 16
      %v772 = vrot.slane %v770, 7
      %v773 = vsel %vm358, %v768, %v772
      %v775 = vshrl.u32 %v742, 16
      %v777 = vrot.slane %v775, 6
      %v778 = vshll.u32 %v742, 16
      %v780 = vrot.slane %v778, 7
      %v781 = vor.u32 %v777, %v780
      %v782 = vrot.slane %v781, 2
      %v784 = vshll.u32 %v743, 16
      %v786 = vrot.slane %v784, 7
      %v787 = vsel %vm358, %v782, %v786
      %v789 = vshrl.u32 %v750, 16
      %v791 = vrot.slane %v789, 6
      %v792 = vshll.u32 %v750, 16
      %v794 = vrot.slane %v792, 7
      %v795 = vor.u32 %v791, %v794
      %v796 = vrot.slane %v795, 2
      %v798 = vshll.u32 %v751, 16
      %v800 = vrot.slane %v798, 7
      %v801 = vsel %vm358, %v796, %v800
      %v803 = vshrl.u32 %v758, 16
      %v805 = vrot.slane %v803, 6
      %v806 = vshll.u32 %v758, 16
      %v808 = vrot.slane %v806, 7
      %v809 = vor.u32 %v805, %v808
      %v810 = vrot.slane %v809, 2
      %v812 = vshll.u32 %v759, 16
      %v814 = vrot.slane %v812, 7
      %v815 = vsel %vm358, %v810, %v814
      %s816 = scalar_lea.vmem %s3, 32
      %v817 = vld [vmem:[%s816] sm:$0xf]
      %v818 = vld [vmem:[%s816 + $0x4] sm:$0xf]
      %v819 = vcombine.low %v773, %v787
      %v820 = vcombine.low %v801, %v815
      %v822 = vunpack.c.l.s4 1983009808
      %v823 = vunpack.c.0.s8 %v822
      %v824 = vlaneseq
      %v825 = vshrl.u32 %v824, 7
      %v826 = vsub.s32 %v823, %v825
      %v827 = vrot.slane %v819, %v826
      %v829 = vunpack.c.l.s4 1983009808
      %v830 = vunpack.c.0.s8 %v829
      %v831 = vlaneseq
      %v832 = vshrl.u32 %v831, 7
      %v833 = vsub.s32 %v830, %v832
      %v834 = vrot.slane %v820, %v833
      %v835 = vcombine.low %v827, %v834
      %v838 = vunpack.c.l.b16 %v817
      %v839 = vunpack.c.l.b16 %v818
      %v840 = vpack.c.b16 %v839, %v838
      %v843 = vsel %vm441, %v835, 0
      %845 = vmatprep.subr.bf16.mxu0 0
      %846 = vmatpush1.bf16.msra.mxu0 0
      %847 = vmatprep.subr.bf16.mxu0 0
      %848 = vmatpush1.bf16.msra.mxu0 0
      %849 = vmatprep.subr.bf16.mxu0 0
      %850 = vmatpush1.bf16.msra.mxu0 0
      %851 = vmatprep.subr.bf16.mxu0 0
      %852 = vmatpush1.bf16.msra.mxu0 0
      %853 = vmatprep.subr.bf16.mxu0 0
      %854 = vmatpush1.bf16.msra.mxu0 0
      %855 = vmatprep.subr.bf16.mxu0 0
      %856 = vmatpush1.bf16.msra.mxu0 0
      %857 = vmatprep.subr.bf16.mxu0 0
      %858 = vmatpush1.bf16.msra.mxu0 0
      %859 = vmatprep.subr.bf16.mxu0 0
      %860 = vmatpush1.bf16.msra.mxu0 %v840
      %861 = vmatprep.subr.bf16.mxu0 0
      %862 = vmatpush2.bf16.msra.mxu0 0
      %863 = vmatprep.subr.bf16.mxu0 0
      %864 = vmatpush2.bf16.msra.mxu0 0
      %865 = vmatprep.subr.bf16.mxu0 0
      %866 = vmatpush2.bf16.msra.mxu0 0
      %867 = vmatprep.subr.bf16.mxu0 0
      %868 = vmatpush2.bf16.msra.mxu0 0
      %869 = vmatprep.subr.bf16.mxu0 0
      %870 = vmatpush2.bf16.msra.mxu0 0
      %871 = vmatprep.subr.bf16.mxu0 0
      %872 = vmatpush2.bf16.msra.mxu0 0
      %873 = vmatprep.subr.bf16.mxu0 0
      %874 = vmatpush2.bf16.msra.mxu0 0
      %875 = vmatprep.subr.bf16.mxu0 0
      %876 = vmatpush2.bf16.msra.mxu0 0
      %877 = vmatprep.mubr.bf16.mxu0 0
      %878 = vmatmul.mubr.bf16.gmra.mxu0 %v843
      %v879 = vpop.f32.mrf.mxu0
      %v880 = vadd.f32 0.0, %v879
      %v881 = vpop.f32.mrf.mxu0
      %v882 = vpop.f32.mrf.mxu0
      %v883 = vadd.f32 0.0, %v882
      %v884 = vpop.f32.mrf.mxu0
      %885 = vdwg.mxu0
      %v886 = vadd.f32 %v726, %v880
      %v887 = vadd.f32 %v727, %v883
      %v888 = vrot.slane %v734, 7
      %v889 = vrot.slane %v888, 2
      %v890 = vrot.slane %v735, 7
      %v891 = vsel %vm559, %v889, %v890
      %v892 = vrot.slane %v742, 7
      %v893 = vrot.slane %v892, 2
      %v894 = vrot.slane %v743, 7
      %v895 = vsel %vm559, %v893, %v894
      %v896 = vrot.slane %v750, 7
      %v897 = vrot.slane %v896, 2
      %v898 = vrot.slane %v751, 7
      %v899 = vsel %vm559, %v897, %v898
      %v900 = vrot.slane %v758, 7
      %v901 = vrot.slane %v900, 2
      %v902 = vrot.slane %v759, 7
      %v903 = vsel %vm559, %v901, %v902
      %s904 = scalar_lea.vmem %s3, 40
      %v905 = vld [vmem:[%s904] sm:$0xf]
      %v906 = vld [vmem:[%s904 + $0x4] sm:$0xf]
      %v907 = vcombine.low %v891, %v895
      %v908 = vcombine.low %v899, %v903
      %v910 = vunpack.c.l.s4 1983009808
      %v911 = vunpack.c.0.s8 %v910
      %v912 = vlaneseq
      %v913 = vshrl.u32 %v912, 7
      %v914 = vsub.s32 %v911, %v913
      %v915 = vrot.slane %v907, %v914
      %v917 = vunpack.c.l.s4 1983009808
      %v918 = vunpack.c.0.s8 %v917
      %v919 = vlaneseq
      %v920 = vshrl.u32 %v919, 7
      %v921 = vsub.s32 %v918, %v920
      %v922 = vrot.slane %v908, %v921
      %v923 = vcombine.low %v915, %v922
      %v926 = vunpack.c.l.b16 %v905
      %v927 = vunpack.c.l.b16 %v906
      %v928 = vpack.c.b16 %v927, %v926
      %v931 = vsel %vm441, %v923, 0
      %933 = vmatprep.subr.bf16.mxu0 0
      %934 = vmatpush1.bf16.msra.mxu0 0
      %935 = vmatprep.subr.bf16.mxu0 0
      %936 = vmatpush1.bf16.msra.mxu0 0
      %937 = vmatprep.subr.bf16.mxu0 0
      %938 = vmatpush1.bf16.msra.mxu0 0
      %939 = vmatprep.subr.bf16.mxu0 0
      %940 = vmatpush1.bf16.msra.mxu0 0
      %941 = vmatprep.subr.bf16.mxu0 0
      %942 = vmatpush1.bf16.msra.mxu0 0
      %943 = vmatprep.subr.bf16.mxu0 0
      %944 = vmatpush1.bf16.msra.mxu0 0
      %945 = vmatprep.subr.bf16.mxu0 0
      %946 = vmatpush1.bf16.msra.mxu0 0
      %947 = vmatprep.subr.bf16.mxu0 0
      %948 = vmatpush1.bf16.msra.mxu0 %v928
      %949 = vmatprep.subr.bf16.mxu0 0
      %950 = vmatpush2.bf16.msra.mxu0 0
      %951 = vmatprep.subr.bf16.mxu0 0
      %952 = vmatpush2.bf16.msra.mxu0 0
      %953 = vmatprep.subr.bf16.mxu0 0
      %954 = vmatpush2.bf16.msra.mxu0 0
      %955 = vmatprep.subr.bf16.mxu0 0
      %956 = vmatpush2.bf16.msra.mxu0 0
      %957 = vmatprep.subr.bf16.mxu0 0
      %958 = vmatpush2.bf16.msra.mxu0 0
      %959 = vmatprep.subr.bf16.mxu0 0
      %960 = vmatpush2.bf16.msra.mxu0 0
      %961 = vmatprep.subr.bf16.mxu0 0
      %962 = vmatpush2.bf16.msra.mxu0 0
      %963 = vmatprep.subr.bf16.mxu0 0
      %964 = vmatpush2.bf16.msra.mxu0 0
      %965 = vmatprep.mubr.bf16.mxu0 0
      %966 = vmatmul.mubr.bf16.gmra.mxu0 %v931
      %v967 = vpop.f32.mrf.mxu0
      %v968 = vadd.f32 0.0, %v967
      %v969 = vpop.f32.mrf.mxu0
      %v970 = vpop.f32.mrf.mxu0
      %v971 = vadd.f32 0.0, %v970
      %v972 = vpop.f32.mrf.mxu0
      %973 = vdwg.mxu0
      %v974 = vadd.f32 %v886, %v968
      %v975 = vadd.f32 %v887, %v971
      %v976 = vld [vmem:[%s297] sm:$0x7]
      %v977 = vld [vmem:[%s297 + $0x4] sm:$0x7]
      %v978 = vld [vmem:[%s297 + $0x8] sm:$0x7]
      %v979 = vld [vmem:[%s297 + $0xc] sm:$0x7]
      %s980 = scalar_lea.vmem %s3, 48
      %v981 = vld [vmem:[%s980] sm:$0xf]
      %v982 = vld [vmem:[%s980 + $0x4] sm:$0xf]
      %v987 = vcombine.low %v976, %v977
      %v988 = vcombine.low %v978, %v979
      %v990 = vunpack.c.l.s4 1983009808
      %v991 = vunpack.c.0.s8 %v990
      %v992 = vlaneseq
      %v993 = vshrl.u32 %v992, 7
      %v994 = vsub.s32 %v991, %v993
      %v995 = vrot.slane %v987, %v994
      %v997 = vunpack.c.l.s4 1983009808
      %v998 = vunpack.c.0.s8 %v997
      %v999 = vlaneseq
      %v1000 = vshrl.u32 %v999, 7
      %v1001 = vsub.s32 %v998, %v1000
      %v1002 = vrot.slane %v988, %v1001
      %v1003 = vcombine.low %v995, %v1002
      %v1006 = vunpack.c.l.b16 %v981
      %v1007 = vunpack.c.l.b16 %v982
      %v1008 = vpack.c.b16 %v1007, %v1006
      %v1011 = vsel %vm441, %v1003, 0
      %1013 = vmatprep.subr.bf16.mxu0 0
      %1014 = vmatpush1.bf16.msra.mxu0 0
      %1015 = vmatprep.subr.bf16.mxu0 0
      %1016 = vmatpush1.bf16.msra.mxu0 0
      %1017 = vmatprep.subr.bf16.mxu0 0
      %1018 = vmatpush1.bf16.msra.mxu0 0
      %1019 = vmatprep.subr.bf16.mxu0 0
      %1020 = vmatpush1.bf16.msra.mxu0 0
      %1021 = vmatprep.subr.bf16.mxu0 0
      %1022 = vmatpush1.bf16.msra.mxu0 0
      %1023 = vmatprep.subr.bf16.mxu0 0
      %1024 = vmatpush1.bf16.msra.mxu0 0
      %1025 = vmatprep.subr.bf16.mxu0 0
      %1026 = vmatpush1.bf16.msra.mxu0 0
      %1027 = vmatprep.subr.bf16.mxu0 0
      %1028 = vmatpush1.bf16.msra.mxu0 %v1008
      %1029 = vmatprep.subr.bf16.mxu0 0
      %1030 = vmatpush2.bf16.msra.mxu0 0
      %1031 = vmatprep.subr.bf16.mxu0 0
      %1032 = vmatpush2.bf16.msra.mxu0 0
      %1033 = vmatprep.subr.bf16.mxu0 0
      %1034 = vmatpush2.bf16.msra.mxu0 0
      %1035 = vmatprep.subr.bf16.mxu0 0
      %1036 = vmatpush2.bf16.msra.mxu0 0
      %1037 = vmatprep.subr.bf16.mxu0 0
      %1038 = vmatpush2.bf16.msra.mxu0 0
      %1039 = vmatprep.subr.bf16.mxu0 0
      %1040 = vmatpush2.bf16.msra.mxu0 0
      %1041 = vmatprep.subr.bf16.mxu0 0
      %1042 = vmatpush2.bf16.msra.mxu0 0
      %1043 = vmatprep.subr.bf16.mxu0 0
      %1044 = vmatpush2.bf16.msra.mxu0 0
      %1045 = vmatprep.mubr.bf16.mxu0 0
      %1046 = vmatmul.mubr.bf16.gmra.mxu0 %v1011
      %v1047 = vpop.f32.mrf.mxu0
      %v1048 = vadd.f32 0.0, %v1047
      %v1049 = vpop.f32.mrf.mxu0
      %v1050 = vpop.f32.mrf.mxu0
      %v1051 = vadd.f32 0.0, %v1050
      %v1052 = vpop.f32.mrf.mxu0
      %1053 = vdwg.mxu0
      %v1054 = vadd.f32 %v974, %v1048
      %v1055 = vadd.f32 %v975, %v1051
      %v1057 = vunpack.c.l.s4 1983009808
      %v1058 = vunpack.c.0.s8 %v1057
      %v1059 = vlaneseq
      %v1060 = vshrl.u32 %v1059, 7
      %v1061 = vsub.s32 %v1058, %v1060
      %v1062 = vrot.slane %v976, %v1061
      %v1063 = vcombine.high %v1062, %v1062
      %v1065 = vunpack.c.l.s4 1983009808
      %v1066 = vunpack.c.0.s8 %v1065
      %v1067 = vlaneseq
      %v1068 = vshrl.u32 %v1067, 7
      %v1069 = vsub.s32 %v1066, %v1068
      %v1070 = vrot.slane %v977, %v1069
      %v1071 = vcombine.high %v1070, %v1070
      %v1073 = vunpack.c.l.s4 1983009808
      %v1074 = vunpack.c.0.s8 %v1073
      %v1075 = vlaneseq
      %v1076 = vshrl.u32 %v1075, 7
      %v1077 = vsub.s32 %v1074, %v1076
      %v1078 = vrot.slane %v978, %v1077
      %v1079 = vcombine.high %v1078, %v1078
      %v1081 = vunpack.c.l.s4 1983009808
      %v1082 = vunpack.c.0.s8 %v1081
      %v1083 = vlaneseq
      %v1084 = vshrl.u32 %v1083, 7
      %v1085 = vsub.s32 %v1082, %v1084
      %v1086 = vrot.slane %v979, %v1085
      %v1087 = vcombine.high %v1086, %v1086
      %v1089 = vshrl.u32 %v1062, 16
      %v1091 = vrot.slane %v1089, 6
      %v1092 = vshll.u32 %v1062, 16
      %v1094 = vrot.slane %v1092, 7
      %v1095 = vor.u32 %v1091, %v1094
      %v1096 = vrot.slane %v1095, 2
      %v1098 = vshll.u32 %v1063, 16
      %v1100 = vrot.slane %v1098, 7
      %v1101 = vsel %vm358, %v1096, %v1100
      %v1103 = vshrl.u32 %v1070, 16
      %v1105 = vrot.slane %v1103, 6
      %v1106 = vshll.u32 %v1070, 16
      %v1108 = vrot.slane %v1106, 7
      %v1109 = vor.u32 %v1105, %v1108
      %v1110 = vrot.slane %v1109, 2
      %v1112 = vshll.u32 %v1071, 16
      %v1114 = vrot.slane %v1112, 7
      %v1115 = vsel %vm358, %v1110, %v1114
      %v1117 = vshrl.u32 %v1078, 16
      %v1119 = vrot.slane %v1117, 6
      %v1120 = vshll.u32 %v1078, 16
      %v1122 = vrot.slane %v1120, 7
      %v1123 = vor.u32 %v1119, %v1122
      %v1124 = vrot.slane %v1123, 2
      %v1126 = vshll.u32 %v1079, 16
      %v1128 = vrot.slane %v1126, 7
      %v1129 = vsel %vm358, %v1124, %v1128
      %v1131 = vshrl.u32 %v1086, 16
      %v1133 = vrot.slane %v1131, 6
      %v1134 = vshll.u32 %v1086, 16
      %v1136 = vrot.slane %v1134, 7
      %v1137 = vor.u32 %v1133, %v1136
      %v1138 = vrot.slane %v1137, 2
      %v1140 = vshll.u32 %v1087, 16
      %v1142 = vrot.slane %v1140, 7
      %v1143 = vsel %vm358, %v1138, %v1142
      %s1144 = scalar_lea.vmem %s3, 56
      %v1145 = vld [vmem:[%s1144] sm:$0xf]
      %v1146 = vld [vmem:[%s1144 + $0x4] sm:$0xf]
      %v1147 = vcombine.low %v1101, %v1115
      %v1148 = vcombine.low %v1129, %v1143
      %v1150 = vunpack.c.l.s4 1983009808
      %v1151 = vunpack.c.0.s8 %v1150
      %v1152 = vlaneseq
      %v1153 = vshrl.u32 %v1152, 7
      %v1154 = vsub.s32 %v1151, %v1153
      %v1155 = vrot.slane %v1147, %v1154
      %v1157 = vunpack.c.l.s4 1983009808
      %v1158 = vunpack.c.0.s8 %v1157
      %v1159 = vlaneseq
      %v1160 = vshrl.u32 %v1159, 7
      %v1161 = vsub.s32 %v1158, %v1160
      %v1162 = vrot.slane %v1148, %v1161
      %v1163 = vcombine.low %v1155, %v1162
      %v1166 = vunpack.c.l.b16 %v1145
      %v1167 = vunpack.c.l.b16 %v1146
      %v1168 = vpack.c.b16 %v1167, %v1166
      %v1171 = vsel %vm441, %v1163, 0
      %1173 = vmatprep.subr.bf16.mxu0 0
      %1174 = vmatpush1.bf16.msra.mxu0 0
      %1175 = vmatprep.subr.bf16.mxu0 0
      %1176 = vmatpush1.bf16.msra.mxu0 0
      %1177 = vmatprep.subr.bf16.mxu0 0
      %1178 = vmatpush1.bf16.msra.mxu0 0
      %1179 = vmatprep.subr.bf16.mxu0 0
      %1180 = vmatpush1.bf16.msra.mxu0 0
      %1181 = vmatprep.subr.bf16.mxu0 0
      %1182 = vmatpush1.bf16.msra.mxu0 0
      %1183 = vmatprep.subr.bf16.mxu0 0
      %1184 = vmatpush1.bf16.msra.mxu0 0
      %1185 = vmatprep.subr.bf16.mxu0 0
      %1186 = vmatpush1.bf16.msra.mxu0 0
      %1187 = vmatprep.subr.bf16.mxu0 0
      %1188 = vmatpush1.bf16.msra.mxu0 %v1168
      %1189 = vmatprep.subr.bf16.mxu0 0
      %1190 = vmatpush2.bf16.msra.mxu0 0
      %1191 = vmatprep.subr.bf16.mxu0 0
      %1192 = vmatpush2.bf16.msra.mxu0 0
      %1193 = vmatprep.subr.bf16.mxu0 0
      %1194 = vmatpush2.bf16.msra.mxu0 0
      %1195 = vmatprep.subr.bf16.mxu0 0
      %1196 = vmatpush2.bf16.msra.mxu0 0
      %1197 = vmatprep.subr.bf16.mxu0 0
      %1198 = vmatpush2.bf16.msra.mxu0 0
      %1199 = vmatprep.subr.bf16.mxu0 0
      %1200 = vmatpush2.bf16.msra.mxu0 0
      %1201 = vmatprep.subr.bf16.mxu0 0
      %1202 = vmatpush2.bf16.msra.mxu0 0
      %1203 = vmatprep.subr.bf16.mxu0 0
      %1204 = vmatpush2.bf16.msra.mxu0 0
      %1205 = vmatprep.mubr.bf16.mxu0 0
      %1206 = vmatmul.mubr.bf16.gmra.mxu0 %v1171
      %v1207 = vpop.f32.mrf.mxu0
      %v1208 = vadd.f32 0.0, %v1207
      %v1209 = vpop.f32.mrf.mxu0
      %v1210 = vpop.f32.mrf.mxu0
      %v1211 = vadd.f32 0.0, %v1210
      %v1212 = vpop.f32.mrf.mxu0
      %1213 = vdwg.mxu0
      %v1214 = vadd.f32 %v1054, %v1208
      %v1215 = vadd.f32 %v1055, %v1211
      %v1216 = vrot.slane %v1062, 7
      %v1217 = vrot.slane %v1216, 2
      %v1218 = vrot.slane %v1063, 7
      %v1219 = vsel %vm559, %v1217, %v1218
      %v1220 = vrot.slane %v1070, 7
      %v1221 = vrot.slane %v1220, 2
      %v1222 = vrot.slane %v1071, 7
      %v1223 = vsel %vm559, %v1221, %v1222
      %v1224 = vrot.slane %v1078, 7
      %v1225 = vrot.slane %v1224, 2
      %v1226 = vrot.slane %v1079, 7
      %v1227 = vsel %vm559, %v1225, %v1226
      %v1228 = vrot.slane %v1086, 7
      %v1229 = vrot.slane %v1228, 2
      %v1230 = vrot.slane %v1087, 7
      %v1231 = vsel %vm559, %v1229, %v1230
      %s1232 = scalar_lea.vmem %s3, 64
      %v1233 = vld [vmem:[%s1232] sm:$0xf]
      %v1234 = vld [vmem:[%s1232 + $0x4] sm:$0xf]
      %v1235 = vcombine.low %v1219, %v1223
      %v1236 = vcombine.low %v1227, %v1231
      %v1238 = vunpack.c.l.s4 1983009808
      %v1239 = vunpack.c.0.s8 %v1238
      %v1240 = vlaneseq
      %v1241 = vshrl.u32 %v1240, 7
      %v1242 = vsub.s32 %v1239, %v1241
      %v1243 = vrot.slane %v1235, %v1242
      %v1245 = vunpack.c.l.s4 1983009808
      %v1246 = vunpack.c.0.s8 %v1245
      %v1247 = vlaneseq
      %v1248 = vshrl.u32 %v1247, 7
      %v1249 = vsub.s32 %v1246, %v1248
      %v1250 = vrot.slane %v1236, %v1249
      %v1251 = vcombine.low %v1243, %v1250
      %v1254 = vunpack.c.l.b16 %v1233
      %v1255 = vunpack.c.l.b16 %v1234
      %v1256 = vpack.c.b16 %v1255, %v1254
      %v1259 = vsel %vm441, %v1251, 0
      %1261 = vmatprep.subr.bf16.mxu0 0
      %1262 = vmatpush1.bf16.msra.mxu0 0
      %1263 = vmatprep.subr.bf16.mxu0 0
      %1264 = vmatpush1.bf16.msra.mxu0 0
      %1265 = vmatprep.subr.bf16.mxu0 0
      %1266 = vmatpush1.bf16.msra.mxu0 0
      %1267 = vmatprep.subr.bf16.mxu0 0
      %1268 = vmatpush1.bf16.msra.mxu0 0
      %1269 = vmatprep.subr.bf16.mxu0 0
      %1270 = vmatpush1.bf16.msra.mxu0 0
      %1271 = vmatprep.subr.bf16.mxu0 0
      %1272 = vmatpush1.bf16.msra.mxu0 0
      %1273 = vmatprep.subr.bf16.mxu0 0
      %1274 = vmatpush1.bf16.msra.mxu0 0
      %1275 = vmatprep.subr.bf16.mxu0 0
      %1276 = vmatpush1.bf16.msra.mxu0 %v1256
      %1277 = vmatprep.subr.bf16.mxu0 0
      %1278 = vmatpush2.bf16.msra.mxu0 0
      %1279 = vmatprep.subr.bf16.mxu0 0
      %1280 = vmatpush2.bf16.msra.mxu0 0
      %1281 = vmatprep.subr.bf16.mxu0 0
      %1282 = vmatpush2.bf16.msra.mxu0 0
      %1283 = vmatprep.subr.bf16.mxu0 0
      %1284 = vmatpush2.bf16.msra.mxu0 0
      %1285 = vmatprep.subr.bf16.mxu0 0
      %1286 = vmatpush2.bf16.msra.mxu0 0
      %1287 = vmatprep.subr.bf16.mxu0 0
      %1288 = vmatpush2.bf16.msra.mxu0 0
      %1289 = vmatprep.subr.bf16.mxu0 0
      %1290 = vmatpush2.bf16.msra.mxu0 0
      %1291 = vmatprep.subr.bf16.mxu0 0
      %1292 = vmatpush2.bf16.msra.mxu0 0
      %1293 = vmatprep.mubr.bf16.mxu0 0
      %1294 = vmatmul.mubr.bf16.gmra.mxu0 %v1259
      %v1295 = vpop.f32.mrf.mxu0
      %v1296 = vadd.f32 0.0, %v1295
      %v1297 = vpop.f32.mrf.mxu0
      %v1298 = vpop.f32.mrf.mxu0
      %v1299 = vadd.f32 0.0, %v1298
      %v1300 = vpop.f32.mrf.mxu0
      %1301 = vdwg.mxu0
      %v1302 = vadd.f32 %v1214, %v1296
      %v1303 = vadd.f32 %v1215, %v1299
      %v1306 = vcombine.high %v1302, %v1302
      %v1307 = vcombine.high %v1303, %v1303
      %v1310 = vpack.c.bf16 %v1302, %v1302
      %v1311 = vpack.c.bf16 %v1306, %v1306
      %v1312 = vpack.c.bf16 %v1303, %v1303
      %v1313 = vpack.c.bf16 %v1307, %v1307
      %vm1314 = vcmask 123904
      %1315 = vst.msk [vmem:[%s307] sm:$0x3] %vm1314, %v1310
      %1316 = vst.msk [vmem:[%s307 + $0x2] sm:$0x3] %vm1314, %v1311
      %1317 = vst.msk [vmem:[%s307 + $0x4] sm:$0x3] %vm1314, %v1312
      %1318 = vst.msk [vmem:[%s307 + $0x6] sm:$0x3] %vm1314, %v1313
      %s1319 = smul.u32 4, %s20
      %p1320 = scmp.lt.s32.totalorder %s19, 1
      %s1321 = scalar_select %p1320, %s19, 1
      %p1322 = scmp.lt.s32.totalorder %s1319, 3
      %s1323 = scalar_select %p1322, %s1319, 3
      %s1324 = smul.addr %s1321, 4
      %s1325 = sadd.s32 %s1323, %s1324
      %s1326 = smul.addr %s1325, 2
      %s1327 = scalar_lea.vmem %s4, %s1326
      // Predicated region
      $region37: #{_lambda_.28} parent=35 // pred_check
        %p1328 = pneg %p152
      $region38: #{_lambda_.28} parent=35 // pred_check_branch
        %1330 = sbr.rel (%p1328) target = $region40
      $region39: #{_lambda_.28} parent=35 // pred_region
        %s1331 = smul.u32 4, %s20
      $region40: #{_lambda_.28} parent=35 // pred_fallthru
        _
    $region36: #{_lambda_.28} parent=5 // pred_fallthru
      _
    %p1332 = scmp.le.s32.totalorder 2, %s10
    // Predicated region
    $region41: #{_lambda_.28} parent=5 // pred_check
      %p1333 = pneg %p1332
    $region42: #{_lambda_.28} parent=5 // pred_check_branch
      %1335 = sbr.rel (%p1333) target = $region44
    $region43: #{_lambda_.28} parent=5 // pred_region
      %s1336 = ssub.s32 %s10, 2
      // Predicated region
      $region45: #{_lambda_.28} parent=43 // pred_check
        %p1337 = pneg %p158
      $region46: #{_lambda_.28} parent=43 // pred_check_branch
        %1339 = sbr.rel (%p1337) target = $region48
      $region47: #{_lambda_.28} parent=43 // pred_region
        %s1340 = smul.u32 4, %s22
        %p1341 = scmp.lt.s32.totalorder %s21, 1
        %s1342 = scalar_select %p1341, %s21, 1
        %p1343 = scmp.lt.s32.totalorder %s1340, 3
        %s1344 = scalar_select %p1343, %s1340, 3
        %s1345 = smul.addr %s1342, 4
        %s1346 = sadd.s32 %s1344, %s1345
        %s1347 = smul.addr %s1346, 2
        %s1348 = scalar_lea.vmem %s4, %s1347
      $region48: #{_lambda_.28} parent=43 // pred_fallthru
        _
    $region44: #{_lambda_.28} parent=5 // pred_fallthru
      _
  $region6: #{_lambda_.28} parent=0 // loop_footer
    %s14 = sadd.s32 1, %s10
  $region7: #{_lambda_.28} parent=0 // loop_footer_branch
    %9 = sbr.rel target = $region3
  $region8: #{_lambda_.28} parent=0 // loop_exit
    _

</llo_original>
